<compile_context>
chip_gen: v7x
topology: tpu7x:2x2x1
jax: 0.10.0
libtpu: 0.0.40
codegen_flags: <defaults>
</compile_context>

<pallas_src>
import functools

import jax
import jax.numpy as jnp
from jax.experimental import pallas as pl
from jax.experimental.pallas import tpu as pltpu

N_FFT = 255
HOP = 4
N_BINS = N_FFT // 2 + 1   # 128
EPS_LN = 1e-6             # TorchLayerNorm eps (added to std, not var)
LEAKY = 0.2               # nn.LeakyReLU(0.2)


def _round_up(x, m):
    return ((x + m - 1) // m) * m


def _pick_tm(M, cap=512):
    """M tile: one tight tile for small M, else largest of 512/256/128 with small waste."""
    m16 = _round_up(M, 16)            # 16: sublane multiple for bf16 operands
    if m16 <= cap:
        return m16
    tm = cap
    while tm > 128 and (_round_up(M, tm) - M) * 8 > M:   # >12.5% padded-row waste
        tm //= 2
    return tm


def _pick_tk(Kp, cap=1024):
    """Largest multiple of 128 that divides Kp and is <= cap."""
    nb = Kp // 128
    best = 1
    for d in range(1, nb + 1):
        if nb % d == 0 and d * 128 <= cap:
            best = d
    return best * 128


# --------------------------------------------------------------------------
# STFT (log magnitude):  librosa.stft(n_fft=255, hop_length=4, center=True,
# window='hann') -> abs -> log(.+1e-10).  Framing/reflect-pad is glue; the
# windowed-DFT matmul + abs + log run inside a tiled Pallas kernel.
# TODO(synk): reference computes the STFT with librosa in float64 on CPU; here it is
#             bf16-operand / f32-accumulate with pad_mode='reflect' and a DFT matmul.
# --------------------------------------------------------------------------
def _stft_kernel(f_ref, d_ref, o_ref):
    # single fused matmul: columns [0,128) are the cos (real) part, [128,256) the sin.
    y = jnp.dot(f_ref[...], d_ref[...], preferred_element_type=jnp.float32)
    re = y[:, :N_BINS]
    im = y[:, N_BINS:]
    mag = jnp.sqrt(re * re + im * im)
    o_ref[...] = jnp.log(mag + 1e-10)


def stft_log_mag(x):
    """x: (B, C, T) float32  ->  (B, C, 128, n_frames)  (NCHW spectrogram)."""
    B, C, T = x.shape
    pad = N_FFT // 2
    xp = jnp.pad(x, ((0, 0), (0, 0), (pad, pad)), mode="reflect")
    Lp = T + 2 * pad
    F = 1 + (Lp - N_FFT) // HOP
    starts = jnp.arange(F) * HOP
    idx = starts[:, None] + jnp.arange(N_FFT)[None, :]        # (F, N_FFT)
    # TODO(synk): this frame gather still materializes a ~64x blowup of the signal in
    #             HBM (emitted in bf16 to halve bytes); a full fix would DMA overlapping
    #             windows from an HBM (pl.ANY) ref inside the kernel.
    frames = xp[:, :, idx].astype(jnp.bfloat16)               # (B, C, F, N_FFT)
    frames = frames.reshape(B * C * F, N_FFT)

    n = jnp.arange(N_FFT, dtype=jnp.float32)
    k = jnp.arange(N_BINS, dtype=jnp.float32)                 # 128 bins
    win = 0.5 - 0.5 * jnp.cos(2.0 * jnp.pi * n / N_FFT)       # periodic hann
    ang = 2.0 * jnp.pi * n[:, None] * k[None, :] / N_FFT
    cos_m = win[:, None] * jnp.cos(ang)
    sin_m = -win[:, None] * jnp.sin(ang)
    dft = jnp.concatenate([cos_m, sin_m], axis=1)             # (N_FFT, 256)

    M, K = frames.shape
    Kp = _round_up(K, 128)                                    # 256
    tm = _pick_tm(M)
    Mp = _round_up(M, tm)

    frames_p = jnp.zeros((Mp, Kp), jnp.bfloat16).at[:M, :K].set(frames)
    dft_p = jnp.zeros((Kp, 2 * N_BINS), jnp.float32).at[:K].set(dft).astype(jnp.bfloat16)

    out = pl.pallas_call(
        _stft_kernel,
        out_shape=jax.ShapeDtypeStruct((Mp, N_BINS), jnp.float32),
        grid_spec=pltpu.PrefetchScalarGridSpec(
            num_scalar_prefetch=0,
            grid=(Mp // tm,),
            in_specs=[
                pl.BlockSpec((tm, Kp), lambda i: (i, 0)),
                pl.BlockSpec((Kp, 2 * N_BINS), lambda i: (0, 0)),
            ],
            out_specs=pl.BlockSpec((tm, N_BINS), lambda i: (i, 0)),
        ),
        compiler_params=pltpu.CompilerParams(
            dimension_semantics=("parallel",)),
    )(frames_p, dft_p)

    spec = out[:M].reshape(B, C, F, N_BINS)        # (B, C, frames, freq)
    return jnp.transpose(spec, (0, 1, 3, 2))       # (B, C, freq, frames)


# --------------------------------------------------------------------------
# downsample block = Conv2d(k=7, s=2, p=3, bias=False)
#                    [+ TorchLayerNorm over channels] [+ LeakyReLU(0.2)]
# implemented as im2col (glue, bf16) + a fused Pallas matmul/accumulate/norm/act kernel.
# --------------------------------------------------------------------------
def _make_plain_conv_kernel(do_act, final_sigmoid):
    def kernel(p_ref, w_ref, o_ref, acc_ref):
        kk = pl.program_id(1)

        @pl.when(kk == 0)
        def _():
            acc_ref[...] = jnp.zeros_like(acc_ref)

        acc_ref[...] += jnp.dot(p_ref[...], w_ref[...],
                                preferred_element_type=jnp.float32)

        @pl.when(kk == pl.num_programs(1) - 1)
        def _():
            x = acc_ref[...]
            if do_act:
                x = jnp.where(x > 0, x, LEAKY * x)
            if final_sigmoid:
                x = jax.nn.sigmoid(x)
            o_ref[...] = x

    return kernel


def _make_norm_conv_kernel(n_valid):
    inv_nm1 = 1.0 / (n_valid - 1)   # TorchLayerNorm uses unbiased std (torch.std default)

    def kernel(p_ref, w_ref, g_ref, b_ref, o_ref, acc_ref):
        kk = pl.program_id(1)

        @pl.when(kk == 0)
        def _():
            acc_ref[...] = jnp.zeros_like(acc_ref)

        acc_ref[...] += jnp.dot(p_ref[...], w_ref[...],
                                preferred_element_type=jnp.float32)

        @pl.when(kk == pl.num_programs(1) - 1)
        def _():
            x = acc_ref[...]
            # TorchLayerNorm: per-pixel mean/unbiased-std over the channel (lane) dim.
            mean = jnp.mean(x, axis=-1, keepdims=True)
            var = jnp.sum((x - mean) ** 2, axis=-1, keepdims=True) * inv_nm1
            std = jnp.sqrt(var)
            inv = pl.reciprocal(std + EPS_LN, approx=True)     # EUP, off the VALU path
            x = g_ref[...] * (x - mean) * inv + b_ref[...]
            x = jnp.where(x > 0, x, LEAKY * x)
            o_ref[...] = x

    return kernel


def conv2d_block(x_nhwc, w_oihw, gamma=None, beta=None, *, stride=2, pad=3,
                 do_norm=False, do_act=True, final_sigmoid=False):
    B, H, W, Cin = x_nhwc.shape
    Cout, Cin_w, kh, kw = w_oihw.shape
    assert Cin == Cin_w
    xp = jnp.pad(x_nhwc, ((0, 0), (pad, pad), (pad, pad), (0, 0)))
    Ho = (H + 2 * pad - kh) // stride + 1
    Wo = (W + 2 * pad - kw) // stride + 1

    # TODO(synk): im2col is still materialized in HBM (49x blowup of the layer input),
    #             but now in bf16; the full fix is a grid axis over the 49 taps with
    #             in-kernel strided DMA of the (stride-decomposed) input windows.
    cols = []
    for dh in range(kh):
        for dw in range(kw):
            cols.append(xp[:, dh:dh + (Ho - 1) * stride + 1:stride,
                           dw:dw + (Wo - 1) * stride + 1:stride, :])
    patches = jnp.stack(cols, axis=3)                        # (B,Ho,Wo,kh*kw,Cin)
    P = patches.reshape(B * Ho * Wo, kh * kw * Cin).astype(jnp.bfloat16)
    Wm = jnp.transpose(w_oihw, (2, 3, 1, 0)).reshape(kh * kw * Cin, Cout)

    M, K = P.shape
    N = Cout
    Kp = _round_up(K, 128)
    Np = _round_up(N, 128)
    tk = _pick_tk(Kp)
    tm = _pick_tm(M)
    Mp = _round_up(M, tm)
    if do_norm:
        assert Np == N, "channel layer-norm expects lane-aligned channel counts"

    Pp = jnp.zeros((Mp, Kp), jnp.bfloat16).at[:M, :K].set(P)
    Wp = jnp.zeros((Kp, Np), jnp.float32).at[:K, :N].set(Wm).astype(jnp.bfloat16)

    in_specs = [
        pl.BlockSpec((tm, tk), lambda i, k: (i, k)),
        # TODO(synk): W is re-streamed per M tile; for v7x a bf16 full-extent resident
        #             copy (with raised vmem_limit_bytes) would cut that traffic.
        pl.BlockSpec((tk, Np), lambda i, k: (k, 0)),
    ]
    args = [Pp, Wp]
    if do_norm:
        g = jnp.zeros((1, Np), jnp.float32).at[0, :N].set(gamma)
        b = jnp.zeros((1, Np), jnp.float32).at[0, :N].set(beta)
        in_specs += [pl.BlockSpec((1, Np), lambda i, k: (0, 0)),
                     pl.BlockSpec((1, Np), lambda i, k: (0, 0))]
        args += [g, b]
        kernel = _make_norm_conv_kernel(N)
    else:
        kernel = _make_plain_conv_kernel(do_act, final_sigmoid)

    out = pl.pallas_call(
        kernel,
        out_shape=jax.ShapeDtypeStruct((Mp, Np), jnp.float32),
        grid_spec=pltpu.PrefetchScalarGridSpec(
            num_scalar_prefetch=0,
            grid=(Mp // tm, Kp // tk),
            in_specs=in_specs,
            out_specs=pl.BlockSpec((tm, Np), lambda i, k: (i, 0)),
            scratch_shapes=[pltpu.VMEM((tm, Np), jnp.float32)],
        ),
        compiler_params=pltpu.CompilerParams(
            dimension_semantics=("parallel", "arbitrary")),
    )(*args)

    return out[:M, :N].reshape(B, Ho, Wo, Cout)


# --------------------------------------------------------------------------
# FrequencyDiscriminator (out_1d=False, final_sigmoid configurable)
# --------------------------------------------------------------------------
def init_params(key, in_channels):
    ks = jax.random.split(key, 5)

    def w(k, cout, cin, kh=7, kw=7):
        # matches nn.init.normal_(m.weight, 0.0, 0.02) done in the reference main()
        return (0.02 * jax.random.normal(k, (cout, cin, kh, kw))).astype(jnp.float32)

    return {
        "w1": w(ks[0], 64, in_channels),
        "w2": w(ks[1], 128, 64),  "g2": jnp.ones((128,), jnp.float32), "b2": jnp.zeros((128,), jnp.float32),
        "w3": w(ks[2], 256, 128), "g3": jnp.ones((256,), jnp.float32), "b3": jnp.zeros((256,), jnp.float32),
        "w4": w(ks[3], 512, 256), "g4": jnp.ones((512,), jnp.float32), "b4": jnp.zeros((512,), jnp.float32),
        "w_out": w(ks[4], in_channels, 512),
    }


def frequency_discriminator(params, x, final_sigmoid=False):
    """x: (B, IN_CHANNELS, T) raw signal (same input as the PyTorch forward)."""
    spec = stft_log_mag(x)                        # (B, C, 128, F)  NCHW
    h = jnp.transpose(spec, (0, 2, 3, 1))         # -> NHWC for the conv stack
    h = conv2d_block(h, params["w1"], do_norm=False, do_act=True)                        # layer1
    h = conv2d_block(h, params["w2"], params["g2"], params["b2"], do_norm=True)          # layer2
    h = conv2d_block(h, params["w3"], params["g3"], params["b3"], do_norm=True)          # layer3
    h = conv2d_block(h, params["w4"], params["g4"], params["b4"], do_norm=True)          # layer4
    h = conv2d_block(h, params["w_out"], do_norm=False, do_act=False,
                     final_sigmoid=final_sigmoid)                                        # out_layer
    return jnp.transpose(h, (0, 3, 1, 2))         # back to NCHW


if __name__ == "__main__":
    key = jax.random.PRNGKey(0)
    k_x, k_p = jax.random.split(key)
    B, C, T = 2, 2, 132                           # small shapes; C == IN_CHANNELS
    x = jax.random.normal(k_x, (B, C, T), dtype=jnp.float32)
    params = init_params(k_p, C)

    fn = jax.jit(functools.partial(frequency_discriminator, final_sigmoid=False))
    out = fn(params, x)
    out = jax.block_until_ready(out)
    assert out.shape[0] == B and out.shape[1] == C and out.ndim == 4
    assert bool(jnp.all(jnp.isfinite(out)))
    print("KERNEL_OK")
</pallas_src>

<mosaic_0001>
module attributes {stable_mosaic.version = 11 : i64} {
  func.func @_stft_kernel(%arg0: i32, %arg1: memref<144x256xbf16, #tpu.memory_space<vmem>>, %arg2: memref<256x256xbf16, #tpu.memory_space<vmem>>, %arg3: memref<144x128xf32, #tpu.memory_space<vmem>>) attributes {dimension_semantics = [#tpu.dimension_semantics<parallel>], iteration_bounds = array<i64: 1>, scalar_prefetch = 0 : i64, scratch_operands = 0 : i64, tpu.core_type = #tpu.core_type<tc>, window_params = [{transform_indices = @transform_0, window_bounds = array<i64: 144, 256>}, {pipeline_mode = #tpu.pipeline_mode<synchronous>, transform_indices = @transform_1, window_bounds = array<i64: 256, 256>}, {transform_indices = @transform_2, window_bounds = array<i64: 144, 128>}]} {
    %c0 = arith.constant 0 : index
    %c0_0 = arith.constant 0 : index
    %0 = vector.load %arg1[%c0, %c0_0] : memref<144x256xbf16, #tpu.memory_space<vmem>>, vector<144x256xbf16>
    %c0_1 = arith.constant 0 : index
    %c0_2 = arith.constant 0 : index
    %1 = vector.load %arg2[%c0_1, %c0_2] : memref<256x256xbf16, #tpu.memory_space<vmem>>, vector<256x256xbf16>
    %cst = arith.constant dense<0.000000e+00> : vector<144x256xf32>
    %2 = tpu.matmul %0, %1, %cst {dimension_numbers = #tpu.dot_dimension_numbers<[1], [0], [0], [1], [0, 0, 1, 1], [], []>} : vector<144x256xbf16>, vector<256x256xbf16>, vector<144x256xf32> -> vector<144x256xf32>
    %3 = vector.extract_strided_slice %2 {offsets = [0, 0], sizes = [144, 128], strides = [1, 1]} : vector<144x256xf32> to vector<144x128xf32>
    %4 = vector.extract_strided_slice %2 {offsets = [0, 128], sizes = [144, 128], strides = [1, 1]} : vector<144x256xf32> to vector<144x128xf32>
    %5 = arith.mulf %3, %3 : vector<144x128xf32>
    %6 = arith.mulf %4, %4 : vector<144x128xf32>
    %7 = arith.addf %5, %6 : vector<144x128xf32>
    %8 = math.sqrt %7 : vector<144x128xf32>
    %cst_3 = arith.constant 1.000000e-10 : f32
    %9 = vector.broadcast %cst_3 : f32 to vector<144x128xf32>
    %10 = arith.addf %8, %9 : vector<144x128xf32>
    %11 = math.log %10 : vector<144x128xf32>
    %c0_4 = arith.constant 0 : index
    %c0_5 = arith.constant 0 : index
    %12 = vector.load %arg3[%c0_4, %c0_5] : memref<144x128xf32, #tpu.memory_space<vmem>>, vector<144x128xf32>
    tpu.vector_store %arg3[%c0_4, %c0_5], %11 {strides = array<i32>} : memref<144x128xf32, #tpu.memory_space<vmem>>, vector<144x128xf32>,
    return
  }
  func.func @transform_0(%arg0: i32) -> (i32, i32) {
    %c0_i32 = arith.constant 0 : i32
    %c0_i32_0 = arith.constant 0 : i32
    return %arg0, %c0_i32 : i32, i32
  }
  func.func @transform_1(%arg0: i32) -> (i32, i32) {
    %c0_i32 = arith.constant 0 : i32
    %c0_i32_0 = arith.constant 0 : i32
    %c0_i32_1 = arith.constant 0 : i32
    return %c0_i32, %c0_i32_0 : i32, i32
  }
  func.func @transform_2(%arg0: i32) -> (i32, i32) {
    %c0_i32 = arith.constant 0 : i32
    %c0_i32_0 = arith.constant 0 : i32
    return %arg0, %c0_i32 : i32, i32
  }
}

module attributes {stable_mosaic.version = 11 : i64} {
  func.func @kernel(%arg0: i32, %arg1: i32, %arg2: memref<256x128xbf16, #tpu.memory_space<vmem>>, %arg3: memref<128x128xbf16, #tpu.memory_space<vmem>>, %arg4: memref<256x128xf32, #tpu.memory_space<vmem>>, %arg5: memref<256x128xf32, #tpu.memory_space<vmem>>) attributes {dimension_semantics = [#tpu.dimension_semantics<parallel>, #tpu.dimension_semantics<arbitrary>], iteration_bounds = array<i64: 9, 1>, scalar_prefetch = 0 : i64, scratch_operands = 1 : i64, tpu.core_type = #tpu.core_type<tc>, window_params = [{transform_indices = @transform_0, window_bounds = array<i64: 256, 128>}, {transform_indices = @transform_1, window_bounds = array<i64: 128, 128>}, {transform_indices = @transform_2, window_bounds = array<i64: 256, 128>}]} {
    %c0_i32 = arith.constant 0 : i32
    %0 = arith.cmpi eq, %arg1, %c0_i32 : i32
    %1 = arith.extui %0 : i1 to i32
    %c0_i32_0 = arith.constant 0 : i32
    %2 = arith.cmpi ne, %1, %c0_i32_0 : i32
    scf.if %2 {
      %cst_10 = arith.constant 0.000000e+00 : f32
      %12 = vector.broadcast %cst_10 : f32 to vector<256x128xf32>
      %c0_11 = arith.constant 0 : index
      %c0_12 = arith.constant 0 : index
      %13 = vector.load %arg5[%c0_11, %c0_12] : memref<256x128xf32, #tpu.memory_space<vmem>>, vector<256x128xf32>
      tpu.vector_store %arg5[%c0_11, %c0_12], %12 {strides = array<i32>} : memref<256x128xf32, #tpu.memory_space<vmem>>, vector<256x128xf32>,
    } else {
    }
    %c0 = arith.constant 0 : index
    %c0_1 = arith.constant 0 : index
    %3 = vector.load %arg5[%c0, %c0_1] : memref<256x128xf32, #tpu.memory_space<vmem>>, vector<256x128xf32>
    %c0_2 = arith.constant 0 : index
    %c0_3 = arith.constant 0 : index
    %4 = vector.load %arg2[%c0_2, %c0_3] : memref<256x128xbf16, #tpu.memory_space<vmem>>, vector<256x128xbf16>
    %c0_4 = arith.constant 0 : index
    %c0_5 = arith.constant 0 : index
    %5 = vector.load %arg3[%c0_4, %c0_5] : memref<128x128xbf16, #tpu.memory_space<vmem>>, vector<128x128xbf16>
    %cst = arith.constant dense<0.000000e+00> : vector<256x128xf32>
    %6 = tpu.matmul %4, %5, %cst {dimension_numbers = #tpu.dot_dimension_numbers<[1], [0], [0], [1], [0, 0, 1, 1], [], []>} : vector<256x128xbf16>, vector<128x128xbf16>, vector<256x128xf32> -> vector<256x128xf32>
    %7 = arith.addf %3, %6 : vector<256x128xf32>
    %c0_6 = arith.constant 0 : index
    %c0_7 = arith.constant 0 : index
    %8 = vector.load %arg5[%c0_6, %c0_7] : memref<256x128xf32, #tpu.memory_space<vmem>>, vector<256x128xf32>
    tpu.vector_store %arg5[%c0_6, %c0_7], %7 {strides = array<i32>} : memref<256x128xf32, #tpu.memory_space<vmem>>, vector<256x128xf32>,
    %c0_i32_8 = arith.constant 0 : i32
    %9 = arith.cmpi eq, %arg1, %c0_i32_8 : i32
    %10 = arith.extui %9 : i1 to i32
    %c0_i32_9 = arith.constant 0 : i32
    %11 = arith.cmpi ne, %10, %c0_i32_9 : i32
    scf.if %11 {
      %c0_10 = arith.constant 0 : index
      %c0_11 = arith.constant 0 : index
      %12 = vector.load %arg5[%c0_10, %c0_11] : memref<256x128xf32, #tpu.memory_space<vmem>>, vector<256x128xf32>
      %cst_12 = arith.constant 0.000000e+00 : f32
      %13 = vector.broadcast %cst_12 : f32 to vector<256x128xf32>
      %14 = arith.cmpf ogt, %12, %13 : vector<256x128xf32>
      %cst_13 = arith.constant 2.000000e-01 : f32
      %15 = vector.broadcast %cst_13 : f32 to vector<256x128xf32>
      %16 = arith.mulf %15, %12 : vector<256x128xf32>
      %17 = arith.select %14, %12, %16 : vector<256x128xi1>, vector<256x128xf32>
      %c0_14 = arith.constant 0 : index
      %c0_15 = arith.constant 0 : index
      %18 = vector.load %arg4[%c0_14, %c0_15] : memref<256x128xf32, #tpu.memory_space<vmem>>, vector<256x128xf32>
      tpu.vector_store %arg4[%c0_14, %c0_15], %17 {strides = array<i32>} : memref<256x128xf32, #tpu.memory_space<vmem>>, vector<256x128xf32>,
    } else {
    }
    return
  }
  func.func @transform_0(%arg0: i32, %arg1: i32) -> (i32, i32) {
    %c0_i32 = arith.constant 0 : i32
    return %arg0, %arg1 : i32, i32
  }
  func.func @transform_1(%arg0: i32, %arg1: i32) -> (i32, i32) {
    %c0_i32 = arith.constant 0 : i32
    %c0_i32_0 = arith.constant 0 : i32
    return %arg1, %c0_i32 : i32, i32
  }
  func.func @transform_2(%arg0: i32, %arg1: i32) -> (i32, i32) {
    %c0_i32 = arith.constant 0 : i32
    %c0_i32_0 = arith.constant 0 : i32
    return %arg0, %c0_i32 : i32, i32
  }
}

module attributes {stable_mosaic.version = 11 : i64} {
  func.func @kernel(%arg0: i32, %arg1: i32, %arg2: memref<128x640xbf16, #tpu.memory_space<vmem>>, %arg3: memref<640x128xbf16, #tpu.memory_space<vmem>>, %arg4: memref<1x128xf32, #tpu.memory_space<vmem>>, %arg5: memref<1x128xf32, #tpu.memory_space<vmem>>, %arg6: memref<128x128xf32, #tpu.memory_space<vmem>>, %arg7: memref<128x128xf32, #tpu.memory_space<vmem>>) attributes {dimension_semantics = [#tpu.dimension_semantics<parallel>, #tpu.dimension_semantics<arbitrary>], iteration_bounds = array<i64: 5, 5>, scalar_prefetch = 0 : i64, scratch_operands = 1 : i64, tpu.core_type = #tpu.core_type<tc>, window_params = [{transform_indices = @transform_0, window_bounds = array<i64: 128, 640>}, {transform_indices = @transform_1, window_bounds = array<i64: 640, 128>}, {pipeline_mode = #tpu.pipeline_mode<synchronous>, transform_indices = @transform_2, window_bounds = array<i64: 1, 128>}, {pipeline_mode = #tpu.pipeline_mode<synchronous>, transform_indices = @transform_3, window_bounds = array<i64: 1, 128>}, {transform_indices = @transform_4, window_bounds = array<i64: 128, 128>}]} {
    %c0_i32 = arith.constant 0 : i32
    %0 = arith.cmpi eq, %arg1, %c0_i32 : i32
    %1 = arith.extui %0 : i1 to i32
    %c0_i32_0 = arith.constant 0 : i32
    %2 = arith.cmpi ne, %1, %c0_i32_0 : i32
    scf.if %2 {
      %cst_9 = arith.constant 0.000000e+00 : f32
      %12 = vector.broadcast %cst_9 : f32 to vector<128x128xf32>
      %c0_10 = arith.constant 0 : index
      %c0_11 = arith.constant 0 : index
      %13 = vector.load %arg7[%c0_10, %c0_11] : memref<128x128xf32, #tpu.memory_space<vmem>>, vector<128x128xf32>
      tpu.vector_store %arg7[%c0_10, %c0_11], %12 {strides = array<i32>} : memref<128x128xf32, #tpu.memory_space<vmem>>, vector<128x128xf32>,
    } else {
    }
    %c0 = arith.constant 0 : index
    %c0_1 = arith.constant 0 : index
    %3 = vector.load %arg7[%c0, %c0_1] : memref<128x128xf32, #tpu.memory_space<vmem>>, vector<128x128xf32>
    %c0_2 = arith.constant 0 : index
    %c0_3 = arith.constant 0 : index
    %4 = vector.load %arg2[%c0_2, %c0_3] : memref<128x640xbf16, #tpu.memory_space<vmem>>, vector<128x640xbf16>
    %c0_4 = arith.constant 0 : index
    %c0_5 = arith.constant 0 : index
    %5 = vector.load %arg3[%c0_4, %c0_5] : memref<640x128xbf16, #tpu.memory_space<vmem>>, vector<640x128xbf16>
    %cst = arith.constant dense<0.000000e+00> : vector<128x128xf32>
    %6 = tpu.matmul %4, %5, %cst {dimension_numbers = #tpu.dot_dimension_numbers<[1], [0], [0], [1], [0, 0, 1, 1], [], []>} : vector<128x640xbf16>, vector<640x128xbf16>, vector<128x128xf32> -> vector<128x128xf32>
    %7 = arith.addf %3, %6 : vector<128x128xf32>
    %c0_6 = arith.constant 0 : index
    %c0_7 = arith.constant 0 : index
    %8 = vector.load %arg7[%c0_6, %c0_7] : memref<128x128xf32, #tpu.memory_space<vmem>>, vector<128x128xf32>
    tpu.vector_store %arg7[%c0_6, %c0_7], %7 {strides = array<i32>} : memref<128x128xf32, #tpu.memory_space<vmem>>, vector<128x128xf32>,
    %c4_i32 = arith.constant 4 : i32
    %9 = arith.cmpi eq, %arg1, %c4_i32 : i32
    %10 = arith.extui %9 : i1 to i32
    %c0_i32_8 = arith.constant 0 : i32
    %11 = arith.cmpi ne, %10, %c0_i32_8 : i32
    scf.if %11 {
      %c0_9 = arith.constant 0 : index
      %c0_10 = arith.constant 0 : index
      %12 = vector.load %arg7[%c0_9, %c0_10] : memref<128x128xf32, #tpu.memory_space<vmem>>, vector<128x128xf32>
      %cst_11 = arith.constant dense<0.000000e+00> : vector<128xf32>
      %13 = vector.multi_reduction <add>, %12, %cst_11 [1] : vector<128x128xf32> to vector<128xf32>
      %14 = vector.shape_cast %13 : vector<128xf32> to vector<128x1xf32>
      %cst_12 = arith.constant 1.280000e+02 : f32
      %15 = vector.broadcast %cst_12 : f32 to vector<128x1xf32>
      %16 = arith.divf %14, %15 : vector<128x1xf32>
      %17 = vector.broadcast %16 : vector<128x1xf32> to vector<128x128xf32>
      %18 = arith.subf %12, %17 : vector<128x128xf32>
      %19 = arith.mulf %18, %18 : vector<128x128xf32>
      %cst_13 = arith.constant dense<0.000000e+00> : vector<128xf32>
      %20 = vector.multi_reduction <add>, %19, %cst_13 [1] : vector<128x128xf32> to vector<128xf32>
      %21 = vector.shape_cast %20 : vector<128xf32> to vector<128x1xf32>
      %cst_14 = arith.constant 0.00787401571 : f32
      %22 = vector.broadcast %cst_14 : f32 to vector<128x1xf32>
      %23 = arith.mulf %21, %22 : vector<128x1xf32>
      %24 = math.sqrt %23 : vector<128x1xf32>
      %cst_15 = arith.constant 9.99999997E-7 : f32
      %25 = vector.broadcast %cst_15 : f32 to vector<128x1xf32>
      %26 = arith.addf %24, %25 : vector<128x1xf32>
      %27 = tpu.reciprocal %26 {approx = true} : vector<128x1xf32> -> vector<128x1xf32>
      %c0_16 = arith.constant 0 : index
      %c0_17 = arith.constant 0 : index
      %28 = vector.load %arg4[%c0_16, %c0_17] : memref<1x128xf32, #tpu.memory_space<vmem>>, vector<1x128xf32>
      %29 = vector.broadcast %16 : vector<128x1xf32> to vector<128x128xf32>
      %30 = arith.subf %12, %29 : vector<128x128xf32>
      %31 = vector.broadcast %28 : vector<1x128xf32> to vector<128x128xf32>
      %32 = arith.mulf %31, %30 : vector<128x128xf32>
      %33 = vector.broadcast %27 : vector<128x1xf32> to vector<128x128xf32>
      %34 = arith.mulf %32, %33 : vector<128x128xf32>
      %c0_18 = arith.constant 0 : index
      %c0_19 = arith.constant 0 : index
      %35 = vector.load %arg5[%c0_18, %c0_19] : memref<1x128xf32, #tpu.memory_space<vmem>>, vector<1x128xf32>
      %36 = vector.broadcast %35 : vector<1x128xf32> to vector<128x128xf32>
      %37 = arith.addf %34, %36 : vector<128x128xf32>
      %cst_20 = arith.constant 0.000000e+00 : f32
      %38 = vector.broadcast %cst_20 : f32 to vector<128x128xf32>
      %39 = arith.cmpf ogt, %37, %38 : vector<128x128xf32>
      %cst_21 = arith.constant 2.000000e-01 : f32
      %40 = vector.broadcast %cst_21 : f32 to vector<128x128xf32>
      %41 = arith.mulf %40, %37 : vector<128x128xf32>
      %42 = arith.select %39, %37, %41 : vector<128x128xi1>, vector<128x128xf32>
      %c0_22 = arith.constant 0 : index
      %c0_23 = arith.constant 0 : index
      %43 = vector.load %arg6[%c0_22, %c0_23] : memref<128x128xf32, #tpu.memory_space<vmem>>, vector<128x128xf32>
      tpu.vector_store %arg6[%c0_22, %c0_23], %42 {strides = array<i32>} : memref<128x128xf32, #tpu.memory_space<vmem>>, vector<128x128xf32>,
    } else {
    }
    return
  }
  func.func @transform_0(%arg0: i32, %arg1: i32) -> (i32, i32) {
    %c0_i32 = arith.constant 0 : i32
    return %arg0, %arg1 : i32, i32
  }
  func.func @transform_1(%arg0: i32, %arg1: i32) -> (i32, i32) {
    %c0_i32 = arith.constant 0 : i32
    %c0_i32_0 = arith.constant 0 : i32
    return %arg1, %c0_i32 : i32, i32
  }
  func.func @transform_2(%arg0: i32, %arg1: i32) -> (i32, i32) {
    %c0_i32 = arith.constant 0 : i32
    %c0_i32_0 = arith.constant 0 : i32
    %c0_i32_1 = arith.constant 0 : i32
    return %c0_i32, %c0_i32_0 : i32, i32
  }
  func.func @transform_3(%arg0: i32, %arg1: i32) -> (i32, i32) {
    %c0_i32 = arith.constant 0 : i32
    %c0_i32_0 = arith.constant 0 : i32
    %c0_i32_1 = arith.constant 0 : i32
    return %c0_i32, %c0_i32_0 : i32, i32
  }
  func.func @transform_4(%arg0: i32, %arg1: i32) -> (i32, i32) {
    %c0_i32 = arith.constant 0 : i32
    %c0_i32_0 = arith.constant 0 : i32
    return %arg0, %c0_i32 : i32, i32
  }
}

module attributes {stable_mosaic.version = 11 : i64} {
  func.func @kernel(%arg0: i32, %arg1: i32, %arg2: memref<160x896xbf16, #tpu.memory_space<vmem>>, %arg3: memref<896x256xbf16, #tpu.memory_space<vmem>>, %arg4: memref<1x256xf32, #tpu.memory_space<vmem>>, %arg5: memref<1x256xf32, #tpu.memory_space<vmem>>, %arg6: memref<160x256xf32, #tpu.memory_space<vmem>>, %arg7: memref<160x256xf32, #tpu.memory_space<vmem>>) attributes {dimension_semantics = [#tpu.dimension_semantics<parallel>, #tpu.dimension_semantics<arbitrary>], iteration_bounds = array<i64: 1, 7>, scalar_prefetch = 0 : i64, scratch_operands = 1 : i64, tpu.core_type = #tpu.core_type<tc>, window_params = [{transform_indices = @transform_0, window_bounds = array<i64: 160, 896>}, {transform_indices = @transform_1, window_bounds = array<i64: 896, 256>}, {pipeline_mode = #tpu.pipeline_mode<synchronous>, transform_indices = @transform_2, window_bounds = array<i64: 1, 256>}, {pipeline_mode = #tpu.pipeline_mode<synchronous>, transform_indices = @transform_3, window_bounds = array<i64: 1, 256>}, {transform_indices = @transform_4, window_bounds = array<i64: 160, 256>}]} {
    %c0_i32 = arith.constant 0 : i32
    %0 = arith.cmpi eq, %arg1, %c0_i32 : i32
    %1 = arith.extui %0 : i1 to i32
    %c0_i32_0 = arith.constant 0 : i32
    %2 = arith.cmpi ne, %1, %c0_i32_0 : i32
    scf.if %2 {
      %cst_9 = arith.constant 0.000000e+00 : f32
      %12 = vector.broadcast %cst_9 : f32 to vector<160x256xf32>
      %c0_10 = arith.constant 0 : index
      %c0_11 = arith.constant 0 : index
      %13 = vector.load %arg7[%c0_10, %c0_11] : memref<160x256xf32, #tpu.memory_space<vmem>>, vector<160x256xf32>
      tpu.vector_store %arg7[%c0_10, %c0_11], %12 {strides = array<i32>} : memref<160x256xf32, #tpu.memory_space<vmem>>, vector<160x256xf32>,
    } else {
    }
    %c0 = arith.constant 0 : index
    %c0_1 = arith.constant 0 : index
    %3 = vector.load %arg7[%c0, %c0_1] : memref<160x256xf32, #tpu.memory_space<vmem>>, vector<160x256xf32>
    %c0_2 = arith.constant 0 : index
    %c0_3 = arith.constant 0 : index
    %4 = vector.load %arg2[%c0_2, %c0_3] : memref<160x896xbf16, #tpu.memory_space<vmem>>, vector<160x896xbf16>
    %c0_4 = arith.constant 0 : index
    %c0_5 = arith.constant 0 : index
    %5 = vector.load %arg3[%c0_4, %c0_5] : memref<896x256xbf16, #tpu.memory_space<vmem>>, vector<896x256xbf16>
    %cst = arith.constant dense<0.000000e+00> : vector<160x256xf32>
    %6 = tpu.matmul %4, %5, %cst {dimension_numbers = #tpu.dot_dimension_numbers<[1], [0], [0], [1], [0, 0, 1, 1], [], []>} : vector<160x896xbf16>, vector<896x256xbf16>, vector<160x256xf32> -> vector<160x256xf32>
    %7 = arith.addf %3, %6 : vector<160x256xf32>
    %c0_6 = arith.constant 0 : index
    %c0_7 = arith.constant 0 : index
    %8 = vector.load %arg7[%c0_6, %c0_7] : memref<160x256xf32, #tpu.memory_space<vmem>>, vector<160x256xf32>
    tpu.vector_store %arg7[%c0_6, %c0_7], %7 {strides = array<i32>} : memref<160x256xf32, #tpu.memory_space<vmem>>, vector<160x256xf32>,
    %c6_i32 = arith.constant 6 : i32
    %9 = arith.cmpi eq, %arg1, %c6_i32 : i32
    %10 = arith.extui %9 : i1 to i32
    %c0_i32_8 = arith.constant 0 : i32
    %11 = arith.cmpi ne, %10, %c0_i32_8 : i32
    scf.if %11 {
      %c0_9 = arith.constant 0 : index
      %c0_10 = arith.constant 0 : index
      %12 = vector.load %arg7[%c0_9, %c0_10] : memref<160x256xf32, #tpu.memory_space<vmem>>, vector<160x256xf32>
      %cst_11 = arith.constant dense<0.000000e+00> : vector<160xf32>
      %13 = vector.multi_reduction <add>, %12, %cst_11 [1] : vector<160x256xf32> to vector<160xf32>
      %14 = vector.shape_cast %13 : vector<160xf32> to vector<160x1xf32>
      %cst_12 = arith.constant 2.560000e+02 : f32
      %15 = vector.broadcast %cst_12 : f32 to vector<160x1xf32>
      %16 = arith.divf %14, %15 : vector<160x1xf32>
      %17 = vector.broadcast %16 : vector<160x1xf32> to vector<160x256xf32>
      %18 = arith.subf %12, %17 : vector<160x256xf32>
      %19 = arith.mulf %18, %18 : vector<160x256xf32>
      %cst_13 = arith.constant dense<0.000000e+00> : vector<160xf32>
      %20 = vector.multi_reduction <add>, %19, %cst_13 [1] : vector<160x256xf32> to vector<160xf32>
      %21 = vector.shape_cast %20 : vector<160xf32> to vector<160x1xf32>
      %cst_14 = arith.constant 0.00392156886 : f32
      %22 = vector.broadcast %cst_14 : f32 to vector<160x1xf32>
      %23 = arith.mulf %21, %22 : vector<160x1xf32>
      %24 = math.sqrt %23 : vector<160x1xf32>
      %cst_15 = arith.constant 9.99999997E-7 : f32
      %25 = vector.broadcast %cst_15 : f32 to vector<160x1xf32>
      %26 = arith.addf %24, %25 : vector<160x1xf32>
      %27 = tpu.reciprocal %26 {approx = true} : vector<160x1xf32> -> vector<160x1xf32>
      %c0_16 = arith.constant 0 : index
      %c0_17 = arith.constant 0 : index
      %28 = vector.load %arg4[%c0_16, %c0_17] : memref<1x256xf32, #tpu.memory_space<vmem>>, vector<1x256xf32>
      %29 = vector.broadcast %16 : vector<160x1xf32> to vector<160x256xf32>
      %30 = arith.subf %12, %29 : vector<160x256xf32>
      %31 = vector.broadcast %28 : vector<1x256xf32> to vector<160x256xf32>
      %32 = arith.mulf %31, %30 : vector<160x256xf32>
      %33 = vector.broadcast %27 : vector<160x1xf32> to vector<160x256xf32>
      %34 = arith.mulf %32, %33 : vector<160x256xf32>
      %c0_18 = arith.constant 0 : index
      %c0_19 = arith.constant 0 : index
      %35 = vector.load %arg5[%c0_18, %c0_19] : memref<1x256xf32, #tpu.memory_space<vmem>>, vector<1x256xf32>
      %36 = vector.broadcast %35 : vector<1x256xf32> to vector<160x256xf32>
      %37 = arith.addf %34, %36 : vector<160x256xf32>
      %cst_20 = arith.constant 0.000000e+00 : f32
      %38 = vector.broadcast %cst_20 : f32 to vector<160x256xf32>
      %39 = arith.cmpf ogt, %37, %38 : vector<160x256xf32>
      %cst_21 = arith.constant 2.000000e-01 : f32
      %40 = vector.broadcast %cst_21 : f32 to vector<160x256xf32>
      %41 = arith.mulf %40, %37 : vector<160x256xf32>
      %42 = arith.select %39, %37, %41 : vector<160x256xi1>, vector<160x256xf32>
      %c0_22 = arith.constant 0 : index
      %c0_23 = arith.constant 0 : index
      %43 = vector.load %arg6[%c0_22, %c0_23] : memref<160x256xf32, #tpu.memory_space<vmem>>, vector<160x256xf32>
      tpu.vector_store %arg6[%c0_22, %c0_23], %42 {strides = array<i32>} : memref<160x256xf32, #tpu.memory_space<vmem>>, vector<160x256xf32>,
    } else {
    }
    return
  }
  func.func @transform_0(%arg0: i32, %arg1: i32) -> (i32, i32) {
    %c0_i32 = arith.constant 0 : i32
    return %arg0, %arg1 : i32, i32
  }
  func.func @transform_1(%arg0: i32, %arg1: i32) -> (i32, i32) {
    %c0_i32 = arith.constant 0 : i32
    %c0_i32_0 = arith.constant 0 : i32
    return %arg1, %c0_i32 : i32, i32
  }
  func.func @transform_2(%arg0: i32, %arg1: i32) -> (i32, i32) {
    %c0_i32 = arith.constant 0 : i32
    %c0_i32_0 = arith.constant 0 : i32
    %c0_i32_1 = arith.constant 0 : i32
    return %c0_i32, %c0_i32_0 : i32, i32
  }
  func.func @transform_3(%arg0: i32, %arg1: i32) -> (i32, i32) {
    %c0_i32 = arith.constant 0 : i32
    %c0_i32_0 = arith.constant 0 : i32
    %c0_i32_1 = arith.constant 0 : i32
    return %c0_i32, %c0_i32_0 : i32, i32
  }
  func.func @transform_4(%arg0: i32, %arg1: i32) -> (i32, i32) {
    %c0_i32 = arith.constant 0 : i32
    %c0_i32_0 = arith.constant 0 : i32
    return %arg0, %c0_i32 : i32, i32
  }
}

module attributes {stable_mosaic.version = 11 : i64} {
  func.func @kernel(%arg0: i32, %arg1: i32, %arg2: memref<48x896xbf16, #tpu.memory_space<vmem>>, %arg3: memref<896x512xbf16, #tpu.memory_space<vmem>>, %arg4: memref<1x512xf32, #tpu.memory_space<vmem>>, %arg5: memref<1x512xf32, #tpu.memory_space<vmem>>, %arg6: memref<48x512xf32, #tpu.memory_space<vmem>>, %arg7: memref<48x512xf32, #tpu.memory_space<vmem>>) attributes {dimension_semantics = [#tpu.dimension_semantics<parallel>, #tpu.dimension_semantics<arbitrary>], iteration_bounds = array<i64: 1, 14>, scalar_prefetch = 0 : i64, scratch_operands = 1 : i64, tpu.core_type = #tpu.core_type<tc>, window_params = [{transform_indices = @transform_0, window_bounds = array<i64: 48, 896>}, {transform_indices = @transform_1, window_bounds = array<i64: 896, 512>}, {pipeline_mode = #tpu.pipeline_mode<synchronous>, transform_indices = @transform_2, window_bounds = array<i64: 1, 512>}, {pipeline_mode = #tpu.pipeline_mode<synchronous>, transform_indices = @transform_3, window_bounds = array<i64: 1, 512>}, {transform_indices = @transform_4, window_bounds = array<i64: 48, 512>}]} {
    %c0_i32 = arith.constant 0 : i32
    %0 = arith.cmpi eq, %arg1, %c0_i32 : i32
    %1 = arith.extui %0 : i1 to i32
    %c0_i32_0 = arith.constant 0 : i32
    %2 = arith.cmpi ne, %1, %c0_i32_0 : i32
    scf.if %2 {
      %cst_9 = arith.constant 0.000000e+00 : f32
      %12 = vector.broadcast %cst_9 : f32 to vector<48x512xf32>
      %c0_10 = arith.constant 0 : index
      %c0_11 = arith.constant 0 : index
      %13 = vector.load %arg7[%c0_10, %c0_11] : memref<48x512xf32, #tpu.memory_space<vmem>>, vector<48x512xf32>
      tpu.vector_store %arg7[%c0_10, %c0_11], %12 {strides = array<i32>} : memref<48x512xf32, #tpu.memory_space<vmem>>, vector<48x512xf32>,
    } else {
    }
    %c0 = arith.constant 0 : index
    %c0_1 = arith.constant 0 : index
    %3 = vector.load %arg7[%c0, %c0_1] : memref<48x512xf32, #tpu.memory_space<vmem>>, vector<48x512xf32>
    %c0_2 = arith.constant 0 : index
    %c0_3 = arith.constant 0 : index
    %4 = vector.load %arg2[%c0_2, %c0_3] : memref<48x896xbf16, #tpu.memory_space<vmem>>, vector<48x896xbf16>
    %c0_4 = arith.constant 0 : index
    %c0_5 = arith.constant 0 : index
    %5 = vector.load %arg3[%c0_4, %c0_5] : memref<896x512xbf16, #tpu.memory_space<vmem>>, vector<896x512xbf16>
    %cst = arith.constant dense<0.000000e+00> : vector<48x512xf32>
    %6 = tpu.matmul %4, %5, %cst {dimension_numbers = #tpu.dot_dimension_numbers<[1], [0], [0], [1], [0, 0, 1, 1], [], []>} : vector<48x896xbf16>, vector<896x512xbf16>, vector<48x512xf32> -> vector<48x512xf32>
    %7 = arith.addf %3, %6 : vector<48x512xf32>
    %c0_6 = arith.constant 0 : index
    %c0_7 = arith.constant 0 : index
    %8 = vector.load %arg7[%c0_6, %c0_7] : memref<48x512xf32, #tpu.memory_space<vmem>>, vector<48x512xf32>
    tpu.vector_store %arg7[%c0_6, %c0_7], %7 {strides = array<i32>} : memref<48x512xf32, #tpu.memory_space<vmem>>, vector<48x512xf32>,
    %c13_i32 = arith.constant 13 : i32
    %9 = arith.cmpi eq, %arg1, %c13_i32 : i32
    %10 = arith.extui %9 : i1 to i32
    %c0_i32_8 = arith.constant 0 : i32
    %11 = arith.cmpi ne, %10, %c0_i32_8 : i32
    scf.if %11 {
      %c0_9 = arith.constant 0 : index
      %c0_10 = arith.constant 0 : index
      %12 = vector.load %arg7[%c0_9, %c0_10] : memref<48x512xf32, #tpu.memory_space<vmem>>, vector<48x512xf32>
      %cst_11 = arith.constant dense<0.000000e+00> : vector<48xf32>
      %13 = vector.multi_reduction <add>, %12, %cst_11 [1] : vector<48x512xf32> to vector<48xf32>
      %14 = vector.shape_cast %13 : vector<48xf32> to vector<48x1xf32>
      %cst_12 = arith.constant 5.120000e+02 : f32
      %15 = vector.broadcast %cst_12 : f32 to vector<48x1xf32>
      %16 = arith.divf %14, %15 : vector<48x1xf32>
      %17 = vector.broadcast %16 : vector<48x1xf32> to vector<48x512xf32>
      %18 = arith.subf %12, %17 : vector<48x512xf32>
      %19 = arith.mulf %18, %18 : vector<48x512xf32>
      %cst_13 = arith.constant dense<0.000000e+00> : vector<48xf32>
      %20 = vector.multi_reduction <add>, %19, %cst_13 [1] : vector<48x512xf32> to vector<48xf32>
      %21 = vector.shape_cast %20 : vector<48xf32> to vector<48x1xf32>
      %cst_14 = arith.constant 0.00195694715 : f32
      %22 = vector.broadcast %cst_14 : f32 to vector<48x1xf32>
      %23 = arith.mulf %21, %22 : vector<48x1xf32>
      %24 = math.sqrt %23 : vector<48x1xf32>
      %cst_15 = arith.constant 9.99999997E-7 : f32
      %25 = vector.broadcast %cst_15 : f32 to vector<48x1xf32>
      %26 = arith.addf %24, %25 : vector<48x1xf32>
      %27 = tpu.reciprocal %26 {approx = true} : vector<48x1xf32> -> vector<48x1xf32>
      %c0_16 = arith.constant 0 : index
      %c0_17 = arith.constant 0 : index
      %28 = vector.load %arg4[%c0_16, %c0_17] : memref<1x512xf32, #tpu.memory_space<vmem>>, vector<1x512xf32>
      %29 = vector.broadcast %16 : vector<48x1xf32> to vector<48x512xf32>
      %30 = arith.subf %12, %29 : vector<48x512xf32>
      %31 = vector.broadcast %28 : vector<1x512xf32> to vector<48x512xf32>
      %32 = arith.mulf %31, %30 : vector<48x512xf32>
      %33 = vector.broadcast %27 : vector<48x1xf32> to vector<48x512xf32>
      %34 = arith.mulf %32, %33 : vector<48x512xf32>
      %c0_18 = arith.constant 0 : index
      %c0_19 = arith.constant 0 : index
      %35 = vector.load %arg5[%c0_18, %c0_19] : memref<1x512xf32, #tpu.memory_space<vmem>>, vector<1x512xf32>
      %36 = vector.broadcast %35 : vector<1x512xf32> to vector<48x512xf32>
      %37 = arith.addf %34, %36 : vector<48x512xf32>
      %cst_20 = arith.constant 0.000000e+00 : f32
      %38 = vector.broadcast %cst_20 : f32 to vector<48x512xf32>
      %39 = arith.cmpf ogt, %37, %38 : vector<48x512xf32>
      %cst_21 = arith.constant 2.000000e-01 : f32
      %40 = vector.broadcast %cst_21 : f32 to vector<48x512xf32>
      %41 = arith.mulf %40, %37 : vector<48x512xf32>
      %42 = arith.select %39, %37, %41 : vector<48x512xi1>, vector<48x512xf32>
      %c0_22 = arith.constant 0 : index
      %c0_23 = arith.constant 0 : index
      %43 = vector.load %arg6[%c0_22, %c0_23] : memref<48x512xf32, #tpu.memory_space<vmem>>, vector<48x512xf32>
      tpu.vector_store %arg6[%c0_22, %c0_23], %42 {strides = array<i32>} : memref<48x512xf32, #tpu.memory_space<vmem>>, vector<48x512xf32>,
    } else {
    }
    return
  }
  func.func @transform_0(%arg0: i32, %arg1: i32) -> (i32, i32) {
    %c0_i32 = arith.constant 0 : i32
    return %arg0, %arg1 : i32, i32
  }
  func.func @transform_1(%arg0: i32, %arg1: i32) -> (i32, i32) {
    %c0_i32 = arith.constant 0 : i32
    %c0_i32_0 = arith.constant 0 : i32
    return %arg1, %c0_i32 : i32, i32
  }
  func.func @transform_2(%arg0: i32, %arg1: i32) -> (i32, i32) {
    %c0_i32 = arith.constant 0 : i32
    %c0_i32_0 = arith.constant 0 : i32
    %c0_i32_1 = arith.constant 0 : i32
    return %c0_i32, %c0_i32_0 : i32, i32
  }
  func.func @transform_3(%arg0: i32, %arg1: i32) -> (i32, i32) {
    %c0_i32 = arith.constant 0 : i32
    %c0_i32_0 = arith.constant 0 : i32
    %c0_i32_1 = arith.constant 0 : i32
    return %c0_i32, %c0_i32_0 : i32, i32
  }
  func.func @transform_4(%arg0: i32, %arg1: i32) -> (i32, i32) {
    %c0_i32 = arith.constant 0 : i32
    %c0_i32_0 = arith.constant 0 : i32
    return %arg0, %c0_i32 : i32, i32
  }
}

module attributes {stable_mosaic.version = 11 : i64} {
  func.func @kernel(%arg0: i32, %arg1: i32, %arg2: memref<16x896xbf16, #tpu.memory_space<vmem>>, %arg3: memref<896x128xbf16, #tpu.memory_space<vmem>>, %arg4: memref<16x128xf32, #tpu.memory_space<vmem>>, %arg5: memref<16x128xf32, #tpu.memory_space<vmem>>) attributes {dimension_semantics = [#tpu.dimension_semantics<parallel>, #tpu.dimension_semantics<arbitrary>], iteration_bounds = array<i64: 1, 28>, scalar_prefetch = 0 : i64, scratch_operands = 1 : i64, tpu.core_type = #tpu.core_type<tc>, window_params = [{transform_indices = @transform_0, window_bounds = array<i64: 16, 896>}, {transform_indices = @transform_1, window_bounds = array<i64: 896, 128>}, {transform_indices = @transform_2, window_bounds = array<i64: 16, 128>}]} {
    %c0_i32 = arith.constant 0 : i32
    %0 = arith.cmpi eq, %arg1, %c0_i32 : i32
    %1 = arith.extui %0 : i1 to i32
    %c0_i32_0 = arith.constant 0 : i32
    %2 = arith.cmpi ne, %1, %c0_i32_0 : i32
    scf.if %2 {
      %cst_9 = arith.constant 0.000000e+00 : f32
      %12 = vector.broadcast %cst_9 : f32 to vector<16x128xf32>
      %c0_10 = arith.constant 0 : index
      %c0_11 = arith.constant 0 : index
      %13 = vector.load %arg5[%c0_10, %c0_11] : memref<16x128xf32, #tpu.memory_space<vmem>>, vector<16x128xf32>
      tpu.vector_store %arg5[%c0_10, %c0_11], %12 {strides = array<i32>} : memref<16x128xf32, #tpu.memory_space<vmem>>, vector<16x128xf32>,
    } else {
    }
    %c0 = arith.constant 0 : index
    %c0_1 = arith.constant 0 : index
    %3 = vector.load %arg5[%c0, %c0_1] : memref<16x128xf32, #tpu.memory_space<vmem>>, vector<16x128xf32>
    %c0_2 = arith.constant 0 : index
    %c0_3 = arith.constant 0 : index
    %4 = vector.load %arg2[%c0_2, %c0_3] : memref<16x896xbf16, #tpu.memory_space<vmem>>, vector<16x896xbf16>
    %c0_4 = arith.constant 0 : index
    %c0_5 = arith.constant 0 : index
    %5 = vector.load %arg3[%c0_4, %c0_5] : memref<896x128xbf16, #tpu.memory_space<vmem>>, vector<896x128xbf16>
    %cst = arith.constant dense<0.000000e+00> : vector<16x128xf32>
    %6 = tpu.matmul %4, %5, %cst {dimension_numbers = #tpu.dot_dimension_numbers<[1], [0], [0], [1], [0, 0, 1, 1], [], []>} : vector<16x896xbf16>, vector<896x128xbf16>, vector<16x128xf32> -> vector<16x128xf32>
    %7 = arith.addf %3, %6 : vector<16x128xf32>
    %c0_6 = arith.constant 0 : index
    %c0_7 = arith.constant 0 : index
    %8 = vector.load %arg5[%c0_6, %c0_7] : memref<16x128xf32, #tpu.memory_space<vmem>>, vector<16x128xf32>
    tpu.vector_store %arg5[%c0_6, %c0_7], %7 {strides = array<i32>} : memref<16x128xf32, #tpu.memory_space<vmem>>, vector<16x128xf32>,
    %c27_i32 = arith.constant 27 : i32
    %9 = arith.cmpi eq, %arg1, %c27_i32 : i32
    %10 = arith.extui %9 : i1 to i32
    %c0_i32_8 = arith.constant 0 : i32
    %11 = arith.cmpi ne, %10, %c0_i32_8 : i32
    scf.if %11 {
      %c0_9 = arith.constant 0 : index
      %c0_10 = arith.constant 0 : index
      %12 = vector.load %arg5[%c0_9, %c0_10] : memref<16x128xf32, #tpu.memory_space<vmem>>, vector<16x128xf32>
      %c0_11 = arith.constant 0 : index
      %c0_12 = arith.constant 0 : index
      %13 = vector.load %arg4[%c0_11, %c0_12] : memref<16x128xf32, #tpu.memory_space<vmem>>, vector<16x128xf32>
      tpu.vector_store %arg4[%c0_11, %c0_12], %12 {strides = array<i32>} : memref<16x128xf32, #tpu.memory_space<vmem>>, vector<16x128xf32>,
    } else {
    }
    return
  }
  func.func @transform_0(%arg0: i32, %arg1: i32) -> (i32, i32) {
    %c0_i32 = arith.constant 0 : i32
    return %arg0, %arg1 : i32, i32
  }
  func.func @transform_1(%arg0: i32, %arg1: i32) -> (i32, i32) {
    %c0_i32 = arith.constant 0 : i32
    %c0_i32_0 = arith.constant 0 : i32
    return %arg1, %c0_i32 : i32, i32
  }
  func.func @transform_2(%arg0: i32, %arg1: i32) -> (i32, i32) {
    %c0_i32 = arith.constant 0 : i32
    %c0_i32_0 = arith.constant 0 : i32
    return %arg0, %c0_i32 : i32, i32
  }
}

</mosaic_0001>

<llo_original>
// kernel: frequency_discriminator.6
$region0: #{frequency_discriminator.6}
  #allocation0 [shape = 'u32[]', space=smem, size = 0x4, offset = 0x4, fixed_abs, tag = 'smem constant byte address 0x4 - core index']
  #allocation1 [shape = 'u32[144,128]{1,0:T(1,128)}', space=vmem, size = 0x12000, scoped, tag = 'internal scratch']
  %s0 = inlined_call_operand.vmem [shape: bf16[144,256], index: 0, kind: input, shape index: {}]
  %s1 = inlined_call_operand.vmem [shape: bf16[256,256], index: 1, kind: input, shape index: {}]
  %s2 = inlined_call_operand.vmem [shape: f32[144,128], index: 2, kind: output, shape index: {}]
  %s3 = sld [smem:[#allocation0]]
  $region18: #{frequency_discriminator.6} parent=0
    _
  %s5 = ssub.s32 1, %s3
  %s6 = scalar_select 0, %s5, %s3
  // Predicated region
  $region2: #{frequency_discriminator.6} parent=0 // pred_check
    _
  $region3: #{frequency_discriminator.6} parent=0 // pred_check_branch
    %8 = sbr.rel (0) target = $region5
  $region4: #{frequency_discriminator.6} parent=0 // pred_region
    _
  $region5: #{frequency_discriminator.6} parent=0 // pred_fallthru
    _
  // Predicated region
  $region6: #{frequency_discriminator.6} parent=0 // pred_check
    _
  $region7: #{frequency_discriminator.6} parent=0 // pred_check_branch
    %10 = sbr.rel (0) target = $region9
  $region8: #{frequency_discriminator.6} parent=0 // pred_region
    _
  $region9: #{frequency_discriminator.6} parent=0 // pred_fallthru
    _
  %v11 = vld [vmem:[%s0] sm:$0xff]
  %v12 = vld [vmem:[%s0 + $0x8] sm:$0xff]
  %v13 = vld [vmem:[%s0 + $0x10] sm:$0xff]
  %v14 = vld [vmem:[%s0 + $0x18] sm:$0xff]
  %v15 = vld [vmem:[%s0 + $0x20] sm:$0xff]
  %v16 = vld [vmem:[%s0 + $0x28] sm:$0xff]
  %v17 = vld [vmem:[%s0 + $0x30] sm:$0xff]
  %v18 = vld [vmem:[%s0 + $0x38] sm:$0xff]
  %v19 = vld [vmem:[%s0 + $0x40] sm:$0xff]
  %v20 = vld [vmem:[%s0 + $0x48] sm:$0xff]
  %v21 = vld [vmem:[%s0 + $0x50] sm:$0xff]
  %v22 = vld [vmem:[%s0 + $0x58] sm:$0xff]
  %v23 = vld [vmem:[%s0 + $0x60] sm:$0xff]
  %v24 = vld [vmem:[%s0 + $0x68] sm:$0xff]
  %v25 = vld [vmem:[%s0 + $0x70] sm:$0xff]
  %v26 = vld [vmem:[%s0 + $0x78] sm:$0xff]
  %v27 = vld [vmem:[%s0 + $0x80] sm:$0xff]
  %v28 = vld [vmem:[%s0 + $0x88] sm:$0xff]
  %v29 = vld [vmem:[%s1] sm:$0xff]
  %v30 = vld [vmem:[%s1 + $0x8] sm:$0xff]
  %v31 = vld [vmem:[%s1 + $0x10] sm:$0xff]
  %v32 = vld [vmem:[%s1 + $0x18] sm:$0xff]
  %v33 = vld [vmem:[%s1 + $0x20] sm:$0xff]
  %v34 = vld [vmem:[%s1 + $0x28] sm:$0xff]
  %v35 = vld [vmem:[%s1 + $0x30] sm:$0xff]
  %v36 = vld [vmem:[%s1 + $0x38] sm:$0xff]
  %v37 = vld [vmem:[%s1 + $0x40] sm:$0xff]
  %v38 = vld [vmem:[%s1 + $0x48] sm:$0xff]
  %v39 = vld [vmem:[%s1 + $0x50] sm:$0xff]
  %v40 = vld [vmem:[%s1 + $0x58] sm:$0xff]
  %v41 = vld [vmem:[%s1 + $0x60] sm:$0xff]
  %v42 = vld [vmem:[%s1 + $0x68] sm:$0xff]
  %v43 = vld [vmem:[%s1 + $0x70] sm:$0xff]
  %v44 = vld [vmem:[%s1 + $0x78] sm:$0xff]
  %v45 = vld [vmem:[%s1 + $0x80] sm:$0xff]
  %v46 = vld [vmem:[%s1 + $0x88] sm:$0xff]
  %v47 = vld [vmem:[%s1 + $0x90] sm:$0xff]
  %v48 = vld [vmem:[%s1 + $0x98] sm:$0xff]
  %v49 = vld [vmem:[%s1 + $0xa0] sm:$0xff]
  %v50 = vld [vmem:[%s1 + $0xa8] sm:$0xff]
  %v51 = vld [vmem:[%s1 + $0xb0] sm:$0xff]
  %v52 = vld [vmem:[%s1 + $0xb8] sm:$0xff]
  %v53 = vld [vmem:[%s1 + $0xc0] sm:$0xff]
  %v54 = vld [vmem:[%s1 + $0xc8] sm:$0xff]
  %v55 = vld [vmem:[%s1 + $0xd0] sm:$0xff]
  %v56 = vld [vmem:[%s1 + $0xd8] sm:$0xff]
  %v57 = vld [vmem:[%s1 + $0xe0] sm:$0xff]
  %v58 = vld [vmem:[%s1 + $0xe8] sm:$0xff]
  %v59 = vld [vmem:[%s1 + $0xf0] sm:$0xff]
  %v60 = vld [vmem:[%s1 + $0xf8] sm:$0xff]
  %v79 = vunpack.c.l.b16 %v11
  %v80 = vunpack.c.h.b16 %v11
  %v81 = vunpack.c.l.b16 %v12
  %v82 = vunpack.c.h.b16 %v12
  %v83 = vunpack.c.l.b16 %v13
  %v84 = vunpack.c.h.b16 %v13
  %v85 = vunpack.c.l.b16 %v14
  %v86 = vunpack.c.h.b16 %v14
  %v87 = vunpack.c.l.b16 %v15
  %v88 = vunpack.c.h.b16 %v15
  %v89 = vunpack.c.l.b16 %v16
  %v90 = vunpack.c.h.b16 %v16
  %v91 = vunpack.c.l.b16 %v17
  %v92 = vunpack.c.h.b16 %v17
  %v93 = vunpack.c.l.b16 %v18
  %v94 = vunpack.c.h.b16 %v18
  %v95 = vunpack.c.l.b16 %v19
  %v96 = vunpack.c.h.b16 %v19
  %v97 = vunpack.c.l.b16 %v20
  %v98 = vunpack.c.h.b16 %v20
  %v99 = vunpack.c.l.b16 %v21
  %v100 = vunpack.c.h.b16 %v21
  %v101 = vunpack.c.l.b16 %v22
  %v102 = vunpack.c.h.b16 %v22
  %v103 = vunpack.c.l.b16 %v23
  %v104 = vunpack.c.h.b16 %v23
  %v105 = vunpack.c.l.b16 %v24
  %v106 = vunpack.c.h.b16 %v24
  %v107 = vunpack.c.l.b16 %v25
  %v108 = vunpack.c.h.b16 %v25
  %v109 = vunpack.c.l.b16 %v26
  %v110 = vunpack.c.h.b16 %v26
  %v111 = vunpack.c.l.b16 %v27
  %v112 = vunpack.c.h.b16 %v27
  %v113 = vunpack.c.l.b16 %v28
  %v114 = vunpack.c.h.b16 %v28
  %v115 = vpack.c.b16 %v81, %v79
  %v116 = vpack.c.b16 %v82, %v80
  %v117 = vpack.c.b16 %v85, %v83
  %v118 = vpack.c.b16 %v86, %v84
  %v119 = vpack.c.b16 %v89, %v87
  %v120 = vpack.c.b16 %v90, %v88
  %v121 = vpack.c.b16 %v93, %v91
  %v122 = vpack.c.b16 %v94, %v92
  %v123 = vpack.c.b16 %v97, %v95
  %v124 = vpack.c.b16 %v98, %v96
  %v125 = vpack.c.b16 %v101, %v99
  %v126 = vpack.c.b16 %v102, %v100
  %v127 = vpack.c.b16 %v105, %v103
  %v128 = vpack.c.b16 %v106, %v104
  %v129 = vpack.c.b16 %v109, %v107
  %v130 = vpack.c.b16 %v110, %v108
  %v131 = vpack.c.b16 %v113, %v111
  %v132 = vpack.c.b16 %v114, %v112
  %v183 = vunpack.c.l.b16 %v29
  %v184 = vunpack.c.h.b16 %v29
  %v185 = vunpack.c.l.b16 %v30
  %v186 = vunpack.c.h.b16 %v30
  %v187 = vunpack.c.l.b16 %v31
  %v188 = vunpack.c.h.b16 %v31
  %v189 = vunpack.c.l.b16 %v32
  %v190 = vunpack.c.h.b16 %v32
  %v191 = vunpack.c.l.b16 %v33
  %v192 = vunpack.c.h.b16 %v33
  %v193 = vunpack.c.l.b16 %v34
  %v194 = vunpack.c.h.b16 %v34
  %v195 = vunpack.c.l.b16 %v35
  %v196 = vunpack.c.h.b16 %v35
  %v197 = vunpack.c.l.b16 %v36
  %v198 = vunpack.c.h.b16 %v36
  %v199 = vunpack.c.l.b16 %v37
  %v200 = vunpack.c.h.b16 %v37
  %v201 = vunpack.c.l.b16 %v38
  %v202 = vunpack.c.h.b16 %v38
  %v203 = vunpack.c.l.b16 %v39
  %v204 = vunpack.c.h.b16 %v39
  %v205 = vunpack.c.l.b16 %v40
  %v206 = vunpack.c.h.b16 %v40
  %v207 = vunpack.c.l.b16 %v41
  %v208 = vunpack.c.h.b16 %v41
  %v209 = vunpack.c.l.b16 %v42
  %v210 = vunpack.c.h.b16 %v42
  %v211 = vunpack.c.l.b16 %v43
  %v212 = vunpack.c.h.b16 %v43
  %v213 = vunpack.c.l.b16 %v44
  %v214 = vunpack.c.h.b16 %v44
  %v215 = vunpack.c.l.b16 %v45
  %v216 = vunpack.c.h.b16 %v45
  %v217 = vunpack.c.l.b16 %v46
  %v218 = vunpack.c.h.b16 %v46
  %v219 = vunpack.c.l.b16 %v47
  %v220 = vunpack.c.h.b16 %v47
  %v221 = vunpack.c.l.b16 %v48
  %v222 = vunpack.c.h.b16 %v48
  %v223 = vunpack.c.l.b16 %v49
  %v224 = vunpack.c.h.b16 %v49
  %v225 = vunpack.c.l.b16 %v50
  %v226 = vunpack.c.h.b16 %v50
  %v227 = vunpack.c.l.b16 %v51
  %v228 = vunpack.c.h.b16 %v51
  %v229 = vunpack.c.l.b16 %v52
  %v230 = vunpack.c.h.b16 %v52
  %v231 = vunpack.c.l.b16 %v53
  %v232 = vunpack.c.h.b16 %v53
  %v233 = vunpack.c.l.b16 %v54
  %v234 = vunpack.c.h.b16 %v54
  %v235 = vunpack.c.l.b16 %v55
  %v236 = vunpack.c.h.b16 %v55
  %v237 = vunpack.c.l.b16 %v56
  %v238 = vunpack.c.h.b16 %v56
  %v239 = vunpack.c.l.b16 %v57
  %v240 = vunpack.c.h.b16 %v57
  %v241 = vunpack.c.l.b16 %v58
  %v242 = vunpack.c.h.b16 %v58
  %v243 = vunpack.c.l.b16 %v59
  %v244 = vunpack.c.h.b16 %v59
  %v245 = vunpack.c.l.b16 %v60
  %v246 = vunpack.c.h.b16 %v60
  %v247 = vpack.c.b16 %v185, %v183
  %v248 = vpack.c.b16 %v186, %v184
  %v249 = vpack.c.b16 %v189, %v187
  %v250 = vpack.c.b16 %v190, %v188
  %v251 = vpack.c.b16 %v193, %v191
  %v252 = vpack.c.b16 %v194, %v192
  %v253 = vpack.c.b16 %v197, %v195
  %v254 = vpack.c.b16 %v198, %v196
  %v255 = vpack.c.b16 %v201, %v199
  %v256 = vpack.c.b16 %v202, %v200
  %v257 = vpack.c.b16 %v205, %v203
  %v258 = vpack.c.b16 %v206, %v204
  %v259 = vpack.c.b16 %v209, %v207
  %v260 = vpack.c.b16 %v210, %v208
  %v261 = vpack.c.b16 %v213, %v211
  %v262 = vpack.c.b16 %v214, %v212
  %v263 = vpack.c.b16 %v217, %v215
  %v264 = vpack.c.b16 %v218, %v216
  %v265 = vpack.c.b16 %v221, %v219
  %v266 = vpack.c.b16 %v222, %v220
  %v267 = vpack.c.b16 %v225, %v223
  %v268 = vpack.c.b16 %v226, %v224
  %v269 = vpack.c.b16 %v229, %v227
  %v270 = vpack.c.b16 %v230, %v228
  %v271 = vpack.c.b16 %v233, %v231
  %v272 = vpack.c.b16 %v234, %v232
  %v273 = vpack.c.b16 %v237, %v235
  %v274 = vpack.c.b16 %v238, %v236
  %v275 = vpack.c.b16 %v241, %v239
  %v276 = vpack.c.b16 %v242, %v240
  %v277 = vpack.c.b16 %v245, %v243
  %v278 = vpack.c.b16 %v246, %v244
  %311 = vmatprep.subr.bf16.mxu0 %v248
  %312 = vmatpush1.bf16.msra.mxu0 %v247
  %313 = vmatprep.subr.bf16.mxu0 %v250
  %314 = vmatpush1.bf16.msra.mxu0 %v249
  %315 = vmatprep.subr.bf16.mxu0 %v252
  %316 = vmatpush1.bf16.msra.mxu0 %v251
  %317 = vmatprep.subr.bf16.mxu0 %v254
  %318 = vmatpush1.bf16.msra.mxu0 %v253
  %319 = vmatprep.subr.bf16.mxu0 %v256
  %320 = vmatpush1.bf16.msra.mxu0 %v255
  %321 = vmatprep.subr.bf16.mxu0 %v258
  %322 = vmatpush1.bf16.msra.mxu0 %v257
  %323 = vmatprep.subr.bf16.mxu0 %v260
  %324 = vmatpush1.bf16.msra.mxu0 %v259
  %325 = vmatprep.subr.bf16.mxu0 %v262
  %326 = vmatpush1.bf16.msra.mxu0 %v261
  %327 = vmatprep.subr.bf16.mxu0 %v264
  %328 = vmatpush1.bf16.msra.mxu0 %v263
  %329 = vmatprep.subr.bf16.mxu0 %v266
  %330 = vmatpush1.bf16.msra.mxu0 %v265
  %331 = vmatprep.subr.bf16.mxu0 %v268
  %332 = vmatpush1.bf16.msra.mxu0 %v267
  %333 = vmatprep.subr.bf16.mxu0 %v270
  %334 = vmatpush1.bf16.msra.mxu0 %v269
  %335 = vmatprep.subr.bf16.mxu0 %v272
  %336 = vmatpush1.bf16.msra.mxu0 %v271
  %337 = vmatprep.subr.bf16.mxu0 %v274
  %338 = vmatpush1.bf16.msra.mxu0 %v273
  %339 = vmatprep.subr.bf16.mxu0 %v276
  %340 = vmatpush1.bf16.msra.mxu0 %v275
  %341 = vmatprep.subr.bf16.mxu0 %v278
  %342 = vmatpush1.bf16.msra.mxu0 %v277
  %343 = vmatprep.mubr.bf16.mxu0 %v116
  %344 = vmatmul.mubr.bf16.gmra.mrb[0].mxu0 %v115
  %v345 = vpop.f32.mrb[0].mxu0
  %v346 = vadd.f32 0.0, %v345
  %v347 = vpop.f32.mrb[0].mxu0
  %v348 = vadd.f32 0.0, %v347
  %v349 = vpop.f32.mrb[0].mxu0
  %v350 = vadd.f32 0.0, %v349
  %v351 = vpop.f32.mrb[0].mxu0
  %v352 = vadd.f32 0.0, %v351
  %353 = vmatprep.mubr.bf16.mxu0 %v118
  %354 = vmatmul.mubr.bf16.gmra.mrb[0].mxu0 %v117
  %v355 = vpop.f32.mrb[0].mxu0
  %v356 = vadd.f32 0.0, %v355
  %v357 = vpop.f32.mrb[0].mxu0
  %v358 = vadd.f32 0.0, %v357
  %v359 = vpop.f32.mrb[0].mxu0
  %v360 = vadd.f32 0.0, %v359
  %v361 = vpop.f32.mrb[0].mxu0
  %v362 = vadd.f32 0.0, %v361
  %363 = vmatprep.mubr.bf16.mxu0 %v120
  %364 = vmatmul.mubr.bf16.gmra.mrb[0].mxu0 %v119
  %v365 = vpop.f32.mrb[0].mxu0
  %v366 = vadd.f32 0.0, %v365
  %v367 = vpop.f32.mrb[0].mxu0
  %v368 = vadd.f32 0.0, %v367
  %v369 = vpop.f32.mrb[0].mxu0
  %v370 = vadd.f32 0.0, %v369
  %v371 = vpop.f32.mrb[0].mxu0
  %v372 = vadd.f32 0.0, %v371
  %373 = vmatprep.mubr.bf16.mxu0 %v122
  %374 = vmatmul.mubr.bf16.gmra.mrb[0].mxu0 %v121
  %v375 = vpop.f32.mrb[0].mxu0
  %v376 = vadd.f32 0.0, %v375
  %v377 = vpop.f32.mrb[0].mxu0
  %v378 = vadd.f32 0.0, %v377
  %v379 = vpop.f32.mrb[0].mxu0
  %v380 = vadd.f32 0.0, %v379
  %v381 = vpop.f32.mrb[0].mxu0
  %v382 = vadd.f32 0.0, %v381
  %383 = vmatprep.mubr.bf16.mxu0 %v124
  %384 = vmatmul.mubr.bf16.gmra.mrb[0].mxu0 %v123
  %v385 = vpop.f32.mrb[0].mxu0
  %v386 = vadd.f32 0.0, %v385
  %v387 = vpop.f32.mrb[0].mxu0
  %v388 = vadd.f32 0.0, %v387
  %v389 = vpop.f32.mrb[0].mxu0
  %v390 = vadd.f32 0.0, %v389
  %v391 = vpop.f32.mrb[0].mxu0
  %v392 = vadd.f32 0.0, %v391
  %393 = vmatprep.mubr.bf16.mxu0 %v126
  %394 = vmatmul.mubr.bf16.gmra.mrb[0].mxu0 %v125
  %v395 = vpop.f32.mrb[0].mxu0
  %v396 = vadd.f32 0.0, %v395
  %v397 = vpop.f32.mrb[0].mxu0
  %v398 = vadd.f32 0.0, %v397
  %v399 = vpop.f32.mrb[0].mxu0
  %v400 = vadd.f32 0.0, %v399
  %v401 = vpop.f32.mrb[0].mxu0
  %v402 = vadd.f32 0.0, %v401
  %403 = vmatprep.mubr.bf16.mxu0 %v128
  %404 = vmatmul.mubr.bf16.gmra.mrb[0].mxu0 %v127
  %v405 = vpop.f32.mrb[0].mxu0
  %v406 = vadd.f32 0.0, %v405
  %v407 = vpop.f32.mrb[0].mxu0
  %v408 = vadd.f32 0.0, %v407
  %v409 = vpop.f32.mrb[0].mxu0
  %v410 = vadd.f32 0.0, %v409
  %v411 = vpop.f32.mrb[0].mxu0
  %v412 = vadd.f32 0.0, %v411
  %413 = vmatprep.mubr.bf16.mxu0 %v130
  %414 = vmatmul.mubr.bf16.gmra.mrb[0].mxu0 %v129
  %v415 = vpop.f32.mrb[0].mxu0
  %v416 = vadd.f32 0.0, %v415
  %v417 = vpop.f32.mrb[0].mxu0
  %v418 = vadd.f32 0.0, %v417
  %v419 = vpop.f32.mrb[0].mxu0
  %v420 = vadd.f32 0.0, %v419
  %v421 = vpop.f32.mrb[0].mxu0
  %v422 = vadd.f32 0.0, %v421
  %423 = vmatprep.mubr.bf16.mxu0 %v132
  %424 = vmatmul.mubr.bf16.gmra.mrb[0].mxu0 %v131
  %v425 = vpop.f32.mrb[0].mxu0
  %v426 = vadd.f32 0.0, %v425
  %v427 = vpop.f32.mrb[0].mxu0
  %v428 = vadd.f32 0.0, %v427
  %v429 = vpop.f32.mrb[0].mxu0
  %v430 = vadd.f32 0.0, %v429
  %v431 = vpop.f32.mrb[0].mxu0
  %v432 = vadd.f32 0.0, %v431
  %433 = vdwg.mxu0
  %v434 = vmul.f32 %v346, %v346
  %v435 = vmul.f32 %v350, %v350
  %v436 = vmul.f32 %v356, %v356
  %v437 = vmul.f32 %v360, %v360
  %v438 = vmul.f32 %v366, %v366
  %v439 = vmul.f32 %v370, %v370
  %v440 = vmul.f32 %v376, %v376
  %v441 = vmul.f32 %v380, %v380
  %v442 = vmul.f32 %v386, %v386
  %v443 = vmul.f32 %v390, %v390
  %v444 = vmul.f32 %v396, %v396
  %v445 = vmul.f32 %v400, %v400
  %v446 = vmul.f32 %v406, %v406
  %v447 = vmul.f32 %v410, %v410
  %v448 = vmul.f32 %v416, %v416
  %v449 = vmul.f32 %v420, %v420
  %v450 = vmul.f32 %v426, %v426
  %v451 = vmul.f32 %v430, %v430
  %v452 = vmul.f32 %v348, %v348
  %v453 = vmul.f32 %v352, %v352
  %v454 = vmul.f32 %v358, %v358
  %v455 = vmul.f32 %v362, %v362
  %v456 = vmul.f32 %v368, %v368
  %v457 = vmul.f32 %v372, %v372
  %v458 = vmul.f32 %v378, %v378
  %v459 = vmul.f32 %v382, %v382
  %v460 = vmul.f32 %v388, %v388
  %v461 = vmul.f32 %v392, %v392
  %v462 = vmul.f32 %v398, %v398
  %v463 = vmul.f32 %v402, %v402
  %v464 = vmul.f32 %v408, %v408
  %v465 = vmul.f32 %v412, %v412
  %v466 = vmul.f32 %v418, %v418
  %v467 = vmul.f32 %v422, %v422
  %v468 = vmul.f32 %v428, %v428
  %v469 = vmul.f32 %v432, %v432
  %v470 = vadd.f32 %v434, %v452
  %v471 = vadd.f32 %v435, %v453
  %v472 = vadd.f32 %v436, %v454
  %v473 = vadd.f32 %v437, %v455
  %v474 = vadd.f32 %v438, %v456
  %v475 = vadd.f32 %v439, %v457
  %v476 = vadd.f32 %v440, %v458
  %v477 = vadd.f32 %v441, %v459
  %v478 = vadd.f32 %v442, %v460
  %v479 = vadd.f32 %v443, %v461
  %v480 = vadd.f32 %v444, %v462
  %v481 = vadd.f32 %v445, %v463
  %v482 = vadd.f32 %v446, %v464
  %v483 = vadd.f32 %v447, %v465
  %v484 = vadd.f32 %v448, %v466
  %v485 = vadd.f32 %v449, %v467
  %v486 = vadd.f32 %v450, %v468
  %v487 = vadd.f32 %v451, %v469
  %v488 = vrsqrt.pop %v470
  %v489 = vmul.f32 %v470, %v488
  %vm490 = vcmp.eq.f32.partialorder %v470, inf
  %v491 = vsel %vm490, %v470, %v489
  %vm492 = vcmp.eq.f32.partialorder %v470, 0.0
  %v493 = vand.u32 %v470, 2147483648
  %v494 = vsel %vm492, %v493, %v491
  %v495 = vrsqrt.pop %v471
  %v496 = vmul.f32 %v471, %v495
  %vm497 = vcmp.eq.f32.partialorder %v471, inf
  %v498 = vsel %vm497, %v471, %v496
  %vm499 = vcmp.eq.f32.partialorder %v471, 0.0
  %v500 = vand.u32 %v471, 2147483648
  %v501 = vsel %vm499, %v500, %v498
  %v502 = vrsqrt.pop %v472
  %v503 = vmul.f32 %v472, %v502
  %vm504 = vcmp.eq.f32.partialorder %v472, inf
  %v505 = vsel %vm504, %v472, %v503
  %vm506 = vcmp.eq.f32.partialorder %v472, 0.0
  %v507 = vand.u32 %v472, 2147483648
  %v508 = vsel %vm506, %v507, %v505
  %v509 = vrsqrt.pop %v473
  %v510 = vmul.f32 %v473, %v509
  %vm511 = vcmp.eq.f32.partialorder %v473, inf
  %v512 = vsel %vm511, %v473, %v510
  %vm513 = vcmp.eq.f32.partialorder %v473, 0.0
  %v514 = vand.u32 %v473, 2147483648
  %v515 = vsel %vm513, %v514, %v512
  %v516 = vrsqrt.pop %v474
  %v517 = vmul.f32 %v474, %v516
  %vm518 = vcmp.eq.f32.partialorder %v474, inf
  %v519 = vsel %vm518, %v474, %v517
  %vm520 = vcmp.eq.f32.partialorder %v474, 0.0
  %v521 = vand.u32 %v474, 2147483648
  %v522 = vsel %vm520, %v521, %v519
  %v523 = vrsqrt.pop %v475
  %v524 = vmul.f32 %v475, %v523
  %vm525 = vcmp.eq.f32.partialorder %v475, inf
  %v526 = vsel %vm525, %v475, %v524
  %vm527 = vcmp.eq.f32.partialorder %v475, 0.0
  %v528 = vand.u32 %v475, 2147483648
  %v529 = vsel %vm527, %v528, %v526
  %v530 = vrsqrt.pop %v476
  %v531 = vmul.f32 %v476, %v530
  %vm532 = vcmp.eq.f32.partialorder %v476, inf
  %v533 = vsel %vm532, %v476, %v531
  %vm534 = vcmp.eq.f32.partialorder %v476, 0.0
  %v535 = vand.u32 %v476, 2147483648
  %v536 = vsel %vm534, %v535, %v533
  %v537 = vrsqrt.pop %v477
  %v538 = vmul.f32 %v477, %v537
  %vm539 = vcmp.eq.f32.partialorder %v477, inf
  %v540 = vsel %vm539, %v477, %v538
  %vm541 = vcmp.eq.f32.partialorder %v477, 0.0
  %v542 = vand.u32 %v477, 2147483648
  %v543 = vsel %vm541, %v542, %v540
  %v544 = vrsqrt.pop %v478
  %v545 = vmul.f32 %v478, %v544
  %vm546 = vcmp.eq.f32.partialorder %v478, inf
  %v547 = vsel %vm546, %v478, %v545
  %vm548 = vcmp.eq.f32.partialorder %v478, 0.0
  %v549 = vand.u32 %v478, 2147483648
  %v550 = vsel %vm548, %v549, %v547
  %v551 = vrsqrt.pop %v479
  %v552 = vmul.f32 %v479, %v551
  %vm553 = vcmp.eq.f32.partialorder %v479, inf
  %v554 = vsel %vm553, %v479, %v552
  %vm555 = vcmp.eq.f32.partialorder %v479, 0.0
  %v556 = vand.u32 %v479, 2147483648
  %v557 = vsel %vm555, %v556, %v554
  %v558 = vrsqrt.pop %v480
  %v559 = vmul.f32 %v480, %v558
  %vm560 = vcmp.eq.f32.partialorder %v480, inf
  %v561 = vsel %vm560, %v480, %v559
  %vm562 = vcmp.eq.f32.partialorder %v480, 0.0
  %v563 = vand.u32 %v480, 2147483648
  %v564 = vsel %vm562, %v563, %v561
  %v565 = vrsqrt.pop %v481
  %v566 = vmul.f32 %v481, %v565
  %vm567 = vcmp.eq.f32.partialorder %v481, inf
  %v568 = vsel %vm567, %v481, %v566
  %vm569 = vcmp.eq.f32.partialorder %v481, 0.0
  %v570 = vand.u32 %v481, 2147483648
  %v571 = vsel %vm569, %v570, %v568
  %v572 = vrsqrt.pop %v482
  %v573 = vmul.f32 %v482, %v572
  %vm574 = vcmp.eq.f32.partialorder %v482, inf
  %v575 = vsel %vm574, %v482, %v573
  %vm576 = vcmp.eq.f32.partialorder %v482, 0.0
  %v577 = vand.u32 %v482, 2147483648
  %v578 = vsel %vm576, %v577, %v575
  %v579 = vrsqrt.pop %v483
  %v580 = vmul.f32 %v483, %v579
  %vm581 = vcmp.eq.f32.partialorder %v483, inf
  %v582 = vsel %vm581, %v483, %v580
  %vm583 = vcmp.eq.f32.partialorder %v483, 0.0
  %v584 = vand.u32 %v483, 2147483648
  %v585 = vsel %vm583, %v584, %v582
  %v586 = vrsqrt.pop %v484
  %v587 = vmul.f32 %v484, %v586
  %vm588 = vcmp.eq.f32.partialorder %v484, inf
  %v589 = vsel %vm588, %v484, %v587
  %vm590 = vcmp.eq.f32.partialorder %v484, 0.0
  %v591 = vand.u32 %v484, 2147483648
  %v592 = vsel %vm590, %v591, %v589
  %v593 = vrsqrt.pop %v485
  %v594 = vmul.f32 %v485, %v593
  %vm595 = vcmp.eq.f32.partialorder %v485, inf
  %v596 = vsel %vm595, %v485, %v594
  %vm597 = vcmp.eq.f32.partialorder %v485, 0.0
  %v598 = vand.u32 %v485, 2147483648
  %v599 = vsel %vm597, %v598, %v596
  %v600 = vrsqrt.pop %v486
  %v601 = vmul.f32 %v486, %v600
  %vm602 = vcmp.eq.f32.partialorder %v486, inf
  %v603 = vsel %vm602, %v486, %v601
  %vm604 = vcmp.eq.f32.partialorder %v486, 0.0
  %v605 = vand.u32 %v486, 2147483648
  %v606 = vsel %vm604, %v605, %v603
  %v607 = vrsqrt.pop %v487
  %v608 = vmul.f32 %v487, %v607
  %vm609 = vcmp.eq.f32.partialorder %v487, inf
  %v610 = vsel %vm609, %v487, %v608
  %vm611 = vcmp.eq.f32.partialorder %v487, 0.0
  %v612 = vand.u32 %v487, 2147483648
  %v613 = vsel %vm611, %v612, %v610
  %v614 = vadd.f32 %v494, 1e-10
  %v615 = vadd.f32 %v501, 1e-10
  %v616 = vadd.f32 %v508, 1e-10
  %v617 = vadd.f32 %v515, 1e-10
  %v618 = vadd.f32 %v522, 1e-10
  %v619 = vadd.f32 %v529, 1e-10
  %v620 = vadd.f32 %v536, 1e-10
  %v621 = vadd.f32 %v543, 1e-10
  %v622 = vadd.f32 %v550, 1e-10
  %v623 = vadd.f32 %v557, 1e-10
  %v624 = vadd.f32 %v564, 1e-10
  %v625 = vadd.f32 %v571, 1e-10
  %v626 = vadd.f32 %v578, 1e-10
  %v627 = vadd.f32 %v585, 1e-10
  %v628 = vadd.f32 %v592, 1e-10
  %v629 = vadd.f32 %v599, 1e-10
  %v630 = vadd.f32 %v606, 1e-10
  %v631 = vadd.f32 %v613, 1e-10
  %v632 = vlog2.pop %v614
  %v633 = vmul.f32 %v632, 0.6931472
  %v634 = vlog2.pop %v615
  %v635 = vmul.f32 %v634, 0.6931472
  %v636 = vlog2.pop %v616
  %v637 = vmul.f32 %v636, 0.6931472
  %v638 = vlog2.pop %v617
  %v639 = vmul.f32 %v638, 0.6931472
  %v640 = vlog2.pop %v618
  %v641 = vmul.f32 %v640, 0.6931472
  %v642 = vlog2.pop %v619
  %v643 = vmul.f32 %v642, 0.6931472
  %v644 = vlog2.pop %v620
  %v645 = vmul.f32 %v644, 0.6931472
  %v646 = vlog2.pop %v621
  %v647 = vmul.f32 %v646, 0.6931472
  %v648 = vlog2.pop %v622
  %v649 = vmul.f32 %v648, 0.6931472
  %v650 = vlog2.pop %v623
  %v651 = vmul.f32 %v650, 0.6931472
  %v652 = vlog2.pop %v624
  %v653 = vmul.f32 %v652, 0.6931472
  %v654 = vlog2.pop %v625
  %v655 = vmul.f32 %v654, 0.6931472
  %v656 = vlog2.pop %v626
  %v657 = vmul.f32 %v656, 0.6931472
  %v658 = vlog2.pop %v627
  %v659 = vmul.f32 %v658, 0.6931472
  %v660 = vlog2.pop %v628
  %v661 = vmul.f32 %v660, 0.6931472
  %v662 = vlog2.pop %v629
  %v663 = vmul.f32 %v662, 0.6931472
  %v664 = vlog2.pop %v630
  %v665 = vmul.f32 %v664, 0.6931472
  %v666 = vlog2.pop %v631
  %v667 = vmul.f32 %v666, 0.6931472
  %668 = vst [vmem:[%s2] sm:$0xff] %v633
  %669 = vst [vmem:[%s2 + $0x8] sm:$0xff] %v635
  %670 = vst [vmem:[%s2 + $0x10] sm:$0xff] %v637
  %671 = vst [vmem:[%s2 + $0x18] sm:$0xff] %v639
  %672 = vst [vmem:[%s2 + $0x20] sm:$0xff] %v641
  %673 = vst [vmem:[%s2 + $0x28] sm:$0xff] %v643
  %674 = vst [vmem:[%s2 + $0x30] sm:$0xff] %v645
  %675 = vst [vmem:[%s2 + $0x38] sm:$0xff] %v647
  %676 = vst [vmem:[%s2 + $0x40] sm:$0xff] %v649
  %677 = vst [vmem:[%s2 + $0x48] sm:$0xff] %v651
  %678 = vst [vmem:[%s2 + $0x50] sm:$0xff] %v653
  %679 = vst [vmem:[%s2 + $0x58] sm:$0xff] %v655
  %680 = vst [vmem:[%s2 + $0x60] sm:$0xff] %v657
  %681 = vst [vmem:[%s2 + $0x68] sm:$0xff] %v659
  %682 = vst [vmem:[%s2 + $0x70] sm:$0xff] %v661
  %683 = vst [vmem:[%s2 + $0x78] sm:$0xff] %v663
  %684 = vst [vmem:[%s2 + $0x80] sm:$0xff] %v665
  %685 = vst [vmem:[%s2 + $0x88] sm:$0xff] %v667
  // Predicated region
  $region10: #{frequency_discriminator.6} parent=0 // pred_check
    _
  $region11: #{frequency_discriminator.6} parent=0 // pred_check_branch
    %687 = sbr.rel (0) target = $region13
  $region12: #{frequency_discriminator.6} parent=0 // pred_region
    _
  $region13: #{frequency_discriminator.6} parent=0 // pred_fallthru
    _
  // Predicated region
  $region14: #{frequency_discriminator.6} parent=0 // pred_check
    _
  $region15: #{frequency_discriminator.6} parent=0 // pred_check_branch
    %689 = sbr.rel (0) target = $region17
  $region16: #{frequency_discriminator.6} parent=0 // pred_region
    _
  $region17: #{frequency_discriminator.6} parent=0 // pred_fallthru
    _

// kernel: frequency_discriminator.7
$region0: #{frequency_discriminator.7}
  #allocation0 [shape = 'u32[]', space=smem, size = 0x4, offset = 0x4, fixed_abs, tag = 'smem constant byte address 0x4 - core index']
  #allocation1 [shape = 'u32[144,128]{1,0:T(1,128)}', space=vmem, size = 0x12000, scoped, tag = 'internal scratch']
  #allocation2 [shape = 'f32[256,128]{1,0:T(8,128)}', space=vmem, size = 0x20000, scoped, tag = 'scratch operand']
  %s0 = inlined_call_operand.vmem [shape: bf16[2304,128], index: 0, kind: input, shape index: {}]
  %s1 = inlined_call_operand.vmem [shape: bf16[128,128], index: 1, kind: input, shape index: {}]
  %s2 = inlined_call_operand.vmem [shape: f32[2304,128], index: 2, kind: output, shape index: {}]
  %s3 = sld [smem:[#allocation0]]
  $region49: #{frequency_discriminator.7} parent=0
    _
  %s5 = ssub.s32 1, %s3
  %s6 = scalar_select 0, %s5, %s3
  loop: start=0, step=1, limit=11
  $region2: #{frequency_discriminator.7} parent=0 // loop_pre_header
    _
  $region3: #{frequency_discriminator.7} parent=0 // loop_header
    %s8 = sphi 0, %s12
    %p9 = scmp.ge.s32.totalorder %s8, 11
    %s15 = sphi 0, %s27
    %s16 = sphi 0, %s23
    %s17 = sphi 0, %s15
    %s18 = sphi 0, %s16
    %s19 = sphi 0, %s17
    %s20 = sphi 0, %s18
    %s32 = sphi 0, %s34
    %s35 = sphi 0, %s32
    %s36 = sphi 0, %s35
    %s52 = sphi 0, %s36
    %s58 = sphi 0, %s60
    %s61 = sphi 0, %s58
    %s62 = sphi 0, %s61
    %s78 = sphi 0, %s62
    %s84 = sphi 0, %s86
    %s87 = sphi 0, %s84
    %s88 = sphi 0, %s87
    %s104 = sphi 0, %s88
  $region4: #{frequency_discriminator.7} parent=0 // loop_header_branch
    %11 = sbr.rel (%p9) target = $region8
  $region5: #{frequency_discriminator.7} parent=0 // loop_body
    %s13 = ssub.s32 %s8, 1
    %s14 = ssub.s32 %s8, 2
    %s21 = sadd.s32 1, %s16
    %p22 = scmp.ge.s32.totalorder %s21, 1
    %s23 = scalar_select %p22, 0, %s21
    %s24 = sadd.s32 1, %s15
    %s25 = scalar_select %p22, %s24, %s15
    %p26 = scmp.ge.s32.totalorder %s25, 9
    %s27 = scalar_select %p26, 0, %s25
    %s28 = ssub.s32 %s15, %s27
    %s29 = ssub.s32 %s16, %s23
    %s30 = sor.u32 %s28, %s29
    %p31 = scmp.eq.s32.totalorder %s30, 0
    %s33 = sadd.s32 %s32, 1
    %s34 = scalar_select %p31, %s32, %s33
    %p37 = pneg %p31
    %p38 = scmp.eq.s32.totalorder %s8, 8
    %p39 = por %p37, %p38
    %p40 = scmp.ne.s32.totalorder %s32, %s35
    %p41 = scmp.eq.s32.totalorder %s8, 0
    %p42 = por %p40, %p41
    %p43 = scmp.ne.s32.totalorder %s32, %s35
    %p44 = scmp.eq.s32.totalorder %s13, 8
    %p45 = por %p43, %p44
    %p46 = scmp.ne.s32.totalorder %s35, %s36
    %p47 = scmp.eq.s32.totalorder %s13, 0
    %p48 = por %p46, %p47
    %p49 = scmp.ne.s32.totalorder %s35, %s36
    %p50 = scmp.eq.s32.totalorder %s14, 8
    %p51 = por %p49, %p50
    %p53 = scmp.ne.s32.totalorder %s36, %s52
    %p54 = scmp.eq.s32.totalorder %s14, 0
    %p55 = por %p53, %p54
    %s56 = ssub.s32 %s16, %s23
    %p57 = scmp.eq.s32.totalorder %s56, 0
    %s59 = sadd.s32 %s58, 1
    %s60 = scalar_select %p57, %s58, %s59
    %p63 = pneg %p57
    %p64 = scmp.eq.s32.totalorder %s8, 8
    %p65 = por %p63, %p64
    %p66 = scmp.ne.s32.totalorder %s58, %s61
    %p67 = scmp.eq.s32.totalorder %s8, 0
    %p68 = por %p66, %p67
    %p69 = scmp.ne.s32.totalorder %s58, %s61
    %p70 = scmp.eq.s32.totalorder %s13, 8
    %p71 = por %p69, %p70
    %p72 = scmp.ne.s32.totalorder %s61, %s62
    %p73 = scmp.eq.s32.totalorder %s13, 0
    %p74 = por %p72, %p73
    %p75 = scmp.ne.s32.totalorder %s61, %s62
    %p76 = scmp.eq.s32.totalorder %s14, 8
    %p77 = por %p75, %p76
    %p79 = scmp.ne.s32.totalorder %s62, %s78
    %p80 = scmp.eq.s32.totalorder %s14, 0
    %p81 = por %p79, %p80
    %s82 = ssub.s32 %s15, %s27
    %p83 = scmp.eq.s32.totalorder %s82, 0
    %s85 = sadd.s32 %s84, 1
    %s86 = scalar_select %p83, %s84, %s85
    %p89 = pneg %p83
    %p90 = scmp.eq.s32.totalorder %s8, 8
    %p91 = por %p89, %p90
    %p92 = scmp.ne.s32.totalorder %s84, %s87
    %p93 = scmp.eq.s32.totalorder %s8, 0
    %p94 = por %p92, %p93
    %p95 = scmp.ne.s32.totalorder %s84, %s87
    %p96 = scmp.eq.s32.totalorder %s13, 8
    %p97 = por %p95, %p96
    %p98 = scmp.ne.s32.totalorder %s87, %s88
    %p99 = scmp.eq.s32.totalorder %s13, 0
    %p100 = por %p98, %p99
    %p101 = scmp.ne.s32.totalorder %s87, %s88
    %p102 = scmp.eq.s32.totalorder %s14, 8
    %p103 = por %p101, %p102
    %p105 = scmp.ne.s32.totalorder %s88, %s104
    %p106 = scmp.eq.s32.totalorder %s14, 0
    %p107 = por %p105, %p106
    %p108 = scmp.le.s32.totalorder 1, %s8
    %p109 = scmp.lt.s32.totalorder %s8, 10
    %p110 = pnand %p108, %p109
    %p111 = pneg %p110
    // Predicated region
    $region9: #{frequency_discriminator.7} parent=5 // pred_check
      _
    $region10: #{frequency_discriminator.7} parent=5 // pred_check_branch
      %113 = sbr.rel (%p110) target = $region12
    $region11: #{frequency_discriminator.7} parent=5 // pred_region
      %s114 = ssub.s32 %s8, 1
      // Predicated region
      $region13: #{frequency_discriminator.7} parent=11 // pred_check
        %p115 = pneg %p74
      $region14: #{frequency_discriminator.7} parent=11 // pred_check_branch
        %117 = sbr.rel (%p115) target = $region16
      $region15: #{frequency_discriminator.7} parent=11 // pred_region
        %s118 = smul.u32 16, %s18
        %p119 = scmp.lt.s32.totalorder %s118, 15
        %s120 = scalar_select %p119, %s118, 15
        %s121 = smul.addr %s120, 4
        %s122 = scalar_lea.vmem %s1, %s121
        %s123 = smul.u32 16, %s18
      $region16: #{frequency_discriminator.7} parent=11 // pred_fallthru
        _
    $region12: #{frequency_discriminator.7} parent=5 // pred_fallthru
      _
    %p124 = scmp.lt.s32.totalorder %s8, 9
    // Predicated region
    $region17: #{frequency_discriminator.7} parent=5 // pred_check
      %p125 = pneg %p124
    $region18: #{frequency_discriminator.7} parent=5 // pred_check_branch
      %127 = sbr.rel (%p125) target = $region20
    $region19: #{frequency_discriminator.7} parent=5 // pred_region
      // Predicated region
      $region21: #{frequency_discriminator.7} parent=19 // pred_check
        %p128 = pneg %p42
      $region22: #{frequency_discriminator.7} parent=19 // pred_check_branch
        %130 = sbr.rel (%p128) target = $region24
      $region23: #{frequency_discriminator.7} parent=19 // pred_region
        %s131 = smul.u32 32, %s15
        %p132 = scmp.lt.s32.totalorder %s131, 287
        %s133 = scalar_select %p132, %s131, 287
        %p134 = scmp.lt.s32.totalorder %s16, 0
        %s135 = scalar_select %p134, %s16, 0
        %s136 = sadd.s32 %s135, %s133
        %s137 = smul.addr %s136, 4
        %s138 = scalar_lea.vmem %s0, %s137
        %s139 = smul.u32 32, %s15
      $region24: #{frequency_discriminator.7} parent=19 // pred_fallthru
        _
    $region20: #{frequency_discriminator.7} parent=5 // pred_fallthru
      _
    %p140 = scmp.le.s32.totalorder 1, %s8
    %p141 = scmp.lt.s32.totalorder %s8, 10
    %p142 = pnand %p140, %p141
    %p143 = pneg %p142
    // Predicated region
    $region25: #{frequency_discriminator.7} parent=5 // pred_check
      _
    $region26: #{frequency_discriminator.7} parent=5 // pred_check_branch
      %145 = sbr.rel (%p142) target = $region28
    $region27: #{frequency_discriminator.7} parent=5 // pred_region
      %s146 = ssub.s32 %s8, 1
      %s147 = smul.u32 32, %s17
      %p148 = scmp.lt.s32.totalorder %s147, 287
      %s149 = scalar_select %p148, %s147, 287
      %p150 = scmp.lt.s32.totalorder %s18, 0
      %s151 = scalar_select %p150, %s18, 0
      %s152 = sadd.s32 %s151, %s149
      %s153 = smul.addr %s152, 4
      %s154 = scalar_lea.vmem %s0, %s153
      %p155 = pneg %p48
      %p156 = pneg %p45
      %s157 = smul.u32 16, %s18
      %p158 = scmp.lt.s32.totalorder %s157, 15
      %s159 = scalar_select %p158, %s157, 15
      %s160 = smul.addr %s159, 4
      %s161 = scalar_lea.vmem %s1, %s160
      %p162 = pneg %p74
      %p163 = pneg %p71
      %p164 = pneg %p100
      %p165 = pneg %p97
      %s166 = smul.u32 32, %s17
      %p167 = scmp.lt.s32.totalorder %s166, 287
      %s168 = scalar_select %p167, %s166, 287
      %s169 = smul.addr %s168, 8
      %s170 = scalar_lea.vmem %s2, %s169
      %s171 = smul.u32 32, %s17
      %p172 = scmp.lt.s32.totalorder %s171, 287
      %s173 = scalar_select %p172, %s171, 287
      %p174 = scmp.lt.s32.totalorder %s18, 0
      %s175 = scalar_select %p174, %s18, 0
      %s176 = sadd.s32 %s175, %s173
      %s177 = smul.addr %s176, 4
      %s178 = scalar_lea.vmem %s0, %s177
      %s179 = smul.u32 32, %s17
      %s180 = smul.u32 16, %s18
      %p181 = scmp.lt.s32.totalorder %s180, 15
      %s182 = scalar_select %p181, %s180, 15
      %s183 = smul.addr %s182, 4
      %s184 = scalar_lea.vmem %s1, %s183
      %s185 = smul.u32 16, %s18
      %s186 = smul.u32 32, %s17
      %p187 = scmp.lt.s32.totalorder %s186, 287
      %s188 = scalar_select %p187, %s186, 287
      %s189 = smul.addr %s188, 8
      %s190 = scalar_lea.vmem %s2, %s189
      %s191 = smul.u32 32, %s17
      %p193 = scmp.eq.s32.totalorder %s18, 0
      // Predicated region
      $region29: #{frequency_discriminator.7} parent=27 // pred_check
        %p194 = pneg %p193
      $region30: #{frequency_discriminator.7} parent=27 // pred_check_branch
        %196 = sbr.rel (%p194) target = $region32
      $region31: #{frequency_discriminator.7} parent=27 // pred_region
        %197 = vst [vmem:[#allocation2] sm:$0xff] 0.0
        %198 = vst [vmem:[#allocation2 + $0x8] sm:$0xff] 0.0
        %199 = vst [vmem:[#allocation2 + $0x10] sm:$0xff] 0.0
        %200 = vst [vmem:[#allocation2 + $0x18] sm:$0xff] 0.0
        %201 = vst [vmem:[#allocation2 + $0x20] sm:$0xff] 0.0
        %202 = vst [vmem:[#allocation2 + $0x28] sm:$0xff] 0.0
        %203 = vst [vmem:[#allocation2 + $0x30] sm:$0xff] 0.0
        %204 = vst [vmem:[#allocation2 + $0x38] sm:$0xff] 0.0
        %205 = vst [vmem:[#allocation2 + $0x40] sm:$0xff] 0.0
        %206 = vst [vmem:[#allocation2 + $0x48] sm:$0xff] 0.0
        %207 = vst [vmem:[#allocation2 + $0x50] sm:$0xff] 0.0
        %208 = vst [vmem:[#allocation2 + $0x58] sm:$0xff] 0.0
        %209 = vst [vmem:[#allocation2 + $0x60] sm:$0xff] 0.0
        %210 = vst [vmem:[#allocation2 + $0x68] sm:$0xff] 0.0
        %211 = vst [vmem:[#allocation2 + $0x70] sm:$0xff] 0.0
        %212 = vst [vmem:[#allocation2 + $0x78] sm:$0xff] 0.0
        %213 = vst [vmem:[#allocation2 + $0x80] sm:$0xff] 0.0
        %214 = vst [vmem:[#allocation2 + $0x88] sm:$0xff] 0.0
        %215 = vst [vmem:[#allocation2 + $0x90] sm:$0xff] 0.0
        %216 = vst [vmem:[#allocation2 + $0x98] sm:$0xff] 0.0
        %217 = vst [vmem:[#allocation2 + $0xa0] sm:$0xff] 0.0
        %218 = vst [vmem:[#allocation2 + $0xa8] sm:$0xff] 0.0
        %219 = vst [vmem:[#allocation2 + $0xb0] sm:$0xff] 0.0
        %220 = vst [vmem:[#allocation2 + $0xb8] sm:$0xff] 0.0
        %221 = vst [vmem:[#allocation2 + $0xc0] sm:$0xff] 0.0
        %222 = vst [vmem:[#allocation2 + $0xc8] sm:$0xff] 0.0
        %223 = vst [vmem:[#allocation2 + $0xd0] sm:$0xff] 0.0
        %224 = vst [vmem:[#allocation2 + $0xd8] sm:$0xff] 0.0
        %225 = vst [vmem:[#allocation2 + $0xe0] sm:$0xff] 0.0
        %226 = vst [vmem:[#allocation2 + $0xe8] sm:$0xff] 0.0
        %227 = vst [vmem:[#allocation2 + $0xf0] sm:$0xff] 0.0
        %228 = vst [vmem:[#allocation2 + $0xf8] sm:$0xff] 0.0
      $region32: #{frequency_discriminator.7} parent=27 // pred_fallthru
        _
      %v229 = vld [vmem:[#allocation2] sm:$0xff]
      %v230 = vld [vmem:[#allocation2 + $0x8] sm:$0xff]
      %v231 = vld [vmem:[#allocation2 + $0x10] sm:$0xff]
      %v232 = vld [vmem:[#allocation2 + $0x18] sm:$0xff]
      %v233 = vld [vmem:[#allocation2 + $0x20] sm:$0xff]
      %v234 = vld [vmem:[#allocation2 + $0x28] sm:$0xff]
      %v235 = vld [vmem:[#allocation2 + $0x30] sm:$0xff]
      %v236 = vld [vmem:[#allocation2 + $0x38] sm:$0xff]
      %v237 = vld [vmem:[#allocation2 + $0x40] sm:$0xff]
      %v238 = vld [vmem:[#allocation2 + $0x48] sm:$0xff]
      %v239 = vld [vmem:[#allocation2 + $0x50] sm:$0xff]
      %v240 = vld [vmem:[#allocation2 + $0x58] sm:$0xff]
      %v241 = vld [vmem:[#allocation2 + $0x60] sm:$0xff]
      %v242 = vld [vmem:[#allocation2 + $0x68] sm:$0xff]
      %v243 = vld [vmem:[#allocation2 + $0x70] sm:$0xff]
      %v244 = vld [vmem:[#allocation2 + $0x78] sm:$0xff]
      %v245 = vld [vmem:[#allocation2 + $0x80] sm:$0xff]
      %v246 = vld [vmem:[#allocation2 + $0x88] sm:$0xff]
      %v247 = vld [vmem:[#allocation2 + $0x90] sm:$0xff]
      %v248 = vld [vmem:[#allocation2 + $0x98] sm:$0xff]
      %v249 = vld [vmem:[#allocation2 + $0xa0] sm:$0xff]
      %v250 = vld [vmem:[#allocation2 + $0xa8] sm:$0xff]
      %v251 = vld [vmem:[#allocation2 + $0xb0] sm:$0xff]
      %v252 = vld [vmem:[#allocation2 + $0xb8] sm:$0xff]
      %v253 = vld [vmem:[#allocation2 + $0xc0] sm:$0xff]
      %v254 = vld [vmem:[#allocation2 + $0xc8] sm:$0xff]
      %v255 = vld [vmem:[#allocation2 + $0xd0] sm:$0xff]
      %v256 = vld [vmem:[#allocation2 + $0xd8] sm:$0xff]
      %v257 = vld [vmem:[#allocation2 + $0xe0] sm:$0xff]
      %v258 = vld [vmem:[#allocation2 + $0xe8] sm:$0xff]
      %v259 = vld [vmem:[#allocation2 + $0xf0] sm:$0xff]
      %v260 = vld [vmem:[#allocation2 + $0xf8] sm:$0xff]
      %v261 = vld [vmem:[%s178] sm:$0xf]
      %v262 = vld [vmem:[%s178 + $0x4] sm:$0xf]
      %v263 = vld [vmem:[%s178 + $0x8] sm:$0xf]
      %v264 = vld [vmem:[%s178 + $0xc] sm:$0xf]
      %v265 = vld [vmem:[%s178 + $0x10] sm:$0xf]
      %v266 = vld [vmem:[%s178 + $0x14] sm:$0xf]
      %v267 = vld [vmem:[%s178 + $0x18] sm:$0xf]
      %v268 = vld [vmem:[%s178 + $0x1c] sm:$0xf]
      %v269 = vld [vmem:[%s178 + $0x20] sm:$0xf]
      %v270 = vld [vmem:[%s178 + $0x24] sm:$0xf]
      %v271 = vld [vmem:[%s178 + $0x28] sm:$0xf]
      %v272 = vld [vmem:[%s178 + $0x2c] sm:$0xf]
      %v273 = vld [vmem:[%s178 + $0x30] sm:$0xf]
      %v274 = vld [vmem:[%s178 + $0x34] sm:$0xf]
      %v275 = vld [vmem:[%s178 + $0x38] sm:$0xf]
      %v276 = vld [vmem:[%s178 + $0x3c] sm:$0xf]
      %v277 = vld [vmem:[%s178 + $0x40] sm:$0xf]
      %v278 = vld [vmem:[%s178 + $0x44] sm:$0xf]
      %v279 = vld [vmem:[%s178 + $0x48] sm:$0xf]
      %v280 = vld [vmem:[%s178 + $0x4c] sm:$0xf]
      %v281 = vld [vmem:[%s178 + $0x50] sm:$0xf]
      %v282 = vld [vmem:[%s178 + $0x54] sm:$0xf]
      %v283 = vld [vmem:[%s178 + $0x58] sm:$0xf]
      %v284 = vld [vmem:[%s178 + $0x5c] sm:$0xf]
      %v285 = vld [vmem:[%s178 + $0x60] sm:$0xf]
      %v286 = vld [vmem:[%s178 + $0x64] sm:$0xf]
      %v287 = vld [vmem:[%s178 + $0x68] sm:$0xf]
      %v288 = vld [vmem:[%s178 + $0x6c] sm:$0xf]
      %v289 = vld [vmem:[%s178 + $0x70] sm:$0xf]
      %v290 = vld [vmem:[%s178 + $0x74] sm:$0xf]
      %v291 = vld [vmem:[%s178 + $0x78] sm:$0xf]
      %v292 = vld [vmem:[%s178 + $0x7c] sm:$0xf]
      %v293 = vld [vmem:[%s184] sm:$0xf]
      %v294 = vld [vmem:[%s184 + $0x4] sm:$0xf]
      %v295 = vld [vmem:[%s184 + $0x8] sm:$0xf]
      %v296 = vld [vmem:[%s184 + $0xc] sm:$0xf]
      %v297 = vld [vmem:[%s184 + $0x10] sm:$0xf]
      %v298 = vld [vmem:[%s184 + $0x14] sm:$0xf]
      %v299 = vld [vmem:[%s184 + $0x18] sm:$0xf]
      %v300 = vld [vmem:[%s184 + $0x1c] sm:$0xf]
      %v301 = vld [vmem:[%s184 + $0x20] sm:$0xf]
      %v302 = vld [vmem:[%s184 + $0x24] sm:$0xf]
      %v303 = vld [vmem:[%s184 + $0x28] sm:$0xf]
      %v304 = vld [vmem:[%s184 + $0x2c] sm:$0xf]
      %v305 = vld [vmem:[%s184 + $0x30] sm:$0xf]
      %v306 = vld [vmem:[%s184 + $0x34] sm:$0xf]
      %v307 = vld [vmem:[%s184 + $0x38] sm:$0xf]
      %v308 = vld [vmem:[%s184 + $0x3c] sm:$0xf]
      %v341 = vunpack.c.l.b16 %v261
      %v342 = vunpack.c.l.b16 %v262
      %v343 = vunpack.c.l.b16 %v263
      %v344 = vunpack.c.l.b16 %v264
      %v345 = vunpack.c.l.b16 %v265
      %v346 = vunpack.c.l.b16 %v266
      %v347 = vunpack.c.l.b16 %v267
      %v348 = vunpack.c.l.b16 %v268
      %v349 = vunpack.c.l.b16 %v269
      %v350 = vunpack.c.l.b16 %v270
      %v351 = vunpack.c.l.b16 %v271
      %v352 = vunpack.c.l.b16 %v272
      %v353 = vunpack.c.l.b16 %v273
      %v354 = vunpack.c.l.b16 %v274
      %v355 = vunpack.c.l.b16 %v275
      %v356 = vunpack.c.l.b16 %v276
      %v357 = vunpack.c.l.b16 %v277
      %v358 = vunpack.c.l.b16 %v278
      %v359 = vunpack.c.l.b16 %v279
      %v360 = vunpack.c.l.b16 %v280
      %v361 = vunpack.c.l.b16 %v281
      %v362 = vunpack.c.l.b16 %v282
      %v363 = vunpack.c.l.b16 %v283
      %v364 = vunpack.c.l.b16 %v284
      %v365 = vunpack.c.l.b16 %v285
      %v366 = vunpack.c.l.b16 %v286
      %v367 = vunpack.c.l.b16 %v287
      %v368 = vunpack.c.l.b16 %v288
      %v369 = vunpack.c.l.b16 %v289
      %v370 = vunpack.c.l.b16 %v290
      %v371 = vunpack.c.l.b16 %v291
      %v372 = vunpack.c.l.b16 %v292
      %v373 = vpack.c.b16 %v342, %v341
      %v374 = vpack.c.b16 %v344, %v343
      %v375 = vpack.c.b16 %v346, %v345
      %v376 = vpack.c.b16 %v348, %v347
      %v377 = vpack.c.b16 %v350, %v349
      %v378 = vpack.c.b16 %v352, %v351
      %v379 = vpack.c.b16 %v354, %v353
      %v380 = vpack.c.b16 %v356, %v355
      %v381 = vpack.c.b16 %v358, %v357
      %v382 = vpack.c.b16 %v360, %v359
      %v383 = vpack.c.b16 %v362, %v361
      %v384 = vpack.c.b16 %v364, %v363
      %v385 = vpack.c.b16 %v366, %v365
      %v386 = vpack.c.b16 %v368, %v367
      %v387 = vpack.c.b16 %v370, %v369
      %v388 = vpack.c.b16 %v372, %v371
      %v421 = vunpack.c.l.b16 %v293
      %v422 = vunpack.c.l.b16 %v294
      %v423 = vunpack.c.l.b16 %v295
      %v424 = vunpack.c.l.b16 %v296
      %v425 = vunpack.c.l.b16 %v297
      %v426 = vunpack.c.l.b16 %v298
      %v427 = vunpack.c.l.b16 %v299
      %v428 = vunpack.c.l.b16 %v300
      %v429 = vunpack.c.l.b16 %v301
      %v430 = vunpack.c.l.b16 %v302
      %v431 = vunpack.c.l.b16 %v303
      %v432 = vunpack.c.l.b16 %v304
      %v433 = vunpack.c.l.b16 %v305
      %v434 = vunpack.c.l.b16 %v306
      %v435 = vunpack.c.l.b16 %v307
      %v436 = vunpack.c.l.b16 %v308
      %v437 = vpack.c.b16 %v422, %v421
      %v438 = vpack.c.b16 %v424, %v423
      %v439 = vpack.c.b16 %v426, %v425
      %v440 = vpack.c.b16 %v428, %v427
      %v441 = vpack.c.b16 %v430, %v429
      %v442 = vpack.c.b16 %v432, %v431
      %v443 = vpack.c.b16 %v434, %v433
      %v444 = vpack.c.b16 %v436, %v435
      %453 = vmatprep.subr.bf16.mxu0 0
      %454 = vmatpush1.bf16.msra.mxu0 %v437
      %455 = vmatprep.subr.bf16.mxu0 0
      %456 = vmatpush1.bf16.msra.mxu0 %v438
      %457 = vmatprep.subr.bf16.mxu0 0
      %458 = vmatpush1.bf16.msra.mxu0 %v439
      %459 = vmatprep.subr.bf16.mxu0 0
      %460 = vmatpush1.bf16.msra.mxu0 %v440
      %461 = vmatprep.subr.bf16.mxu0 0
      %462 = vmatpush1.bf16.msra.mxu0 %v441
      %463 = vmatprep.subr.bf16.mxu0 0
      %464 = vmatpush1.bf16.msra.mxu0 %v442
      %465 = vmatprep.subr.bf16.mxu0 0
      %466 = vmatpush1.bf16.msra.mxu0 %v443
      %467 = vmatprep.subr.bf16.mxu0 0
      %468 = vmatpush1.bf16.msra.mxu0 %v444
      %469 = vmatprep.subr.bf16.mxu0 0
      %470 = vmatpush1.bf16.msra.mxu0 0
      %471 = vmatprep.subr.bf16.mxu0 0
      %472 = vmatpush1.bf16.msra.mxu0 0
      %473 = vmatprep.subr.bf16.mxu0 0
      %474 = vmatpush1.bf16.msra.mxu0 0
      %475 = vmatprep.subr.bf16.mxu0 0
      %476 = vmatpush1.bf16.msra.mxu0 0
      %477 = vmatprep.subr.bf16.mxu0 0
      %478 = vmatpush1.bf16.msra.mxu0 0
      %479 = vmatprep.subr.bf16.mxu0 0
      %480 = vmatpush1.bf16.msra.mxu0 0
      %481 = vmatprep.subr.bf16.mxu0 0
      %482 = vmatpush1.bf16.msra.mxu0 0
      %483 = vmatprep.subr.bf16.mxu0 0
      %484 = vmatpush1.bf16.msra.mxu0 0
      %485 = vmatprep.mubr.bf16.mxu0 0
      %486 = vmatmul.mubr.bf16.gmra.mrb[0].mxu0 %v373
      %v487 = vpop.f32.mrb[0].mxu0
      %v488 = vadd.f32 0.0, %v487
      %v489 = vpop.f32.mrb[0].mxu0
      %v490 = vpop.f32.mrb[0].mxu0
      %v491 = vadd.f32 0.0, %v490
      %v492 = vpop.f32.mrb[0].mxu0
      %493 = vmatprep.mubr.bf16.mxu0 0
      %494 = vmatmul.mubr.bf16.gmra.mrb[0].mxu0 %v374
      %v495 = vpop.f32.mrb[0].mxu0
      %v496 = vadd.f32 0.0, %v495
      %v497 = vpop.f32.mrb[0].mxu0
      %v498 = vpop.f32.mrb[0].mxu0
      %v499 = vadd.f32 0.0, %v498
      %v500 = vpop.f32.mrb[0].mxu0
      %501 = vmatprep.mubr.bf16.mxu0 0
      %502 = vmatmul.mubr.bf16.gmra.mrb[0].mxu0 %v375
      %v503 = vpop.f32.mrb[0].mxu0
      %v504 = vadd.f32 0.0, %v503
      %v505 = vpop.f32.mrb[0].mxu0
      %v506 = vpop.f32.mrb[0].mxu0
      %v507 = vadd.f32 0.0, %v506
      %v508 = vpop.f32.mrb[0].mxu0
      %509 = vmatprep.mubr.bf16.mxu0 0
      %510 = vmatmul.mubr.bf16.gmra.mrb[0].mxu0 %v376
      %v511 = vpop.f32.mrb[0].mxu0
      %v512 = vadd.f32 0.0, %v511
      %v513 = vpop.f32.mrb[0].mxu0
      %v514 = vpop.f32.mrb[0].mxu0
      %v515 = vadd.f32 0.0, %v514
      %v516 = vpop.f32.mrb[0].mxu0
      %517 = vmatprep.mubr.bf16.mxu0 0
      %518 = vmatmul.mubr.bf16.gmra.mrb[0].mxu0 %v377
      %v519 = vpop.f32.mrb[0].mxu0
      %v520 = vadd.f32 0.0, %v519
      %v521 = vpop.f32.mrb[0].mxu0
      %v522 = vpop.f32.mrb[0].mxu0
      %v523 = vadd.f32 0.0, %v522
      %v524 = vpop.f32.mrb[0].mxu0
      %525 = vmatprep.mubr.bf16.mxu0 0
      %526 = vmatmul.mubr.bf16.gmra.mrb[0].mxu0 %v378
      %v527 = vpop.f32.mrb[0].mxu0
      %v528 = vadd.f32 0.0, %v527
      %v529 = vpop.f32.mrb[0].mxu0
      %v530 = vpop.f32.mrb[0].mxu0
      %v531 = vadd.f32 0.0, %v530
      %v532 = vpop.f32.mrb[0].mxu0
      %533 = vmatprep.mubr.bf16.mxu0 0
      %534 = vmatmul.mubr.bf16.gmra.mrb[0].mxu0 %v379
      %v535 = vpop.f32.mrb[0].mxu0
      %v536 = vadd.f32 0.0, %v535
      %v537 = vpop.f32.mrb[0].mxu0
      %v538 = vpop.f32.mrb[0].mxu0
      %v539 = vadd.f32 0.0, %v538
      %v540 = vpop.f32.mrb[0].mxu0
      %541 = vmatprep.mubr.bf16.mxu0 0
      %542 = vmatmul.mubr.bf16.gmra.mrb[0].mxu0 %v380
      %v543 = vpop.f32.mrb[0].mxu0
      %v544 = vadd.f32 0.0, %v543
      %v545 = vpop.f32.mrb[0].mxu0
      %v546 = vpop.f32.mrb[0].mxu0
      %v547 = vadd.f32 0.0, %v546
      %v548 = vpop.f32.mrb[0].mxu0
      %549 = vmatprep.mubr.bf16.mxu0 0
      %550 = vmatmul.mubr.bf16.gmra.mrb[0].mxu0 %v381
      %v551 = vpop.f32.mrb[0].mxu0
      %v552 = vadd.f32 0.0, %v551
      %v553 = vpop.f32.mrb[0].mxu0
      %v554 = vpop.f32.mrb[0].mxu0
      %v555 = vadd.f32 0.0, %v554
      %v556 = vpop.f32.mrb[0].mxu0
      %557 = vmatprep.mubr.bf16.mxu0 0
      %558 = vmatmul.mubr.bf16.gmra.mrb[0].mxu0 %v382
      %v559 = vpop.f32.mrb[0].mxu0
      %v560 = vadd.f32 0.0, %v559
      %v561 = vpop.f32.mrb[0].mxu0
      %v562 = vpop.f32.mrb[0].mxu0
      %v563 = vadd.f32 0.0, %v562
      %v564 = vpop.f32.mrb[0].mxu0
      %565 = vmatprep.mubr.bf16.mxu0 0
      %566 = vmatmul.mubr.bf16.gmra.mrb[0].mxu0 %v383
      %v567 = vpop.f32.mrb[0].mxu0
      %v568 = vadd.f32 0.0, %v567
      %v569 = vpop.f32.mrb[0].mxu0
      %v570 = vpop.f32.mrb[0].mxu0
      %v571 = vadd.f32 0.0, %v570
      %v572 = vpop.f32.mrb[0].mxu0
      %573 = vmatprep.mubr.bf16.mxu0 0
      %574 = vmatmul.mubr.bf16.gmra.mrb[0].mxu0 %v384
      %v575 = vpop.f32.mrb[0].mxu0
      %v576 = vadd.f32 0.0, %v575
      %v577 = vpop.f32.mrb[0].mxu0
      %v578 = vpop.f32.mrb[0].mxu0
      %v579 = vadd.f32 0.0, %v578
      %v580 = vpop.f32.mrb[0].mxu0
      %581 = vmatprep.mubr.bf16.mxu0 0
      %582 = vmatmul.mubr.bf16.gmra.mrb[0].mxu0 %v385
      %v583 = vpop.f32.mrb[0].mxu0
      %v584 = vadd.f32 0.0, %v583
      %v585 = vpop.f32.mrb[0].mxu0
      %v586 = vpop.f32.mrb[0].mxu0
      %v587 = vadd.f32 0.0, %v586
      %v588 = vpop.f32.mrb[0].mxu0
      %589 = vmatprep.mubr.bf16.mxu0 0
      %590 = vmatmul.mubr.bf16.gmra.mrb[0].mxu0 %v386
      %v591 = vpop.f32.mrb[0].mxu0
      %v592 = vadd.f32 0.0, %v591
      %v593 = vpop.f32.mrb[0].mxu0
      %v594 = vpop.f32.mrb[0].mxu0
      %v595 = vadd.f32 0.0, %v594
      %v596 = vpop.f32.mrb[0].mxu0
      %597 = vmatprep.mubr.bf16.mxu0 0
      %598 = vmatmul.mubr.bf16.gmra.mrb[0].mxu0 %v387
      %v599 = vpop.f32.mrb[0].mxu0
      %v600 = vadd.f32 0.0, %v599
      %v601 = vpop.f32.mrb[0].mxu0
      %v602 = vpop.f32.mrb[0].mxu0
      %v603 = vadd.f32 0.0, %v602
      %v604 = vpop.f32.mrb[0].mxu0
      %605 = vmatprep.mubr.bf16.mxu0 0
      %606 = vmatmul.mubr.bf16.gmra.mrb[0].mxu0 %v388
      %v607 = vpop.f32.mrb[0].mxu0
      %v608 = vadd.f32 0.0, %v607
      %v609 = vpop.f32.mrb[0].mxu0
      %v610 = vpop.f32.mrb[0].mxu0
      %v611 = vadd.f32 0.0, %v610
      %v612 = vpop.f32.mrb[0].mxu0
      %613 = vdwg.mxu0
      %v614 = vadd.f32 %v229, %v488
      %v615 = vadd.f32 %v230, %v491
      %v616 = vadd.f32 %v231, %v496
      %v617 = vadd.f32 %v232, %v499
      %v618 = vadd.f32 %v233, %v504
      %v619 = vadd.f32 %v234, %v507
      %v620 = vadd.f32 %v235, %v512
      %v621 = vadd.f32 %v236, %v515
      %v622 = vadd.f32 %v237, %v520
      %v623 = vadd.f32 %v238, %v523
      %v624 = vadd.f32 %v239, %v528
      %v625 = vadd.f32 %v240, %v531
      %v626 = vadd.f32 %v241, %v536
      %v627 = vadd.f32 %v242, %v539
      %v628 = vadd.f32 %v243, %v544
      %v629 = vadd.f32 %v244, %v547
      %v630 = vadd.f32 %v245, %v552
      %v631 = vadd.f32 %v246, %v555
      %v632 = vadd.f32 %v247, %v560
      %v633 = vadd.f32 %v248, %v563
      %v634 = vadd.f32 %v249, %v568
      %v635 = vadd.f32 %v250, %v571
      %v636 = vadd.f32 %v251, %v576
      %v637 = vadd.f32 %v252, %v579
      %v638 = vadd.f32 %v253, %v584
      %v639 = vadd.f32 %v254, %v587
      %v640 = vadd.f32 %v255, %v592
      %v641 = vadd.f32 %v256, %v595
      %v642 = vadd.f32 %v257, %v600
      %v643 = vadd.f32 %v258, %v603
      %v644 = vadd.f32 %v259, %v608
      %v645 = vadd.f32 %v260, %v611
      %646 = vst [vmem:[#allocation2] sm:$0xff] %v614
      %647 = vst [vmem:[#allocation2 + $0x8] sm:$0xff] %v615
      %648 = vst [vmem:[#allocation2 + $0x10] sm:$0xff] %v616
      %649 = vst [vmem:[#allocation2 + $0x18] sm:$0xff] %v617
      %650 = vst [vmem:[#allocation2 + $0x20] sm:$0xff] %v618
      %651 = vst [vmem:[#allocation2 + $0x28] sm:$0xff] %v619
      %652 = vst [vmem:[#allocation2 + $0x30] sm:$0xff] %v620
      %653 = vst [vmem:[#allocation2 + $0x38] sm:$0xff] %v621
      %654 = vst [vmem:[#allocation2 + $0x40] sm:$0xff] %v622
      %655 = vst [vmem:[#allocation2 + $0x48] sm:$0xff] %v623
      %656 = vst [vmem:[#allocation2 + $0x50] sm:$0xff] %v624
      %657 = vst [vmem:[#allocation2 + $0x58] sm:$0xff] %v625
      %658 = vst [vmem:[#allocation2 + $0x60] sm:$0xff] %v626
      %659 = vst [vmem:[#allocation2 + $0x68] sm:$0xff] %v627
      %660 = vst [vmem:[#allocation2 + $0x70] sm:$0xff] %v628
      %661 = vst [vmem:[#allocation2 + $0x78] sm:$0xff] %v629
      %662 = vst [vmem:[#allocation2 + $0x80] sm:$0xff] %v630
      %663 = vst [vmem:[#allocation2 + $0x88] sm:$0xff] %v631
      %664 = vst [vmem:[#allocation2 + $0x90] sm:$0xff] %v632
      %665 = vst [vmem:[#allocation2 + $0x98] sm:$0xff] %v633
      %666 = vst [vmem:[#allocation2 + $0xa0] sm:$0xff] %v634
      %667 = vst [vmem:[#allocation2 + $0xa8] sm:$0xff] %v635
      %668 = vst [vmem:[#allocation2 + $0xb0] sm:$0xff] %v636
      %669 = vst [vmem:[#allocation2 + $0xb8] sm:$0xff] %v637
      %670 = vst [vmem:[#allocation2 + $0xc0] sm:$0xff] %v638
      %671 = vst [vmem:[#allocation2 + $0xc8] sm:$0xff] %v639
      %672 = vst [vmem:[#allocation2 + $0xd0] sm:$0xff] %v640
      %673 = vst [vmem:[#allocation2 + $0xd8] sm:$0xff] %v641
      %674 = vst [vmem:[#allocation2 + $0xe0] sm:$0xff] %v642
      %675 = vst [vmem:[#allocation2 + $0xe8] sm:$0xff] %v643
      %676 = vst [vmem:[#allocation2 + $0xf0] sm:$0xff] %v644
      %677 = vst [vmem:[#allocation2 + $0xf8] sm:$0xff] %v645
      // Predicated region
      $region33: #{frequency_discriminator.7} parent=27 // pred_check
        %p678 = pneg %p193
      $region34: #{frequency_discriminator.7} parent=27 // pred_check_branch
        %680 = sbr.rel (%p678) target = $region36
      $region35: #{frequency_discriminator.7} parent=27 // pred_region
        %v681 = vld [vmem:[#allocation2] sm:$0xff]
        %v682 = vld [vmem:[#allocation2 + $0x8] sm:$0xff]
        %v683 = vld [vmem:[#allocation2 + $0x10] sm:$0xff]
        %v684 = vld [vmem:[#allocation2 + $0x18] sm:$0xff]
        %v685 = vld [vmem:[#allocation2 + $0x20] sm:$0xff]
        %v686 = vld [vmem:[#allocation2 + $0x28] sm:$0xff]
        %v687 = vld [vmem:[#allocation2 + $0x30] sm:$0xff]
        %v688 = vld [vmem:[#allocation2 + $0x38] sm:$0xff]
        %v689 = vld [vmem:[#allocation2 + $0x40] sm:$0xff]
        %v690 = vld [vmem:[#allocation2 + $0x48] sm:$0xff]
        %v691 = vld [vmem:[#allocation2 + $0x50] sm:$0xff]
        %v692 = vld [vmem:[#allocation2 + $0x58] sm:$0xff]
        %v693 = vld [vmem:[#allocation2 + $0x60] sm:$0xff]
        %v694 = vld [vmem:[#allocation2 + $0x68] sm:$0xff]
        %v695 = vld [vmem:[#allocation2 + $0x70] sm:$0xff]
        %v696 = vld [vmem:[#allocation2 + $0x78] sm:$0xff]
        %v697 = vld [vmem:[#allocation2 + $0x80] sm:$0xff]
        %v698 = vld [vmem:[#allocation2 + $0x88] sm:$0xff]
        %v699 = vld [vmem:[#allocation2 + $0x90] sm:$0xff]
        %v700 = vld [vmem:[#allocation2 + $0x98] sm:$0xff]
        %v701 = vld [vmem:[#allocation2 + $0xa0] sm:$0xff]
        %v702 = vld [vmem:[#allocation2 + $0xa8] sm:$0xff]
        %v703 = vld [vmem:[#allocation2 + $0xb0] sm:$0xff]
        %v704 = vld [vmem:[#allocation2 + $0xb8] sm:$0xff]
        %v705 = vld [vmem:[#allocation2 + $0xc0] sm:$0xff]
        %v706 = vld [vmem:[#allocation2 + $0xc8] sm:$0xff]
        %v707 = vld [vmem:[#allocation2 + $0xd0] sm:$0xff]
        %v708 = vld [vmem:[#allocation2 + $0xd8] sm:$0xff]
        %v709 = vld [vmem:[#allocation2 + $0xe0] sm:$0xff]
        %v710 = vld [vmem:[#allocation2 + $0xe8] sm:$0xff]
        %v711 = vld [vmem:[#allocation2 + $0xf0] sm:$0xff]
        %v712 = vld [vmem:[#allocation2 + $0xf8] sm:$0xff]
        %vm713 = vcmp.gt.f32.partialorder %v681, 0.0
        %vm714 = vcmp.gt.f32.partialorder %v682, 0.0
        %vm715 = vcmp.gt.f32.partialorder %v683, 0.0
        %vm716 = vcmp.gt.f32.partialorder %v684, 0.0
        %vm717 = vcmp.gt.f32.partialorder %v685, 0.0
        %vm718 = vcmp.gt.f32.partialorder %v686, 0.0
        %vm719 = vcmp.gt.f32.partialorder %v687, 0.0
        %vm720 = vcmp.gt.f32.partialorder %v688, 0.0
        %vm721 = vcmp.gt.f32.partialorder %v689, 0.0
        %vm722 = vcmp.gt.f32.partialorder %v690, 0.0
        %vm723 = vcmp.gt.f32.partialorder %v691, 0.0
        %vm724 = vcmp.gt.f32.partialorder %v692, 0.0
        %vm725 = vcmp.gt.f32.partialorder %v693, 0.0
        %vm726 = vcmp.gt.f32.partialorder %v694, 0.0
        %vm727 = vcmp.gt.f32.partialorder %v695, 0.0
        %vm728 = vcmp.gt.f32.partialorder %v696, 0.0
        %vm729 = vcmp.gt.f32.partialorder %v697, 0.0
        %vm730 = vcmp.gt.f32.partialorder %v698, 0.0
        %vm731 = vcmp.gt.f32.partialorder %v699, 0.0
        %vm732 = vcmp.gt.f32.partialorder %v700, 0.0
        %vm733 = vcmp.gt.f32.partialorder %v701, 0.0
        %vm734 = vcmp.gt.f32.partialorder %v702, 0.0
        %vm735 = vcmp.gt.f32.partialorder %v703, 0.0
        %vm736 = vcmp.gt.f32.partialorder %v704, 0.0
        %vm737 = vcmp.gt.f32.partialorder %v705, 0.0
        %vm738 = vcmp.gt.f32.partialorder %v706, 0.0
        %vm739 = vcmp.gt.f32.partialorder %v707, 0.0
        %vm740 = vcmp.gt.f32.partialorder %v708, 0.0
        %vm741 = vcmp.gt.f32.partialorder %v709, 0.0
        %vm742 = vcmp.gt.f32.partialorder %v710, 0.0
        %vm743 = vcmp.gt.f32.partialorder %v711, 0.0
        %vm744 = vcmp.gt.f32.partialorder %v712, 0.0
        %v745 = vmul.f32 %v681, 0.2
        %v746 = vmul.f32 %v682, 0.2
        %v747 = vmul.f32 %v683, 0.2
        %v748 = vmul.f32 %v684, 0.2
        %v749 = vmul.f32 %v685, 0.2
        %v750 = vmul.f32 %v686, 0.2
        %v751 = vmul.f32 %v687, 0.2
        %v752 = vmul.f32 %v688, 0.2
        %v753 = vmul.f32 %v689, 0.2
        %v754 = vmul.f32 %v690, 0.2
        %v755 = vmul.f32 %v691, 0.2
        %v756 = vmul.f32 %v692, 0.2
        %v757 = vmul.f32 %v693, 0.2
        %v758 = vmul.f32 %v694, 0.2
        %v759 = vmul.f32 %v695, 0.2
        %v760 = vmul.f32 %v696, 0.2
        %v761 = vmul.f32 %v697, 0.2
        %v762 = vmul.f32 %v698, 0.2
        %v763 = vmul.f32 %v699, 0.2
        %v764 = vmul.f32 %v700, 0.2
        %v765 = vmul.f32 %v701, 0.2
        %v766 = vmul.f32 %v702, 0.2
        %v767 = vmul.f32 %v703, 0.2
        %v768 = vmul.f32 %v704, 0.2
        %v769 = vmul.f32 %v705, 0.2
        %v770 = vmul.f32 %v706, 0.2
        %v771 = vmul.f32 %v707, 0.2
        %v772 = vmul.f32 %v708, 0.2
        %v773 = vmul.f32 %v709, 0.2
        %v774 = vmul.f32 %v710, 0.2
        %v775 = vmul.f32 %v711, 0.2
        %v776 = vmul.f32 %v712, 0.2
        %v777 = vsel %vm713, %v681, %v745
        %v778 = vsel %vm714, %v682, %v746
        %v779 = vsel %vm715, %v683, %v747
        %v780 = vsel %vm716, %v684, %v748
        %v781 = vsel %vm717, %v685, %v749
        %v782 = vsel %vm718, %v686, %v750
        %v783 = vsel %vm719, %v687, %v751
        %v784 = vsel %vm720, %v688, %v752
        %v785 = vsel %vm721, %v689, %v753
        %v786 = vsel %vm722, %v690, %v754
        %v787 = vsel %vm723, %v691, %v755
        %v788 = vsel %vm724, %v692, %v756
        %v789 = vsel %vm725, %v693, %v757
        %v790 = vsel %vm726, %v694, %v758
        %v791 = vsel %vm727, %v695, %v759
        %v792 = vsel %vm728, %v696, %v760
        %v793 = vsel %vm729, %v697, %v761
        %v794 = vsel %vm730, %v698, %v762
        %v795 = vsel %vm731, %v699, %v763
        %v796 = vsel %vm732, %v700, %v764
        %v797 = vsel %vm733, %v701, %v765
        %v798 = vsel %vm734, %v702, %v766
        %v799 = vsel %vm735, %v703, %v767
        %v800 = vsel %vm736, %v704, %v768
        %v801 = vsel %vm737, %v705, %v769
        %v802 = vsel %vm738, %v706, %v770
        %v803 = vsel %vm739, %v707, %v771
        %v804 = vsel %vm740, %v708, %v772
        %v805 = vsel %vm741, %v709, %v773
        %v806 = vsel %vm742, %v710, %v774
        %v807 = vsel %vm743, %v711, %v775
        %v808 = vsel %vm744, %v712, %v776
        %809 = vst [vmem:[%s190] sm:$0xff] %v777
        %810 = vst [vmem:[%s190 + $0x8] sm:$0xff] %v778
        %811 = vst [vmem:[%s190 + $0x10] sm:$0xff] %v779
        %812 = vst [vmem:[%s190 + $0x18] sm:$0xff] %v780
        %813 = vst [vmem:[%s190 + $0x20] sm:$0xff] %v781
        %814 = vst [vmem:[%s190 + $0x28] sm:$0xff] %v782
        %815 = vst [vmem:[%s190 + $0x30] sm:$0xff] %v783
        %816 = vst [vmem:[%s190 + $0x38] sm:$0xff] %v784
        %817 = vst [vmem:[%s190 + $0x40] sm:$0xff] %v785
        %818 = vst [vmem:[%s190 + $0x48] sm:$0xff] %v786
        %819 = vst [vmem:[%s190 + $0x50] sm:$0xff] %v787
        %820 = vst [vmem:[%s190 + $0x58] sm:$0xff] %v788
        %821 = vst [vmem:[%s190 + $0x60] sm:$0xff] %v789
        %822 = vst [vmem:[%s190 + $0x68] sm:$0xff] %v790
        %823 = vst [vmem:[%s190 + $0x70] sm:$0xff] %v791
        %824 = vst [vmem:[%s190 + $0x78] sm:$0xff] %v792
        %825 = vst [vmem:[%s190 + $0x80] sm:$0xff] %v793
        %826 = vst [vmem:[%s190 + $0x88] sm:$0xff] %v794
        %827 = vst [vmem:[%s190 + $0x90] sm:$0xff] %v795
        %828 = vst [vmem:[%s190 + $0x98] sm:$0xff] %v796
        %829 = vst [vmem:[%s190 + $0xa0] sm:$0xff] %v797
        %830 = vst [vmem:[%s190 + $0xa8] sm:$0xff] %v798
        %831 = vst [vmem:[%s190 + $0xb0] sm:$0xff] %v799
        %832 = vst [vmem:[%s190 + $0xb8] sm:$0xff] %v800
        %833 = vst [vmem:[%s190 + $0xc0] sm:$0xff] %v801
        %834 = vst [vmem:[%s190 + $0xc8] sm:$0xff] %v802
        %835 = vst [vmem:[%s190 + $0xd0] sm:$0xff] %v803
        %836 = vst [vmem:[%s190 + $0xd8] sm:$0xff] %v804
        %837 = vst [vmem:[%s190 + $0xe0] sm:$0xff] %v805
        %838 = vst [vmem:[%s190 + $0xe8] sm:$0xff] %v806
        %839 = vst [vmem:[%s190 + $0xf0] sm:$0xff] %v807
        %840 = vst [vmem:[%s190 + $0xf8] sm:$0xff] %v808
      $region36: #{frequency_discriminator.7} parent=27 // pred_fallthru
        _
      %s841 = smul.u32 32, %s17
      %p842 = scmp.lt.s32.totalorder %s841, 287
      %s843 = scalar_select %p842, %s841, 287
      %s844 = smul.addr %s843, 8
      %s845 = scalar_lea.vmem %s2, %s844
      // Predicated region
      $region37: #{frequency_discriminator.7} parent=27 // pred_check
        %p846 = pneg %p97
      $region38: #{frequency_discriminator.7} parent=27 // pred_check_branch
        %848 = sbr.rel (%p846) target = $region40
      $region39: #{frequency_discriminator.7} parent=27 // pred_region
        %s849 = smul.u32 32, %s17
      $region40: #{frequency_discriminator.7} parent=27 // pred_fallthru
        _
    $region28: #{frequency_discriminator.7} parent=5 // pred_fallthru
      _
    %p850 = scmp.le.s32.totalorder 2, %s8
    // Predicated region
    $region41: #{frequency_discriminator.7} parent=5 // pred_check
      %p851 = pneg %p850
    $region42: #{frequency_discriminator.7} parent=5 // pred_check_branch
      %853 = sbr.rel (%p851) target = $region44
    $region43: #{frequency_discriminator.7} parent=5 // pred_region
      %s854 = ssub.s32 %s8, 2
      // Predicated region
      $region45: #{frequency_discriminator.7} parent=43 // pred_check
        %p855 = pneg %p103
      $region46: #{frequency_discriminator.7} parent=43 // pred_check_branch
        %857 = sbr.rel (%p855) target = $region48
      $region47: #{frequency_discriminator.7} parent=43 // pred_region
        %s858 = smul.u32 32, %s19
        %p859 = scmp.lt.s32.totalorder %s858, 287
        %s860 = scalar_select %p859, %s858, 287
        %s861 = smul.addr %s860, 8
        %s862 = scalar_lea.vmem %s2, %s861
      $region48: #{frequency_discriminator.7} parent=43 // pred_fallthru
        _
    $region44: #{frequency_discriminator.7} parent=5 // pred_fallthru
      _
  $region6: #{frequency_discriminator.7} parent=0 // loop_footer
    %s12 = sadd.s32 1, %s8
  $region7: #{frequency_discriminator.7} parent=0 // loop_footer_branch
    %7 = sbr.rel target = $region3
  $region8: #{frequency_discriminator.7} parent=0 // loop_exit
    _

// kernel: frequency_discriminator.8
$region0: #{frequency_discriminator.8}
  #allocation0 [shape = 'u32[]', space=smem, size = 0x4, offset = 0x4, fixed_abs, tag = 'smem constant byte address 0x4 - core index']
  #allocation1 [shape = 'u32[144,128]{1,0:T(1,128)}', space=vmem, size = 0x12000, scoped, tag = 'internal scratch']
  #allocation2 [shape = 'f32[128,128]{1,0:T(8,128)}', space=vmem, size = 0x10000, scoped, tag = 'scratch operand']
  %s0 = inlined_call_operand.vmem [shape: bf16[640,3200], index: 0, kind: input, shape index: {}]
  %s1 = inlined_call_operand.vmem [shape: bf16[3200,128], index: 1, kind: input, shape index: {}]
  %s2 = inlined_call_operand.vmem [shape: f32[1,128], index: 2, kind: input, shape index: {}]
  %s3 = inlined_call_operand.vmem [shape: f32[1,128], index: 3, kind: input, shape index: {}]
  %s4 = inlined_call_operand.vmem [shape: f32[640,128], index: 4, kind: output, shape index: {}]
  %s5 = sld [smem:[#allocation0]]
  $region83: #{frequency_discriminator.8} parent=0
    _
  %s7 = ssub.s32 1, %s5
  %s8 = scalar_select 0, %s7, %s5
  $region1: #{frequency_discriminator.8} parent=0
    #allocation3 [shape = 'u8[327680]{0}', space=vmem, size = 0x50000, scoped, tag = 'input window, operand 0']
    loop: start=0, step=1, limit=27
    $region2: #{frequency_discriminator.8} parent=1 // loop_pre_header
      _
    $region3: #{frequency_discriminator.8} parent=1 // loop_header
      %s10 = sphi 0, %s14
      %p11 = scmp.ge.s32.totalorder %s10, 27
      %s17 = sphi 0, %s29
      %s18 = sphi 0, %s25
      %s19 = sphi 0, %s17
      %s20 = sphi 0, %s18
      %s21 = sphi 0, %s19
      %s22 = sphi 0, %s20
      %s34 = sphi 0, %s36
      %s37 = sphi 0, %s34
      %s38 = sphi 0, %s37
      %s54 = sphi 0, %s38
      %s60 = sphi 0, %s62
      %s63 = sphi 0, %s60
      %s64 = sphi 0, %s63
      %s80 = sphi 0, %s64
      %s84 = sphi 0, %s84
      %s86 = sphi 0, %s84
      %s87 = sphi 0, %s86
      %s101 = sphi 0, %s87
      %s105 = sphi 0, %s105
      %s107 = sphi 0, %s105
      %s108 = sphi 0, %s107
      %s122 = sphi 0, %s108
      %s128 = sphi 0, %s130
      %s131 = sphi 0, %s128
      %s132 = sphi 0, %s131
      %s148 = sphi 0, %s132
    $region4: #{frequency_discriminator.8} parent=1 // loop_header_branch
      %13 = sbr.rel (%p11) target = $region8
    $region5: #{frequency_discriminator.8} parent=1 // loop_body
      %s15 = ssub.s32 %s10, 1
      %s16 = ssub.s32 %s10, 2
      %s23 = sadd.s32 1, %s18
      %p24 = scmp.ge.s32.totalorder %s23, 5
      %s25 = scalar_select %p24, 0, %s23
      %s26 = sadd.s32 1, %s17
      %s27 = scalar_select %p24, %s26, %s17
      %p28 = scmp.ge.s32.totalorder %s27, 5
      %s29 = scalar_select %p28, 0, %s27
      %s30 = ssub.s32 %s17, %s29
      %s31 = ssub.s32 %s18, %s25
      %s32 = sor.u32 %s30, %s31
      %p33 = scmp.eq.s32.totalorder %s32, 0
      %s35 = sadd.s32 %s34, 1
      %s36 = scalar_select %p33, %s34, %s35
      %p39 = pneg %p33
      %p40 = scmp.eq.s32.totalorder %s10, 24
      %p41 = por %p39, %p40
      %p42 = scmp.ne.s32.totalorder %s34, %s37
      %p43 = scmp.eq.s32.totalorder %s10, 0
      %p44 = por %p42, %p43
      %p45 = scmp.ne.s32.totalorder %s34, %s37
      %p46 = scmp.eq.s32.totalorder %s15, 24
      %p47 = por %p45, %p46
      %p48 = scmp.ne.s32.totalorder %s37, %s38
      %p49 = scmp.eq.s32.totalorder %s15, 0
      %p50 = por %p48, %p49
      %p51 = scmp.ne.s32.totalorder %s37, %s38
      %p52 = scmp.eq.s32.totalorder %s16, 24
      %p53 = por %p51, %p52
      %p55 = scmp.ne.s32.totalorder %s38, %s54
      %p56 = scmp.eq.s32.totalorder %s16, 0
      %p57 = por %p55, %p56
      %s58 = ssub.s32 %s18, %s25
      %p59 = scmp.eq.s32.totalorder %s58, 0
      %s61 = sadd.s32 %s60, 1
      %s62 = scalar_select %p59, %s60, %s61
      %p65 = pneg %p59
      %p66 = scmp.eq.s32.totalorder %s10, 24
      %p67 = por %p65, %p66
      %p68 = scmp.ne.s32.totalorder %s60, %s63
      %p69 = scmp.eq.s32.totalorder %s10, 0
      %p70 = por %p68, %p69
      %p71 = scmp.ne.s32.totalorder %s60, %s63
      %p72 = scmp.eq.s32.totalorder %s15, 24
      %p73 = por %p71, %p72
      %p74 = scmp.ne.s32.totalorder %s63, %s64
      %p75 = scmp.eq.s32.totalorder %s15, 0
      %p76 = por %p74, %p75
      %p77 = scmp.ne.s32.totalorder %s63, %s64
      %p78 = scmp.eq.s32.totalorder %s16, 24
      %p79 = por %p77, %p78
      %p81 = scmp.ne.s32.totalorder %s64, %s80
      %p82 = scmp.eq.s32.totalorder %s16, 0
      %p83 = por %p81, %p82
      %s85 = sadd.s32 %s84, 1
      %p88 = scmp.eq.s32.totalorder %s10, 24
      %p89 = scmp.ne.s32.totalorder %s84, %s86
      %p90 = scmp.eq.s32.totalorder %s10, 0
      %p91 = por %p89, %p90
      %p92 = scmp.ne.s32.totalorder %s84, %s86
      %p93 = scmp.eq.s32.totalorder %s15, 24
      %p94 = por %p92, %p93
      %p95 = scmp.ne.s32.totalorder %s86, %s87
      %p96 = scmp.eq.s32.totalorder %s15, 0
      %p97 = por %p95, %p96
      %p98 = scmp.ne.s32.totalorder %s86, %s87
      %p99 = scmp.eq.s32.totalorder %s16, 24
      %p100 = por %p98, %p99
      %p102 = scmp.ne.s32.totalorder %s87, %s101
      %p103 = scmp.eq.s32.totalorder %s16, 0
      %p104 = por %p102, %p103
      %s106 = sadd.s32 %s105, 1
      %p109 = scmp.eq.s32.totalorder %s10, 24
      %p110 = scmp.ne.s32.totalorder %s105, %s107
      %p111 = scmp.eq.s32.totalorder %s10, 0
      %p112 = por %p110, %p111
      %p113 = scmp.ne.s32.totalorder %s105, %s107
      %p114 = scmp.eq.s32.totalorder %s15, 24
      %p115 = por %p113, %p114
      %p116 = scmp.ne.s32.totalorder %s107, %s108
      %p117 = scmp.eq.s32.totalorder %s15, 0
      %p118 = por %p116, %p117
      %p119 = scmp.ne.s32.totalorder %s107, %s108
      %p120 = scmp.eq.s32.totalorder %s16, 24
      %p121 = por %p119, %p120
      %p123 = scmp.ne.s32.totalorder %s108, %s122
      %p124 = scmp.eq.s32.totalorder %s16, 0
      %p125 = por %p123, %p124
      %s126 = ssub.s32 %s17, %s29
      %p127 = scmp.eq.s32.totalorder %s126, 0
      %s129 = sadd.s32 %s128, 1
      %s130 = scalar_select %p127, %s128, %s129
      %p133 = pneg %p127
      %p134 = scmp.eq.s32.totalorder %s10, 24
      %p135 = por %p133, %p134
      %p136 = scmp.ne.s32.totalorder %s128, %s131
      %p137 = scmp.eq.s32.totalorder %s10, 0
      %p138 = por %p136, %p137
      %p139 = scmp.ne.s32.totalorder %s128, %s131
      %p140 = scmp.eq.s32.totalorder %s15, 24
      %p141 = por %p139, %p140
      %p142 = scmp.ne.s32.totalorder %s131, %s132
      %p143 = scmp.eq.s32.totalorder %s15, 0
      %p144 = por %p142, %p143
      %p145 = scmp.ne.s32.totalorder %s131, %s132
      %p146 = scmp.eq.s32.totalorder %s16, 24
      %p147 = por %p145, %p146
      %p149 = scmp.ne.s32.totalorder %s132, %s148
      %p150 = scmp.eq.s32.totalorder %s16, 0
      %p151 = por %p149, %p150
      %p152 = scmp.le.s32.totalorder 1, %s10
      %p153 = scmp.lt.s32.totalorder %s10, 26
      %p154 = pnand %p152, %p153
      %p155 = pneg %p154
      // Predicated region
      $region9: #{frequency_discriminator.8} parent=5 // pred_check
        _
      $region10: #{frequency_discriminator.8} parent=5 // pred_check_branch
        %157 = sbr.rel (%p154) target = $region12
      $region11: #{frequency_discriminator.8} parent=5 // pred_region
        %s158 = ssub.s32 %s10, 1
        // Predicated region
        $region13: #{frequency_discriminator.8} parent=11 // pred_check
          %p159 = pneg %p97
        $region14: #{frequency_discriminator.8} parent=11 // pred_check_branch
          %161 = sbr.rel (%p159) target = $region16
        $region15: #{frequency_discriminator.8} parent=11 // pred_region
          _
        $region16: #{frequency_discriminator.8} parent=11 // pred_fallthru
          _
        // Predicated region
        $region17: #{frequency_discriminator.8} parent=11 // pred_check
          %p162 = pneg %p118
        $region18: #{frequency_discriminator.8} parent=11 // pred_check_branch
          %164 = sbr.rel (%p162) target = $region20
        $region19: #{frequency_discriminator.8} parent=11 // pred_region
          _
        $region20: #{frequency_discriminator.8} parent=11 // pred_fallthru
          _
      $region12: #{frequency_discriminator.8} parent=5 // pred_fallthru
        _
      %p165 = scmp.lt.s32.totalorder %s10, 25
      // Predicated region
      $region21: #{frequency_discriminator.8} parent=5 // pred_check
        %p166 = pneg %p165
      $region22: #{frequency_discriminator.8} parent=5 // pred_check_branch
        %168 = sbr.rel (%p166) target = $region24
      $region23: #{frequency_discriminator.8} parent=5 // pred_region
        // Predicated region
        $region25: #{frequency_discriminator.8} parent=23 // pred_check
          %p169 = pneg %p44
        $region26: #{frequency_discriminator.8} parent=23 // pred_check_branch
          %171 = sbr.rel (%p169) target = $region28
        $region27: #{frequency_discriminator.8} parent=23 // pred_region
          %s172 = sand.u32 %s34, 1
          %s173 = sand.u32 %s34, 1
          %s174 = smul.addr %s173, 320
          %s175 = scalar_lea.vmem [#allocation3], %s174
          %s176 = smul.u32 16, %s17
          %s177 = smul.u32 5, %s18
          %s178 = smul.addr %s176, 25
          %s179 = sadd.s32 %s177, %s178
          %s180 = smul.addr %s179, 4
          %s181 = scalar_lea.vmem %s0, %s180
          // Predicated region
          $region29: #{frequency_discriminator.8} parent=27 // pred_check
            _
          $region30: #{frequency_discriminator.8} parent=27 // pred_check_branch
            %183 = sbr.rel (0) target = $region32
          $region31: #{frequency_discriminator.8} parent=27 // pred_region
            // Predicated region
            $region33: #{frequency_discriminator.8} parent=31 // pred_check
              _
            $region34: #{frequency_discriminator.8} parent=31 // pred_check_branch
              %185 = sbr.rel (0) target = $region36
            $region35: #{frequency_discriminator.8} parent=31 // pred_region
              %s186 = scalar_lea.vmem %s181, 16
              %s187 = scalar_lea.vmem %s175, 16 [#allocation3]
              loop: start=0, step=1, limit=1
              $region37: #{frequency_discriminator.8} parent=35 // loop_pre_header
                _
              $region38: #{frequency_discriminator.8} parent=35 // loop_header
                %s189 = sphi 0, %s193
                %p190 = scmp.ge.s32.totalorder %s189, 1
                %s194 = sphi %s181, %s181
                %s195 = sphi %s175, %s175
              $region39: #{frequency_discriminator.8} parent=35 // loop_header_branch
                %192 = sbr.rel (%p190) target = $region43
              $region40: #{frequency_discriminator.8} parent=35 // loop_body
                %v196 = vld [vmem:[%s194] sm:$0xff]
                %197 = vst [vmem:[%s195] sm:$0xff] %v196
                %v198 = vld [vmem:[%s194 + $0x8] sm:$0xff]
                %199 = vst [vmem:[%s195 + $0x8] sm:$0xff] %v198
                %v200 = vld [vmem:[%s194 + $0x64] sm:$0xff]
                %201 = vst [vmem:[%s195 + $0x14] sm:$0xff] %v200
                %v202 = vld [vmem:[%s194 + $0x6c] sm:$0xff]
                %203 = vst [vmem:[%s195 + $0x1c] sm:$0xff] %v202
                %v204 = vld [vmem:[%s194 + $0xc8] sm:$0xff]
                %205 = vst [vmem:[%s195 + $0x28] sm:$0xff] %v204
                %v206 = vld [vmem:[%s194 + $0xd0] sm:$0xff]
                %207 = vst [vmem:[%s195 + $0x30] sm:$0xff] %v206
                %v208 = vld [vmem:[%s194 + $0x12c] sm:$0xff]
                %209 = vst [vmem:[%s195 + $0x3c] sm:$0xff] %v208
                %v210 = vld [vmem:[%s194 + $0x134] sm:$0xff]
                %211 = vst [vmem:[%s195 + $0x44] sm:$0xff] %v210
                %v212 = vld [vmem:[%s194 + $0x190] sm:$0xff]
                %213 = vst [vmem:[%s195 + $0x50] sm:$0xff] %v212
                %v214 = vld [vmem:[%s194 + $0x198] sm:$0xff]
                %215 = vst [vmem:[%s195 + $0x58] sm:$0xff] %v214
                %v216 = vld [vmem:[%s194 + $0x1f4] sm:$0xff]
                %217 = vst [vmem:[%s195 + $0x64] sm:$0xff] %v216
                %v218 = vld [vmem:[%s194 + $0x1fc] sm:$0xff]
                %219 = vst [vmem:[%s195 + $0x6c] sm:$0xff] %v218
                %v220 = vld [vmem:[%s194 + $0x258] sm:$0xff]
                %221 = vst [vmem:[%s195 + $0x78] sm:$0xff] %v220
                %v222 = vld [vmem:[%s194 + $0x260] sm:$0xff]
                %223 = vst [vmem:[%s195 + $0x80] sm:$0xff] %v222
                %v224 = vld [vmem:[%s194 + $0x2bc] sm:$0xff]
                %225 = vst [vmem:[%s195 + $0x8c] sm:$0xff] %v224
                %v226 = vld [vmem:[%s194 + $0x2c4] sm:$0xff]
                %227 = vst [vmem:[%s195 + $0x94] sm:$0xff] %v226
                %v228 = vld [vmem:[%s194 + $0x320] sm:$0xff]
                %229 = vst [vmem:[%s195 + $0xa0] sm:$0xff] %v228
                %v230 = vld [vmem:[%s194 + $0x328] sm:$0xff]
                %231 = vst [vmem:[%s195 + $0xa8] sm:$0xff] %v230
                %v232 = vld [vmem:[%s194 + $0x384] sm:$0xff]
                %233 = vst [vmem:[%s195 + $0xb4] sm:$0xff] %v232
                %v234 = vld [vmem:[%s194 + $0x38c] sm:$0xff]
                %235 = vst [vmem:[%s195 + $0xbc] sm:$0xff] %v234
                %v236 = vld [vmem:[%s194 + $0x3e8] sm:$0xff]
                %237 = vst [vmem:[%s195 + $0xc8] sm:$0xff] %v236
                %v238 = vld [vmem:[%s194 + $0x3f0] sm:$0xff]
                %239 = vst [vmem:[%s195 + $0xd0] sm:$0xff] %v238
                %v240 = vld [vmem:[%s194 + $0x44c] sm:$0xff]
                %241 = vst [vmem:[%s195 + $0xdc] sm:$0xff] %v240
                %v242 = vld [vmem:[%s194 + $0x454] sm:$0xff]
                %243 = vst [vmem:[%s195 + $0xe4] sm:$0xff] %v242
                %v244 = vld [vmem:[%s194 + $0x4b0] sm:$0xff]
                %245 = vst [vmem:[%s195 + $0xf0] sm:$0xff] %v244
                %v246 = vld [vmem:[%s194 + $0x4b8] sm:$0xff]
                %247 = vst [vmem:[%s195 + $0xf8] sm:$0xff] %v246
                %v248 = vld [vmem:[%s194 + $0x514] sm:$0xff]
                %249 = vst [vmem:[%s195 + $0x104] sm:$0xff] %v248
                %v250 = vld [vmem:[%s194 + $0x51c] sm:$0xff]
                %251 = vst [vmem:[%s195 + $0x10c] sm:$0xff] %v250
                %v252 = vld [vmem:[%s194 + $0x578] sm:$0xff]
                %253 = vst [vmem:[%s195 + $0x118] sm:$0xff] %v252
                %v254 = vld [vmem:[%s194 + $0x580] sm:$0xff]
                %255 = vst [vmem:[%s195 + $0x120] sm:$0xff] %v254
                %v256 = vld [vmem:[%s194 + $0x5dc] sm:$0xff]
                %257 = vst [vmem:[%s195 + $0x12c] sm:$0xff] %v256
                %v258 = vld [vmem:[%s194 + $0x5e4] sm:$0xff]
                %259 = vst [vmem:[%s195 + $0x134] sm:$0xff] %v258
              $region41: #{frequency_discriminator.8} parent=35 // loop_footer
                %s193 = sadd.s32 1, %s189
              $region42: #{frequency_discriminator.8} parent=35 // loop_footer_branch
                %188 = sbr.rel target = $region38
              $region43: #{frequency_discriminator.8} parent=35 // loop_exit
                _
              loop: start=0, step=1, limit=1
              $region44: #{frequency_discriminator.8} parent=35 // loop_pre_header
                _
              $region45: #{frequency_discriminator.8} parent=35 // loop_header
                %s262 = sphi 0, %s266
                %p263 = scmp.ge.s32.totalorder %s262, 1
                %s267 = sphi %s186, %s186
                %s268 = sphi %s187, %s187
              $region46: #{frequency_discriminator.8} parent=35 // loop_header_branch
                %265 = sbr.rel (%p263) target = $region50
              $region47: #{frequency_discriminator.8} parent=35 // loop_body
                %v269 = vld [vmem:[%s267] sm:$0xf]
                %270 = vst [vmem:[%s268] sm:$0xf] %v269
                %v271 = vld [vmem:[%s267 + $0x64] sm:$0xf]
                %272 = vst [vmem:[%s268 + $0x14] sm:$0xf] %v271
                %v273 = vld [vmem:[%s267 + $0xc8] sm:$0xf]
                %274 = vst [vmem:[%s268 + $0x28] sm:$0xf] %v273
                %v275 = vld [vmem:[%s267 + $0x12c] sm:$0xf]
                %276 = vst [vmem:[%s268 + $0x3c] sm:$0xf] %v275
                %v277 = vld [vmem:[%s267 + $0x190] sm:$0xf]
                %278 = vst [vmem:[%s268 + $0x50] sm:$0xf] %v277
                %v279 = vld [vmem:[%s267 + $0x1f4] sm:$0xf]
                %280 = vst [vmem:[%s268 + $0x64] sm:$0xf] %v279
                %v281 = vld [vmem:[%s267 + $0x258] sm:$0xf]
                %282 = vst [vmem:[%s268 + $0x78] sm:$0xf] %v281
                %v283 = vld [vmem:[%s267 + $0x2bc] sm:$0xf]
                %284 = vst [vmem:[%s268 + $0x8c] sm:$0xf] %v283
                %v285 = vld [vmem:[%s267 + $0x320] sm:$0xf]
                %286 = vst [vmem:[%s268 + $0xa0] sm:$0xf] %v285
                %v287 = vld [vmem:[%s267 + $0x384] sm:$0xf]
                %288 = vst [vmem:[%s268 + $0xb4] sm:$0xf] %v287
                %v289 = vld [vmem:[%s267 + $0x3e8] sm:$0xf]
                %290 = vst [vmem:[%s268 + $0xc8] sm:$0xf] %v289
                %v291 = vld [vmem:[%s267 + $0x44c] sm:$0xf]
                %292 = vst [vmem:[%s268 + $0xdc] sm:$0xf] %v291
                %v293 = vld [vmem:[%s267 + $0x4b0] sm:$0xf]
                %294 = vst [vmem:[%s268 + $0xf0] sm:$0xf] %v293
                %v295 = vld [vmem:[%s267 + $0x514] sm:$0xf]
                %296 = vst [vmem:[%s268 + $0x104] sm:$0xf] %v295
                %v297 = vld [vmem:[%s267 + $0x578] sm:$0xf]
                %298 = vst [vmem:[%s268 + $0x118] sm:$0xf] %v297
                %v299 = vld [vmem:[%s267 + $0x5dc] sm:$0xf]
                %300 = vst [vmem:[%s268 + $0x12c] sm:$0xf] %v299
              $region48: #{frequency_discriminator.8} parent=35 // loop_footer
                %s266 = sadd.s32 1, %s262
              $region49: #{frequency_discriminator.8} parent=35 // loop_footer_branch
                %261 = sbr.rel target = $region45
              $region50: #{frequency_discriminator.8} parent=35 // loop_exit
                _
            $region36: #{frequency_discriminator.8} parent=31 // pred_fallthru
              _
          $region32: #{frequency_discriminator.8} parent=27 // pred_fallthru
            _
          %301 = vnop
        $region28: #{frequency_discriminator.8} parent=23 // pred_fallthru
          _
        // Predicated region
        $region51: #{frequency_discriminator.8} parent=23 // pred_check
          %p302 = pneg %p70
        $region52: #{frequency_discriminator.8} parent=23 // pred_check_branch
          %304 = sbr.rel (%p302) target = $region54
        $region53: #{frequency_discriminator.8} parent=23 // pred_region
          %s305 = smul.u32 80, %s18
          %p306 = scmp.lt.s32.totalorder %s305, 399
          %s307 = scalar_select %p306, %s305, 399
          %s308 = smul.addr %s307, 4
          %s309 = scalar_lea.vmem %s1, %s308
          %s310 = smul.u32 80, %s18
        $region54: #{frequency_discriminator.8} parent=23 // pred_fallthru
          _
      $region24: #{frequency_discriminator.8} parent=5 // pred_fallthru
        _
      %p311 = scmp.le.s32.totalorder 1, %s10
      %p312 = scmp.lt.s32.totalorder %s10, 26
      %p313 = pnand %p311, %p312
      %p314 = pneg %p313
      // Predicated region
      $region55: #{frequency_discriminator.8} parent=5 // pred_check
        _
      $region56: #{frequency_discriminator.8} parent=5 // pred_check_branch
        %316 = sbr.rel (%p313) target = $region58
      $region57: #{frequency_discriminator.8} parent=5 // pred_region
        %s317 = ssub.s32 %s10, 1
        %s318 = sand.u32 %s37, 1
        %s319 = sand.u32 %s37, 1
        %s320 = smul.addr %s319, 320
        %s321 = scalar_lea.vmem [#allocation3], %s320
        // Predicated region
        $region59: #{frequency_discriminator.8} parent=57 // pred_check
          %p322 = pneg %p50
        $region60: #{frequency_discriminator.8} parent=57 // pred_check_branch
          %324 = sbr.rel (%p322) target = $region62
        $region61: #{frequency_discriminator.8} parent=57 // pred_region
          _
        $region62: #{frequency_discriminator.8} parent=57 // pred_fallthru
          _
        %s325 = sand.u32 %s37, 1
        %s326 = sand.u32 %s37, 1
        %s327 = smul.addr %s326, 320
        %s328 = scalar_lea.vmem [#allocation3], %s327
        %p329 = pneg %p50
        %p330 = pneg %p47
        %s331 = smul.u32 80, %s20
        %p332 = scmp.lt.s32.totalorder %s331, 399
        %s333 = scalar_select %p332, %s331, 399
        %s334 = smul.addr %s333, 4
        %s335 = scalar_lea.vmem %s1, %s334
        %p336 = pneg %p76
        %p337 = pneg %p73
        %p338 = pneg %p97
        %p339 = pneg %p94
        %p340 = pneg %p118
        %p341 = pneg %p115
        %p342 = pneg %p144
        %p343 = pneg %p141
        %s344 = smul.u32 16, %s19
        %p345 = scmp.lt.s32.totalorder %s344, 79
        %s346 = scalar_select %p345, %s344, 79
        %s347 = smul.addr %s346, 8
        %s348 = scalar_lea.vmem %s4, %s347
        %s349 = smul.u32 16, %s19
        %s350 = smul.u32 5, %s20
        %s351 = smul.u32 80, %s20
        %p352 = scmp.lt.s32.totalorder %s351, 399
        %s353 = scalar_select %p352, %s351, 399
        %s354 = smul.addr %s353, 4
        %s355 = scalar_lea.vmem %s1, %s354
        %s356 = smul.u32 80, %s20
        %s357 = smul.u32 16, %s19
        %p358 = scmp.lt.s32.totalorder %s357, 79
        %s359 = scalar_select %p358, %s357, 79
        %s360 = smul.addr %s359, 8
        %s361 = scalar_lea.vmem %s4, %s360
        %s362 = smul.u32 16, %s19
        %p364 = scmp.eq.s32.totalorder %s20, 0
        // Predicated region
        $region63: #{frequency_discriminator.8} parent=57 // pred_check
          %p365 = pneg %p364
        $region64: #{frequency_discriminator.8} parent=57 // pred_check_branch
          %367 = sbr.rel (%p365) target = $region66
        $region65: #{frequency_discriminator.8} parent=57 // pred_region
          %368 = vst [vmem:[#allocation2] sm:$0xff] 0.0
          %369 = vst [vmem:[#allocation2 + $0x8] sm:$0xff] 0.0
          %370 = vst [vmem:[#allocation2 + $0x10] sm:$0xff] 0.0
          %371 = vst [vmem:[#allocation2 + $0x18] sm:$0xff] 0.0
          %372 = vst [vmem:[#allocation2 + $0x20] sm:$0xff] 0.0
          %373 = vst [vmem:[#allocation2 + $0x28] sm:$0xff] 0.0
          %374 = vst [vmem:[#allocation2 + $0x30] sm:$0xff] 0.0
          %375 = vst [vmem:[#allocation2 + $0x38] sm:$0xff] 0.0
          %376 = vst [vmem:[#allocation2 + $0x40] sm:$0xff] 0.0
          %377 = vst [vmem:[#allocation2 + $0x48] sm:$0xff] 0.0
          %378 = vst [vmem:[#allocation2 + $0x50] sm:$0xff] 0.0
          %379 = vst [vmem:[#allocation2 + $0x58] sm:$0xff] 0.0
          %380 = vst [vmem:[#allocation2 + $0x60] sm:$0xff] 0.0
          %381 = vst [vmem:[#allocation2 + $0x68] sm:$0xff] 0.0
          %382 = vst [vmem:[#allocation2 + $0x70] sm:$0xff] 0.0
          %383 = vst [vmem:[#allocation2 + $0x78] sm:$0xff] 0.0
        $region66: #{frequency_discriminator.8} parent=57 // pred_fallthru
          _
        %v384 = vld [vmem:[#allocation2] sm:$0xff]
        %v385 = vld [vmem:[#allocation2 + $0x8] sm:$0xff]
        %v386 = vld [vmem:[#allocation2 + $0x10] sm:$0xff]
        %v387 = vld [vmem:[#allocation2 + $0x18] sm:$0xff]
        %v388 = vld [vmem:[#allocation2 + $0x20] sm:$0xff]
        %v389 = vld [vmem:[#allocation2 + $0x28] sm:$0xff]
        %v390 = vld [vmem:[#allocation2 + $0x30] sm:$0xff]
        %v391 = vld [vmem:[#allocation2 + $0x38] sm:$0xff]
        %v392 = vld [vmem:[#allocation2 + $0x40] sm:$0xff]
        %v393 = vld [vmem:[#allocation2 + $0x48] sm:$0xff]
        %v394 = vld [vmem:[#allocation2 + $0x50] sm:$0xff]
        %v395 = vld [vmem:[#allocation2 + $0x58] sm:$0xff]
        %v396 = vld [vmem:[#allocation2 + $0x60] sm:$0xff]
        %v397 = vld [vmem:[#allocation2 + $0x68] sm:$0xff]
        %v398 = vld [vmem:[#allocation2 + $0x70] sm:$0xff]
        %v399 = vld [vmem:[#allocation2 + $0x78] sm:$0xff]
        %v400 = vld [vmem:[%s321] sm:$0xff]
        %v401 = vld [vmem:[%s321 + $0x8] sm:$0xff]
        %v402 = vld [vmem:[%s321 + $0x10] sm:$0xf]
        %v403 = vld [vmem:[%s321 + $0x14] sm:$0xff]
        %v404 = vld [vmem:[%s321 + $0x1c] sm:$0xff]
        %v405 = vld [vmem:[%s321 + $0x24] sm:$0xf]
        %v406 = vld [vmem:[%s321 + $0x28] sm:$0xff]
        %v407 = vld [vmem:[%s321 + $0x30] sm:$0xff]
        %v408 = vld [vmem:[%s321 + $0x38] sm:$0xf]
        %v409 = vld [vmem:[%s321 + $0x3c] sm:$0xff]
        %v410 = vld [vmem:[%s321 + $0x44] sm:$0xff]
        %v411 = vld [vmem:[%s321 + $0x4c] sm:$0xf]
        %v412 = vld [vmem:[%s321 + $0x50] sm:$0xff]
        %v413 = vld [vmem:[%s321 + $0x58] sm:$0xff]
        %v414 = vld [vmem:[%s321 + $0x60] sm:$0xf]
        %v415 = vld [vmem:[%s321 + $0x64] sm:$0xff]
        %v416 = vld [vmem:[%s321 + $0x6c] sm:$0xff]
        %v417 = vld [vmem:[%s321 + $0x74] sm:$0xf]
        %v418 = vld [vmem:[%s321 + $0x78] sm:$0xff]
        %v419 = vld [vmem:[%s321 + $0x80] sm:$0xff]
        %v420 = vld [vmem:[%s321 + $0x88] sm:$0xf]
        %v421 = vld [vmem:[%s321 + $0x8c] sm:$0xff]
        %v422 = vld [vmem:[%s321 + $0x94] sm:$0xff]
        %v423 = vld [vmem:[%s321 + $0x9c] sm:$0xf]
        %v424 = vld [vmem:[%s321 + $0xa0] sm:$0xff]
        %v425 = vld [vmem:[%s321 + $0xa8] sm:$0xff]
        %v426 = vld [vmem:[%s321 + $0xb0] sm:$0xf]
        %v427 = vld [vmem:[%s321 + $0xb4] sm:$0xff]
        %v428 = vld [vmem:[%s321 + $0xbc] sm:$0xff]
        %v429 = vld [vmem:[%s321 + $0xc4] sm:$0xf]
        %v430 = vld [vmem:[%s321 + $0xc8] sm:$0xff]
        %v431 = vld [vmem:[%s321 + $0xd0] sm:$0xff]
        %v432 = vld [vmem:[%s321 + $0xd8] sm:$0xf]
        %v433 = vld [vmem:[%s321 + $0xdc] sm:$0xff]
        %v434 = vld [vmem:[%s321 + $0xe4] sm:$0xff]
        %v435 = vld [vmem:[%s321 + $0xec] sm:$0xf]
        %v436 = vld [vmem:[%s321 + $0xf0] sm:$0xff]
        %v437 = vld [vmem:[%s321 + $0xf8] sm:$0xff]
        %v438 = vld [vmem:[%s321 + $0x100] sm:$0xf]
        %v439 = vld [vmem:[%s321 + $0x104] sm:$0xff]
        %v440 = vld [vmem:[%s321 + $0x10c] sm:$0xff]
        %v441 = vld [vmem:[%s321 + $0x114] sm:$0xf]
        %v442 = vld [vmem:[%s321 + $0x118] sm:$0xff]
        %v443 = vld [vmem:[%s321 + $0x120] sm:$0xff]
        %v444 = vld [vmem:[%s321 + $0x128] sm:$0xf]
        %v445 = vld [vmem:[%s321 + $0x12c] sm:$0xff]
        %v446 = vld [vmem:[%s321 + $0x134] sm:$0xff]
        %v447 = vld [vmem:[%s321 + $0x13c] sm:$0xf]
        %v448 = vld [vmem:[%s355] sm:$0xf]
        %v449 = vld [vmem:[%s355 + $0x4] sm:$0xf]
        %v450 = vld [vmem:[%s355 + $0x8] sm:$0xf]
        %v451 = vld [vmem:[%s355 + $0xc] sm:$0xf]
        %v452 = vld [vmem:[%s355 + $0x10] sm:$0xf]
        %v453 = vld [vmem:[%s355 + $0x14] sm:$0xf]
        %v454 = vld [vmem:[%s355 + $0x18] sm:$0xf]
        %v455 = vld [vmem:[%s355 + $0x1c] sm:$0xf]
        %v456 = vld [vmem:[%s355 + $0x20] sm:$0xf]
        %v457 = vld [vmem:[%s355 + $0x24] sm:$0xf]
        %v458 = vld [vmem:[%s355 + $0x28] sm:$0xf]
        %v459 = vld [vmem:[%s355 + $0x2c] sm:$0xf]
        %v460 = vld [vmem:[%s355 + $0x30] sm:$0xf]
        %v461 = vld [vmem:[%s355 + $0x34] sm:$0xf]
        %v462 = vld [vmem:[%s355 + $0x38] sm:$0xf]
        %v463 = vld [vmem:[%s355 + $0x3c] sm:$0xf]
        %v464 = vld [vmem:[%s355 + $0x40] sm:$0xf]
        %v465 = vld [vmem:[%s355 + $0x44] sm:$0xf]
        %v466 = vld [vmem:[%s355 + $0x48] sm:$0xf]
        %v467 = vld [vmem:[%s355 + $0x4c] sm:$0xf]
        %v468 = vld [vmem:[%s355 + $0x50] sm:$0xf]
        %v469 = vld [vmem:[%s355 + $0x54] sm:$0xf]
        %v470 = vld [vmem:[%s355 + $0x58] sm:$0xf]
        %v471 = vld [vmem:[%s355 + $0x5c] sm:$0xf]
        %v472 = vld [vmem:[%s355 + $0x60] sm:$0xf]
        %v473 = vld [vmem:[%s355 + $0x64] sm:$0xf]
        %v474 = vld [vmem:[%s355 + $0x68] sm:$0xf]
        %v475 = vld [vmem:[%s355 + $0x6c] sm:$0xf]
        %v476 = vld [vmem:[%s355 + $0x70] sm:$0xf]
        %v477 = vld [vmem:[%s355 + $0x74] sm:$0xf]
        %v478 = vld [vmem:[%s355 + $0x78] sm:$0xf]
        %v479 = vld [vmem:[%s355 + $0x7c] sm:$0xf]
        %v480 = vld [vmem:[%s355 + $0x80] sm:$0xf]
        %v481 = vld [vmem:[%s355 + $0x84] sm:$0xf]
        %v482 = vld [vmem:[%s355 + $0x88] sm:$0xf]
        %v483 = vld [vmem:[%s355 + $0x8c] sm:$0xf]
        %v484 = vld [vmem:[%s355 + $0x90] sm:$0xf]
        %v485 = vld [vmem:[%s355 + $0x94] sm:$0xf]
        %v486 = vld [vmem:[%s355 + $0x98] sm:$0xf]
        %v487 = vld [vmem:[%s355 + $0x9c] sm:$0xf]
        %v488 = vld [vmem:[%s355 + $0xa0] sm:$0xf]
        %v489 = vld [vmem:[%s355 + $0xa4] sm:$0xf]
        %v490 = vld [vmem:[%s355 + $0xa8] sm:$0xf]
        %v491 = vld [vmem:[%s355 + $0xac] sm:$0xf]
        %v492 = vld [vmem:[%s355 + $0xb0] sm:$0xf]
        %v493 = vld [vmem:[%s355 + $0xb4] sm:$0xf]
        %v494 = vld [vmem:[%s355 + $0xb8] sm:$0xf]
        %v495 = vld [vmem:[%s355 + $0xbc] sm:$0xf]
        %v496 = vld [vmem:[%s355 + $0xc0] sm:$0xf]
        %v497 = vld [vmem:[%s355 + $0xc4] sm:$0xf]
        %v498 = vld [vmem:[%s355 + $0xc8] sm:$0xf]
        %v499 = vld [vmem:[%s355 + $0xcc] sm:$0xf]
        %v500 = vld [vmem:[%s355 + $0xd0] sm:$0xf]
        %v501 = vld [vmem:[%s355 + $0xd4] sm:$0xf]
        %v502 = vld [vmem:[%s355 + $0xd8] sm:$0xf]
        %v503 = vld [vmem:[%s355 + $0xdc] sm:$0xf]
        %v504 = vld [vmem:[%s355 + $0xe0] sm:$0xf]
        %v505 = vld [vmem:[%s355 + $0xe4] sm:$0xf]
        %v506 = vld [vmem:[%s355 + $0xe8] sm:$0xf]
        %v507 = vld [vmem:[%s355 + $0xec] sm:$0xf]
        %v508 = vld [vmem:[%s355 + $0xf0] sm:$0xf]
        %v509 = vld [vmem:[%s355 + $0xf4] sm:$0xf]
        %v510 = vld [vmem:[%s355 + $0xf8] sm:$0xf]
        %v511 = vld [vmem:[%s355 + $0xfc] sm:$0xf]
        %v512 = vld [vmem:[%s355 + $0x100] sm:$0xf]
        %v513 = vld [vmem:[%s355 + $0x104] sm:$0xf]
        %v514 = vld [vmem:[%s355 + $0x108] sm:$0xf]
        %v515 = vld [vmem:[%s355 + $0x10c] sm:$0xf]
        %v516 = vld [vmem:[%s355 + $0x110] sm:$0xf]
        %v517 = vld [vmem:[%s355 + $0x114] sm:$0xf]
        %v518 = vld [vmem:[%s355 + $0x118] sm:$0xf]
        %v519 = vld [vmem:[%s355 + $0x11c] sm:$0xf]
        %v520 = vld [vmem:[%s355 + $0x120] sm:$0xf]
        %v521 = vld [vmem:[%s355 + $0x124] sm:$0xf]
        %v522 = vld [vmem:[%s355 + $0x128] sm:$0xf]
        %v523 = vld [vmem:[%s355 + $0x12c] sm:$0xf]
        %v524 = vld [vmem:[%s355 + $0x130] sm:$0xf]
        %v525 = vld [vmem:[%s355 + $0x134] sm:$0xf]
        %v526 = vld [vmem:[%s355 + $0x138] sm:$0xf]
        %v527 = vld [vmem:[%s355 + $0x13c] sm:$0xf]
        %v576 = vunpack.c.l.b16 %v400
        %v577 = vunpack.c.h.b16 %v400
        %v578 = vunpack.c.l.b16 %v401
        %v579 = vunpack.c.h.b16 %v401
        %v580 = vunpack.c.l.b16 %v402
        %v581 = vunpack.c.l.b16 %v403
        %v582 = vunpack.c.h.b16 %v403
        %v583 = vunpack.c.l.b16 %v404
        %v584 = vunpack.c.h.b16 %v404
        %v585 = vunpack.c.l.b16 %v405
        %v586 = vunpack.c.l.b16 %v406
        %v587 = vunpack.c.h.b16 %v406
        %v588 = vunpack.c.l.b16 %v407
        %v589 = vunpack.c.h.b16 %v407
        %v590 = vunpack.c.l.b16 %v408
        %v591 = vunpack.c.l.b16 %v409
        %v592 = vunpack.c.h.b16 %v409
        %v593 = vunpack.c.l.b16 %v410
        %v594 = vunpack.c.h.b16 %v410
        %v595 = vunpack.c.l.b16 %v411
        %v596 = vunpack.c.l.b16 %v412
        %v597 = vunpack.c.h.b16 %v412
        %v598 = vunpack.c.l.b16 %v413
        %v599 = vunpack.c.h.b16 %v413
        %v600 = vunpack.c.l.b16 %v414
        %v601 = vunpack.c.l.b16 %v415
        %v602 = vunpack.c.h.b16 %v415
        %v603 = vunpack.c.l.b16 %v416
        %v604 = vunpack.c.h.b16 %v416
        %v605 = vunpack.c.l.b16 %v417
        %v606 = vunpack.c.l.b16 %v418
        %v607 = vunpack.c.h.b16 %v418
        %v608 = vunpack.c.l.b16 %v419
        %v609 = vunpack.c.h.b16 %v419
        %v610 = vunpack.c.l.b16 %v420
        %v611 = vunpack.c.l.b16 %v421
        %v612 = vunpack.c.h.b16 %v421
        %v613 = vunpack.c.l.b16 %v422
        %v614 = vunpack.c.h.b16 %v422
        %v615 = vunpack.c.l.b16 %v423
        %v616 = vunpack.c.l.b16 %v424
        %v617 = vunpack.c.h.b16 %v424
        %v618 = vunpack.c.l.b16 %v425
        %v619 = vunpack.c.h.b16 %v425
        %v620 = vunpack.c.l.b16 %v426
        %v621 = vunpack.c.l.b16 %v427
        %v622 = vunpack.c.h.b16 %v427
        %v623 = vunpack.c.l.b16 %v428
        %v624 = vunpack.c.h.b16 %v428
        %v625 = vunpack.c.l.b16 %v429
        %v626 = vunpack.c.l.b16 %v430
        %v627 = vunpack.c.h.b16 %v430
        %v628 = vunpack.c.l.b16 %v431
        %v629 = vunpack.c.h.b16 %v431
        %v630 = vunpack.c.l.b16 %v432
        %v631 = vunpack.c.l.b16 %v433
        %v632 = vunpack.c.h.b16 %v433
        %v633 = vunpack.c.l.b16 %v434
        %v634 = vunpack.c.h.b16 %v434
        %v635 = vunpack.c.l.b16 %v435
        %v636 = vunpack.c.l.b16 %v436
        %v637 = vunpack.c.h.b16 %v436
        %v638 = vunpack.c.l.b16 %v437
        %v639 = vunpack.c.h.b16 %v437
        %v640 = vunpack.c.l.b16 %v438
        %v641 = vunpack.c.l.b16 %v439
        %v642 = vunpack.c.h.b16 %v439
        %v643 = vunpack.c.l.b16 %v440
        %v644 = vunpack.c.h.b16 %v440
        %v645 = vunpack.c.l.b16 %v441
        %v646 = vunpack.c.l.b16 %v442
        %v647 = vunpack.c.h.b16 %v442
        %v648 = vunpack.c.l.b16 %v443
        %v649 = vunpack.c.h.b16 %v443
        %v650 = vunpack.c.l.b16 %v444
        %v651 = vunpack.c.l.b16 %v445
        %v652 = vunpack.c.h.b16 %v445
        %v653 = vunpack.c.l.b16 %v446
        %v654 = vunpack.c.h.b16 %v446
        %v655 = vunpack.c.l.b16 %v447
        %v656 = vpack.c.b16 %v581, %v576
        %v657 = vpack.c.b16 %v582, %v577
        %v658 = vpack.c.b16 %v583, %v578
        %v659 = vpack.c.b16 %v584, %v579
        %v660 = vpack.c.b16 %v585, %v580
        %v661 = vpack.c.b16 %v591, %v586
        %v662 = vpack.c.b16 %v592, %v587
        %v663 = vpack.c.b16 %v593, %v588
        %v664 = vpack.c.b16 %v594, %v589
        %v665 = vpack.c.b16 %v595, %v590
        %v666 = vpack.c.b16 %v601, %v596
        %v667 = vpack.c.b16 %v602, %v597
        %v668 = vpack.c.b16 %v603, %v598
        %v669 = vpack.c.b16 %v604, %v599
        %v670 = vpack.c.b16 %v605, %v600
        %v671 = vpack.c.b16 %v611, %v606
        %v672 = vpack.c.b16 %v612, %v607
        %v673 = vpack.c.b16 %v613, %v608
        %v674 = vpack.c.b16 %v614, %v609
        %v675 = vpack.c.b16 %v615, %v610
        %v676 = vpack.c.b16 %v621, %v616
        %v677 = vpack.c.b16 %v622, %v617
        %v678 = vpack.c.b16 %v623, %v618
        %v679 = vpack.c.b16 %v624, %v619
        %v680 = vpack.c.b16 %v625, %v620
        %v681 = vpack.c.b16 %v631, %v626
        %v682 = vpack.c.b16 %v632, %v627
        %v683 = vpack.c.b16 %v633, %v628
        %v684 = vpack.c.b16 %v634, %v629
        %v685 = vpack.c.b16 %v635, %v630
        %v686 = vpack.c.b16 %v641, %v636
        %v687 = vpack.c.b16 %v642, %v637
        %v688 = vpack.c.b16 %v643, %v638
        %v689 = vpack.c.b16 %v644, %v639
        %v690 = vpack.c.b16 %v645, %v640
        %v691 = vpack.c.b16 %v651, %v646
        %v692 = vpack.c.b16 %v652, %v647
        %v693 = vpack.c.b16 %v653, %v648
        %v694 = vpack.c.b16 %v654, %v649
        %v695 = vpack.c.b16 %v655, %v650
        %v816 = vunpack.c.l.b16 %v448
        %v817 = vunpack.c.l.b16 %v449
        %v818 = vunpack.c.l.b16 %v450
        %v819 = vunpack.c.l.b16 %v451
        %v820 = vunpack.c.l.b16 %v452
        %v821 = vunpack.c.l.b16 %v453
        %v822 = vunpack.c.l.b16 %v454
        %v823 = vunpack.c.l.b16 %v455
        %v824 = vunpack.c.l.b16 %v456
        %v825 = vunpack.c.l.b16 %v457
        %v826 = vunpack.c.l.b16 %v458
        %v827 = vunpack.c.l.b16 %v459
        %v828 = vunpack.c.l.b16 %v460
        %v829 = vunpack.c.l.b16 %v461
        %v830 = vunpack.c.l.b16 %v462
        %v831 = vunpack.c.l.b16 %v463
        %v832 = vunpack.c.l.b16 %v464
        %v833 = vunpack.c.l.b16 %v465
        %v834 = vunpack.c.l.b16 %v466
        %v835 = vunpack.c.l.b16 %v467
        %v836 = vunpack.c.l.b16 %v468
        %v837 = vunpack.c.l.b16 %v469
        %v838 = vunpack.c.l.b16 %v470
        %v839 = vunpack.c.l.b16 %v471
        %v840 = vunpack.c.l.b16 %v472
        %v841 = vunpack.c.l.b16 %v473
        %v842 = vunpack.c.l.b16 %v474
        %v843 = vunpack.c.l.b16 %v475
        %v844 = vunpack.c.l.b16 %v476
        %v845 = vunpack.c.l.b16 %v477
        %v846 = vunpack.c.l.b16 %v478
        %v847 = vunpack.c.l.b16 %v479
        %v848 = vunpack.c.l.b16 %v480
        %v849 = vunpack.c.l.b16 %v481
        %v850 = vunpack.c.l.b16 %v482
        %v851 = vunpack.c.l.b16 %v483
        %v852 = vunpack.c.l.b16 %v484
        %v853 = vunpack.c.l.b16 %v485
        %v854 = vunpack.c.l.b16 %v486
        %v855 = vunpack.c.l.b16 %v487
        %v856 = vunpack.c.l.b16 %v488
        %v857 = vunpack.c.l.b16 %v489
        %v858 = vunpack.c.l.b16 %v490
        %v859 = vunpack.c.l.b16 %v491
        %v860 = vunpack.c.l.b16 %v492
        %v861 = vunpack.c.l.b16 %v493
        %v862 = vunpack.c.l.b16 %v494
        %v863 = vunpack.c.l.b16 %v495
        %v864 = vunpack.c.l.b16 %v496
        %v865 = vunpack.c.l.b16 %v497
        %v866 = vunpack.c.l.b16 %v498
        %v867 = vunpack.c.l.b16 %v499
        %v868 = vunpack.c.l.b16 %v500
        %v869 = vunpack.c.l.b16 %v501
        %v870 = vunpack.c.l.b16 %v502
        %v871 = vunpack.c.l.b16 %v503
        %v872 = vunpack.c.l.b16 %v504
        %v873 = vunpack.c.l.b16 %v505
        %v874 = vunpack.c.l.b16 %v506
        %v875 = vunpack.c.l.b16 %v507
        %v876 = vunpack.c.l.b16 %v508
        %v877 = vunpack.c.l.b16 %v509
        %v878 = vunpack.c.l.b16 %v510
        %v879 = vunpack.c.l.b16 %v511
        %v880 = vunpack.c.l.b16 %v512
        %v881 = vunpack.c.l.b16 %v513
        %v882 = vunpack.c.l.b16 %v514
        %v883 = vunpack.c.l.b16 %v515
        %v884 = vunpack.c.l.b16 %v516
        %v885 = vunpack.c.l.b16 %v517
        %v886 = vunpack.c.l.b16 %v518
        %v887 = vunpack.c.l.b16 %v519
        %v888 = vunpack.c.l.b16 %v520
        %v889 = vunpack.c.l.b16 %v521
        %v890 = vunpack.c.l.b16 %v522
        %v891 = vunpack.c.l.b16 %v523
        %v892 = vunpack.c.l.b16 %v524
        %v893 = vunpack.c.l.b16 %v525
        %v894 = vunpack.c.l.b16 %v526
        %v895 = vunpack.c.l.b16 %v527
        %v896 = vpack.c.b16 %v817, %v816
        %v897 = vpack.c.b16 %v819, %v818
        %v898 = vpack.c.b16 %v821, %v820
        %v899 = vpack.c.b16 %v823, %v822
        %v900 = vpack.c.b16 %v825, %v824
        %v901 = vpack.c.b16 %v827, %v826
        %v902 = vpack.c.b16 %v829, %v828
        %v903 = vpack.c.b16 %v831, %v830
        %v904 = vpack.c.b16 %v833, %v832
        %v905 = vpack.c.b16 %v835, %v834
        %v906 = vpack.c.b16 %v837, %v836
        %v907 = vpack.c.b16 %v839, %v838
        %v908 = vpack.c.b16 %v841, %v840
        %v909 = vpack.c.b16 %v843, %v842
        %v910 = vpack.c.b16 %v845, %v844
        %v911 = vpack.c.b16 %v847, %v846
        %v912 = vpack.c.b16 %v849, %v848
        %v913 = vpack.c.b16 %v851, %v850
        %v914 = vpack.c.b16 %v853, %v852
        %v915 = vpack.c.b16 %v855, %v854
        %v916 = vpack.c.b16 %v857, %v856
        %v917 = vpack.c.b16 %v859, %v858
        %v918 = vpack.c.b16 %v861, %v860
        %v919 = vpack.c.b16 %v863, %v862
        %v920 = vpack.c.b16 %v865, %v864
        %v921 = vpack.c.b16 %v867, %v866
        %v922 = vpack.c.b16 %v869, %v868
        %v923 = vpack.c.b16 %v871, %v870
        %v924 = vpack.c.b16 %v873, %v872
        %v925 = vpack.c.b16 %v875, %v874
        %v926 = vpack.c.b16 %v877, %v876
        %v927 = vpack.c.b16 %v879, %v878
        %v928 = vpack.c.b16 %v881, %v880
        %v929 = vpack.c.b16 %v883, %v882
        %v930 = vpack.c.b16 %v885, %v884
        %v931 = vpack.c.b16 %v887, %v886
        %v932 = vpack.c.b16 %v889, %v888
        %v933 = vpack.c.b16 %v891, %v890
        %v934 = vpack.c.b16 %v893, %v892
        %v935 = vpack.c.b16 %v895, %v894
        %976 = vmatprep.subr.bf16.mxu0 0
        %977 = vmatpush1.bf16.msra.mxu0 %v896
        %978 = vmatprep.subr.bf16.mxu0 0
        %979 = vmatpush1.bf16.msra.mxu0 %v897
        %980 = vmatprep.subr.bf16.mxu0 0
        %981 = vmatpush1.bf16.msra.mxu0 %v898
        %982 = vmatprep.subr.bf16.mxu0 0
        %983 = vmatpush1.bf16.msra.mxu0 %v899
        %984 = vmatprep.subr.bf16.mxu0 0
        %985 = vmatpush1.bf16.msra.mxu0 %v900
        %986 = vmatprep.subr.bf16.mxu0 0
        %987 = vmatpush1.bf16.msra.mxu0 %v901
        %988 = vmatprep.subr.bf16.mxu0 0
        %989 = vmatpush1.bf16.msra.mxu0 %v902
        %990 = vmatprep.subr.bf16.mxu0 0
        %991 = vmatpush1.bf16.msra.mxu0 %v903
        %992 = vmatprep.subr.bf16.mxu0 0
        %993 = vmatpush1.bf16.msra.mxu0 %v904
        %994 = vmatprep.subr.bf16.mxu0 0
        %995 = vmatpush1.bf16.msra.mxu0 %v905
        %996 = vmatprep.subr.bf16.mxu0 0
        %997 = vmatpush1.bf16.msra.mxu0 %v906
        %998 = vmatprep.subr.bf16.mxu0 0
        %999 = vmatpush1.bf16.msra.mxu0 %v907
        %1000 = vmatprep.subr.bf16.mxu0 0
        %1001 = vmatpush1.bf16.msra.mxu0 %v908
        %1002 = vmatprep.subr.bf16.mxu0 0
        %1003 = vmatpush1.bf16.msra.mxu0 %v909
        %1004 = vmatprep.subr.bf16.mxu0 0
        %1005 = vmatpush1.bf16.msra.mxu0 %v910
        %1006 = vmatprep.subr.bf16.mxu0 0
        %1007 = vmatpush1.bf16.msra.mxu0 %v911
        %1008 = vmatprep.mubr.bf16.mxu0 %v657
        %1009 = vmatmul.mubr.bf16.gmra.mrb[0].mxu0 %v656
        %v1010 = vpop.f32.mrb[0].mxu0
        %v1011 = vadd.f32 0.0, %v1010
        %v1012 = vpop.f32.mrb[0].mxu0
        %v1013 = vpop.f32.mrb[0].mxu0
        %v1014 = vadd.f32 0.0, %v1013
        %v1015 = vpop.f32.mrb[0].mxu0
        %1016 = vmatprep.mubr.bf16.mxu0 %v662
        %1017 = vmatmul.mubr.bf16.gmra.mrb[0].mxu0 %v661
        %v1018 = vpop.f32.mrb[0].mxu0
        %v1019 = vadd.f32 0.0, %v1018
        %v1020 = vpop.f32.mrb[0].mxu0
        %v1021 = vpop.f32.mrb[0].mxu0
        %v1022 = vadd.f32 0.0, %v1021
        %v1023 = vpop.f32.mrb[0].mxu0
        %1024 = vmatprep.mubr.bf16.mxu0 %v667
        %1025 = vmatmul.mubr.bf16.gmra.mrb[0].mxu0 %v666
        %v1026 = vpop.f32.mrb[0].mxu0
        %v1027 = vadd.f32 0.0, %v1026
        %v1028 = vpop.f32.mrb[0].mxu0
        %v1029 = vpop.f32.mrb[0].mxu0
        %v1030 = vadd.f32 0.0, %v1029
        %v1031 = vpop.f32.mrb[0].mxu0
        %1032 = vmatprep.mubr.bf16.mxu0 %v672
        %1033 = vmatmul.mubr.bf16.gmra.mrb[0].mxu0 %v671
        %v1034 = vpop.f32.mrb[0].mxu0
        %v1035 = vadd.f32 0.0, %v1034
        %v1036 = vpop.f32.mrb[0].mxu0
        %v1037 = vpop.f32.mrb[0].mxu0
        %v1038 = vadd.f32 0.0, %v1037
        %v1039 = vpop.f32.mrb[0].mxu0
        %1040 = vmatprep.mubr.bf16.mxu0 %v677
        %1041 = vmatmul.mubr.bf16.gmra.mrb[0].mxu0 %v676
        %v1042 = vpop.f32.mrb[0].mxu0
        %v1043 = vadd.f32 0.0, %v1042
        %v1044 = vpop.f32.mrb[0].mxu0
        %v1045 = vpop.f32.mrb[0].mxu0
        %v1046 = vadd.f32 0.0, %v1045
        %v1047 = vpop.f32.mrb[0].mxu0
        %1048 = vmatprep.mubr.bf16.mxu0 %v682
        %1049 = vmatmul.mubr.bf16.gmra.mrb[0].mxu0 %v681
        %v1050 = vpop.f32.mrb[0].mxu0
        %v1051 = vadd.f32 0.0, %v1050
        %v1052 = vpop.f32.mrb[0].mxu0
        %v1053 = vpop.f32.mrb[0].mxu0
        %v1054 = vadd.f32 0.0, %v1053
        %v1055 = vpop.f32.mrb[0].mxu0
        %1056 = vmatprep.mubr.bf16.mxu0 %v687
        %1057 = vmatmul.mubr.bf16.gmra.mrb[0].mxu0 %v686
        %v1058 = vpop.f32.mrb[0].mxu0
        %v1059 = vadd.f32 0.0, %v1058
        %v1060 = vpop.f32.mrb[0].mxu0
        %v1061 = vpop.f32.mrb[0].mxu0
        %v1062 = vadd.f32 0.0, %v1061
        %v1063 = vpop.f32.mrb[0].mxu0
        %1064 = vmatprep.mubr.bf16.mxu0 %v692
        %1065 = vmatmul.mubr.bf16.gmra.mrb[0].mxu0 %v691
        %v1066 = vpop.f32.mrb[0].mxu0
        %v1067 = vadd.f32 0.0, %v1066
        %v1068 = vpop.f32.mrb[0].mxu0
        %v1069 = vpop.f32.mrb[0].mxu0
        %v1070 = vadd.f32 0.0, %v1069
        %v1071 = vpop.f32.mrb[0].mxu0
        %1072 = vdwg.mxu0
        %1073 = vmatprep.subr.bf16.mxu0 0
        %1074 = vmatpush1.bf16.msra.mxu0 %v912
        %1075 = vmatprep.subr.bf16.mxu0 0
        %1076 = vmatpush1.bf16.msra.mxu0 %v913
        %1077 = vmatprep.subr.bf16.mxu0 0
        %1078 = vmatpush1.bf16.msra.mxu0 %v914
        %1079 = vmatprep.subr.bf16.mxu0 0
        %1080 = vmatpush1.bf16.msra.mxu0 %v915
        %1081 = vmatprep.subr.bf16.mxu0 0
        %1082 = vmatpush1.bf16.msra.mxu0 %v916
        %1083 = vmatprep.subr.bf16.mxu0 0
        %1084 = vmatpush1.bf16.msra.mxu0 %v917
        %1085 = vmatprep.subr.bf16.mxu0 0
        %1086 = vmatpush1.bf16.msra.mxu0 %v918
        %1087 = vmatprep.subr.bf16.mxu0 0
        %1088 = vmatpush1.bf16.msra.mxu0 %v919
        %1089 = vmatprep.subr.bf16.mxu0 0
        %1090 = vmatpush1.bf16.msra.mxu0 %v920
        %1091 = vmatprep.subr.bf16.mxu0 0
        %1092 = vmatpush1.bf16.msra.mxu0 %v921
        %1093 = vmatprep.subr.bf16.mxu0 0
        %1094 = vmatpush1.bf16.msra.mxu0 %v922
        %1095 = vmatprep.subr.bf16.mxu0 0
        %1096 = vmatpush1.bf16.msra.mxu0 %v923
        %1097 = vmatprep.subr.bf16.mxu0 0
        %1098 = vmatpush1.bf16.msra.mxu0 %v924
        %1099 = vmatprep.subr.bf16.mxu0 0
        %1100 = vmatpush1.bf16.msra.mxu0 %v925
        %1101 = vmatprep.subr.bf16.mxu0 0
        %1102 = vmatpush1.bf16.msra.mxu0 %v926
        %1103 = vmatprep.subr.bf16.mxu0 0
        %1104 = vmatpush1.bf16.msra.mxu0 %v927
        %1105 = vmatprep.mubr.bf16.mxu0 %v659
        %1106 = vmatmul.mubr.bf16.gmra.mrb[0].mxu0 %v658
        %v1107 = vpop.f32.mrb[0].mxu0
        %v1108 = vadd.f32 %v1011, %v1107
        %v1109 = vpop.f32.mrb[0].mxu0
        %v1110 = vpop.f32.mrb[0].mxu0
        %v1111 = vadd.f32 %v1014, %v1110
        %v1112 = vpop.f32.mrb[0].mxu0
        %1113 = vmatprep.mubr.bf16.mxu0 %v664
        %1114 = vmatmul.mubr.bf16.gmra.mrb[0].mxu0 %v663
        %v1115 = vpop.f32.mrb[0].mxu0
        %v1116 = vadd.f32 %v1019, %v1115
        %v1117 = vpop.f32.mrb[0].mxu0
        %v1118 = vpop.f32.mrb[0].mxu0
        %v1119 = vadd.f32 %v1022, %v1118
        %v1120 = vpop.f32.mrb[0].mxu0
        %1121 = vmatprep.mubr.bf16.mxu0 %v669
        %1122 = vmatmul.mubr.bf16.gmra.mrb[0].mxu0 %v668
        %v1123 = vpop.f32.mrb[0].mxu0
        %v1124 = vadd.f32 %v1027, %v1123
        %v1125 = vpop.f32.mrb[0].mxu0
        %v1126 = vpop.f32.mrb[0].mxu0
        %v1127 = vadd.f32 %v1030, %v1126
        %v1128 = vpop.f32.mrb[0].mxu0
        %1129 = vmatprep.mubr.bf16.mxu0 %v674
        %1130 = vmatmul.mubr.bf16.gmra.mrb[0].mxu0 %v673
        %v1131 = vpop.f32.mrb[0].mxu0
        %v1132 = vadd.f32 %v1035, %v1131
        %v1133 = vpop.f32.mrb[0].mxu0
        %v1134 = vpop.f32.mrb[0].mxu0
        %v1135 = vadd.f32 %v1038, %v1134
        %v1136 = vpop.f32.mrb[0].mxu0
        %1137 = vmatprep.mubr.bf16.mxu0 %v679
        %1138 = vmatmul.mubr.bf16.gmra.mrb[0].mxu0 %v678
        %v1139 = vpop.f32.mrb[0].mxu0
        %v1140 = vadd.f32 %v1043, %v1139
        %v1141 = vpop.f32.mrb[0].mxu0
        %v1142 = vpop.f32.mrb[0].mxu0
        %v1143 = vadd.f32 %v1046, %v1142
        %v1144 = vpop.f32.mrb[0].mxu0
        %1145 = vmatprep.mubr.bf16.mxu0 %v684
        %1146 = vmatmul.mubr.bf16.gmra.mrb[0].mxu0 %v683
        %v1147 = vpop.f32.mrb[0].mxu0
        %v1148 = vadd.f32 %v1051, %v1147
        %v1149 = vpop.f32.mrb[0].mxu0
        %v1150 = vpop.f32.mrb[0].mxu0
        %v1151 = vadd.f32 %v1054, %v1150
        %v1152 = vpop.f32.mrb[0].mxu0
        %1153 = vmatprep.mubr.bf16.mxu0 %v689
        %1154 = vmatmul.mubr.bf16.gmra.mrb[0].mxu0 %v688
        %v1155 = vpop.f32.mrb[0].mxu0
        %v1156 = vadd.f32 %v1059, %v1155
        %v1157 = vpop.f32.mrb[0].mxu0
        %v1158 = vpop.f32.mrb[0].mxu0
        %v1159 = vadd.f32 %v1062, %v1158
        %v1160 = vpop.f32.mrb[0].mxu0
        %1161 = vmatprep.mubr.bf16.mxu0 %v694
        %1162 = vmatmul.mubr.bf16.gmra.mrb[0].mxu0 %v693
        %v1163 = vpop.f32.mrb[0].mxu0
        %v1164 = vadd.f32 %v1067, %v1163
        %v1165 = vpop.f32.mrb[0].mxu0
        %v1166 = vpop.f32.mrb[0].mxu0
        %v1167 = vadd.f32 %v1070, %v1166
        %v1168 = vpop.f32.mrb[0].mxu0
        %1169 = vdwg.mxu0
        %1170 = vmatprep.subr.bf16.mxu0 0
        %1171 = vmatpush1.bf16.msra.mxu0 %v928
        %1172 = vmatprep.subr.bf16.mxu0 0
        %1173 = vmatpush1.bf16.msra.mxu0 %v929
        %1174 = vmatprep.subr.bf16.mxu0 0
        %1175 = vmatpush1.bf16.msra.mxu0 %v930
        %1176 = vmatprep.subr.bf16.mxu0 0
        %1177 = vmatpush1.bf16.msra.mxu0 %v931
        %1178 = vmatprep.subr.bf16.mxu0 0
        %1179 = vmatpush1.bf16.msra.mxu0 %v932
        %1180 = vmatprep.subr.bf16.mxu0 0
        %1181 = vmatpush1.bf16.msra.mxu0 %v933
        %1182 = vmatprep.subr.bf16.mxu0 0
        %1183 = vmatpush1.bf16.msra.mxu0 %v934
        %1184 = vmatprep.subr.bf16.mxu0 0
        %1185 = vmatpush1.bf16.msra.mxu0 %v935
        %1186 = vmatprep.subr.bf16.mxu0 0
        %1187 = vmatpush1.bf16.msra.mxu0 0
        %1188 = vmatprep.subr.bf16.mxu0 0
        %1189 = vmatpush1.bf16.msra.mxu0 0
        %1190 = vmatprep.subr.bf16.mxu0 0
        %1191 = vmatpush1.bf16.msra.mxu0 0
        %1192 = vmatprep.subr.bf16.mxu0 0
        %1193 = vmatpush1.bf16.msra.mxu0 0
        %1194 = vmatprep.subr.bf16.mxu0 0
        %1195 = vmatpush1.bf16.msra.mxu0 0
        %1196 = vmatprep.subr.bf16.mxu0 0
        %1197 = vmatpush1.bf16.msra.mxu0 0
        %1198 = vmatprep.subr.bf16.mxu0 0
        %1199 = vmatpush1.bf16.msra.mxu0 0
        %1200 = vmatprep.subr.bf16.mxu0 0
        %1201 = vmatpush1.bf16.msra.mxu0 0
        %1202 = vmatprep.mubr.bf16.mxu0 0
        %1203 = vmatmul.mubr.bf16.gmra.mrb[0].mxu0 %v660
        %v1204 = vpop.f32.mrb[0].mxu0
        %v1205 = vadd.f32 %v1108, %v1204
        %v1206 = vpop.f32.mrb[0].mxu0
        %v1207 = vpop.f32.mrb[0].mxu0
        %v1208 = vadd.f32 %v1111, %v1207
        %v1209 = vpop.f32.mrb[0].mxu0
        %1210 = vmatprep.mubr.bf16.mxu0 0
        %1211 = vmatmul.mubr.bf16.gmra.mrb[0].mxu0 %v665
        %v1212 = vpop.f32.mrb[0].mxu0
        %v1213 = vadd.f32 %v1116, %v1212
        %v1214 = vpop.f32.mrb[0].mxu0
        %v1215 = vpop.f32.mrb[0].mxu0
        %v1216 = vadd.f32 %v1119, %v1215
        %v1217 = vpop.f32.mrb[0].mxu0
        %1218 = vmatprep.mubr.bf16.mxu0 0
        %1219 = vmatmul.mubr.bf16.gmra.mrb[0].mxu0 %v670
        %v1220 = vpop.f32.mrb[0].mxu0
        %v1221 = vadd.f32 %v1124, %v1220
        %v1222 = vpop.f32.mrb[0].mxu0
        %v1223 = vpop.f32.mrb[0].mxu0
        %v1224 = vadd.f32 %v1127, %v1223
        %v1225 = vpop.f32.mrb[0].mxu0
        %1226 = vmatprep.mubr.bf16.mxu0 0
        %1227 = vmatmul.mubr.bf16.gmra.mrb[0].mxu0 %v675
        %v1228 = vpop.f32.mrb[0].mxu0
        %v1229 = vadd.f32 %v1132, %v1228
        %v1230 = vpop.f32.mrb[0].mxu0
        %v1231 = vpop.f32.mrb[0].mxu0
        %v1232 = vadd.f32 %v1135, %v1231
        %v1233 = vpop.f32.mrb[0].mxu0
        %1234 = vmatprep.mubr.bf16.mxu0 0
        %1235 = vmatmul.mubr.bf16.gmra.mrb[0].mxu0 %v680
        %v1236 = vpop.f32.mrb[0].mxu0
        %v1237 = vadd.f32 %v1140, %v1236
        %v1238 = vpop.f32.mrb[0].mxu0
        %v1239 = vpop.f32.mrb[0].mxu0
        %v1240 = vadd.f32 %v1143, %v1239
        %v1241 = vpop.f32.mrb[0].mxu0
        %1242 = vmatprep.mubr.bf16.mxu0 0
        %1243 = vmatmul.mubr.bf16.gmra.mrb[0].mxu0 %v685
        %v1244 = vpop.f32.mrb[0].mxu0
        %v1245 = vadd.f32 %v1148, %v1244
        %v1246 = vpop.f32.mrb[0].mxu0
        %v1247 = vpop.f32.mrb[0].mxu0
        %v1248 = vadd.f32 %v1151, %v1247
        %v1249 = vpop.f32.mrb[0].mxu0
        %1250 = vmatprep.mubr.bf16.mxu0 0
        %1251 = vmatmul.mubr.bf16.gmra.mrb[0].mxu0 %v690
        %v1252 = vpop.f32.mrb[0].mxu0
        %v1253 = vadd.f32 %v1156, %v1252
        %v1254 = vpop.f32.mrb[0].mxu0
        %v1255 = vpop.f32.mrb[0].mxu0
        %v1256 = vadd.f32 %v1159, %v1255
        %v1257 = vpop.f32.mrb[0].mxu0
        %1258 = vmatprep.mubr.bf16.mxu0 0
        %1259 = vmatmul.mubr.bf16.gmra.mrb[0].mxu0 %v695
        %v1260 = vpop.f32.mrb[0].mxu0
        %v1261 = vadd.f32 %v1164, %v1260
        %v1262 = vpop.f32.mrb[0].mxu0
        %v1263 = vpop.f32.mrb[0].mxu0
        %v1264 = vadd.f32 %v1167, %v1263
        %v1265 = vpop.f32.mrb[0].mxu0
        %1266 = vdwg.mxu0
        %v1267 = vadd.f32 %v384, %v1205
        %v1268 = vadd.f32 %v385, %v1208
        %v1269 = vadd.f32 %v386, %v1213
        %v1270 = vadd.f32 %v387, %v1216
        %v1271 = vadd.f32 %v388, %v1221
        %v1272 = vadd.f32 %v389, %v1224
        %v1273 = vadd.f32 %v390, %v1229
        %v1274 = vadd.f32 %v391, %v1232
        %v1275 = vadd.f32 %v392, %v1237
        %v1276 = vadd.f32 %v393, %v1240
        %v1277 = vadd.f32 %v394, %v1245
        %v1278 = vadd.f32 %v395, %v1248
        %v1279 = vadd.f32 %v396, %v1253
        %v1280 = vadd.f32 %v397, %v1256
        %v1281 = vadd.f32 %v398, %v1261
        %v1282 = vadd.f32 %v399, %v1264
        %1283 = vst [vmem:[#allocation2] sm:$0xff] %v1267
        %1284 = vst [vmem:[#allocation2 + $0x8] sm:$0xff] %v1268
        %1285 = vst [vmem:[#allocation2 + $0x10] sm:$0xff] %v1269
        %1286 = vst [vmem:[#allocation2 + $0x18] sm:$0xff] %v1270
        %1287 = vst [vmem:[#allocation2 + $0x20] sm:$0xff] %v1271
        %1288 = vst [vmem:[#allocation2 + $0x28] sm:$0xff] %v1272
        %1289 = vst [vmem:[#allocation2 + $0x30] sm:$0xff] %v1273
        %1290 = vst [vmem:[#allocation2 + $0x38] sm:$0xff] %v1274
        %1291 = vst [vmem:[#allocation2 + $0x40] sm:$0xff] %v1275
        %1292 = vst [vmem:[#allocation2 + $0x48] sm:$0xff] %v1276
        %1293 = vst [vmem:[#allocation2 + $0x50] sm:$0xff] %v1277
        %1294 = vst [vmem:[#allocation2 + $0x58] sm:$0xff] %v1278
        %1295 = vst [vmem:[#allocation2 + $0x60] sm:$0xff] %v1279
        %1296 = vst [vmem:[#allocation2 + $0x68] sm:$0xff] %v1280
        %1297 = vst [vmem:[#allocation2 + $0x70] sm:$0xff] %v1281
        %1298 = vst [vmem:[#allocation2 + $0x78] sm:$0xff] %v1282
        %p1299 = scmp.eq.s32.totalorder %s20, 4
        // Predicated region
        $region67: #{frequency_discriminator.8} parent=57 // pred_check
          %p1300 = pneg %p1299
        $region68: #{frequency_discriminator.8} parent=57 // pred_check_branch
          %1302 = sbr.rel (%p1300) target = $region70
        $region69: #{frequency_discriminator.8} parent=57 // pred_region
          %v1303 = vld [vmem:[#allocation2] sm:$0xff]
          %v1304 = vld [vmem:[#allocation2 + $0x8] sm:$0xff]
          %v1305 = vld [vmem:[#allocation2 + $0x10] sm:$0xff]
          %v1306 = vld [vmem:[#allocation2 + $0x18] sm:$0xff]
          %v1307 = vld [vmem:[#allocation2 + $0x20] sm:$0xff]
          %v1308 = vld [vmem:[#allocation2 + $0x28] sm:$0xff]
          %v1309 = vld [vmem:[#allocation2 + $0x30] sm:$0xff]
          %v1310 = vld [vmem:[#allocation2 + $0x38] sm:$0xff]
          %v1311 = vld [vmem:[#allocation2 + $0x40] sm:$0xff]
          %v1312 = vld [vmem:[#allocation2 + $0x48] sm:$0xff]
          %v1313 = vld [vmem:[#allocation2 + $0x50] sm:$0xff]
          %v1314 = vld [vmem:[#allocation2 + $0x58] sm:$0xff]
          %v1315 = vld [vmem:[#allocation2 + $0x60] sm:$0xff]
          %v1316 = vld [vmem:[#allocation2 + $0x68] sm:$0xff]
          %v1317 = vld [vmem:[#allocation2 + $0x70] sm:$0xff]
          %v1318 = vld [vmem:[#allocation2 + $0x78] sm:$0xff]
          %1319 = vadd.xlane.f32.xlu0 %v1303
          %v1320 = vpop.xlane.xlu0 %1319
          %1321 = vadd.xlane.f32.xlu0 %v1304
          %v1322 = vpop.xlane.xlu0 %1321
          %1323 = vadd.xlane.f32.xlu0 %v1305
          %v1324 = vpop.xlane.xlu0 %1323
          %1325 = vadd.xlane.f32.xlu0 %v1306
          %v1326 = vpop.xlane.xlu0 %1325
          %1327 = vadd.xlane.f32.xlu0 %v1307
          %v1328 = vpop.xlane.xlu0 %1327
          %1329 = vadd.xlane.f32.xlu0 %v1308
          %v1330 = vpop.xlane.xlu0 %1329
          %1331 = vadd.xlane.f32.xlu0 %v1309
          %v1332 = vpop.xlane.xlu0 %1331
          %1333 = vadd.xlane.f32.xlu0 %v1310
          %v1334 = vpop.xlane.xlu0 %1333
          %1335 = vadd.xlane.f32.xlu0 %v1311
          %v1336 = vpop.xlane.xlu0 %1335
          %1337 = vadd.xlane.f32.xlu0 %v1312
          %v1338 = vpop.xlane.xlu0 %1337
          %1339 = vadd.xlane.f32.xlu0 %v1313
          %v1340 = vpop.xlane.xlu0 %1339
          %1341 = vadd.xlane.f32.xlu0 %v1314
          %v1342 = vpop.xlane.xlu0 %1341
          %1343 = vadd.xlane.f32.xlu0 %v1315
          %v1344 = vpop.xlane.xlu0 %1343
          %1345 = vadd.xlane.f32.xlu0 %v1316
          %v1346 = vpop.xlane.xlu0 %1345
          %1347 = vadd.xlane.f32.xlu0 %v1317
          %v1348 = vpop.xlane.xlu0 %1347
          %1349 = vadd.xlane.f32.xlu0 %v1318
          %v1350 = vpop.xlane.xlu0 %1349
          %v1351 = vrcp.pop 128.0
          %v1352 = vmul.f32 %v1320, %v1351
          %v1353 = vmul.f32 %v1322, %v1351
          %v1354 = vmul.f32 %v1324, %v1351
          %v1355 = vmul.f32 %v1326, %v1351
          %v1356 = vmul.f32 %v1328, %v1351
          %v1357 = vmul.f32 %v1330, %v1351
          %v1358 = vmul.f32 %v1332, %v1351
          %v1359 = vmul.f32 %v1334, %v1351
          %v1360 = vmul.f32 %v1336, %v1351
          %v1361 = vmul.f32 %v1338, %v1351
          %v1362 = vmul.f32 %v1340, %v1351
          %v1363 = vmul.f32 %v1342, %v1351
          %v1364 = vmul.f32 %v1344, %v1351
          %v1365 = vmul.f32 %v1346, %v1351
          %v1366 = vmul.f32 %v1348, %v1351
          %v1367 = vmul.f32 %v1350, %v1351
          %v1368 = vsub.f32 %v1303, %v1352
          %v1369 = vsub.f32 %v1304, %v1353
          %v1370 = vsub.f32 %v1305, %v1354
          %v1371 = vsub.f32 %v1306, %v1355
          %v1372 = vsub.f32 %v1307, %v1356
          %v1373 = vsub.f32 %v1308, %v1357
          %v1374 = vsub.f32 %v1309, %v1358
          %v1375 = vsub.f32 %v1310, %v1359
          %v1376 = vsub.f32 %v1311, %v1360
          %v1377 = vsub.f32 %v1312, %v1361
          %v1378 = vsub.f32 %v1313, %v1362
          %v1379 = vsub.f32 %v1314, %v1363
          %v1380 = vsub.f32 %v1315, %v1364
          %v1381 = vsub.f32 %v1316, %v1365
          %v1382 = vsub.f32 %v1317, %v1366
          %v1383 = vsub.f32 %v1318, %v1367
          %v1384 = vmul.f32 %v1368, %v1368
          %v1385 = vmul.f32 %v1369, %v1369
          %v1386 = vmul.f32 %v1370, %v1370
          %v1387 = vmul.f32 %v1371, %v1371
          %v1388 = vmul.f32 %v1372, %v1372
          %v1389 = vmul.f32 %v1373, %v1373
          %v1390 = vmul.f32 %v1374, %v1374
          %v1391 = vmul.f32 %v1375, %v1375
          %v1392 = vmul.f32 %v1376, %v1376
          %v1393 = vmul.f32 %v1377, %v1377
          %v1394 = vmul.f32 %v1378, %v1378
          %v1395 = vmul.f32 %v1379, %v1379
          %v1396 = vmul.f32 %v1380, %v1380
          %v1397 = vmul.f32 %v1381, %v1381
          %v1398 = vmul.f32 %v1382, %v1382
          %v1399 = vmul.f32 %v1383, %v1383
          %1400 = vadd.xlane.f32.xlu0 %v1384
          %v1401 = vpop.xlane.xlu0 %1400
          %1402 = vadd.xlane.f32.xlu0 %v1385
          %v1403 = vpop.xlane.xlu0 %1402
          %1404 = vadd.xlane.f32.xlu0 %v1386
          %v1405 = vpop.xlane.xlu0 %1404
          %1406 = vadd.xlane.f32.xlu0 %v1387
          %v1407 = vpop.xlane.xlu0 %1406
          %1408 = vadd.xlane.f32.xlu0 %v1388
          %v1409 = vpop.xlane.xlu0 %1408
          %1410 = vadd.xlane.f32.xlu0 %v1389
          %v1411 = vpop.xlane.xlu0 %1410
          %1412 = vadd.xlane.f32.xlu0 %v1390
          %v1413 = vpop.xlane.xlu0 %1412
          %1414 = vadd.xlane.f32.xlu0 %v1391
          %v1415 = vpop.xlane.xlu0 %1414
          %1416 = vadd.xlane.f32.xlu0 %v1392
          %v1417 = vpop.xlane.xlu0 %1416
          %1418 = vadd.xlane.f32.xlu0 %v1393
          %v1419 = vpop.xlane.xlu0 %1418
          %1420 = vadd.xlane.f32.xlu0 %v1394
          %v1421 = vpop.xlane.xlu0 %1420
          %1422 = vadd.xlane.f32.xlu0 %v1395
          %v1423 = vpop.xlane.xlu0 %1422
          %1424 = vadd.xlane.f32.xlu0 %v1396
          %v1425 = vpop.xlane.xlu0 %1424
          %1426 = vadd.xlane.f32.xlu0 %v1397
          %v1427 = vpop.xlane.xlu0 %1426
          %1428 = vadd.xlane.f32.xlu0 %v1398
          %v1429 = vpop.xlane.xlu0 %1428
          %1430 = vadd.xlane.f32.xlu0 %v1399
          %v1431 = vpop.xlane.xlu0 %1430
          %v1432 = vmul.f32 %v1401, 0.007874016
          %v1433 = vmul.f32 %v1403, 0.007874016
          %v1434 = vmul.f32 %v1405, 0.007874016
          %v1435 = vmul.f32 %v1407, 0.007874016
          %v1436 = vmul.f32 %v1409, 0.007874016
          %v1437 = vmul.f32 %v1411, 0.007874016
          %v1438 = vmul.f32 %v1413, 0.007874016
          %v1439 = vmul.f32 %v1415, 0.007874016
          %v1440 = vmul.f32 %v1417, 0.007874016
          %v1441 = vmul.f32 %v1419, 0.007874016
          %v1442 = vmul.f32 %v1421, 0.007874016
          %v1443 = vmul.f32 %v1423, 0.007874016
          %v1444 = vmul.f32 %v1425, 0.007874016
          %v1445 = vmul.f32 %v1427, 0.007874016
          %v1446 = vmul.f32 %v1429, 0.007874016
          %v1447 = vmul.f32 %v1431, 0.007874016
          %v1448 = vrsqrt.pop %v1432
          %v1449 = vmul.f32 %v1432, %v1448
          %vm1450 = vcmp.eq.f32.partialorder %v1432, inf
          %v1451 = vsel %vm1450, %v1432, %v1449
          %vm1452 = vcmp.eq.f32.partialorder %v1432, 0.0
          %v1453 = vand.u32 %v1432, 2147483648
          %v1454 = vsel %vm1452, %v1453, %v1451
          %v1455 = vrsqrt.pop %v1433
          %v1456 = vmul.f32 %v1433, %v1455
          %vm1457 = vcmp.eq.f32.partialorder %v1433, inf
          %v1458 = vsel %vm1457, %v1433, %v1456
          %vm1459 = vcmp.eq.f32.partialorder %v1433, 0.0
          %v1460 = vand.u32 %v1433, 2147483648
          %v1461 = vsel %vm1459, %v1460, %v1458
          %v1462 = vrsqrt.pop %v1434
          %v1463 = vmul.f32 %v1434, %v1462
          %vm1464 = vcmp.eq.f32.partialorder %v1434, inf
          %v1465 = vsel %vm1464, %v1434, %v1463
          %vm1466 = vcmp.eq.f32.partialorder %v1434, 0.0
          %v1467 = vand.u32 %v1434, 2147483648
          %v1468 = vsel %vm1466, %v1467, %v1465
          %v1469 = vrsqrt.pop %v1435
          %v1470 = vmul.f32 %v1435, %v1469
          %vm1471 = vcmp.eq.f32.partialorder %v1435, inf
          %v1472 = vsel %vm1471, %v1435, %v1470
          %vm1473 = vcmp.eq.f32.partialorder %v1435, 0.0
          %v1474 = vand.u32 %v1435, 2147483648
          %v1475 = vsel %vm1473, %v1474, %v1472
          %v1476 = vrsqrt.pop %v1436
          %v1477 = vmul.f32 %v1436, %v1476
          %vm1478 = vcmp.eq.f32.partialorder %v1436, inf
          %v1479 = vsel %vm1478, %v1436, %v1477
          %vm1480 = vcmp.eq.f32.partialorder %v1436, 0.0
          %v1481 = vand.u32 %v1436, 2147483648
          %v1482 = vsel %vm1480, %v1481, %v1479
          %v1483 = vrsqrt.pop %v1437
          %v1484 = vmul.f32 %v1437, %v1483
          %vm1485 = vcmp.eq.f32.partialorder %v1437, inf
          %v1486 = vsel %vm1485, %v1437, %v1484
          %vm1487 = vcmp.eq.f32.partialorder %v1437, 0.0
          %v1488 = vand.u32 %v1437, 2147483648
          %v1489 = vsel %vm1487, %v1488, %v1486
          %v1490 = vrsqrt.pop %v1438
          %v1491 = vmul.f32 %v1438, %v1490
          %vm1492 = vcmp.eq.f32.partialorder %v1438, inf
          %v1493 = vsel %vm1492, %v1438, %v1491
          %vm1494 = vcmp.eq.f32.partialorder %v1438, 0.0
          %v1495 = vand.u32 %v1438, 2147483648
          %v1496 = vsel %vm1494, %v1495, %v1493
          %v1497 = vrsqrt.pop %v1439
          %v1498 = vmul.f32 %v1439, %v1497
          %vm1499 = vcmp.eq.f32.partialorder %v1439, inf
          %v1500 = vsel %vm1499, %v1439, %v1498
          %vm1501 = vcmp.eq.f32.partialorder %v1439, 0.0
          %v1502 = vand.u32 %v1439, 2147483648
          %v1503 = vsel %vm1501, %v1502, %v1500
          %v1504 = vrsqrt.pop %v1440
          %v1505 = vmul.f32 %v1440, %v1504
          %vm1506 = vcmp.eq.f32.partialorder %v1440, inf
          %v1507 = vsel %vm1506, %v1440, %v1505
          %vm1508 = vcmp.eq.f32.partialorder %v1440, 0.0
          %v1509 = vand.u32 %v1440, 2147483648
          %v1510 = vsel %vm1508, %v1509, %v1507
          %v1511 = vrsqrt.pop %v1441
          %v1512 = vmul.f32 %v1441, %v1511
          %vm1513 = vcmp.eq.f32.partialorder %v1441, inf
          %v1514 = vsel %vm1513, %v1441, %v1512
          %vm1515 = vcmp.eq.f32.partialorder %v1441, 0.0
          %v1516 = vand.u32 %v1441, 2147483648
          %v1517 = vsel %vm1515, %v1516, %v1514
          %v1518 = vrsqrt.pop %v1442
          %v1519 = vmul.f32 %v1442, %v1518
          %vm1520 = vcmp.eq.f32.partialorder %v1442, inf
          %v1521 = vsel %vm1520, %v1442, %v1519
          %vm1522 = vcmp.eq.f32.partialorder %v1442, 0.0
          %v1523 = vand.u32 %v1442, 2147483648
          %v1524 = vsel %vm1522, %v1523, %v1521
          %v1525 = vrsqrt.pop %v1443
          %v1526 = vmul.f32 %v1443, %v1525
          %vm1527 = vcmp.eq.f32.partialorder %v1443, inf
          %v1528 = vsel %vm1527, %v1443, %v1526
          %vm1529 = vcmp.eq.f32.partialorder %v1443, 0.0
          %v1530 = vand.u32 %v1443, 2147483648
          %v1531 = vsel %vm1529, %v1530, %v1528
          %v1532 = vrsqrt.pop %v1444
          %v1533 = vmul.f32 %v1444, %v1532
          %vm1534 = vcmp.eq.f32.partialorder %v1444, inf
          %v1535 = vsel %vm1534, %v1444, %v1533
          %vm1536 = vcmp.eq.f32.partialorder %v1444, 0.0
          %v1537 = vand.u32 %v1444, 2147483648
          %v1538 = vsel %vm1536, %v1537, %v1535
          %v1539 = vrsqrt.pop %v1445
          %v1540 = vmul.f32 %v1445, %v1539
          %vm1541 = vcmp.eq.f32.partialorder %v1445, inf
          %v1542 = vsel %vm1541, %v1445, %v1540
          %vm1543 = vcmp.eq.f32.partialorder %v1445, 0.0
          %v1544 = vand.u32 %v1445, 2147483648
          %v1545 = vsel %vm1543, %v1544, %v1542
          %v1546 = vrsqrt.pop %v1446
          %v1547 = vmul.f32 %v1446, %v1546
          %vm1548 = vcmp.eq.f32.partialorder %v1446, inf
          %v1549 = vsel %vm1548, %v1446, %v1547
          %vm1550 = vcmp.eq.f32.partialorder %v1446, 0.0
          %v1551 = vand.u32 %v1446, 2147483648
          %v1552 = vsel %vm1550, %v1551, %v1549
          %v1553 = vrsqrt.pop %v1447
          %v1554 = vmul.f32 %v1447, %v1553
          %vm1555 = vcmp.eq.f32.partialorder %v1447, inf
          %v1556 = vsel %vm1555, %v1447, %v1554
          %vm1557 = vcmp.eq.f32.partialorder %v1447, 0.0
          %v1558 = vand.u32 %v1447, 2147483648
          %v1559 = vsel %vm1557, %v1558, %v1556
          %v1560 = vadd.f32 %v1454, 1e-06
          %v1561 = vadd.f32 %v1461, 1e-06
          %v1562 = vadd.f32 %v1468, 1e-06
          %v1563 = vadd.f32 %v1475, 1e-06
          %v1564 = vadd.f32 %v1482, 1e-06
          %v1565 = vadd.f32 %v1489, 1e-06
          %v1566 = vadd.f32 %v1496, 1e-06
          %v1567 = vadd.f32 %v1503, 1e-06
          %v1568 = vadd.f32 %v1510, 1e-06
          %v1569 = vadd.f32 %v1517, 1e-06
          %v1570 = vadd.f32 %v1524, 1e-06
          %v1571 = vadd.f32 %v1531, 1e-06
          %v1572 = vadd.f32 %v1538, 1e-06
          %v1573 = vadd.f32 %v1545, 1e-06
          %v1574 = vadd.f32 %v1552, 1e-06
          %v1575 = vadd.f32 %v1559, 1e-06
          %v1576 = vrcp.pop %v1560
          %v1577 = vrcp.pop %v1561
          %v1578 = vrcp.pop %v1562
          %v1579 = vrcp.pop %v1563
          %v1580 = vrcp.pop %v1564
          %v1581 = vrcp.pop %v1565
          %v1582 = vrcp.pop %v1566
          %v1583 = vrcp.pop %v1567
          %v1584 = vrcp.pop %v1568
          %v1585 = vrcp.pop %v1569
          %v1586 = vrcp.pop %v1570
          %v1587 = vrcp.pop %v1571
          %v1588 = vrcp.pop %v1572
          %v1589 = vrcp.pop %v1573
          %v1590 = vrcp.pop %v1574
          %v1591 = vrcp.pop %v1575
          %v1592 = vld [vmem:[%s2] sm:$0x1]
          %v1594 = vlaneseq
          %v1595 = vshrl.u32 %v1594, 7
          %v1596 = vsub.s32 0, %v1595
          %v1597 = vrot.slane %v1592, %v1596
          %v1599 = vmul.f32 %v1597, %v1368
          %v1600 = vmul.f32 %v1597, %v1369
          %v1601 = vmul.f32 %v1597, %v1370
          %v1602 = vmul.f32 %v1597, %v1371
          %v1603 = vmul.f32 %v1597, %v1372
          %v1604 = vmul.f32 %v1597, %v1373
          %v1605 = vmul.f32 %v1597, %v1374
          %v1606 = vmul.f32 %v1597, %v1375
          %v1607 = vmul.f32 %v1597, %v1376
          %v1608 = vmul.f32 %v1597, %v1377
          %v1609 = vmul.f32 %v1597, %v1378
          %v1610 = vmul.f32 %v1597, %v1379
          %v1611 = vmul.f32 %v1597, %v1380
          %v1612 = vmul.f32 %v1597, %v1381
          %v1613 = vmul.f32 %v1597, %v1382
          %v1614 = vmul.f32 %v1597, %v1383
          %v1615 = vmul.f32 %v1599, %v1576
          %v1616 = vmul.f32 %v1600, %v1577
          %v1617 = vmul.f32 %v1601, %v1578
          %v1618 = vmul.f32 %v1602, %v1579
          %v1619 = vmul.f32 %v1603, %v1580
          %v1620 = vmul.f32 %v1604, %v1581
          %v1621 = vmul.f32 %v1605, %v1582
          %v1622 = vmul.f32 %v1606, %v1583
          %v1623 = vmul.f32 %v1607, %v1584
          %v1624 = vmul.f32 %v1608, %v1585
          %v1625 = vmul.f32 %v1609, %v1586
          %v1626 = vmul.f32 %v1610, %v1587
          %v1627 = vmul.f32 %v1611, %v1588
          %v1628 = vmul.f32 %v1612, %v1589
          %v1629 = vmul.f32 %v1613, %v1590
          %v1630 = vmul.f32 %v1614, %v1591
          %v1631 = vld [vmem:[%s3] sm:$0x1]
          %v1633 = vlaneseq
          %v1634 = vshrl.u32 %v1633, 7
          %v1635 = vsub.s32 0, %v1634
          %v1636 = vrot.slane %v1631, %v1635
          %v1638 = vadd.f32 %v1615, %v1636
          %v1639 = vadd.f32 %v1616, %v1636
          %v1640 = vadd.f32 %v1617, %v1636
          %v1641 = vadd.f32 %v1618, %v1636
          %v1642 = vadd.f32 %v1619, %v1636
          %v1643 = vadd.f32 %v1620, %v1636
          %v1644 = vadd.f32 %v1621, %v1636
          %v1645 = vadd.f32 %v1622, %v1636
          %v1646 = vadd.f32 %v1623, %v1636
          %v1647 = vadd.f32 %v1624, %v1636
          %v1648 = vadd.f32 %v1625, %v1636
          %v1649 = vadd.f32 %v1626, %v1636
          %v1650 = vadd.f32 %v1627, %v1636
          %v1651 = vadd.f32 %v1628, %v1636
          %v1652 = vadd.f32 %v1629, %v1636
          %v1653 = vadd.f32 %v1630, %v1636
          %vm1654 = vcmp.gt.f32.partialorder %v1638, 0.0
          %vm1655 = vcmp.gt.f32.partialorder %v1639, 0.0
          %vm1656 = vcmp.gt.f32.partialorder %v1640, 0.0
          %vm1657 = vcmp.gt.f32.partialorder %v1641, 0.0
          %vm1658 = vcmp.gt.f32.partialorder %v1642, 0.0
          %vm1659 = vcmp.gt.f32.partialorder %v1643, 0.0
          %vm1660 = vcmp.gt.f32.partialorder %v1644, 0.0
          %vm1661 = vcmp.gt.f32.partialorder %v1645, 0.0
          %vm1662 = vcmp.gt.f32.partialorder %v1646, 0.0
          %vm1663 = vcmp.gt.f32.partialorder %v1647, 0.0
          %vm1664 = vcmp.gt.f32.partialorder %v1648, 0.0
          %vm1665 = vcmp.gt.f32.partialorder %v1649, 0.0
          %vm1666 = vcmp.gt.f32.partialorder %v1650, 0.0
          %vm1667 = vcmp.gt.f32.partialorder %v1651, 0.0
          %vm1668 = vcmp.gt.f32.partialorder %v1652, 0.0
          %vm1669 = vcmp.gt.f32.partialorder %v1653, 0.0
          %v1670 = vmul.f32 %v1638, 0.2
          %v1671 = vmul.f32 %v1639, 0.2
          %v1672 = vmul.f32 %v1640, 0.2
          %v1673 = vmul.f32 %v1641, 0.2
          %v1674 = vmul.f32 %v1642, 0.2
          %v1675 = vmul.f32 %v1643, 0.2
          %v1676 = vmul.f32 %v1644, 0.2
          %v1677 = vmul.f32 %v1645, 0.2
          %v1678 = vmul.f32 %v1646, 0.2
          %v1679 = vmul.f32 %v1647, 0.2
          %v1680 = vmul.f32 %v1648, 0.2
          %v1681 = vmul.f32 %v1649, 0.2
          %v1682 = vmul.f32 %v1650, 0.2
          %v1683 = vmul.f32 %v1651, 0.2
          %v1684 = vmul.f32 %v1652, 0.2
          %v1685 = vmul.f32 %v1653, 0.2
          %v1686 = vsel %vm1654, %v1638, %v1670
          %v1687 = vsel %vm1655, %v1639, %v1671
          %v1688 = vsel %vm1656, %v1640, %v1672
          %v1689 = vsel %vm1657, %v1641, %v1673
          %v1690 = vsel %vm1658, %v1642, %v1674
          %v1691 = vsel %vm1659, %v1643, %v1675
          %v1692 = vsel %vm1660, %v1644, %v1676
          %v1693 = vsel %vm1661, %v1645, %v1677
          %v1694 = vsel %vm1662, %v1646, %v1678
          %v1695 = vsel %vm1663, %v1647, %v1679
          %v1696 = vsel %vm1664, %v1648, %v1680
          %v1697 = vsel %vm1665, %v1649, %v1681
          %v1698 = vsel %vm1666, %v1650, %v1682
          %v1699 = vsel %vm1667, %v1651, %v1683
          %v1700 = vsel %vm1668, %v1652, %v1684
          %v1701 = vsel %vm1669, %v1653, %v1685
          %1702 = vst [vmem:[%s361] sm:$0xff] %v1686
          %1703 = vst [vmem:[%s361 + $0x8] sm:$0xff] %v1687
          %1704 = vst [vmem:[%s361 + $0x10] sm:$0xff] %v1688
          %1705 = vst [vmem:[%s361 + $0x18] sm:$0xff] %v1689
          %1706 = vst [vmem:[%s361 + $0x20] sm:$0xff] %v1690
          %1707 = vst [vmem:[%s361 + $0x28] sm:$0xff] %v1691
          %1708 = vst [vmem:[%s361 + $0x30] sm:$0xff] %v1692
          %1709 = vst [vmem:[%s361 + $0x38] sm:$0xff] %v1693
          %1710 = vst [vmem:[%s361 + $0x40] sm:$0xff] %v1694
          %1711 = vst [vmem:[%s361 + $0x48] sm:$0xff] %v1695
          %1712 = vst [vmem:[%s361 + $0x50] sm:$0xff] %v1696
          %1713 = vst [vmem:[%s361 + $0x58] sm:$0xff] %v1697
          %1714 = vst [vmem:[%s361 + $0x60] sm:$0xff] %v1698
          %1715 = vst [vmem:[%s361 + $0x68] sm:$0xff] %v1699
          %1716 = vst [vmem:[%s361 + $0x70] sm:$0xff] %v1700
          %1717 = vst [vmem:[%s361 + $0x78] sm:$0xff] %v1701
        $region70: #{frequency_discriminator.8} parent=57 // pred_fallthru
          _
        %s1718 = smul.u32 16, %s19
        %p1719 = scmp.lt.s32.totalorder %s1718, 79
        %s1720 = scalar_select %p1719, %s1718, 79
        %s1721 = smul.addr %s1720, 8
        %s1722 = scalar_lea.vmem %s4, %s1721
        // Predicated region
        $region71: #{frequency_discriminator.8} parent=57 // pred_check
          %p1723 = pneg %p141
        $region72: #{frequency_discriminator.8} parent=57 // pred_check_branch
          %1725 = sbr.rel (%p1723) target = $region74
        $region73: #{frequency_discriminator.8} parent=57 // pred_region
          %s1726 = smul.u32 16, %s19
        $region74: #{frequency_discriminator.8} parent=57 // pred_fallthru
          _
      $region58: #{frequency_discriminator.8} parent=5 // pred_fallthru
        _
      %p1727 = scmp.le.s32.totalorder 2, %s10
      // Predicated region
      $region75: #{frequency_discriminator.8} parent=5 // pred_check
        %p1728 = pneg %p1727
      $region76: #{frequency_discriminator.8} parent=5 // pred_check_branch
        %1730 = sbr.rel (%p1728) target = $region78
      $region77: #{frequency_discriminator.8} parent=5 // pred_region
        %s1731 = ssub.s32 %s10, 2
        // Predicated region
        $region79: #{frequency_discriminator.8} parent=77 // pred_check
          %p1732 = pneg %p147
        $region80: #{frequency_discriminator.8} parent=77 // pred_check_branch
          %1734 = sbr.rel (%p1732) target = $region82
        $region81: #{frequency_discriminator.8} parent=77 // pred_region
          %s1735 = smul.u32 16, %s21
          %p1736 = scmp.lt.s32.totalorder %s1735, 79
          %s1737 = scalar_select %p1736, %s1735, 79
          %s1738 = smul.addr %s1737, 8
          %s1739 = scalar_lea.vmem %s4, %s1738
        $region82: #{frequency_discriminator.8} parent=77 // pred_fallthru
          _
      $region78: #{frequency_discriminator.8} parent=5 // pred_fallthru
        _
    $region6: #{frequency_discriminator.8} parent=1 // loop_footer
      %s14 = sadd.s32 1, %s10
    $region7: #{frequency_discriminator.8} parent=1 // loop_footer_branch
      %9 = sbr.rel target = $region3
    $region8: #{frequency_discriminator.8} parent=1 // loop_exit
      _

// kernel: frequency_discriminator.9
$region0: #{frequency_discriminator.9}
  #allocation0 [shape = 'u32[]', space=smem, size = 0x4, offset = 0x4, fixed_abs, tag = 'smem constant byte address 0x4 - core index']
  #allocation1 [shape = 'u32[144,128]{1,0:T(1,128)}', space=vmem, size = 0x12000, scoped, tag = 'internal scratch']
  #allocation2 [shape = 'f32[160,256]{1,0:T(8,128)}', space=vmem, size = 0x28000, scoped, tag = 'scratch operand']
  %s0 = inlined_call_operand.vmem [shape: bf16[160,6272], index: 0, kind: input, shape index: {}]
  %s1 = inlined_call_operand.vmem [shape: bf16[6272,256], index: 1, kind: input, shape index: {}]
  %s2 = inlined_call_operand.vmem [shape: f32[1,256], index: 2, kind: input, shape index: {}]
  %s3 = inlined_call_operand.vmem [shape: f32[1,256], index: 3, kind: input, shape index: {}]
  %s4 = inlined_call_operand.vmem [shape: f32[160,256], index: 4, kind: output, shape index: {}]
  %s5 = sld [smem:[#allocation0]]
  $region83: #{frequency_discriminator.9} parent=0
    _
  %s7 = ssub.s32 1, %s5
  %s8 = scalar_select 0, %s7, %s5
  $region1: #{frequency_discriminator.9} parent=0
    #allocation3 [shape = 'u8[573440]{0}', space=vmem, size = 0x8c000, scoped, tag = 'input window, operand 0']
    loop: start=0, step=1, limit=9
    $region2: #{frequency_discriminator.9} parent=1 // loop_pre_header
      _
    $region3: #{frequency_discriminator.9} parent=1 // loop_header
      %s10 = sphi 0, %s14
      %p11 = scmp.ge.s32.totalorder %s10, 9
      %s17 = sphi 0, %s29
      %s18 = sphi 0, %s25
      %s19 = sphi 0, %s17
      %s20 = sphi 0, %s18
      %s21 = sphi 0, %s19
      %s22 = sphi 0, %s20
      %s34 = sphi 0, %s36
      %s37 = sphi 0, %s34
      %s38 = sphi 0, %s37
      %s54 = sphi 0, %s38
      %s60 = sphi 0, %s62
      %s63 = sphi 0, %s60
      %s64 = sphi 0, %s63
      %s80 = sphi 0, %s64
      %s84 = sphi 0, %s84
      %s86 = sphi 0, %s84
      %s87 = sphi 0, %s86
      %s101 = sphi 0, %s87
      %s105 = sphi 0, %s105
      %s107 = sphi 0, %s105
      %s108 = sphi 0, %s107
      %s122 = sphi 0, %s108
      %s128 = sphi 0, %s130
      %s131 = sphi 0, %s128
      %s132 = sphi 0, %s131
      %s148 = sphi 0, %s132
    $region4: #{frequency_discriminator.9} parent=1 // loop_header_branch
      %13 = sbr.rel (%p11) target = $region8
    $region5: #{frequency_discriminator.9} parent=1 // loop_body
      %s15 = ssub.s32 %s10, 1
      %s16 = ssub.s32 %s10, 2
      %s23 = sadd.s32 1, %s18
      %p24 = scmp.ge.s32.totalorder %s23, 7
      %s25 = scalar_select %p24, 0, %s23
      %s26 = sadd.s32 1, %s17
      %s27 = scalar_select %p24, %s26, %s17
      %p28 = scmp.ge.s32.totalorder %s27, 1
      %s29 = scalar_select %p28, 0, %s27
      %s30 = ssub.s32 %s17, %s29
      %s31 = ssub.s32 %s18, %s25
      %s32 = sor.u32 %s30, %s31
      %p33 = scmp.eq.s32.totalorder %s32, 0
      %s35 = sadd.s32 %s34, 1
      %s36 = scalar_select %p33, %s34, %s35
      %p39 = pneg %p33
      %p40 = scmp.eq.s32.totalorder %s10, 6
      %p41 = por %p39, %p40
      %p42 = scmp.ne.s32.totalorder %s34, %s37
      %p43 = scmp.eq.s32.totalorder %s10, 0
      %p44 = por %p42, %p43
      %p45 = scmp.ne.s32.totalorder %s34, %s37
      %p46 = scmp.eq.s32.totalorder %s15, 6
      %p47 = por %p45, %p46
      %p48 = scmp.ne.s32.totalorder %s37, %s38
      %p49 = scmp.eq.s32.totalorder %s15, 0
      %p50 = por %p48, %p49
      %p51 = scmp.ne.s32.totalorder %s37, %s38
      %p52 = scmp.eq.s32.totalorder %s16, 6
      %p53 = por %p51, %p52
      %p55 = scmp.ne.s32.totalorder %s38, %s54
      %p56 = scmp.eq.s32.totalorder %s16, 0
      %p57 = por %p55, %p56
      %s58 = ssub.s32 %s18, %s25
      %p59 = scmp.eq.s32.totalorder %s58, 0
      %s61 = sadd.s32 %s60, 1
      %s62 = scalar_select %p59, %s60, %s61
      %p65 = pneg %p59
      %p66 = scmp.eq.s32.totalorder %s10, 6
      %p67 = por %p65, %p66
      %p68 = scmp.ne.s32.totalorder %s60, %s63
      %p69 = scmp.eq.s32.totalorder %s10, 0
      %p70 = por %p68, %p69
      %p71 = scmp.ne.s32.totalorder %s60, %s63
      %p72 = scmp.eq.s32.totalorder %s15, 6
      %p73 = por %p71, %p72
      %p74 = scmp.ne.s32.totalorder %s63, %s64
      %p75 = scmp.eq.s32.totalorder %s15, 0
      %p76 = por %p74, %p75
      %p77 = scmp.ne.s32.totalorder %s63, %s64
      %p78 = scmp.eq.s32.totalorder %s16, 6
      %p79 = por %p77, %p78
      %p81 = scmp.ne.s32.totalorder %s64, %s80
      %p82 = scmp.eq.s32.totalorder %s16, 0
      %p83 = por %p81, %p82
      %s85 = sadd.s32 %s84, 1
      %p88 = scmp.eq.s32.totalorder %s10, 6
      %p89 = scmp.ne.s32.totalorder %s84, %s86
      %p90 = scmp.eq.s32.totalorder %s10, 0
      %p91 = por %p89, %p90
      %p92 = scmp.ne.s32.totalorder %s84, %s86
      %p93 = scmp.eq.s32.totalorder %s15, 6
      %p94 = por %p92, %p93
      %p95 = scmp.ne.s32.totalorder %s86, %s87
      %p96 = scmp.eq.s32.totalorder %s15, 0
      %p97 = por %p95, %p96
      %p98 = scmp.ne.s32.totalorder %s86, %s87
      %p99 = scmp.eq.s32.totalorder %s16, 6
      %p100 = por %p98, %p99
      %p102 = scmp.ne.s32.totalorder %s87, %s101
      %p103 = scmp.eq.s32.totalorder %s16, 0
      %p104 = por %p102, %p103
      %s106 = sadd.s32 %s105, 1
      %p109 = scmp.eq.s32.totalorder %s10, 6
      %p110 = scmp.ne.s32.totalorder %s105, %s107
      %p111 = scmp.eq.s32.totalorder %s10, 0
      %p112 = por %p110, %p111
      %p113 = scmp.ne.s32.totalorder %s105, %s107
      %p114 = scmp.eq.s32.totalorder %s15, 6
      %p115 = por %p113, %p114
      %p116 = scmp.ne.s32.totalorder %s107, %s108
      %p117 = scmp.eq.s32.totalorder %s15, 0
      %p118 = por %p116, %p117
      %p119 = scmp.ne.s32.totalorder %s107, %s108
      %p120 = scmp.eq.s32.totalorder %s16, 6
      %p121 = por %p119, %p120
      %p123 = scmp.ne.s32.totalorder %s108, %s122
      %p124 = scmp.eq.s32.totalorder %s16, 0
      %p125 = por %p123, %p124
      %s126 = ssub.s32 %s17, %s29
      %p127 = scmp.eq.s32.totalorder %s126, 0
      %s129 = sadd.s32 %s128, 1
      %s130 = scalar_select %p127, %s128, %s129
      %p133 = pneg %p127
      %p134 = scmp.eq.s32.totalorder %s10, 6
      %p135 = por %p133, %p134
      %p136 = scmp.ne.s32.totalorder %s128, %s131
      %p137 = scmp.eq.s32.totalorder %s10, 0
      %p138 = por %p136, %p137
      %p139 = scmp.ne.s32.totalorder %s128, %s131
      %p140 = scmp.eq.s32.totalorder %s15, 6
      %p141 = por %p139, %p140
      %p142 = scmp.ne.s32.totalorder %s131, %s132
      %p143 = scmp.eq.s32.totalorder %s15, 0
      %p144 = por %p142, %p143
      %p145 = scmp.ne.s32.totalorder %s131, %s132
      %p146 = scmp.eq.s32.totalorder %s16, 6
      %p147 = por %p145, %p146
      %p149 = scmp.ne.s32.totalorder %s132, %s148
      %p150 = scmp.eq.s32.totalorder %s16, 0
      %p151 = por %p149, %p150
      %p152 = scmp.le.s32.totalorder 1, %s10
      %p153 = scmp.lt.s32.totalorder %s10, 8
      %p154 = pnand %p152, %p153
      %p155 = pneg %p154
      // Predicated region
      $region9: #{frequency_discriminator.9} parent=5 // pred_check
        _
      $region10: #{frequency_discriminator.9} parent=5 // pred_check_branch
        %157 = sbr.rel (%p154) target = $region12
      $region11: #{frequency_discriminator.9} parent=5 // pred_region
        %s158 = ssub.s32 %s10, 1
        // Predicated region
        $region13: #{frequency_discriminator.9} parent=11 // pred_check
          %p159 = pneg %p97
        $region14: #{frequency_discriminator.9} parent=11 // pred_check_branch
          %161 = sbr.rel (%p159) target = $region16
        $region15: #{frequency_discriminator.9} parent=11 // pred_region
          _
        $region16: #{frequency_discriminator.9} parent=11 // pred_fallthru
          _
        // Predicated region
        $region17: #{frequency_discriminator.9} parent=11 // pred_check
          %p162 = pneg %p118
        $region18: #{frequency_discriminator.9} parent=11 // pred_check_branch
          %164 = sbr.rel (%p162) target = $region20
        $region19: #{frequency_discriminator.9} parent=11 // pred_region
          _
        $region20: #{frequency_discriminator.9} parent=11 // pred_fallthru
          _
      $region12: #{frequency_discriminator.9} parent=5 // pred_fallthru
        _
      %p165 = scmp.lt.s32.totalorder %s10, 7
      // Predicated region
      $region21: #{frequency_discriminator.9} parent=5 // pred_check
        %p166 = pneg %p165
      $region22: #{frequency_discriminator.9} parent=5 // pred_check_branch
        %168 = sbr.rel (%p166) target = $region24
      $region23: #{frequency_discriminator.9} parent=5 // pred_region
        // Predicated region
        $region25: #{frequency_discriminator.9} parent=23 // pred_check
          %p169 = pneg %p44
        $region26: #{frequency_discriminator.9} parent=23 // pred_check_branch
          %171 = sbr.rel (%p169) target = $region28
        $region27: #{frequency_discriminator.9} parent=23 // pred_region
          %s172 = sand.u32 %s34, 1
          %s173 = sand.u32 %s34, 1
          %s174 = smul.addr %s173, 560
          %s175 = scalar_lea.vmem [#allocation3], %s174
          %s176 = smul.u32 20, %s17
          %s177 = smul.u32 7, %s18
          %s178 = smul.addr %s176, 49
          %s179 = sadd.s32 %s177, %s178
          %s180 = smul.addr %s179, 4
          %s181 = scalar_lea.vmem %s0, %s180
          // Predicated region
          $region29: #{frequency_discriminator.9} parent=27 // pred_check
            _
          $region30: #{frequency_discriminator.9} parent=27 // pred_check_branch
            %183 = sbr.rel (0) target = $region32
          $region31: #{frequency_discriminator.9} parent=27 // pred_region
            // Predicated region
            $region33: #{frequency_discriminator.9} parent=31 // pred_check
              _
            $region34: #{frequency_discriminator.9} parent=31 // pred_check_branch
              %185 = sbr.rel (0) target = $region36
            $region35: #{frequency_discriminator.9} parent=31 // pred_region
              %s186 = scalar_lea.vmem %s181, 24
              %s187 = scalar_lea.vmem %s175, 24 [#allocation3]
              loop: start=0, step=1, limit=1
              $region37: #{frequency_discriminator.9} parent=35 // loop_pre_header
                _
              $region38: #{frequency_discriminator.9} parent=35 // loop_header
                %s189 = sphi 0, %s193
                %p190 = scmp.ge.s32.totalorder %s189, 1
                %s194 = sphi %s181, %s181
                %s195 = sphi %s175, %s175
              $region39: #{frequency_discriminator.9} parent=35 // loop_header_branch
                %192 = sbr.rel (%p190) target = $region43
              $region40: #{frequency_discriminator.9} parent=35 // loop_body
                %v196 = vld [vmem:[%s194] sm:$0xff]
                %197 = vst [vmem:[%s195] sm:$0xff] %v196
                %v198 = vld [vmem:[%s194 + $0x8] sm:$0xff]
                %199 = vst [vmem:[%s195 + $0x8] sm:$0xff] %v198
                %v200 = vld [vmem:[%s194 + $0x10] sm:$0xff]
                %201 = vst [vmem:[%s195 + $0x10] sm:$0xff] %v200
                %v202 = vld [vmem:[%s194 + $0xc4] sm:$0xff]
                %203 = vst [vmem:[%s195 + $0x1c] sm:$0xff] %v202
                %v204 = vld [vmem:[%s194 + $0xcc] sm:$0xff]
                %205 = vst [vmem:[%s195 + $0x24] sm:$0xff] %v204
                %v206 = vld [vmem:[%s194 + $0xd4] sm:$0xff]
                %207 = vst [vmem:[%s195 + $0x2c] sm:$0xff] %v206
                %v208 = vld [vmem:[%s194 + $0x188] sm:$0xff]
                %209 = vst [vmem:[%s195 + $0x38] sm:$0xff] %v208
                %v210 = vld [vmem:[%s194 + $0x190] sm:$0xff]
                %211 = vst [vmem:[%s195 + $0x40] sm:$0xff] %v210
                %v212 = vld [vmem:[%s194 + $0x198] sm:$0xff]
                %213 = vst [vmem:[%s195 + $0x48] sm:$0xff] %v212
                %v214 = vld [vmem:[%s194 + $0x24c] sm:$0xff]
                %215 = vst [vmem:[%s195 + $0x54] sm:$0xff] %v214
                %v216 = vld [vmem:[%s194 + $0x254] sm:$0xff]
                %217 = vst [vmem:[%s195 + $0x5c] sm:$0xff] %v216
                %v218 = vld [vmem:[%s194 + $0x25c] sm:$0xff]
                %219 = vst [vmem:[%s195 + $0x64] sm:$0xff] %v218
                %v220 = vld [vmem:[%s194 + $0x310] sm:$0xff]
                %221 = vst [vmem:[%s195 + $0x70] sm:$0xff] %v220
                %v222 = vld [vmem:[%s194 + $0x318] sm:$0xff]
                %223 = vst [vmem:[%s195 + $0x78] sm:$0xff] %v222
                %v224 = vld [vmem:[%s194 + $0x320] sm:$0xff]
                %225 = vst [vmem:[%s195 + $0x80] sm:$0xff] %v224
                %v226 = vld [vmem:[%s194 + $0x3d4] sm:$0xff]
                %227 = vst [vmem:[%s195 + $0x8c] sm:$0xff] %v226
                %v228 = vld [vmem:[%s194 + $0x3dc] sm:$0xff]
                %229 = vst [vmem:[%s195 + $0x94] sm:$0xff] %v228
                %v230 = vld [vmem:[%s194 + $0x3e4] sm:$0xff]
                %231 = vst [vmem:[%s195 + $0x9c] sm:$0xff] %v230
                %v232 = vld [vmem:[%s194 + $0x498] sm:$0xff]
                %233 = vst [vmem:[%s195 + $0xa8] sm:$0xff] %v232
                %v234 = vld [vmem:[%s194 + $0x4a0] sm:$0xff]
                %235 = vst [vmem:[%s195 + $0xb0] sm:$0xff] %v234
                %v236 = vld [vmem:[%s194 + $0x4a8] sm:$0xff]
                %237 = vst [vmem:[%s195 + $0xb8] sm:$0xff] %v236
                %v238 = vld [vmem:[%s194 + $0x55c] sm:$0xff]
                %239 = vst [vmem:[%s195 + $0xc4] sm:$0xff] %v238
                %v240 = vld [vmem:[%s194 + $0x564] sm:$0xff]
                %241 = vst [vmem:[%s195 + $0xcc] sm:$0xff] %v240
                %v242 = vld [vmem:[%s194 + $0x56c] sm:$0xff]
                %243 = vst [vmem:[%s195 + $0xd4] sm:$0xff] %v242
                %v244 = vld [vmem:[%s194 + $0x620] sm:$0xff]
                %245 = vst [vmem:[%s195 + $0xe0] sm:$0xff] %v244
                %v246 = vld [vmem:[%s194 + $0x628] sm:$0xff]
                %247 = vst [vmem:[%s195 + $0xe8] sm:$0xff] %v246
                %v248 = vld [vmem:[%s194 + $0x630] sm:$0xff]
                %249 = vst [vmem:[%s195 + $0xf0] sm:$0xff] %v248
                %v250 = vld [vmem:[%s194 + $0x6e4] sm:$0xff]
                %251 = vst [vmem:[%s195 + $0xfc] sm:$0xff] %v250
                %v252 = vld [vmem:[%s194 + $0x6ec] sm:$0xff]
                %253 = vst [vmem:[%s195 + $0x104] sm:$0xff] %v252
                %v254 = vld [vmem:[%s194 + $0x6f4] sm:$0xff]
                %255 = vst [vmem:[%s195 + $0x10c] sm:$0xff] %v254
                %v256 = vld [vmem:[%s194 + $0x7a8] sm:$0xff]
                %257 = vst [vmem:[%s195 + $0x118] sm:$0xff] %v256
                %v258 = vld [vmem:[%s194 + $0x7b0] sm:$0xff]
                %259 = vst [vmem:[%s195 + $0x120] sm:$0xff] %v258
                %v260 = vld [vmem:[%s194 + $0x7b8] sm:$0xff]
                %261 = vst [vmem:[%s195 + $0x128] sm:$0xff] %v260
                %v262 = vld [vmem:[%s194 + $0x86c] sm:$0xff]
                %263 = vst [vmem:[%s195 + $0x134] sm:$0xff] %v262
                %v264 = vld [vmem:[%s194 + $0x874] sm:$0xff]
                %265 = vst [vmem:[%s195 + $0x13c] sm:$0xff] %v264
                %v266 = vld [vmem:[%s194 + $0x87c] sm:$0xff]
                %267 = vst [vmem:[%s195 + $0x144] sm:$0xff] %v266
                %v268 = vld [vmem:[%s194 + $0x930] sm:$0xff]
                %269 = vst [vmem:[%s195 + $0x150] sm:$0xff] %v268
                %v270 = vld [vmem:[%s194 + $0x938] sm:$0xff]
                %271 = vst [vmem:[%s195 + $0x158] sm:$0xff] %v270
                %v272 = vld [vmem:[%s194 + $0x940] sm:$0xff]
                %273 = vst [vmem:[%s195 + $0x160] sm:$0xff] %v272
                %v274 = vld [vmem:[%s194 + $0x9f4] sm:$0xff]
                %275 = vst [vmem:[%s195 + $0x16c] sm:$0xff] %v274
                %v276 = vld [vmem:[%s194 + $0x9fc] sm:$0xff]
                %277 = vst [vmem:[%s195 + $0x174] sm:$0xff] %v276
                %v278 = vld [vmem:[%s194 + $0xa04] sm:$0xff]
                %279 = vst [vmem:[%s195 + $0x17c] sm:$0xff] %v278
                %v280 = vld [vmem:[%s194 + $0xab8] sm:$0xff]
                %281 = vst [vmem:[%s195 + $0x188] sm:$0xff] %v280
                %v282 = vld [vmem:[%s194 + $0xac0] sm:$0xff]
                %283 = vst [vmem:[%s195 + $0x190] sm:$0xff] %v282
                %v284 = vld [vmem:[%s194 + $0xac8] sm:$0xff]
                %285 = vst [vmem:[%s195 + $0x198] sm:$0xff] %v284
                %v286 = vld [vmem:[%s194 + $0xb7c] sm:$0xff]
                %287 = vst [vmem:[%s195 + $0x1a4] sm:$0xff] %v286
                %v288 = vld [vmem:[%s194 + $0xb84] sm:$0xff]
                %289 = vst [vmem:[%s195 + $0x1ac] sm:$0xff] %v288
                %v290 = vld [vmem:[%s194 + $0xb8c] sm:$0xff]
                %291 = vst [vmem:[%s195 + $0x1b4] sm:$0xff] %v290
                %v292 = vld [vmem:[%s194 + $0xc40] sm:$0xff]
                %293 = vst [vmem:[%s195 + $0x1c0] sm:$0xff] %v292
                %v294 = vld [vmem:[%s194 + $0xc48] sm:$0xff]
                %295 = vst [vmem:[%s195 + $0x1c8] sm:$0xff] %v294
                %v296 = vld [vmem:[%s194 + $0xc50] sm:$0xff]
                %297 = vst [vmem:[%s195 + $0x1d0] sm:$0xff] %v296
                %v298 = vld [vmem:[%s194 + $0xd04] sm:$0xff]
                %299 = vst [vmem:[%s195 + $0x1dc] sm:$0xff] %v298
                %v300 = vld [vmem:[%s194 + $0xd0c] sm:$0xff]
                %301 = vst [vmem:[%s195 + $0x1e4] sm:$0xff] %v300
                %v302 = vld [vmem:[%s194 + $0xd14] sm:$0xff]
                %303 = vst [vmem:[%s195 + $0x1ec] sm:$0xff] %v302
                %v304 = vld [vmem:[%s194 + $0xdc8] sm:$0xff]
                %305 = vst [vmem:[%s195 + $0x1f8] sm:$0xff] %v304
                %v306 = vld [vmem:[%s194 + $0xdd0] sm:$0xff]
                %307 = vst [vmem:[%s195 + $0x200] sm:$0xff] %v306
                %v308 = vld [vmem:[%s194 + $0xdd8] sm:$0xff]
                %309 = vst [vmem:[%s195 + $0x208] sm:$0xff] %v308
                %v310 = vld [vmem:[%s194 + $0xe8c] sm:$0xff]
                %311 = vst [vmem:[%s195 + $0x214] sm:$0xff] %v310
                %v312 = vld [vmem:[%s194 + $0xe94] sm:$0xff]
                %313 = vst [vmem:[%s195 + $0x21c] sm:$0xff] %v312
                %v314 = vld [vmem:[%s194 + $0xe9c] sm:$0xff]
                %315 = vst [vmem:[%s195 + $0x224] sm:$0xff] %v314
              $region41: #{frequency_discriminator.9} parent=35 // loop_footer
                %s193 = sadd.s32 1, %s189
              $region42: #{frequency_discriminator.9} parent=35 // loop_footer_branch
                %188 = sbr.rel target = $region38
              $region43: #{frequency_discriminator.9} parent=35 // loop_exit
                _
              loop: start=0, step=1, limit=1
              $region44: #{frequency_discriminator.9} parent=35 // loop_pre_header
                _
              $region45: #{frequency_discriminator.9} parent=35 // loop_header
                %s318 = sphi 0, %s322
                %p319 = scmp.ge.s32.totalorder %s318, 1
                %s323 = sphi %s186, %s186
                %s324 = sphi %s187, %s187
              $region46: #{frequency_discriminator.9} parent=35 // loop_header_branch
                %321 = sbr.rel (%p319) target = $region50
              $region47: #{frequency_discriminator.9} parent=35 // loop_body
                %v325 = vld [vmem:[%s323] sm:$0xf]
                %326 = vst [vmem:[%s324] sm:$0xf] %v325
                %v327 = vld [vmem:[%s323 + $0xc4] sm:$0xf]
                %328 = vst [vmem:[%s324 + $0x1c] sm:$0xf] %v327
                %v329 = vld [vmem:[%s323 + $0x188] sm:$0xf]
                %330 = vst [vmem:[%s324 + $0x38] sm:$0xf] %v329
                %v331 = vld [vmem:[%s323 + $0x24c] sm:$0xf]
                %332 = vst [vmem:[%s324 + $0x54] sm:$0xf] %v331
                %v333 = vld [vmem:[%s323 + $0x310] sm:$0xf]
                %334 = vst [vmem:[%s324 + $0x70] sm:$0xf] %v333
                %v335 = vld [vmem:[%s323 + $0x3d4] sm:$0xf]
                %336 = vst [vmem:[%s324 + $0x8c] sm:$0xf] %v335
                %v337 = vld [vmem:[%s323 + $0x498] sm:$0xf]
                %338 = vst [vmem:[%s324 + $0xa8] sm:$0xf] %v337
                %v339 = vld [vmem:[%s323 + $0x55c] sm:$0xf]
                %340 = vst [vmem:[%s324 + $0xc4] sm:$0xf] %v339
                %v341 = vld [vmem:[%s323 + $0x620] sm:$0xf]
                %342 = vst [vmem:[%s324 + $0xe0] sm:$0xf] %v341
                %v343 = vld [vmem:[%s323 + $0x6e4] sm:$0xf]
                %344 = vst [vmem:[%s324 + $0xfc] sm:$0xf] %v343
                %v345 = vld [vmem:[%s323 + $0x7a8] sm:$0xf]
                %346 = vst [vmem:[%s324 + $0x118] sm:$0xf] %v345
                %v347 = vld [vmem:[%s323 + $0x86c] sm:$0xf]
                %348 = vst [vmem:[%s324 + $0x134] sm:$0xf] %v347
                %v349 = vld [vmem:[%s323 + $0x930] sm:$0xf]
                %350 = vst [vmem:[%s324 + $0x150] sm:$0xf] %v349
                %v351 = vld [vmem:[%s323 + $0x9f4] sm:$0xf]
                %352 = vst [vmem:[%s324 + $0x16c] sm:$0xf] %v351
                %v353 = vld [vmem:[%s323 + $0xab8] sm:$0xf]
                %354 = vst [vmem:[%s324 + $0x188] sm:$0xf] %v353
                %v355 = vld [vmem:[%s323 + $0xb7c] sm:$0xf]
                %356 = vst [vmem:[%s324 + $0x1a4] sm:$0xf] %v355
                %v357 = vld [vmem:[%s323 + $0xc40] sm:$0xf]
                %358 = vst [vmem:[%s324 + $0x1c0] sm:$0xf] %v357
                %v359 = vld [vmem:[%s323 + $0xd04] sm:$0xf]
                %360 = vst [vmem:[%s324 + $0x1dc] sm:$0xf] %v359
                %v361 = vld [vmem:[%s323 + $0xdc8] sm:$0xf]
                %362 = vst [vmem:[%s324 + $0x1f8] sm:$0xf] %v361
                %v363 = vld [vmem:[%s323 + $0xe8c] sm:$0xf]
                %364 = vst [vmem:[%s324 + $0x214] sm:$0xf] %v363
              $region48: #{frequency_discriminator.9} parent=35 // loop_footer
                %s322 = sadd.s32 1, %s318
              $region49: #{frequency_discriminator.9} parent=35 // loop_footer_branch
                %317 = sbr.rel target = $region45
              $region50: #{frequency_discriminator.9} parent=35 // loop_exit
                _
            $region36: #{frequency_discriminator.9} parent=31 // pred_fallthru
              _
          $region32: #{frequency_discriminator.9} parent=27 // pred_fallthru
            _
          %365 = vnop
        $region28: #{frequency_discriminator.9} parent=23 // pred_fallthru
          _
        // Predicated region
        $region51: #{frequency_discriminator.9} parent=23 // pred_check
          %p366 = pneg %p70
        $region52: #{frequency_discriminator.9} parent=23 // pred_check_branch
          %368 = sbr.rel (%p366) target = $region54
        $region53: #{frequency_discriminator.9} parent=23 // pred_region
          %s369 = smul.u32 112, %s18
          %p370 = scmp.lt.s32.totalorder %s369, 783
          %s371 = scalar_select %p370, %s369, 783
          %s372 = smul.addr %s371, 2
          %s373 = smul.addr %s372, 4
          %s374 = scalar_lea.vmem %s1, %s373
          %s375 = smul.u32 112, %s18
        $region54: #{frequency_discriminator.9} parent=23 // pred_fallthru
          _
      $region24: #{frequency_discriminator.9} parent=5 // pred_fallthru
        _
      %p376 = scmp.le.s32.totalorder 1, %s10
      %p377 = scmp.lt.s32.totalorder %s10, 8
      %p378 = pnand %p376, %p377
      %p379 = pneg %p378
      // Predicated region
      $region55: #{frequency_discriminator.9} parent=5 // pred_check
        _
      $region56: #{frequency_discriminator.9} parent=5 // pred_check_branch
        %381 = sbr.rel (%p378) target = $region58
      $region57: #{frequency_discriminator.9} parent=5 // pred_region
        %s382 = ssub.s32 %s10, 1
        %s383 = sand.u32 %s37, 1
        %s384 = sand.u32 %s37, 1
        %s385 = smul.addr %s384, 560
        %s386 = scalar_lea.vmem [#allocation3], %s385
        // Predicated region
        $region59: #{frequency_discriminator.9} parent=57 // pred_check
          %p387 = pneg %p50
        $region60: #{frequency_discriminator.9} parent=57 // pred_check_branch
          %389 = sbr.rel (%p387) target = $region62
        $region61: #{frequency_discriminator.9} parent=57 // pred_region
          _
        $region62: #{frequency_discriminator.9} parent=57 // pred_fallthru
          _
        %s390 = sand.u32 %s37, 1
        %s391 = sand.u32 %s37, 1
        %s392 = smul.addr %s391, 560
        %s393 = scalar_lea.vmem [#allocation3], %s392
        %p394 = pneg %p50
        %p395 = pneg %p47
        %s396 = smul.u32 112, %s20
        %p397 = scmp.lt.s32.totalorder %s396, 783
        %s398 = scalar_select %p397, %s396, 783
        %s399 = smul.addr %s398, 2
        %s400 = smul.addr %s399, 4
        %s401 = scalar_lea.vmem %s1, %s400
        %p402 = pneg %p76
        %p403 = pneg %p73
        %p404 = pneg %p97
        %p405 = pneg %p94
        %p406 = pneg %p118
        %p407 = pneg %p115
        %p408 = pneg %p144
        %p409 = pneg %p141
        %s410 = smul.u32 20, %s19
        %p411 = scmp.lt.s32.totalorder %s410, 19
        %s412 = scalar_select %p411, %s410, 19
        %s413 = smul.addr %s412, 2
        %s414 = smul.addr %s413, 8
        %s415 = scalar_lea.vmem %s4, %s414
        %s416 = smul.u32 20, %s19
        %s417 = smul.u32 7, %s20
        %s418 = smul.u32 112, %s20
        %p419 = scmp.lt.s32.totalorder %s418, 783
        %s420 = scalar_select %p419, %s418, 783
        %s421 = smul.addr %s420, 2
        %s422 = smul.addr %s421, 4
        %s423 = scalar_lea.vmem %s1, %s422
        %s424 = smul.u32 112, %s20
        %s425 = smul.u32 20, %s19
        %p426 = scmp.lt.s32.totalorder %s425, 19
        %s427 = scalar_select %p426, %s425, 19
        %s428 = smul.addr %s427, 2
        %s429 = smul.addr %s428, 8
        %s430 = scalar_lea.vmem %s4, %s429
        %s431 = smul.u32 20, %s19
        %p433 = scmp.eq.s32.totalorder %s20, 0
        // Predicated region
        $region63: #{frequency_discriminator.9} parent=57 // pred_check
          %p434 = pneg %p433
        $region64: #{frequency_discriminator.9} parent=57 // pred_check_branch
          %436 = sbr.rel (%p434) target = $region66
        $region65: #{frequency_discriminator.9} parent=57 // pred_region
          %437 = vst [vmem:[#allocation2] sm:$0xff] 0.0
          %438 = vst [vmem:[#allocation2 + $0x8] sm:$0xff] 0.0
          %439 = vst [vmem:[#allocation2 + $0x10] sm:$0xff] 0.0
          %440 = vst [vmem:[#allocation2 + $0x18] sm:$0xff] 0.0
          %441 = vst [vmem:[#allocation2 + $0x20] sm:$0xff] 0.0
          %442 = vst [vmem:[#allocation2 + $0x28] sm:$0xff] 0.0
          %443 = vst [vmem:[#allocation2 + $0x30] sm:$0xff] 0.0
          %444 = vst [vmem:[#allocation2 + $0x38] sm:$0xff] 0.0
          %445 = vst [vmem:[#allocation2 + $0x40] sm:$0xff] 0.0
          %446 = vst [vmem:[#allocation2 + $0x48] sm:$0xff] 0.0
          %447 = vst [vmem:[#allocation2 + $0x50] sm:$0xff] 0.0
          %448 = vst [vmem:[#allocation2 + $0x58] sm:$0xff] 0.0
          %449 = vst [vmem:[#allocation2 + $0x60] sm:$0xff] 0.0
          %450 = vst [vmem:[#allocation2 + $0x68] sm:$0xff] 0.0
          %451 = vst [vmem:[#allocation2 + $0x70] sm:$0xff] 0.0
          %452 = vst [vmem:[#allocation2 + $0x78] sm:$0xff] 0.0
          %453 = vst [vmem:[#allocation2 + $0x80] sm:$0xff] 0.0
          %454 = vst [vmem:[#allocation2 + $0x88] sm:$0xff] 0.0
          %455 = vst [vmem:[#allocation2 + $0x90] sm:$0xff] 0.0
          %456 = vst [vmem:[#allocation2 + $0x98] sm:$0xff] 0.0
          %457 = vst [vmem:[#allocation2 + $0xa0] sm:$0xff] 0.0
          %458 = vst [vmem:[#allocation2 + $0xa8] sm:$0xff] 0.0
          %459 = vst [vmem:[#allocation2 + $0xb0] sm:$0xff] 0.0
          %460 = vst [vmem:[#allocation2 + $0xb8] sm:$0xff] 0.0
          %461 = vst [vmem:[#allocation2 + $0xc0] sm:$0xff] 0.0
          %462 = vst [vmem:[#allocation2 + $0xc8] sm:$0xff] 0.0
          %463 = vst [vmem:[#allocation2 + $0xd0] sm:$0xff] 0.0
          %464 = vst [vmem:[#allocation2 + $0xd8] sm:$0xff] 0.0
          %465 = vst [vmem:[#allocation2 + $0xe0] sm:$0xff] 0.0
          %466 = vst [vmem:[#allocation2 + $0xe8] sm:$0xff] 0.0
          %467 = vst [vmem:[#allocation2 + $0xf0] sm:$0xff] 0.0
          %468 = vst [vmem:[#allocation2 + $0xf8] sm:$0xff] 0.0
          %469 = vst [vmem:[#allocation2 + $0x100] sm:$0xff] 0.0
          %470 = vst [vmem:[#allocation2 + $0x108] sm:$0xff] 0.0
          %471 = vst [vmem:[#allocation2 + $0x110] sm:$0xff] 0.0
          %472 = vst [vmem:[#allocation2 + $0x118] sm:$0xff] 0.0
          %473 = vst [vmem:[#allocation2 + $0x120] sm:$0xff] 0.0
          %474 = vst [vmem:[#allocation2 + $0x128] sm:$0xff] 0.0
          %475 = vst [vmem:[#allocation2 + $0x130] sm:$0xff] 0.0
          %476 = vst [vmem:[#allocation2 + $0x138] sm:$0xff] 0.0
        $region66: #{frequency_discriminator.9} parent=57 // pred_fallthru
          _
        %v477 = vld [vmem:[#allocation2] sm:$0xff]
        %v478 = vld [vmem:[#allocation2 + $0x8] sm:$0xff]
        %v479 = vld [vmem:[#allocation2 + $0x10] sm:$0xff]
        %v480 = vld [vmem:[#allocation2 + $0x18] sm:$0xff]
        %v481 = vld [vmem:[#allocation2 + $0x20] sm:$0xff]
        %v482 = vld [vmem:[#allocation2 + $0x28] sm:$0xff]
        %v483 = vld [vmem:[#allocation2 + $0x30] sm:$0xff]
        %v484 = vld [vmem:[#allocation2 + $0x38] sm:$0xff]
        %v485 = vld [vmem:[#allocation2 + $0x40] sm:$0xff]
        %v486 = vld [vmem:[#allocation2 + $0x48] sm:$0xff]
        %v487 = vld [vmem:[#allocation2 + $0x50] sm:$0xff]
        %v488 = vld [vmem:[#allocation2 + $0x58] sm:$0xff]
        %v489 = vld [vmem:[#allocation2 + $0x60] sm:$0xff]
        %v490 = vld [vmem:[#allocation2 + $0x68] sm:$0xff]
        %v491 = vld [vmem:[#allocation2 + $0x70] sm:$0xff]
        %v492 = vld [vmem:[#allocation2 + $0x78] sm:$0xff]
        %v493 = vld [vmem:[#allocation2 + $0x80] sm:$0xff]
        %v494 = vld [vmem:[#allocation2 + $0x88] sm:$0xff]
        %v495 = vld [vmem:[#allocation2 + $0x90] sm:$0xff]
        %v496 = vld [vmem:[#allocation2 + $0x98] sm:$0xff]
        %v497 = vld [vmem:[#allocation2 + $0xa0] sm:$0xff]
        %v498 = vld [vmem:[#allocation2 + $0xa8] sm:$0xff]
        %v499 = vld [vmem:[#allocation2 + $0xb0] sm:$0xff]
        %v500 = vld [vmem:[#allocation2 + $0xb8] sm:$0xff]
        %v501 = vld [vmem:[#allocation2 + $0xc0] sm:$0xff]
        %v502 = vld [vmem:[#allocation2 + $0xc8] sm:$0xff]
        %v503 = vld [vmem:[#allocation2 + $0xd0] sm:$0xff]
        %v504 = vld [vmem:[#allocation2 + $0xd8] sm:$0xff]
        %v505 = vld [vmem:[#allocation2 + $0xe0] sm:$0xff]
        %v506 = vld [vmem:[#allocation2 + $0xe8] sm:$0xff]
        %v507 = vld [vmem:[#allocation2 + $0xf0] sm:$0xff]
        %v508 = vld [vmem:[#allocation2 + $0xf8] sm:$0xff]
        %v509 = vld [vmem:[#allocation2 + $0x100] sm:$0xff]
        %v510 = vld [vmem:[#allocation2 + $0x108] sm:$0xff]
        %v511 = vld [vmem:[#allocation2 + $0x110] sm:$0xff]
        %v512 = vld [vmem:[#allocation2 + $0x118] sm:$0xff]
        %v513 = vld [vmem:[#allocation2 + $0x120] sm:$0xff]
        %v514 = vld [vmem:[#allocation2 + $0x128] sm:$0xff]
        %v515 = vld [vmem:[#allocation2 + $0x130] sm:$0xff]
        %v516 = vld [vmem:[#allocation2 + $0x138] sm:$0xff]
        %v517 = vld [vmem:[%s386] sm:$0xff]
        %v518 = vld [vmem:[%s386 + $0x8] sm:$0xff]
        %v519 = vld [vmem:[%s386 + $0x10] sm:$0xff]
        %v520 = vld [vmem:[%s386 + $0x18] sm:$0xf]
        %v521 = vld [vmem:[%s386 + $0x1c] sm:$0xff]
        %v522 = vld [vmem:[%s386 + $0x24] sm:$0xff]
        %v523 = vld [vmem:[%s386 + $0x2c] sm:$0xff]
        %v524 = vld [vmem:[%s386 + $0x34] sm:$0xf]
        %v525 = vld [vmem:[%s386 + $0x38] sm:$0xff]
        %v526 = vld [vmem:[%s386 + $0x40] sm:$0xff]
        %v527 = vld [vmem:[%s386 + $0x48] sm:$0xff]
        %v528 = vld [vmem:[%s386 + $0x50] sm:$0xf]
        %v529 = vld [vmem:[%s386 + $0x54] sm:$0xff]
        %v530 = vld [vmem:[%s386 + $0x5c] sm:$0xff]
        %v531 = vld [vmem:[%s386 + $0x64] sm:$0xff]
        %v532 = vld [vmem:[%s386 + $0x6c] sm:$0xf]
        %v533 = vld [vmem:[%s386 + $0x70] sm:$0xff]
        %v534 = vld [vmem:[%s386 + $0x78] sm:$0xff]
        %v535 = vld [vmem:[%s386 + $0x80] sm:$0xff]
        %v536 = vld [vmem:[%s386 + $0x88] sm:$0xf]
        %v537 = vld [vmem:[%s386 + $0x8c] sm:$0xff]
        %v538 = vld [vmem:[%s386 + $0x94] sm:$0xff]
        %v539 = vld [vmem:[%s386 + $0x9c] sm:$0xff]
        %v540 = vld [vmem:[%s386 + $0xa4] sm:$0xf]
        %v541 = vld [vmem:[%s386 + $0xa8] sm:$0xff]
        %v542 = vld [vmem:[%s386 + $0xb0] sm:$0xff]
        %v543 = vld [vmem:[%s386 + $0xb8] sm:$0xff]
        %v544 = vld [vmem:[%s386 + $0xc0] sm:$0xf]
        %v545 = vld [vmem:[%s386 + $0xc4] sm:$0xff]
        %v546 = vld [vmem:[%s386 + $0xcc] sm:$0xff]
        %v547 = vld [vmem:[%s386 + $0xd4] sm:$0xff]
        %v548 = vld [vmem:[%s386 + $0xdc] sm:$0xf]
        %v549 = vld [vmem:[%s386 + $0xe0] sm:$0xff]
        %v550 = vld [vmem:[%s386 + $0xe8] sm:$0xff]
        %v551 = vld [vmem:[%s386 + $0xf0] sm:$0xff]
        %v552 = vld [vmem:[%s386 + $0xf8] sm:$0xf]
        %v553 = vld [vmem:[%s386 + $0xfc] sm:$0xff]
        %v554 = vld [vmem:[%s386 + $0x104] sm:$0xff]
        %v555 = vld [vmem:[%s386 + $0x10c] sm:$0xff]
        %v556 = vld [vmem:[%s386 + $0x114] sm:$0xf]
        %v557 = vld [vmem:[%s386 + $0x118] sm:$0xff]
        %v558 = vld [vmem:[%s386 + $0x120] sm:$0xff]
        %v559 = vld [vmem:[%s386 + $0x128] sm:$0xff]
        %v560 = vld [vmem:[%s386 + $0x130] sm:$0xf]
        %v561 = vld [vmem:[%s386 + $0x134] sm:$0xff]
        %v562 = vld [vmem:[%s386 + $0x13c] sm:$0xff]
        %v563 = vld [vmem:[%s386 + $0x144] sm:$0xff]
        %v564 = vld [vmem:[%s386 + $0x14c] sm:$0xf]
        %v565 = vld [vmem:[%s386 + $0x150] sm:$0xff]
        %v566 = vld [vmem:[%s386 + $0x158] sm:$0xff]
        %v567 = vld [vmem:[%s386 + $0x160] sm:$0xff]
        %v568 = vld [vmem:[%s386 + $0x168] sm:$0xf]
        %v569 = vld [vmem:[%s386 + $0x16c] sm:$0xff]
        %v570 = vld [vmem:[%s386 + $0x174] sm:$0xff]
        %v571 = vld [vmem:[%s386 + $0x17c] sm:$0xff]
        %v572 = vld [vmem:[%s386 + $0x184] sm:$0xf]
        %v573 = vld [vmem:[%s386 + $0x188] sm:$0xff]
        %v574 = vld [vmem:[%s386 + $0x190] sm:$0xff]
        %v575 = vld [vmem:[%s386 + $0x198] sm:$0xff]
        %v576 = vld [vmem:[%s386 + $0x1a0] sm:$0xf]
        %v577 = vld [vmem:[%s386 + $0x1a4] sm:$0xff]
        %v578 = vld [vmem:[%s386 + $0x1ac] sm:$0xff]
        %v579 = vld [vmem:[%s386 + $0x1b4] sm:$0xff]
        %v580 = vld [vmem:[%s386 + $0x1bc] sm:$0xf]
        %v581 = vld [vmem:[%s386 + $0x1c0] sm:$0xff]
        %v582 = vld [vmem:[%s386 + $0x1c8] sm:$0xff]
        %v583 = vld [vmem:[%s386 + $0x1d0] sm:$0xff]
        %v584 = vld [vmem:[%s386 + $0x1d8] sm:$0xf]
        %v585 = vld [vmem:[%s386 + $0x1dc] sm:$0xff]
        %v586 = vld [vmem:[%s386 + $0x1e4] sm:$0xff]
        %v587 = vld [vmem:[%s386 + $0x1ec] sm:$0xff]
        %v588 = vld [vmem:[%s386 + $0x1f4] sm:$0xf]
        %v589 = vld [vmem:[%s386 + $0x1f8] sm:$0xff]
        %v590 = vld [vmem:[%s386 + $0x200] sm:$0xff]
        %v591 = vld [vmem:[%s386 + $0x208] sm:$0xff]
        %v592 = vld [vmem:[%s386 + $0x210] sm:$0xf]
        %v593 = vld [vmem:[%s386 + $0x214] sm:$0xff]
        %v594 = vld [vmem:[%s386 + $0x21c] sm:$0xff]
        %v595 = vld [vmem:[%s386 + $0x224] sm:$0xff]
        %v596 = vld [vmem:[%s386 + $0x22c] sm:$0xf]
        %v597 = vld [vmem:[%s423] sm:$0xff]
        %v598 = vld [vmem:[%s423 + $0x8] sm:$0xff]
        %v599 = vld [vmem:[%s423 + $0x10] sm:$0xff]
        %v600 = vld [vmem:[%s423 + $0x18] sm:$0xff]
        %v601 = vld [vmem:[%s423 + $0x20] sm:$0xff]
        %v602 = vld [vmem:[%s423 + $0x28] sm:$0xff]
        %v603 = vld [vmem:[%s423 + $0x30] sm:$0xff]
        %v604 = vld [vmem:[%s423 + $0x38] sm:$0xff]
        %v605 = vld [vmem:[%s423 + $0x40] sm:$0xff]
        %v606 = vld [vmem:[%s423 + $0x48] sm:$0xff]
        %v607 = vld [vmem:[%s423 + $0x50] sm:$0xff]
        %v608 = vld [vmem:[%s423 + $0x58] sm:$0xff]
        %v609 = vld [vmem:[%s423 + $0x60] sm:$0xff]
        %v610 = vld [vmem:[%s423 + $0x68] sm:$0xff]
        %v611 = vld [vmem:[%s423 + $0x70] sm:$0xff]
        %v612 = vld [vmem:[%s423 + $0x78] sm:$0xff]
        %v613 = vld [vmem:[%s423 + $0x80] sm:$0xff]
        %v614 = vld [vmem:[%s423 + $0x88] sm:$0xff]
        %v615 = vld [vmem:[%s423 + $0x90] sm:$0xff]
        %v616 = vld [vmem:[%s423 + $0x98] sm:$0xff]
        %v617 = vld [vmem:[%s423 + $0xa0] sm:$0xff]
        %v618 = vld [vmem:[%s423 + $0xa8] sm:$0xff]
        %v619 = vld [vmem:[%s423 + $0xb0] sm:$0xff]
        %v620 = vld [vmem:[%s423 + $0xb8] sm:$0xff]
        %v621 = vld [vmem:[%s423 + $0xc0] sm:$0xff]
        %v622 = vld [vmem:[%s423 + $0xc8] sm:$0xff]
        %v623 = vld [vmem:[%s423 + $0xd0] sm:$0xff]
        %v624 = vld [vmem:[%s423 + $0xd8] sm:$0xff]
        %v625 = vld [vmem:[%s423 + $0xe0] sm:$0xff]
        %v626 = vld [vmem:[%s423 + $0xe8] sm:$0xff]
        %v627 = vld [vmem:[%s423 + $0xf0] sm:$0xff]
        %v628 = vld [vmem:[%s423 + $0xf8] sm:$0xff]
        %v629 = vld [vmem:[%s423 + $0x100] sm:$0xff]
        %v630 = vld [vmem:[%s423 + $0x108] sm:$0xff]
        %v631 = vld [vmem:[%s423 + $0x110] sm:$0xff]
        %v632 = vld [vmem:[%s423 + $0x118] sm:$0xff]
        %v633 = vld [vmem:[%s423 + $0x120] sm:$0xff]
        %v634 = vld [vmem:[%s423 + $0x128] sm:$0xff]
        %v635 = vld [vmem:[%s423 + $0x130] sm:$0xff]
        %v636 = vld [vmem:[%s423 + $0x138] sm:$0xff]
        %v637 = vld [vmem:[%s423 + $0x140] sm:$0xff]
        %v638 = vld [vmem:[%s423 + $0x148] sm:$0xff]
        %v639 = vld [vmem:[%s423 + $0x150] sm:$0xff]
        %v640 = vld [vmem:[%s423 + $0x158] sm:$0xff]
        %v641 = vld [vmem:[%s423 + $0x160] sm:$0xff]
        %v642 = vld [vmem:[%s423 + $0x168] sm:$0xff]
        %v643 = vld [vmem:[%s423 + $0x170] sm:$0xff]
        %v644 = vld [vmem:[%s423 + $0x178] sm:$0xff]
        %v645 = vld [vmem:[%s423 + $0x180] sm:$0xff]
        %v646 = vld [vmem:[%s423 + $0x188] sm:$0xff]
        %v647 = vld [vmem:[%s423 + $0x190] sm:$0xff]
        %v648 = vld [vmem:[%s423 + $0x198] sm:$0xff]
        %v649 = vld [vmem:[%s423 + $0x1a0] sm:$0xff]
        %v650 = vld [vmem:[%s423 + $0x1a8] sm:$0xff]
        %v651 = vld [vmem:[%s423 + $0x1b0] sm:$0xff]
        %v652 = vld [vmem:[%s423 + $0x1b8] sm:$0xff]
        %v653 = vld [vmem:[%s423 + $0x1c0] sm:$0xff]
        %v654 = vld [vmem:[%s423 + $0x1c8] sm:$0xff]
        %v655 = vld [vmem:[%s423 + $0x1d0] sm:$0xff]
        %v656 = vld [vmem:[%s423 + $0x1d8] sm:$0xff]
        %v657 = vld [vmem:[%s423 + $0x1e0] sm:$0xff]
        %v658 = vld [vmem:[%s423 + $0x1e8] sm:$0xff]
        %v659 = vld [vmem:[%s423 + $0x1f0] sm:$0xff]
        %v660 = vld [vmem:[%s423 + $0x1f8] sm:$0xff]
        %v661 = vld [vmem:[%s423 + $0x200] sm:$0xff]
        %v662 = vld [vmem:[%s423 + $0x208] sm:$0xff]
        %v663 = vld [vmem:[%s423 + $0x210] sm:$0xff]
        %v664 = vld [vmem:[%s423 + $0x218] sm:$0xff]
        %v665 = vld [vmem:[%s423 + $0x220] sm:$0xff]
        %v666 = vld [vmem:[%s423 + $0x228] sm:$0xff]
        %v667 = vld [vmem:[%s423 + $0x230] sm:$0xff]
        %v668 = vld [vmem:[%s423 + $0x238] sm:$0xff]
        %v669 = vld [vmem:[%s423 + $0x240] sm:$0xff]
        %v670 = vld [vmem:[%s423 + $0x248] sm:$0xff]
        %v671 = vld [vmem:[%s423 + $0x250] sm:$0xff]
        %v672 = vld [vmem:[%s423 + $0x258] sm:$0xff]
        %v673 = vld [vmem:[%s423 + $0x260] sm:$0xff]
        %v674 = vld [vmem:[%s423 + $0x268] sm:$0xff]
        %v675 = vld [vmem:[%s423 + $0x270] sm:$0xff]
        %v676 = vld [vmem:[%s423 + $0x278] sm:$0xff]
        %v677 = vld [vmem:[%s423 + $0x280] sm:$0xff]
        %v678 = vld [vmem:[%s423 + $0x288] sm:$0xff]
        %v679 = vld [vmem:[%s423 + $0x290] sm:$0xff]
        %v680 = vld [vmem:[%s423 + $0x298] sm:$0xff]
        %v681 = vld [vmem:[%s423 + $0x2a0] sm:$0xff]
        %v682 = vld [vmem:[%s423 + $0x2a8] sm:$0xff]
        %v683 = vld [vmem:[%s423 + $0x2b0] sm:$0xff]
        %v684 = vld [vmem:[%s423 + $0x2b8] sm:$0xff]
        %v685 = vld [vmem:[%s423 + $0x2c0] sm:$0xff]
        %v686 = vld [vmem:[%s423 + $0x2c8] sm:$0xff]
        %v687 = vld [vmem:[%s423 + $0x2d0] sm:$0xff]
        %v688 = vld [vmem:[%s423 + $0x2d8] sm:$0xff]
        %v689 = vld [vmem:[%s423 + $0x2e0] sm:$0xff]
        %v690 = vld [vmem:[%s423 + $0x2e8] sm:$0xff]
        %v691 = vld [vmem:[%s423 + $0x2f0] sm:$0xff]
        %v692 = vld [vmem:[%s423 + $0x2f8] sm:$0xff]
        %v693 = vld [vmem:[%s423 + $0x300] sm:$0xff]
        %v694 = vld [vmem:[%s423 + $0x308] sm:$0xff]
        %v695 = vld [vmem:[%s423 + $0x310] sm:$0xff]
        %v696 = vld [vmem:[%s423 + $0x318] sm:$0xff]
        %v697 = vld [vmem:[%s423 + $0x320] sm:$0xff]
        %v698 = vld [vmem:[%s423 + $0x328] sm:$0xff]
        %v699 = vld [vmem:[%s423 + $0x330] sm:$0xff]
        %v700 = vld [vmem:[%s423 + $0x338] sm:$0xff]
        %v701 = vld [vmem:[%s423 + $0x340] sm:$0xff]
        %v702 = vld [vmem:[%s423 + $0x348] sm:$0xff]
        %v703 = vld [vmem:[%s423 + $0x350] sm:$0xff]
        %v704 = vld [vmem:[%s423 + $0x358] sm:$0xff]
        %v705 = vld [vmem:[%s423 + $0x360] sm:$0xff]
        %v706 = vld [vmem:[%s423 + $0x368] sm:$0xff]
        %v707 = vld [vmem:[%s423 + $0x370] sm:$0xff]
        %v708 = vld [vmem:[%s423 + $0x378] sm:$0xff]
        %v789 = vunpack.c.l.b16 %v517
        %v790 = vunpack.c.h.b16 %v517
        %v791 = vunpack.c.l.b16 %v518
        %v792 = vunpack.c.h.b16 %v518
        %v793 = vunpack.c.l.b16 %v519
        %v794 = vunpack.c.h.b16 %v519
        %v795 = vunpack.c.l.b16 %v520
        %v796 = vunpack.c.l.b16 %v521
        %v797 = vunpack.c.h.b16 %v521
        %v798 = vunpack.c.l.b16 %v522
        %v799 = vunpack.c.h.b16 %v522
        %v800 = vunpack.c.l.b16 %v523
        %v801 = vunpack.c.h.b16 %v523
        %v802 = vunpack.c.l.b16 %v524
        %v803 = vunpack.c.l.b16 %v525
        %v804 = vunpack.c.h.b16 %v525
        %v805 = vunpack.c.l.b16 %v526
        %v806 = vunpack.c.h.b16 %v526
        %v807 = vunpack.c.l.b16 %v527
        %v808 = vunpack.c.h.b16 %v527
        %v809 = vunpack.c.l.b16 %v528
        %v810 = vunpack.c.l.b16 %v529
        %v811 = vunpack.c.h.b16 %v529
        %v812 = vunpack.c.l.b16 %v530
        %v813 = vunpack.c.h.b16 %v530
        %v814 = vunpack.c.l.b16 %v531
        %v815 = vunpack.c.h.b16 %v531
        %v816 = vunpack.c.l.b16 %v532
        %v817 = vunpack.c.l.b16 %v533
        %v818 = vunpack.c.h.b16 %v533
        %v819 = vunpack.c.l.b16 %v534
        %v820 = vunpack.c.h.b16 %v534
        %v821 = vunpack.c.l.b16 %v535
        %v822 = vunpack.c.h.b16 %v535
        %v823 = vunpack.c.l.b16 %v536
        %v824 = vunpack.c.l.b16 %v537
        %v825 = vunpack.c.h.b16 %v537
        %v826 = vunpack.c.l.b16 %v538
        %v827 = vunpack.c.h.b16 %v538
        %v828 = vunpack.c.l.b16 %v539
        %v829 = vunpack.c.h.b16 %v539
        %v830 = vunpack.c.l.b16 %v540
        %v831 = vunpack.c.l.b16 %v541
        %v832 = vunpack.c.h.b16 %v541
        %v833 = vunpack.c.l.b16 %v542
        %v834 = vunpack.c.h.b16 %v542
        %v835 = vunpack.c.l.b16 %v543
        %v836 = vunpack.c.h.b16 %v543
        %v837 = vunpack.c.l.b16 %v544
        %v838 = vunpack.c.l.b16 %v545
        %v839 = vunpack.c.h.b16 %v545
        %v840 = vunpack.c.l.b16 %v546
        %v841 = vunpack.c.h.b16 %v546
        %v842 = vunpack.c.l.b16 %v547
        %v843 = vunpack.c.h.b16 %v547
        %v844 = vunpack.c.l.b16 %v548
        %v845 = vunpack.c.l.b16 %v549
        %v846 = vunpack.c.h.b16 %v549
        %v847 = vunpack.c.l.b16 %v550
        %v848 = vunpack.c.h.b16 %v550
        %v849 = vunpack.c.l.b16 %v551
        %v850 = vunpack.c.h.b16 %v551
        %v851 = vunpack.c.l.b16 %v552
        %v852 = vunpack.c.l.b16 %v553
        %v853 = vunpack.c.h.b16 %v553
        %v854 = vunpack.c.l.b16 %v554
        %v855 = vunpack.c.h.b16 %v554
        %v856 = vunpack.c.l.b16 %v555
        %v857 = vunpack.c.h.b16 %v555
        %v858 = vunpack.c.l.b16 %v556
        %v859 = vunpack.c.l.b16 %v557
        %v860 = vunpack.c.h.b16 %v557
        %v861 = vunpack.c.l.b16 %v558
        %v862 = vunpack.c.h.b16 %v558
        %v863 = vunpack.c.l.b16 %v559
        %v864 = vunpack.c.h.b16 %v559
        %v865 = vunpack.c.l.b16 %v560
        %v866 = vunpack.c.l.b16 %v561
        %v867 = vunpack.c.h.b16 %v561
        %v868 = vunpack.c.l.b16 %v562
        %v869 = vunpack.c.h.b16 %v562
        %v870 = vunpack.c.l.b16 %v563
        %v871 = vunpack.c.h.b16 %v563
        %v872 = vunpack.c.l.b16 %v564
        %v873 = vunpack.c.l.b16 %v565
        %v874 = vunpack.c.h.b16 %v565
        %v875 = vunpack.c.l.b16 %v566
        %v876 = vunpack.c.h.b16 %v566
        %v877 = vunpack.c.l.b16 %v567
        %v878 = vunpack.c.h.b16 %v567
        %v879 = vunpack.c.l.b16 %v568
        %v880 = vunpack.c.l.b16 %v569
        %v881 = vunpack.c.h.b16 %v569
        %v882 = vunpack.c.l.b16 %v570
        %v883 = vunpack.c.h.b16 %v570
        %v884 = vunpack.c.l.b16 %v571
        %v885 = vunpack.c.h.b16 %v571
        %v886 = vunpack.c.l.b16 %v572
        %v887 = vunpack.c.l.b16 %v573
        %v888 = vunpack.c.h.b16 %v573
        %v889 = vunpack.c.l.b16 %v574
        %v890 = vunpack.c.h.b16 %v574
        %v891 = vunpack.c.l.b16 %v575
        %v892 = vunpack.c.h.b16 %v575
        %v893 = vunpack.c.l.b16 %v576
        %v894 = vunpack.c.l.b16 %v577
        %v895 = vunpack.c.h.b16 %v577
        %v896 = vunpack.c.l.b16 %v578
        %v897 = vunpack.c.h.b16 %v578
        %v898 = vunpack.c.l.b16 %v579
        %v899 = vunpack.c.h.b16 %v579
        %v900 = vunpack.c.l.b16 %v580
        %v901 = vunpack.c.l.b16 %v581
        %v902 = vunpack.c.h.b16 %v581
        %v903 = vunpack.c.l.b16 %v582
        %v904 = vunpack.c.h.b16 %v582
        %v905 = vunpack.c.l.b16 %v583
        %v906 = vunpack.c.h.b16 %v583
        %v907 = vunpack.c.l.b16 %v584
        %v908 = vunpack.c.l.b16 %v585
        %v909 = vunpack.c.h.b16 %v585
        %v910 = vunpack.c.l.b16 %v586
        %v911 = vunpack.c.h.b16 %v586
        %v912 = vunpack.c.l.b16 %v587
        %v913 = vunpack.c.h.b16 %v587
        %v914 = vunpack.c.l.b16 %v588
        %v915 = vunpack.c.l.b16 %v589
        %v916 = vunpack.c.h.b16 %v589
        %v917 = vunpack.c.l.b16 %v590
        %v918 = vunpack.c.h.b16 %v590
        %v919 = vunpack.c.l.b16 %v591
        %v920 = vunpack.c.h.b16 %v591
        %v921 = vunpack.c.l.b16 %v592
        %v922 = vunpack.c.l.b16 %v593
        %v923 = vunpack.c.h.b16 %v593
        %v924 = vunpack.c.l.b16 %v594
        %v925 = vunpack.c.h.b16 %v594
        %v926 = vunpack.c.l.b16 %v595
        %v927 = vunpack.c.h.b16 %v595
        %v928 = vunpack.c.l.b16 %v596
        %v929 = vpack.c.b16 %v796, %v789
        %v930 = vpack.c.b16 %v797, %v790
        %v931 = vpack.c.b16 %v798, %v791
        %v932 = vpack.c.b16 %v799, %v792
        %v933 = vpack.c.b16 %v800, %v793
        %v934 = vpack.c.b16 %v801, %v794
        %v935 = vpack.c.b16 %v802, %v795
        %v936 = vpack.c.b16 %v810, %v803
        %v937 = vpack.c.b16 %v811, %v804
        %v938 = vpack.c.b16 %v812, %v805
        %v939 = vpack.c.b16 %v813, %v806
        %v940 = vpack.c.b16 %v814, %v807
        %v941 = vpack.c.b16 %v815, %v808
        %v942 = vpack.c.b16 %v816, %v809
        %v943 = vpack.c.b16 %v824, %v817
        %v944 = vpack.c.b16 %v825, %v818
        %v945 = vpack.c.b16 %v826, %v819
        %v946 = vpack.c.b16 %v827, %v820
        %v947 = vpack.c.b16 %v828, %v821
        %v948 = vpack.c.b16 %v829, %v822
        %v949 = vpack.c.b16 %v830, %v823
        %v950 = vpack.c.b16 %v838, %v831
        %v951 = vpack.c.b16 %v839, %v832
        %v952 = vpack.c.b16 %v840, %v833
        %v953 = vpack.c.b16 %v841, %v834
        %v954 = vpack.c.b16 %v842, %v835
        %v955 = vpack.c.b16 %v843, %v836
        %v956 = vpack.c.b16 %v844, %v837
        %v957 = vpack.c.b16 %v852, %v845
        %v958 = vpack.c.b16 %v853, %v846
        %v959 = vpack.c.b16 %v854, %v847
        %v960 = vpack.c.b16 %v855, %v848
        %v961 = vpack.c.b16 %v856, %v849
        %v962 = vpack.c.b16 %v857, %v850
        %v963 = vpack.c.b16 %v858, %v851
        %v964 = vpack.c.b16 %v866, %v859
        %v965 = vpack.c.b16 %v867, %v860
        %v966 = vpack.c.b16 %v868, %v861
        %v967 = vpack.c.b16 %v869, %v862
        %v968 = vpack.c.b16 %v870, %v863
        %v969 = vpack.c.b16 %v871, %v864
        %v970 = vpack.c.b16 %v872, %v865
        %v971 = vpack.c.b16 %v880, %v873
        %v972 = vpack.c.b16 %v881, %v874
        %v973 = vpack.c.b16 %v882, %v875
        %v974 = vpack.c.b16 %v883, %v876
        %v975 = vpack.c.b16 %v884, %v877
        %v976 = vpack.c.b16 %v885, %v878
        %v977 = vpack.c.b16 %v886, %v879
        %v978 = vpack.c.b16 %v894, %v887
        %v979 = vpack.c.b16 %v895, %v888
        %v980 = vpack.c.b16 %v896, %v889
        %v981 = vpack.c.b16 %v897, %v890
        %v982 = vpack.c.b16 %v898, %v891
        %v983 = vpack.c.b16 %v899, %v892
        %v984 = vpack.c.b16 %v900, %v893
        %v985 = vpack.c.b16 %v908, %v901
        %v986 = vpack.c.b16 %v909, %v902
        %v987 = vpack.c.b16 %v910, %v903
        %v988 = vpack.c.b16 %v911, %v904
        %v989 = vpack.c.b16 %v912, %v905
        %v990 = vpack.c.b16 %v913, %v906
        %v991 = vpack.c.b16 %v914, %v907
        %v992 = vpack.c.b16 %v922, %v915
        %v993 = vpack.c.b16 %v923, %v916
        %v994 = vpack.c.b16 %v924, %v917
        %v995 = vpack.c.b16 %v925, %v918
        %v996 = vpack.c.b16 %v926, %v919
        %v997 = vpack.c.b16 %v927, %v920
        %v998 = vpack.c.b16 %v928, %v921
        %v1181 = vunpack.c.l.b16 %v597
        %v1182 = vunpack.c.h.b16 %v597
        %v1183 = vunpack.c.l.b16 %v598
        %v1184 = vunpack.c.h.b16 %v598
        %v1185 = vunpack.c.l.b16 %v599
        %v1186 = vunpack.c.h.b16 %v599
        %v1187 = vunpack.c.l.b16 %v600
        %v1188 = vunpack.c.h.b16 %v600
        %v1189 = vunpack.c.l.b16 %v601
        %v1190 = vunpack.c.h.b16 %v601
        %v1191 = vunpack.c.l.b16 %v602
        %v1192 = vunpack.c.h.b16 %v602
        %v1193 = vunpack.c.l.b16 %v603
        %v1194 = vunpack.c.h.b16 %v603
        %v1195 = vunpack.c.l.b16 %v604
        %v1196 = vunpack.c.h.b16 %v604
        %v1197 = vunpack.c.l.b16 %v605
        %v1198 = vunpack.c.h.b16 %v605
        %v1199 = vunpack.c.l.b16 %v606
        %v1200 = vunpack.c.h.b16 %v606
        %v1201 = vunpack.c.l.b16 %v607
        %v1202 = vunpack.c.h.b16 %v607
        %v1203 = vunpack.c.l.b16 %v608
        %v1204 = vunpack.c.h.b16 %v608
        %v1205 = vunpack.c.l.b16 %v609
        %v1206 = vunpack.c.h.b16 %v609
        %v1207 = vunpack.c.l.b16 %v610
        %v1208 = vunpack.c.h.b16 %v610
        %v1209 = vunpack.c.l.b16 %v611
        %v1210 = vunpack.c.h.b16 %v611
        %v1211 = vunpack.c.l.b16 %v612
        %v1212 = vunpack.c.h.b16 %v612
        %v1213 = vunpack.c.l.b16 %v613
        %v1214 = vunpack.c.h.b16 %v613
        %v1215 = vunpack.c.l.b16 %v614
        %v1216 = vunpack.c.h.b16 %v614
        %v1217 = vunpack.c.l.b16 %v615
        %v1218 = vunpack.c.h.b16 %v615
        %v1219 = vunpack.c.l.b16 %v616
        %v1220 = vunpack.c.h.b16 %v616
        %v1221 = vunpack.c.l.b16 %v617
        %v1222 = vunpack.c.h.b16 %v617
        %v1223 = vunpack.c.l.b16 %v618
        %v1224 = vunpack.c.h.b16 %v618
        %v1225 = vunpack.c.l.b16 %v619
        %v1226 = vunpack.c.h.b16 %v619
        %v1227 = vunpack.c.l.b16 %v620
        %v1228 = vunpack.c.h.b16 %v620
        %v1229 = vunpack.c.l.b16 %v621
        %v1230 = vunpack.c.h.b16 %v621
        %v1231 = vunpack.c.l.b16 %v622
        %v1232 = vunpack.c.h.b16 %v622
        %v1233 = vunpack.c.l.b16 %v623
        %v1234 = vunpack.c.h.b16 %v623
        %v1235 = vunpack.c.l.b16 %v624
        %v1236 = vunpack.c.h.b16 %v624
        %v1237 = vunpack.c.l.b16 %v625
        %v1238 = vunpack.c.h.b16 %v625
        %v1239 = vunpack.c.l.b16 %v626
        %v1240 = vunpack.c.h.b16 %v626
        %v1241 = vunpack.c.l.b16 %v627
        %v1242 = vunpack.c.h.b16 %v627
        %v1243 = vunpack.c.l.b16 %v628
        %v1244 = vunpack.c.h.b16 %v628
        %v1245 = vunpack.c.l.b16 %v629
        %v1246 = vunpack.c.h.b16 %v629
        %v1247 = vunpack.c.l.b16 %v630
        %v1248 = vunpack.c.h.b16 %v630
        %v1249 = vunpack.c.l.b16 %v631
        %v1250 = vunpack.c.h.b16 %v631
        %v1251 = vunpack.c.l.b16 %v632
        %v1252 = vunpack.c.h.b16 %v632
        %v1253 = vunpack.c.l.b16 %v633
        %v1254 = vunpack.c.h.b16 %v633
        %v1255 = vunpack.c.l.b16 %v634
        %v1256 = vunpack.c.h.b16 %v634
        %v1257 = vunpack.c.l.b16 %v635
        %v1258 = vunpack.c.h.b16 %v635
        %v1259 = vunpack.c.l.b16 %v636
        %v1260 = vunpack.c.h.b16 %v636
        %v1261 = vunpack.c.l.b16 %v637
        %v1262 = vunpack.c.h.b16 %v637
        %v1263 = vunpack.c.l.b16 %v638
        %v1264 = vunpack.c.h.b16 %v638
        %v1265 = vunpack.c.l.b16 %v639
        %v1266 = vunpack.c.h.b16 %v639
        %v1267 = vunpack.c.l.b16 %v640
        %v1268 = vunpack.c.h.b16 %v640
        %v1269 = vunpack.c.l.b16 %v641
        %v1270 = vunpack.c.h.b16 %v641
        %v1271 = vunpack.c.l.b16 %v642
        %v1272 = vunpack.c.h.b16 %v642
        %v1273 = vunpack.c.l.b16 %v643
        %v1274 = vunpack.c.h.b16 %v643
        %v1275 = vunpack.c.l.b16 %v644
        %v1276 = vunpack.c.h.b16 %v644
        %v1277 = vunpack.c.l.b16 %v645
        %v1278 = vunpack.c.h.b16 %v645
        %v1279 = vunpack.c.l.b16 %v646
        %v1280 = vunpack.c.h.b16 %v646
        %v1281 = vunpack.c.l.b16 %v647
        %v1282 = vunpack.c.h.b16 %v647
        %v1283 = vunpack.c.l.b16 %v648
        %v1284 = vunpack.c.h.b16 %v648
        %v1285 = vunpack.c.l.b16 %v649
        %v1286 = vunpack.c.h.b16 %v649
        %v1287 = vunpack.c.l.b16 %v650
        %v1288 = vunpack.c.h.b16 %v650
        %v1289 = vunpack.c.l.b16 %v651
        %v1290 = vunpack.c.h.b16 %v651
        %v1291 = vunpack.c.l.b16 %v652
        %v1292 = vunpack.c.h.b16 %v652
        %v1293 = vunpack.c.l.b16 %v653
        %v1294 = vunpack.c.h.b16 %v653
        %v1295 = vunpack.c.l.b16 %v654
        %v1296 = vunpack.c.h.b16 %v654
        %v1297 = vunpack.c.l.b16 %v655
        %v1298 = vunpack.c.h.b16 %v655
        %v1299 = vunpack.c.l.b16 %v656
        %v1300 = vunpack.c.h.b16 %v656
        %v1301 = vunpack.c.l.b16 %v657
        %v1302 = vunpack.c.h.b16 %v657
        %v1303 = vunpack.c.l.b16 %v658
        %v1304 = vunpack.c.h.b16 %v658
        %v1305 = vunpack.c.l.b16 %v659
        %v1306 = vunpack.c.h.b16 %v659
        %v1307 = vunpack.c.l.b16 %v660
        %v1308 = vunpack.c.h.b16 %v660
        %v1309 = vunpack.c.l.b16 %v661
        %v1310 = vunpack.c.h.b16 %v661
        %v1311 = vunpack.c.l.b16 %v662
        %v1312 = vunpack.c.h.b16 %v662
        %v1313 = vunpack.c.l.b16 %v663
        %v1314 = vunpack.c.h.b16 %v663
        %v1315 = vunpack.c.l.b16 %v664
        %v1316 = vunpack.c.h.b16 %v664
        %v1317 = vunpack.c.l.b16 %v665
        %v1318 = vunpack.c.h.b16 %v665
        %v1319 = vunpack.c.l.b16 %v666
        %v1320 = vunpack.c.h.b16 %v666
        %v1321 = vunpack.c.l.b16 %v667
        %v1322 = vunpack.c.h.b16 %v667
        %v1323 = vunpack.c.l.b16 %v668
        %v1324 = vunpack.c.h.b16 %v668
        %v1325 = vunpack.c.l.b16 %v669
        %v1326 = vunpack.c.h.b16 %v669
        %v1327 = vunpack.c.l.b16 %v670
        %v1328 = vunpack.c.h.b16 %v670
        %v1329 = vunpack.c.l.b16 %v671
        %v1330 = vunpack.c.h.b16 %v671
        %v1331 = vunpack.c.l.b16 %v672
        %v1332 = vunpack.c.h.b16 %v672
        %v1333 = vunpack.c.l.b16 %v673
        %v1334 = vunpack.c.h.b16 %v673
        %v1335 = vunpack.c.l.b16 %v674
        %v1336 = vunpack.c.h.b16 %v674
        %v1337 = vunpack.c.l.b16 %v675
        %v1338 = vunpack.c.h.b16 %v675
        %v1339 = vunpack.c.l.b16 %v676
        %v1340 = vunpack.c.h.b16 %v676
        %v1341 = vunpack.c.l.b16 %v677
        %v1342 = vunpack.c.h.b16 %v677
        %v1343 = vunpack.c.l.b16 %v678
        %v1344 = vunpack.c.h.b16 %v678
        %v1345 = vunpack.c.l.b16 %v679
        %v1346 = vunpack.c.h.b16 %v679
        %v1347 = vunpack.c.l.b16 %v680
        %v1348 = vunpack.c.h.b16 %v680
        %v1349 = vunpack.c.l.b16 %v681
        %v1350 = vunpack.c.h.b16 %v681
        %v1351 = vunpack.c.l.b16 %v682
        %v1352 = vunpack.c.h.b16 %v682
        %v1353 = vunpack.c.l.b16 %v683
        %v1354 = vunpack.c.h.b16 %v683
        %v1355 = vunpack.c.l.b16 %v684
        %v1356 = vunpack.c.h.b16 %v684
        %v1357 = vunpack.c.l.b16 %v685
        %v1358 = vunpack.c.h.b16 %v685
        %v1359 = vunpack.c.l.b16 %v686
        %v1360 = vunpack.c.h.b16 %v686
        %v1361 = vunpack.c.l.b16 %v687
        %v1362 = vunpack.c.h.b16 %v687
        %v1363 = vunpack.c.l.b16 %v688
        %v1364 = vunpack.c.h.b16 %v688
        %v1365 = vunpack.c.l.b16 %v689
        %v1366 = vunpack.c.h.b16 %v689
        %v1367 = vunpack.c.l.b16 %v690
        %v1368 = vunpack.c.h.b16 %v690
        %v1369 = vunpack.c.l.b16 %v691
        %v1370 = vunpack.c.h.b16 %v691
        %v1371 = vunpack.c.l.b16 %v692
        %v1372 = vunpack.c.h.b16 %v692
        %v1373 = vunpack.c.l.b16 %v693
        %v1374 = vunpack.c.h.b16 %v693
        %v1375 = vunpack.c.l.b16 %v694
        %v1376 = vunpack.c.h.b16 %v694
        %v1377 = vunpack.c.l.b16 %v695
        %v1378 = vunpack.c.h.b16 %v695
        %v1379 = vunpack.c.l.b16 %v696
        %v1380 = vunpack.c.h.b16 %v696
        %v1381 = vunpack.c.l.b16 %v697
        %v1382 = vunpack.c.h.b16 %v697
        %v1383 = vunpack.c.l.b16 %v698
        %v1384 = vunpack.c.h.b16 %v698
        %v1385 = vunpack.c.l.b16 %v699
        %v1386 = vunpack.c.h.b16 %v699
        %v1387 = vunpack.c.l.b16 %v700
        %v1388 = vunpack.c.h.b16 %v700
        %v1389 = vunpack.c.l.b16 %v701
        %v1390 = vunpack.c.h.b16 %v701
        %v1391 = vunpack.c.l.b16 %v702
        %v1392 = vunpack.c.h.b16 %v702
        %v1393 = vunpack.c.l.b16 %v703
        %v1394 = vunpack.c.h.b16 %v703
        %v1395 = vunpack.c.l.b16 %v704
        %v1396 = vunpack.c.h.b16 %v704
        %v1397 = vunpack.c.l.b16 %v705
        %v1398 = vunpack.c.h.b16 %v705
        %v1399 = vunpack.c.l.b16 %v706
        %v1400 = vunpack.c.h.b16 %v706
        %v1401 = vunpack.c.l.b16 %v707
        %v1402 = vunpack.c.h.b16 %v707
        %v1403 = vunpack.c.l.b16 %v708
        %v1404 = vunpack.c.h.b16 %v708
        %v1405 = vpack.c.b16 %v1183, %v1181
        %v1406 = vpack.c.b16 %v1184, %v1182
        %v1407 = vpack.c.b16 %v1187, %v1185
        %v1408 = vpack.c.b16 %v1188, %v1186
        %v1409 = vpack.c.b16 %v1191, %v1189
        %v1410 = vpack.c.b16 %v1192, %v1190
        %v1411 = vpack.c.b16 %v1195, %v1193
        %v1412 = vpack.c.b16 %v1196, %v1194
        %v1413 = vpack.c.b16 %v1199, %v1197
        %v1414 = vpack.c.b16 %v1200, %v1198
        %v1415 = vpack.c.b16 %v1203, %v1201
        %v1416 = vpack.c.b16 %v1204, %v1202
        %v1417 = vpack.c.b16 %v1207, %v1205
        %v1418 = vpack.c.b16 %v1208, %v1206
        %v1419 = vpack.c.b16 %v1211, %v1209
        %v1420 = vpack.c.b16 %v1212, %v1210
        %v1421 = vpack.c.b16 %v1215, %v1213
        %v1422 = vpack.c.b16 %v1216, %v1214
        %v1423 = vpack.c.b16 %v1219, %v1217
        %v1424 = vpack.c.b16 %v1220, %v1218
        %v1425 = vpack.c.b16 %v1223, %v1221
        %v1426 = vpack.c.b16 %v1224, %v1222
        %v1427 = vpack.c.b16 %v1227, %v1225
        %v1428 = vpack.c.b16 %v1228, %v1226
        %v1429 = vpack.c.b16 %v1231, %v1229
        %v1430 = vpack.c.b16 %v1232, %v1230
        %v1431 = vpack.c.b16 %v1235, %v1233
        %v1432 = vpack.c.b16 %v1236, %v1234
        %v1433 = vpack.c.b16 %v1239, %v1237
        %v1434 = vpack.c.b16 %v1240, %v1238
        %v1435 = vpack.c.b16 %v1243, %v1241
        %v1436 = vpack.c.b16 %v1244, %v1242
        %v1437 = vpack.c.b16 %v1247, %v1245
        %v1438 = vpack.c.b16 %v1248, %v1246
        %v1439 = vpack.c.b16 %v1251, %v1249
        %v1440 = vpack.c.b16 %v1252, %v1250
        %v1441 = vpack.c.b16 %v1255, %v1253
        %v1442 = vpack.c.b16 %v1256, %v1254
        %v1443 = vpack.c.b16 %v1259, %v1257
        %v1444 = vpack.c.b16 %v1260, %v1258
        %v1445 = vpack.c.b16 %v1263, %v1261
        %v1446 = vpack.c.b16 %v1264, %v1262
        %v1447 = vpack.c.b16 %v1267, %v1265
        %v1448 = vpack.c.b16 %v1268, %v1266
        %v1449 = vpack.c.b16 %v1271, %v1269
        %v1450 = vpack.c.b16 %v1272, %v1270
        %v1451 = vpack.c.b16 %v1275, %v1273
        %v1452 = vpack.c.b16 %v1276, %v1274
        %v1453 = vpack.c.b16 %v1279, %v1277
        %v1454 = vpack.c.b16 %v1280, %v1278
        %v1455 = vpack.c.b16 %v1283, %v1281
        %v1456 = vpack.c.b16 %v1284, %v1282
        %v1457 = vpack.c.b16 %v1287, %v1285
        %v1458 = vpack.c.b16 %v1288, %v1286
        %v1459 = vpack.c.b16 %v1291, %v1289
        %v1460 = vpack.c.b16 %v1292, %v1290
        %v1461 = vpack.c.b16 %v1295, %v1293
        %v1462 = vpack.c.b16 %v1296, %v1294
        %v1463 = vpack.c.b16 %v1299, %v1297
        %v1464 = vpack.c.b16 %v1300, %v1298
        %v1465 = vpack.c.b16 %v1303, %v1301
        %v1466 = vpack.c.b16 %v1304, %v1302
        %v1467 = vpack.c.b16 %v1307, %v1305
        %v1468 = vpack.c.b16 %v1308, %v1306
        %v1469 = vpack.c.b16 %v1311, %v1309
        %v1470 = vpack.c.b16 %v1312, %v1310
        %v1471 = vpack.c.b16 %v1315, %v1313
        %v1472 = vpack.c.b16 %v1316, %v1314
        %v1473 = vpack.c.b16 %v1319, %v1317
        %v1474 = vpack.c.b16 %v1320, %v1318
        %v1475 = vpack.c.b16 %v1323, %v1321
        %v1476 = vpack.c.b16 %v1324, %v1322
        %v1477 = vpack.c.b16 %v1327, %v1325
        %v1478 = vpack.c.b16 %v1328, %v1326
        %v1479 = vpack.c.b16 %v1331, %v1329
        %v1480 = vpack.c.b16 %v1332, %v1330
        %v1481 = vpack.c.b16 %v1335, %v1333
        %v1482 = vpack.c.b16 %v1336, %v1334
        %v1483 = vpack.c.b16 %v1339, %v1337
        %v1484 = vpack.c.b16 %v1340, %v1338
        %v1485 = vpack.c.b16 %v1343, %v1341
        %v1486 = vpack.c.b16 %v1344, %v1342
        %v1487 = vpack.c.b16 %v1347, %v1345
        %v1488 = vpack.c.b16 %v1348, %v1346
        %v1489 = vpack.c.b16 %v1351, %v1349
        %v1490 = vpack.c.b16 %v1352, %v1350
        %v1491 = vpack.c.b16 %v1355, %v1353
        %v1492 = vpack.c.b16 %v1356, %v1354
        %v1493 = vpack.c.b16 %v1359, %v1357
        %v1494 = vpack.c.b16 %v1360, %v1358
        %v1495 = vpack.c.b16 %v1363, %v1361
        %v1496 = vpack.c.b16 %v1364, %v1362
        %v1497 = vpack.c.b16 %v1367, %v1365
        %v1498 = vpack.c.b16 %v1368, %v1366
        %v1499 = vpack.c.b16 %v1371, %v1369
        %v1500 = vpack.c.b16 %v1372, %v1370
        %v1501 = vpack.c.b16 %v1375, %v1373
        %v1502 = vpack.c.b16 %v1376, %v1374
        %v1503 = vpack.c.b16 %v1379, %v1377
        %v1504 = vpack.c.b16 %v1380, %v1378
        %v1505 = vpack.c.b16 %v1383, %v1381
        %v1506 = vpack.c.b16 %v1384, %v1382
        %v1507 = vpack.c.b16 %v1387, %v1385
        %v1508 = vpack.c.b16 %v1388, %v1386
        %v1509 = vpack.c.b16 %v1391, %v1389
        %v1510 = vpack.c.b16 %v1392, %v1390
        %v1511 = vpack.c.b16 %v1395, %v1393
        %v1512 = vpack.c.b16 %v1396, %v1394
        %v1513 = vpack.c.b16 %v1399, %v1397
        %v1514 = vpack.c.b16 %v1400, %v1398
        %v1515 = vpack.c.b16 %v1403, %v1401
        %v1516 = vpack.c.b16 %v1404, %v1402
        %1629 = vmatprep.subr.bf16.mxu0 %v1406
        %1630 = vmatpush1.bf16.msra.mxu0 %v1405
        %1631 = vmatprep.subr.bf16.mxu0 %v1408
        %1632 = vmatpush1.bf16.msra.mxu0 %v1407
        %1633 = vmatprep.subr.bf16.mxu0 %v1410
        %1634 = vmatpush1.bf16.msra.mxu0 %v1409
        %1635 = vmatprep.subr.bf16.mxu0 %v1412
        %1636 = vmatpush1.bf16.msra.mxu0 %v1411
        %1637 = vmatprep.subr.bf16.mxu0 %v1414
        %1638 = vmatpush1.bf16.msra.mxu0 %v1413
        %1639 = vmatprep.subr.bf16.mxu0 %v1416
        %1640 = vmatpush1.bf16.msra.mxu0 %v1415
        %1641 = vmatprep.subr.bf16.mxu0 %v1418
        %1642 = vmatpush1.bf16.msra.mxu0 %v1417
        %1643 = vmatprep.subr.bf16.mxu0 %v1420
        %1644 = vmatpush1.bf16.msra.mxu0 %v1419
        %1645 = vmatprep.subr.bf16.mxu0 %v1422
        %1646 = vmatpush1.bf16.msra.mxu0 %v1421
        %1647 = vmatprep.subr.bf16.mxu0 %v1424
        %1648 = vmatpush1.bf16.msra.mxu0 %v1423
        %1649 = vmatprep.subr.bf16.mxu0 %v1426
        %1650 = vmatpush1.bf16.msra.mxu0 %v1425
        %1651 = vmatprep.subr.bf16.mxu0 %v1428
        %1652 = vmatpush1.bf16.msra.mxu0 %v1427
        %1653 = vmatprep.subr.bf16.mxu0 %v1430
        %1654 = vmatpush1.bf16.msra.mxu0 %v1429
        %1655 = vmatprep.subr.bf16.mxu0 %v1432
        %1656 = vmatpush1.bf16.msra.mxu0 %v1431
        %1657 = vmatprep.subr.bf16.mxu0 %v1434
        %1658 = vmatpush1.bf16.msra.mxu0 %v1433
        %1659 = vmatprep.subr.bf16.mxu0 %v1436
        %1660 = vmatpush1.bf16.msra.mxu0 %v1435
        %1661 = vmatprep.mubr.bf16.mxu0 %v930
        %1662 = vmatmul.mubr.bf16.gmra.mrb[0].mxu0 %v929
        %v1663 = vpop.f32.mrb[0].mxu0
        %v1664 = vadd.f32 0.0, %v1663
        %v1665 = vpop.f32.mrb[0].mxu0
        %v1666 = vadd.f32 0.0, %v1665
        %v1667 = vpop.f32.mrb[0].mxu0
        %v1668 = vadd.f32 0.0, %v1667
        %v1669 = vpop.f32.mrb[0].mxu0
        %v1670 = vadd.f32 0.0, %v1669
        %1671 = vmatprep.mubr.bf16.mxu0 %v937
        %1672 = vmatmul.mubr.bf16.gmra.mrb[0].mxu0 %v936
        %v1673 = vpop.f32.mrb[0].mxu0
        %v1674 = vadd.f32 0.0, %v1673
        %v1675 = vpop.f32.mrb[0].mxu0
        %v1676 = vadd.f32 0.0, %v1675
        %v1677 = vpop.f32.mrb[0].mxu0
        %v1678 = vadd.f32 0.0, %v1677
        %v1679 = vpop.f32.mrb[0].mxu0
        %v1680 = vadd.f32 0.0, %v1679
        %1681 = vmatprep.mubr.bf16.mxu0 %v944
        %1682 = vmatmul.mubr.bf16.gmra.mrb[0].mxu0 %v943
        %v1683 = vpop.f32.mrb[0].mxu0
        %v1684 = vadd.f32 0.0, %v1683
        %v1685 = vpop.f32.mrb[0].mxu0
        %v1686 = vadd.f32 0.0, %v1685
        %v1687 = vpop.f32.mrb[0].mxu0
        %v1688 = vadd.f32 0.0, %v1687
        %v1689 = vpop.f32.mrb[0].mxu0
        %v1690 = vadd.f32 0.0, %v1689
        %1691 = vmatprep.mubr.bf16.mxu0 %v951
        %1692 = vmatmul.mubr.bf16.gmra.mrb[0].mxu0 %v950
        %v1693 = vpop.f32.mrb[0].mxu0
        %v1694 = vadd.f32 0.0, %v1693
        %v1695 = vpop.f32.mrb[0].mxu0
        %v1696 = vadd.f32 0.0, %v1695
        %v1697 = vpop.f32.mrb[0].mxu0
        %v1698 = vadd.f32 0.0, %v1697
        %v1699 = vpop.f32.mrb[0].mxu0
        %v1700 = vadd.f32 0.0, %v1699
        %1701 = vmatprep.mubr.bf16.mxu0 %v958
        %1702 = vmatmul.mubr.bf16.gmra.mrb[0].mxu0 %v957
        %v1703 = vpop.f32.mrb[0].mxu0
        %v1704 = vadd.f32 0.0, %v1703
        %v1705 = vpop.f32.mrb[0].mxu0
        %v1706 = vadd.f32 0.0, %v1705
        %v1707 = vpop.f32.mrb[0].mxu0
        %v1708 = vadd.f32 0.0, %v1707
        %v1709 = vpop.f32.mrb[0].mxu0
        %v1710 = vadd.f32 0.0, %v1709
        %1711 = vmatprep.mubr.bf16.mxu0 %v965
        %1712 = vmatmul.mubr.bf16.gmra.mrb[0].mxu0 %v964
        %v1713 = vpop.f32.mrb[0].mxu0
        %v1714 = vadd.f32 0.0, %v1713
        %v1715 = vpop.f32.mrb[0].mxu0
        %v1716 = vadd.f32 0.0, %v1715
        %v1717 = vpop.f32.mrb[0].mxu0
        %v1718 = vadd.f32 0.0, %v1717
        %v1719 = vpop.f32.mrb[0].mxu0
        %v1720 = vadd.f32 0.0, %v1719
        %1721 = vmatprep.mubr.bf16.mxu0 %v972
        %1722 = vmatmul.mubr.bf16.gmra.mrb[0].mxu0 %v971
        %v1723 = vpop.f32.mrb[0].mxu0
        %v1724 = vadd.f32 0.0, %v1723
        %v1725 = vpop.f32.mrb[0].mxu0
        %v1726 = vadd.f32 0.0, %v1725
        %v1727 = vpop.f32.mrb[0].mxu0
        %v1728 = vadd.f32 0.0, %v1727
        %v1729 = vpop.f32.mrb[0].mxu0
        %v1730 = vadd.f32 0.0, %v1729
        %1731 = vmatprep.mubr.bf16.mxu0 %v979
        %1732 = vmatmul.mubr.bf16.gmra.mrb[0].mxu0 %v978
        %v1733 = vpop.f32.mrb[0].mxu0
        %v1734 = vadd.f32 0.0, %v1733
        %v1735 = vpop.f32.mrb[0].mxu0
        %v1736 = vadd.f32 0.0, %v1735
        %v1737 = vpop.f32.mrb[0].mxu0
        %v1738 = vadd.f32 0.0, %v1737
        %v1739 = vpop.f32.mrb[0].mxu0
        %v1740 = vadd.f32 0.0, %v1739
        %1741 = vmatprep.mubr.bf16.mxu0 %v986
        %1742 = vmatmul.mubr.bf16.gmra.mrb[0].mxu0 %v985
        %v1743 = vpop.f32.mrb[0].mxu0
        %v1744 = vadd.f32 0.0, %v1743
        %v1745 = vpop.f32.mrb[0].mxu0
        %v1746 = vadd.f32 0.0, %v1745
        %v1747 = vpop.f32.mrb[0].mxu0
        %v1748 = vadd.f32 0.0, %v1747
        %v1749 = vpop.f32.mrb[0].mxu0
        %v1750 = vadd.f32 0.0, %v1749
        %1751 = vmatprep.mubr.bf16.mxu0 %v993
        %1752 = vmatmul.mubr.bf16.gmra.mrb[0].mxu0 %v992
        %v1753 = vpop.f32.mrb[0].mxu0
        %v1754 = vadd.f32 0.0, %v1753
        %v1755 = vpop.f32.mrb[0].mxu0
        %v1756 = vadd.f32 0.0, %v1755
        %v1757 = vpop.f32.mrb[0].mxu0
        %v1758 = vadd.f32 0.0, %v1757
        %v1759 = vpop.f32.mrb[0].mxu0
        %v1760 = vadd.f32 0.0, %v1759
        %1761 = vdwg.mxu0
        %1762 = vmatprep.subr.bf16.mxu0 %v1438
        %1763 = vmatpush1.bf16.msra.mxu0 %v1437
        %1764 = vmatprep.subr.bf16.mxu0 %v1440
        %1765 = vmatpush1.bf16.msra.mxu0 %v1439
        %1766 = vmatprep.subr.bf16.mxu0 %v1442
        %1767 = vmatpush1.bf16.msra.mxu0 %v1441
        %1768 = vmatprep.subr.bf16.mxu0 %v1444
        %1769 = vmatpush1.bf16.msra.mxu0 %v1443
        %1770 = vmatprep.subr.bf16.mxu0 %v1446
        %1771 = vmatpush1.bf16.msra.mxu0 %v1445
        %1772 = vmatprep.subr.bf16.mxu0 %v1448
        %1773 = vmatpush1.bf16.msra.mxu0 %v1447
        %1774 = vmatprep.subr.bf16.mxu0 %v1450
        %1775 = vmatpush1.bf16.msra.mxu0 %v1449
        %1776 = vmatprep.subr.bf16.mxu0 %v1452
        %1777 = vmatpush1.bf16.msra.mxu0 %v1451
        %1778 = vmatprep.subr.bf16.mxu0 %v1454
        %1779 = vmatpush1.bf16.msra.mxu0 %v1453
        %1780 = vmatprep.subr.bf16.mxu0 %v1456
        %1781 = vmatpush1.bf16.msra.mxu0 %v1455
        %1782 = vmatprep.subr.bf16.mxu0 %v1458
        %1783 = vmatpush1.bf16.msra.mxu0 %v1457
        %1784 = vmatprep.subr.bf16.mxu0 %v1460
        %1785 = vmatpush1.bf16.msra.mxu0 %v1459
        %1786 = vmatprep.subr.bf16.mxu0 %v1462
        %1787 = vmatpush1.bf16.msra.mxu0 %v1461
        %1788 = vmatprep.subr.bf16.mxu0 %v1464
        %1789 = vmatpush1.bf16.msra.mxu0 %v1463
        %1790 = vmatprep.subr.bf16.mxu0 %v1466
        %1791 = vmatpush1.bf16.msra.mxu0 %v1465
        %1792 = vmatprep.subr.bf16.mxu0 %v1468
        %1793 = vmatpush1.bf16.msra.mxu0 %v1467
        %1794 = vmatprep.mubr.bf16.mxu0 %v932
        %1795 = vmatmul.mubr.bf16.gmra.mrb[0].mxu0 %v931
        %v1796 = vpop.f32.mrb[0].mxu0
        %v1797 = vadd.f32 %v1664, %v1796
        %v1798 = vpop.f32.mrb[0].mxu0
        %v1799 = vadd.f32 %v1666, %v1798
        %v1800 = vpop.f32.mrb[0].mxu0
        %v1801 = vadd.f32 %v1668, %v1800
        %v1802 = vpop.f32.mrb[0].mxu0
        %v1803 = vadd.f32 %v1670, %v1802
        %1804 = vmatprep.mubr.bf16.mxu0 %v939
        %1805 = vmatmul.mubr.bf16.gmra.mrb[0].mxu0 %v938
        %v1806 = vpop.f32.mrb[0].mxu0
        %v1807 = vadd.f32 %v1674, %v1806
        %v1808 = vpop.f32.mrb[0].mxu0
        %v1809 = vadd.f32 %v1676, %v1808
        %v1810 = vpop.f32.mrb[0].mxu0
        %v1811 = vadd.f32 %v1678, %v1810
        %v1812 = vpop.f32.mrb[0].mxu0
        %v1813 = vadd.f32 %v1680, %v1812
        %1814 = vmatprep.mubr.bf16.mxu0 %v946
        %1815 = vmatmul.mubr.bf16.gmra.mrb[0].mxu0 %v945
        %v1816 = vpop.f32.mrb[0].mxu0
        %v1817 = vadd.f32 %v1684, %v1816
        %v1818 = vpop.f32.mrb[0].mxu0
        %v1819 = vadd.f32 %v1686, %v1818
        %v1820 = vpop.f32.mrb[0].mxu0
        %v1821 = vadd.f32 %v1688, %v1820
        %v1822 = vpop.f32.mrb[0].mxu0
        %v1823 = vadd.f32 %v1690, %v1822
        %1824 = vmatprep.mubr.bf16.mxu0 %v953
        %1825 = vmatmul.mubr.bf16.gmra.mrb[0].mxu0 %v952
        %v1826 = vpop.f32.mrb[0].mxu0
        %v1827 = vadd.f32 %v1694, %v1826
        %v1828 = vpop.f32.mrb[0].mxu0
        %v1829 = vadd.f32 %v1696, %v1828
        %v1830 = vpop.f32.mrb[0].mxu0
        %v1831 = vadd.f32 %v1698, %v1830
        %v1832 = vpop.f32.mrb[0].mxu0
        %v1833 = vadd.f32 %v1700, %v1832
        %1834 = vmatprep.mubr.bf16.mxu0 %v960
        %1835 = vmatmul.mubr.bf16.gmra.mrb[0].mxu0 %v959
        %v1836 = vpop.f32.mrb[0].mxu0
        %v1837 = vadd.f32 %v1704, %v1836
        %v1838 = vpop.f32.mrb[0].mxu0
        %v1839 = vadd.f32 %v1706, %v1838
        %v1840 = vpop.f32.mrb[0].mxu0
        %v1841 = vadd.f32 %v1708, %v1840
        %v1842 = vpop.f32.mrb[0].mxu0
        %v1843 = vadd.f32 %v1710, %v1842
        %1844 = vmatprep.mubr.bf16.mxu0 %v967
        %1845 = vmatmul.mubr.bf16.gmra.mrb[0].mxu0 %v966
        %v1846 = vpop.f32.mrb[0].mxu0
        %v1847 = vadd.f32 %v1714, %v1846
        %v1848 = vpop.f32.mrb[0].mxu0
        %v1849 = vadd.f32 %v1716, %v1848
        %v1850 = vpop.f32.mrb[0].mxu0
        %v1851 = vadd.f32 %v1718, %v1850
        %v1852 = vpop.f32.mrb[0].mxu0
        %v1853 = vadd.f32 %v1720, %v1852
        %1854 = vmatprep.mubr.bf16.mxu0 %v974
        %1855 = vmatmul.mubr.bf16.gmra.mrb[0].mxu0 %v973
        %v1856 = vpop.f32.mrb[0].mxu0
        %v1857 = vadd.f32 %v1724, %v1856
        %v1858 = vpop.f32.mrb[0].mxu0
        %v1859 = vadd.f32 %v1726, %v1858
        %v1860 = vpop.f32.mrb[0].mxu0
        %v1861 = vadd.f32 %v1728, %v1860
        %v1862 = vpop.f32.mrb[0].mxu0
        %v1863 = vadd.f32 %v1730, %v1862
        %1864 = vmatprep.mubr.bf16.mxu0 %v981
        %1865 = vmatmul.mubr.bf16.gmra.mrb[0].mxu0 %v980
        %v1866 = vpop.f32.mrb[0].mxu0
        %v1867 = vadd.f32 %v1734, %v1866
        %v1868 = vpop.f32.mrb[0].mxu0
        %v1869 = vadd.f32 %v1736, %v1868
        %v1870 = vpop.f32.mrb[0].mxu0
        %v1871 = vadd.f32 %v1738, %v1870
        %v1872 = vpop.f32.mrb[0].mxu0
        %v1873 = vadd.f32 %v1740, %v1872
        %1874 = vmatprep.mubr.bf16.mxu0 %v988
        %1875 = vmatmul.mubr.bf16.gmra.mrb[0].mxu0 %v987
        %v1876 = vpop.f32.mrb[0].mxu0
        %v1877 = vadd.f32 %v1744, %v1876
        %v1878 = vpop.f32.mrb[0].mxu0
        %v1879 = vadd.f32 %v1746, %v1878
        %v1880 = vpop.f32.mrb[0].mxu0
        %v1881 = vadd.f32 %v1748, %v1880
        %v1882 = vpop.f32.mrb[0].mxu0
        %v1883 = vadd.f32 %v1750, %v1882
        %1884 = vmatprep.mubr.bf16.mxu0 %v995
        %1885 = vmatmul.mubr.bf16.gmra.mrb[0].mxu0 %v994
        %v1886 = vpop.f32.mrb[0].mxu0
        %v1887 = vadd.f32 %v1754, %v1886
        %v1888 = vpop.f32.mrb[0].mxu0
        %v1889 = vadd.f32 %v1756, %v1888
        %v1890 = vpop.f32.mrb[0].mxu0
        %v1891 = vadd.f32 %v1758, %v1890
        %v1892 = vpop.f32.mrb[0].mxu0
        %v1893 = vadd.f32 %v1760, %v1892
        %1894 = vdwg.mxu0
        %1895 = vmatprep.subr.bf16.mxu0 %v1470
        %1896 = vmatpush1.bf16.msra.mxu0 %v1469
        %1897 = vmatprep.subr.bf16.mxu0 %v1472
        %1898 = vmatpush1.bf16.msra.mxu0 %v1471
        %1899 = vmatprep.subr.bf16.mxu0 %v1474
        %1900 = vmatpush1.bf16.msra.mxu0 %v1473
        %1901 = vmatprep.subr.bf16.mxu0 %v1476
        %1902 = vmatpush1.bf16.msra.mxu0 %v1475
        %1903 = vmatprep.subr.bf16.mxu0 %v1478
        %1904 = vmatpush1.bf16.msra.mxu0 %v1477
        %1905 = vmatprep.subr.bf16.mxu0 %v1480
        %1906 = vmatpush1.bf16.msra.mxu0 %v1479
        %1907 = vmatprep.subr.bf16.mxu0 %v1482
        %1908 = vmatpush1.bf16.msra.mxu0 %v1481
        %1909 = vmatprep.subr.bf16.mxu0 %v1484
        %1910 = vmatpush1.bf16.msra.mxu0 %v1483
        %1911 = vmatprep.subr.bf16.mxu0 %v1486
        %1912 = vmatpush1.bf16.msra.mxu0 %v1485
        %1913 = vmatprep.subr.bf16.mxu0 %v1488
        %1914 = vmatpush1.bf16.msra.mxu0 %v1487
        %1915 = vmatprep.subr.bf16.mxu0 %v1490
        %1916 = vmatpush1.bf16.msra.mxu0 %v1489
        %1917 = vmatprep.subr.bf16.mxu0 %v1492
        %1918 = vmatpush1.bf16.msra.mxu0 %v1491
        %1919 = vmatprep.subr.bf16.mxu0 %v1494
        %1920 = vmatpush1.bf16.msra.mxu0 %v1493
        %1921 = vmatprep.subr.bf16.mxu0 %v1496
        %1922 = vmatpush1.bf16.msra.mxu0 %v1495
        %1923 = vmatprep.subr.bf16.mxu0 %v1498
        %1924 = vmatpush1.bf16.msra.mxu0 %v1497
        %1925 = vmatprep.subr.bf16.mxu0 %v1500
        %1926 = vmatpush1.bf16.msra.mxu0 %v1499
        %1927 = vmatprep.mubr.bf16.mxu0 %v934
        %1928 = vmatmul.mubr.bf16.gmra.mrb[0].mxu0 %v933
        %v1929 = vpop.f32.mrb[0].mxu0
        %v1930 = vadd.f32 %v1797, %v1929
        %v1931 = vpop.f32.mrb[0].mxu0
        %v1932 = vadd.f32 %v1799, %v1931
        %v1933 = vpop.f32.mrb[0].mxu0
        %v1934 = vadd.f32 %v1801, %v1933
        %v1935 = vpop.f32.mrb[0].mxu0
        %v1936 = vadd.f32 %v1803, %v1935
        %1937 = vmatprep.mubr.bf16.mxu0 %v941
        %1938 = vmatmul.mubr.bf16.gmra.mrb[0].mxu0 %v940
        %v1939 = vpop.f32.mrb[0].mxu0
        %v1940 = vadd.f32 %v1807, %v1939
        %v1941 = vpop.f32.mrb[0].mxu0
        %v1942 = vadd.f32 %v1809, %v1941
        %v1943 = vpop.f32.mrb[0].mxu0
        %v1944 = vadd.f32 %v1811, %v1943
        %v1945 = vpop.f32.mrb[0].mxu0
        %v1946 = vadd.f32 %v1813, %v1945
        %1947 = vmatprep.mubr.bf16.mxu0 %v948
        %1948 = vmatmul.mubr.bf16.gmra.mrb[0].mxu0 %v947
        %v1949 = vpop.f32.mrb[0].mxu0
        %v1950 = vadd.f32 %v1817, %v1949
        %v1951 = vpop.f32.mrb[0].mxu0
        %v1952 = vadd.f32 %v1819, %v1951
        %v1953 = vpop.f32.mrb[0].mxu0
        %v1954 = vadd.f32 %v1821, %v1953
        %v1955 = vpop.f32.mrb[0].mxu0
        %v1956 = vadd.f32 %v1823, %v1955
        %1957 = vmatprep.mubr.bf16.mxu0 %v955
        %1958 = vmatmul.mubr.bf16.gmra.mrb[0].mxu0 %v954
        %v1959 = vpop.f32.mrb[0].mxu0
        %v1960 = vadd.f32 %v1827, %v1959
        %v1961 = vpop.f32.mrb[0].mxu0
        %v1962 = vadd.f32 %v1829, %v1961
        %v1963 = vpop.f32.mrb[0].mxu0
        %v1964 = vadd.f32 %v1831, %v1963
        %v1965 = vpop.f32.mrb[0].mxu0
        %v1966 = vadd.f32 %v1833, %v1965
        %1967 = vmatprep.mubr.bf16.mxu0 %v962
        %1968 = vmatmul.mubr.bf16.gmra.mrb[0].mxu0 %v961
        %v1969 = vpop.f32.mrb[0].mxu0
        %v1970 = vadd.f32 %v1837, %v1969
        %v1971 = vpop.f32.mrb[0].mxu0
        %v1972 = vadd.f32 %v1839, %v1971
        %v1973 = vpop.f32.mrb[0].mxu0
        %v1974 = vadd.f32 %v1841, %v1973
        %v1975 = vpop.f32.mrb[0].mxu0
        %v1976 = vadd.f32 %v1843, %v1975
        %1977 = vmatprep.mubr.bf16.mxu0 %v969
        %1978 = vmatmul.mubr.bf16.gmra.mrb[0].mxu0 %v968
        %v1979 = vpop.f32.mrb[0].mxu0
        %v1980 = vadd.f32 %v1847, %v1979
        %v1981 = vpop.f32.mrb[0].mxu0
        %v1982 = vadd.f32 %v1849, %v1981
        %v1983 = vpop.f32.mrb[0].mxu0
        %v1984 = vadd.f32 %v1851, %v1983
        %v1985 = vpop.f32.mrb[0].mxu0
        %v1986 = vadd.f32 %v1853, %v1985
        %1987 = vmatprep.mubr.bf16.mxu0 %v976
        %1988 = vmatmul.mubr.bf16.gmra.mrb[0].mxu0 %v975
        %v1989 = vpop.f32.mrb[0].mxu0
        %v1990 = vadd.f32 %v1857, %v1989
        %v1991 = vpop.f32.mrb[0].mxu0
        %v1992 = vadd.f32 %v1859, %v1991
        %v1993 = vpop.f32.mrb[0].mxu0
        %v1994 = vadd.f32 %v1861, %v1993
        %v1995 = vpop.f32.mrb[0].mxu0
        %v1996 = vadd.f32 %v1863, %v1995
        %1997 = vmatprep.mubr.bf16.mxu0 %v983
        %1998 = vmatmul.mubr.bf16.gmra.mrb[0].mxu0 %v982
        %v1999 = vpop.f32.mrb[0].mxu0
        %v2000 = vadd.f32 %v1867, %v1999
        %v2001 = vpop.f32.mrb[0].mxu0
        %v2002 = vadd.f32 %v1869, %v2001
        %v2003 = vpop.f32.mrb[0].mxu0
        %v2004 = vadd.f32 %v1871, %v2003
        %v2005 = vpop.f32.mrb[0].mxu0
        %v2006 = vadd.f32 %v1873, %v2005
        %2007 = vmatprep.mubr.bf16.mxu0 %v990
        %2008 = vmatmul.mubr.bf16.gmra.mrb[0].mxu0 %v989
        %v2009 = vpop.f32.mrb[0].mxu0
        %v2010 = vadd.f32 %v1877, %v2009
        %v2011 = vpop.f32.mrb[0].mxu0
        %v2012 = vadd.f32 %v1879, %v2011
        %v2013 = vpop.f32.mrb[0].mxu0
        %v2014 = vadd.f32 %v1881, %v2013
        %v2015 = vpop.f32.mrb[0].mxu0
        %v2016 = vadd.f32 %v1883, %v2015
        %2017 = vmatprep.mubr.bf16.mxu0 %v997
        %2018 = vmatmul.mubr.bf16.gmra.mrb[0].mxu0 %v996
        %v2019 = vpop.f32.mrb[0].mxu0
        %v2020 = vadd.f32 %v1887, %v2019
        %v2021 = vpop.f32.mrb[0].mxu0
        %v2022 = vadd.f32 %v1889, %v2021
        %v2023 = vpop.f32.mrb[0].mxu0
        %v2024 = vadd.f32 %v1891, %v2023
        %v2025 = vpop.f32.mrb[0].mxu0
        %v2026 = vadd.f32 %v1893, %v2025
        %2027 = vdwg.mxu0
        %2028 = vmatprep.subr.bf16.mxu0 %v1502
        %2029 = vmatpush1.bf16.msra.mxu0 %v1501
        %2030 = vmatprep.subr.bf16.mxu0 %v1504
        %2031 = vmatpush1.bf16.msra.mxu0 %v1503
        %2032 = vmatprep.subr.bf16.mxu0 %v1506
        %2033 = vmatpush1.bf16.msra.mxu0 %v1505
        %2034 = vmatprep.subr.bf16.mxu0 %v1508
        %2035 = vmatpush1.bf16.msra.mxu0 %v1507
        %2036 = vmatprep.subr.bf16.mxu0 %v1510
        %2037 = vmatpush1.bf16.msra.mxu0 %v1509
        %2038 = vmatprep.subr.bf16.mxu0 %v1512
        %2039 = vmatpush1.bf16.msra.mxu0 %v1511
        %2040 = vmatprep.subr.bf16.mxu0 %v1514
        %2041 = vmatpush1.bf16.msra.mxu0 %v1513
        %2042 = vmatprep.subr.bf16.mxu0 %v1516
        %2043 = vmatpush1.bf16.msra.mxu0 %v1515
        %2044 = vmatprep.subr.bf16.mxu0 0
        %2045 = vmatpush1.bf16.msra.mxu0 0
        %2046 = vmatprep.subr.bf16.mxu0 0
        %2047 = vmatpush1.bf16.msra.mxu0 0
        %2048 = vmatprep.subr.bf16.mxu0 0
        %2049 = vmatpush1.bf16.msra.mxu0 0
        %2050 = vmatprep.subr.bf16.mxu0 0
        %2051 = vmatpush1.bf16.msra.mxu0 0
        %2052 = vmatprep.subr.bf16.mxu0 0
        %2053 = vmatpush1.bf16.msra.mxu0 0
        %2054 = vmatprep.subr.bf16.mxu0 0
        %2055 = vmatpush1.bf16.msra.mxu0 0
        %2056 = vmatprep.subr.bf16.mxu0 0
        %2057 = vmatpush1.bf16.msra.mxu0 0
        %2058 = vmatprep.subr.bf16.mxu0 0
        %2059 = vmatpush1.bf16.msra.mxu0 0
        %2060 = vmatprep.mubr.bf16.mxu0 0
        %2061 = vmatmul.mubr.bf16.gmra.mrb[0].mxu0 %v935
        %v2062 = vpop.f32.mrb[0].mxu0
        %v2063 = vadd.f32 %v1930, %v2062
        %v2064 = vpop.f32.mrb[0].mxu0
        %v2065 = vadd.f32 %v1932, %v2064
        %v2066 = vpop.f32.mrb[0].mxu0
        %v2067 = vadd.f32 %v1934, %v2066
        %v2068 = vpop.f32.mrb[0].mxu0
        %v2069 = vadd.f32 %v1936, %v2068
        %2070 = vmatprep.mubr.bf16.mxu0 0
        %2071 = vmatmul.mubr.bf16.gmra.mrb[0].mxu0 %v942
        %v2072 = vpop.f32.mrb[0].mxu0
        %v2073 = vadd.f32 %v1940, %v2072
        %v2074 = vpop.f32.mrb[0].mxu0
        %v2075 = vadd.f32 %v1942, %v2074
        %v2076 = vpop.f32.mrb[0].mxu0
        %v2077 = vadd.f32 %v1944, %v2076
        %v2078 = vpop.f32.mrb[0].mxu0
        %v2079 = vadd.f32 %v1946, %v2078
        %2080 = vmatprep.mubr.bf16.mxu0 0
        %2081 = vmatmul.mubr.bf16.gmra.mrb[0].mxu0 %v949
        %v2082 = vpop.f32.mrb[0].mxu0
        %v2083 = vadd.f32 %v1950, %v2082
        %v2084 = vpop.f32.mrb[0].mxu0
        %v2085 = vadd.f32 %v1952, %v2084
        %v2086 = vpop.f32.mrb[0].mxu0
        %v2087 = vadd.f32 %v1954, %v2086
        %v2088 = vpop.f32.mrb[0].mxu0
        %v2089 = vadd.f32 %v1956, %v2088
        %2090 = vmatprep.mubr.bf16.mxu0 0
        %2091 = vmatmul.mubr.bf16.gmra.mrb[0].mxu0 %v956
        %v2092 = vpop.f32.mrb[0].mxu0
        %v2093 = vadd.f32 %v1960, %v2092
        %v2094 = vpop.f32.mrb[0].mxu0
        %v2095 = vadd.f32 %v1962, %v2094
        %v2096 = vpop.f32.mrb[0].mxu0
        %v2097 = vadd.f32 %v1964, %v2096
        %v2098 = vpop.f32.mrb[0].mxu0
        %v2099 = vadd.f32 %v1966, %v2098
        %2100 = vmatprep.mubr.bf16.mxu0 0
        %2101 = vmatmul.mubr.bf16.gmra.mrb[0].mxu0 %v963
        %v2102 = vpop.f32.mrb[0].mxu0
        %v2103 = vadd.f32 %v1970, %v2102
        %v2104 = vpop.f32.mrb[0].mxu0
        %v2105 = vadd.f32 %v1972, %v2104
        %v2106 = vpop.f32.mrb[0].mxu0
        %v2107 = vadd.f32 %v1974, %v2106
        %v2108 = vpop.f32.mrb[0].mxu0
        %v2109 = vadd.f32 %v1976, %v2108
        %2110 = vmatprep.mubr.bf16.mxu0 0
        %2111 = vmatmul.mubr.bf16.gmra.mrb[0].mxu0 %v970
        %v2112 = vpop.f32.mrb[0].mxu0
        %v2113 = vadd.f32 %v1980, %v2112
        %v2114 = vpop.f32.mrb[0].mxu0
        %v2115 = vadd.f32 %v1982, %v2114
        %v2116 = vpop.f32.mrb[0].mxu0
        %v2117 = vadd.f32 %v1984, %v2116
        %v2118 = vpop.f32.mrb[0].mxu0
        %v2119 = vadd.f32 %v1986, %v2118
        %2120 = vmatprep.mubr.bf16.mxu0 0
        %2121 = vmatmul.mubr.bf16.gmra.mrb[0].mxu0 %v977
        %v2122 = vpop.f32.mrb[0].mxu0
        %v2123 = vadd.f32 %v1990, %v2122
        %v2124 = vpop.f32.mrb[0].mxu0
        %v2125 = vadd.f32 %v1992, %v2124
        %v2126 = vpop.f32.mrb[0].mxu0
        %v2127 = vadd.f32 %v1994, %v2126
        %v2128 = vpop.f32.mrb[0].mxu0
        %v2129 = vadd.f32 %v1996, %v2128
        %2130 = vmatprep.mubr.bf16.mxu0 0
        %2131 = vmatmul.mubr.bf16.gmra.mrb[0].mxu0 %v984
        %v2132 = vpop.f32.mrb[0].mxu0
        %v2133 = vadd.f32 %v2000, %v2132
        %v2134 = vpop.f32.mrb[0].mxu0
        %v2135 = vadd.f32 %v2002, %v2134
        %v2136 = vpop.f32.mrb[0].mxu0
        %v2137 = vadd.f32 %v2004, %v2136
        %v2138 = vpop.f32.mrb[0].mxu0
        %v2139 = vadd.f32 %v2006, %v2138
        %2140 = vmatprep.mubr.bf16.mxu0 0
        %2141 = vmatmul.mubr.bf16.gmra.mrb[0].mxu0 %v991
        %v2142 = vpop.f32.mrb[0].mxu0
        %v2143 = vadd.f32 %v2010, %v2142
        %v2144 = vpop.f32.mrb[0].mxu0
        %v2145 = vadd.f32 %v2012, %v2144
        %v2146 = vpop.f32.mrb[0].mxu0
        %v2147 = vadd.f32 %v2014, %v2146
        %v2148 = vpop.f32.mrb[0].mxu0
        %v2149 = vadd.f32 %v2016, %v2148
        %2150 = vmatprep.mubr.bf16.mxu0 0
        %2151 = vmatmul.mubr.bf16.gmra.mrb[0].mxu0 %v998
        %v2152 = vpop.f32.mrb[0].mxu0
        %v2153 = vadd.f32 %v2020, %v2152
        %v2154 = vpop.f32.mrb[0].mxu0
        %v2155 = vadd.f32 %v2022, %v2154
        %v2156 = vpop.f32.mrb[0].mxu0
        %v2157 = vadd.f32 %v2024, %v2156
        %v2158 = vpop.f32.mrb[0].mxu0
        %v2159 = vadd.f32 %v2026, %v2158
        %2160 = vdwg.mxu0
        %v2161 = vadd.f32 %v477, %v2063
        %v2162 = vadd.f32 %v478, %v2065
        %v2163 = vadd.f32 %v479, %v2067
        %v2164 = vadd.f32 %v480, %v2069
        %v2165 = vadd.f32 %v481, %v2073
        %v2166 = vadd.f32 %v482, %v2075
        %v2167 = vadd.f32 %v483, %v2077
        %v2168 = vadd.f32 %v484, %v2079
        %v2169 = vadd.f32 %v485, %v2083
        %v2170 = vadd.f32 %v486, %v2085
        %v2171 = vadd.f32 %v487, %v2087
        %v2172 = vadd.f32 %v488, %v2089
        %v2173 = vadd.f32 %v489, %v2093
        %v2174 = vadd.f32 %v490, %v2095
        %v2175 = vadd.f32 %v491, %v2097
        %v2176 = vadd.f32 %v492, %v2099
        %v2177 = vadd.f32 %v493, %v2103
        %v2178 = vadd.f32 %v494, %v2105
        %v2179 = vadd.f32 %v495, %v2107
        %v2180 = vadd.f32 %v496, %v2109
        %v2181 = vadd.f32 %v497, %v2113
        %v2182 = vadd.f32 %v498, %v2115
        %v2183 = vadd.f32 %v499, %v2117
        %v2184 = vadd.f32 %v500, %v2119
        %v2185 = vadd.f32 %v501, %v2123
        %v2186 = vadd.f32 %v502, %v2125
        %v2187 = vadd.f32 %v503, %v2127
        %v2188 = vadd.f32 %v504, %v2129
        %v2189 = vadd.f32 %v505, %v2133
        %v2190 = vadd.f32 %v506, %v2135
        %v2191 = vadd.f32 %v507, %v2137
        %v2192 = vadd.f32 %v508, %v2139
        %v2193 = vadd.f32 %v509, %v2143
        %v2194 = vadd.f32 %v510, %v2145
        %v2195 = vadd.f32 %v511, %v2147
        %v2196 = vadd.f32 %v512, %v2149
        %v2197 = vadd.f32 %v513, %v2153
        %v2198 = vadd.f32 %v514, %v2155
        %v2199 = vadd.f32 %v515, %v2157
        %v2200 = vadd.f32 %v516, %v2159
        %2201 = vst [vmem:[#allocation2] sm:$0xff] %v2161
        %2202 = vst [vmem:[#allocation2 + $0x8] sm:$0xff] %v2162
        %2203 = vst [vmem:[#allocation2 + $0x10] sm:$0xff] %v2163
        %2204 = vst [vmem:[#allocation2 + $0x18] sm:$0xff] %v2164
        %2205 = vst [vmem:[#allocation2 + $0x20] sm:$0xff] %v2165
        %2206 = vst [vmem:[#allocation2 + $0x28] sm:$0xff] %v2166
        %2207 = vst [vmem:[#allocation2 + $0x30] sm:$0xff] %v2167
        %2208 = vst [vmem:[#allocation2 + $0x38] sm:$0xff] %v2168
        %2209 = vst [vmem:[#allocation2 + $0x40] sm:$0xff] %v2169
        %2210 = vst [vmem:[#allocation2 + $0x48] sm:$0xff] %v2170
        %2211 = vst [vmem:[#allocation2 + $0x50] sm:$0xff] %v2171
        %2212 = vst [vmem:[#allocation2 + $0x58] sm:$0xff] %v2172
        %2213 = vst [vmem:[#allocation2 + $0x60] sm:$0xff] %v2173
        %2214 = vst [vmem:[#allocation2 + $0x68] sm:$0xff] %v2174
        %2215 = vst [vmem:[#allocation2 + $0x70] sm:$0xff] %v2175
        %2216 = vst [vmem:[#allocation2 + $0x78] sm:$0xff] %v2176
        %2217 = vst [vmem:[#allocation2 + $0x80] sm:$0xff] %v2177
        %2218 = vst [vmem:[#allocation2 + $0x88] sm:$0xff] %v2178
        %2219 = vst [vmem:[#allocation2 + $0x90] sm:$0xff] %v2179
        %2220 = vst [vmem:[#allocation2 + $0x98] sm:$0xff] %v2180
        %2221 = vst [vmem:[#allocation2 + $0xa0] sm:$0xff] %v2181
        %2222 = vst [vmem:[#allocation2 + $0xa8] sm:$0xff] %v2182
        %2223 = vst [vmem:[#allocation2 + $0xb0] sm:$0xff] %v2183
        %2224 = vst [vmem:[#allocation2 + $0xb8] sm:$0xff] %v2184
        %2225 = vst [vmem:[#allocation2 + $0xc0] sm:$0xff] %v2185
        %2226 = vst [vmem:[#allocation2 + $0xc8] sm:$0xff] %v2186
        %2227 = vst [vmem:[#allocation2 + $0xd0] sm:$0xff] %v2187
        %2228 = vst [vmem:[#allocation2 + $0xd8] sm:$0xff] %v2188
        %2229 = vst [vmem:[#allocation2 + $0xe0] sm:$0xff] %v2189
        %2230 = vst [vmem:[#allocation2 + $0xe8] sm:$0xff] %v2190
        %2231 = vst [vmem:[#allocation2 + $0xf0] sm:$0xff] %v2191
        %2232 = vst [vmem:[#allocation2 + $0xf8] sm:$0xff] %v2192
        %2233 = vst [vmem:[#allocation2 + $0x100] sm:$0xff] %v2193
        %2234 = vst [vmem:[#allocation2 + $0x108] sm:$0xff] %v2194
        %2235 = vst [vmem:[#allocation2 + $0x110] sm:$0xff] %v2195
        %2236 = vst [vmem:[#allocation2 + $0x118] sm:$0xff] %v2196
        %2237 = vst [vmem:[#allocation2 + $0x120] sm:$0xff] %v2197
        %2238 = vst [vmem:[#allocation2 + $0x128] sm:$0xff] %v2198
        %2239 = vst [vmem:[#allocation2 + $0x130] sm:$0xff] %v2199
        %2240 = vst [vmem:[#allocation2 + $0x138] sm:$0xff] %v2200
        %p2241 = scmp.eq.s32.totalorder %s20, 6
        // Predicated region
        $region67: #{frequency_discriminator.9} parent=57 // pred_check
          %p2242 = pneg %p2241
        $region68: #{frequency_discriminator.9} parent=57 // pred_check_branch
          %2244 = sbr.rel (%p2242) target = $region70
        $region69: #{frequency_discriminator.9} parent=57 // pred_region
          %v2245 = vld [vmem:[#allocation2] sm:$0xff]
          %v2246 = vld [vmem:[#allocation2 + $0x8] sm:$0xff]
          %v2247 = vld [vmem:[#allocation2 + $0x10] sm:$0xff]
          %v2248 = vld [vmem:[#allocation2 + $0x18] sm:$0xff]
          %v2249 = vld [vmem:[#allocation2 + $0x20] sm:$0xff]
          %v2250 = vld [vmem:[#allocation2 + $0x28] sm:$0xff]
          %v2251 = vld [vmem:[#allocation2 + $0x30] sm:$0xff]
          %v2252 = vld [vmem:[#allocation2 + $0x38] sm:$0xff]
          %v2253 = vld [vmem:[#allocation2 + $0x40] sm:$0xff]
          %v2254 = vld [vmem:[#allocation2 + $0x48] sm:$0xff]
          %v2255 = vld [vmem:[#allocation2 + $0x50] sm:$0xff]
          %v2256 = vld [vmem:[#allocation2 + $0x58] sm:$0xff]
          %v2257 = vld [vmem:[#allocation2 + $0x60] sm:$0xff]
          %v2258 = vld [vmem:[#allocation2 + $0x68] sm:$0xff]
          %v2259 = vld [vmem:[#allocation2 + $0x70] sm:$0xff]
          %v2260 = vld [vmem:[#allocation2 + $0x78] sm:$0xff]
          %v2261 = vld [vmem:[#allocation2 + $0x80] sm:$0xff]
          %v2262 = vld [vmem:[#allocation2 + $0x88] sm:$0xff]
          %v2263 = vld [vmem:[#allocation2 + $0x90] sm:$0xff]
          %v2264 = vld [vmem:[#allocation2 + $0x98] sm:$0xff]
          %v2265 = vld [vmem:[#allocation2 + $0xa0] sm:$0xff]
          %v2266 = vld [vmem:[#allocation2 + $0xa8] sm:$0xff]
          %v2267 = vld [vmem:[#allocation2 + $0xb0] sm:$0xff]
          %v2268 = vld [vmem:[#allocation2 + $0xb8] sm:$0xff]
          %v2269 = vld [vmem:[#allocation2 + $0xc0] sm:$0xff]
          %v2270 = vld [vmem:[#allocation2 + $0xc8] sm:$0xff]
          %v2271 = vld [vmem:[#allocation2 + $0xd0] sm:$0xff]
          %v2272 = vld [vmem:[#allocation2 + $0xd8] sm:$0xff]
          %v2273 = vld [vmem:[#allocation2 + $0xe0] sm:$0xff]
          %v2274 = vld [vmem:[#allocation2 + $0xe8] sm:$0xff]
          %v2275 = vld [vmem:[#allocation2 + $0xf0] sm:$0xff]
          %v2276 = vld [vmem:[#allocation2 + $0xf8] sm:$0xff]
          %v2277 = vld [vmem:[#allocation2 + $0x100] sm:$0xff]
          %v2278 = vld [vmem:[#allocation2 + $0x108] sm:$0xff]
          %v2279 = vld [vmem:[#allocation2 + $0x110] sm:$0xff]
          %v2280 = vld [vmem:[#allocation2 + $0x118] sm:$0xff]
          %v2281 = vld [vmem:[#allocation2 + $0x120] sm:$0xff]
          %v2282 = vld [vmem:[#allocation2 + $0x128] sm:$0xff]
          %v2283 = vld [vmem:[#allocation2 + $0x130] sm:$0xff]
          %v2284 = vld [vmem:[#allocation2 + $0x138] sm:$0xff]
          %v2285 = vadd.f32 %v2245, %v2246
          %2286 = vadd.xlane.f32.xlu0 %v2285
          %v2287 = vpop.xlane.xlu0 %2286
          %v2288 = vadd.f32 %v2247, %v2248
          %2289 = vadd.xlane.f32.xlu0 %v2288
          %v2290 = vpop.xlane.xlu0 %2289
          %v2291 = vadd.f32 %v2249, %v2250
          %2292 = vadd.xlane.f32.xlu0 %v2291
          %v2293 = vpop.xlane.xlu0 %2292
          %v2294 = vadd.f32 %v2251, %v2252
          %2295 = vadd.xlane.f32.xlu0 %v2294
          %v2296 = vpop.xlane.xlu0 %2295
          %v2297 = vadd.f32 %v2253, %v2254
          %2298 = vadd.xlane.f32.xlu0 %v2297
          %v2299 = vpop.xlane.xlu0 %2298
          %v2300 = vadd.f32 %v2255, %v2256
          %2301 = vadd.xlane.f32.xlu0 %v2300
          %v2302 = vpop.xlane.xlu0 %2301
          %v2303 = vadd.f32 %v2257, %v2258
          %2304 = vadd.xlane.f32.xlu0 %v2303
          %v2305 = vpop.xlane.xlu0 %2304
          %v2306 = vadd.f32 %v2259, %v2260
          %2307 = vadd.xlane.f32.xlu0 %v2306
          %v2308 = vpop.xlane.xlu0 %2307
          %v2309 = vadd.f32 %v2261, %v2262
          %2310 = vadd.xlane.f32.xlu0 %v2309
          %v2311 = vpop.xlane.xlu0 %2310
          %v2312 = vadd.f32 %v2263, %v2264
          %2313 = vadd.xlane.f32.xlu0 %v2312
          %v2314 = vpop.xlane.xlu0 %2313
          %v2315 = vadd.f32 %v2265, %v2266
          %2316 = vadd.xlane.f32.xlu0 %v2315
          %v2317 = vpop.xlane.xlu0 %2316
          %v2318 = vadd.f32 %v2267, %v2268
          %2319 = vadd.xlane.f32.xlu0 %v2318
          %v2320 = vpop.xlane.xlu0 %2319
          %v2321 = vadd.f32 %v2269, %v2270
          %2322 = vadd.xlane.f32.xlu0 %v2321
          %v2323 = vpop.xlane.xlu0 %2322
          %v2324 = vadd.f32 %v2271, %v2272
          %2325 = vadd.xlane.f32.xlu0 %v2324
          %v2326 = vpop.xlane.xlu0 %2325
          %v2327 = vadd.f32 %v2273, %v2274
          %2328 = vadd.xlane.f32.xlu0 %v2327
          %v2329 = vpop.xlane.xlu0 %2328
          %v2330 = vadd.f32 %v2275, %v2276
          %2331 = vadd.xlane.f32.xlu0 %v2330
          %v2332 = vpop.xlane.xlu0 %2331
          %v2333 = vadd.f32 %v2277, %v2278
          %2334 = vadd.xlane.f32.xlu0 %v2333
          %v2335 = vpop.xlane.xlu0 %2334
          %v2336 = vadd.f32 %v2279, %v2280
          %2337 = vadd.xlane.f32.xlu0 %v2336
          %v2338 = vpop.xlane.xlu0 %2337
          %v2339 = vadd.f32 %v2281, %v2282
          %2340 = vadd.xlane.f32.xlu0 %v2339
          %v2341 = vpop.xlane.xlu0 %2340
          %v2342 = vadd.f32 %v2283, %v2284
          %2343 = vadd.xlane.f32.xlu0 %v2342
          %v2344 = vpop.xlane.xlu0 %2343
          %v2345 = vrcp.pop 256.0
          %v2346 = vmul.f32 %v2287, %v2345
          %v2347 = vmul.f32 %v2290, %v2345
          %v2348 = vmul.f32 %v2293, %v2345
          %v2349 = vmul.f32 %v2296, %v2345
          %v2350 = vmul.f32 %v2299, %v2345
          %v2351 = vmul.f32 %v2302, %v2345
          %v2352 = vmul.f32 %v2305, %v2345
          %v2353 = vmul.f32 %v2308, %v2345
          %v2354 = vmul.f32 %v2311, %v2345
          %v2355 = vmul.f32 %v2314, %v2345
          %v2356 = vmul.f32 %v2317, %v2345
          %v2357 = vmul.f32 %v2320, %v2345
          %v2358 = vmul.f32 %v2323, %v2345
          %v2359 = vmul.f32 %v2326, %v2345
          %v2360 = vmul.f32 %v2329, %v2345
          %v2361 = vmul.f32 %v2332, %v2345
          %v2362 = vmul.f32 %v2335, %v2345
          %v2363 = vmul.f32 %v2338, %v2345
          %v2364 = vmul.f32 %v2341, %v2345
          %v2365 = vmul.f32 %v2344, %v2345
          %v2366 = vsub.f32 %v2245, %v2346
          %v2367 = vsub.f32 %v2246, %v2346
          %v2368 = vsub.f32 %v2247, %v2347
          %v2369 = vsub.f32 %v2248, %v2347
          %v2370 = vsub.f32 %v2249, %v2348
          %v2371 = vsub.f32 %v2250, %v2348
          %v2372 = vsub.f32 %v2251, %v2349
          %v2373 = vsub.f32 %v2252, %v2349
          %v2374 = vsub.f32 %v2253, %v2350
          %v2375 = vsub.f32 %v2254, %v2350
          %v2376 = vsub.f32 %v2255, %v2351
          %v2377 = vsub.f32 %v2256, %v2351
          %v2378 = vsub.f32 %v2257, %v2352
          %v2379 = vsub.f32 %v2258, %v2352
          %v2380 = vsub.f32 %v2259, %v2353
          %v2381 = vsub.f32 %v2260, %v2353
          %v2382 = vsub.f32 %v2261, %v2354
          %v2383 = vsub.f32 %v2262, %v2354
          %v2384 = vsub.f32 %v2263, %v2355
          %v2385 = vsub.f32 %v2264, %v2355
          %v2386 = vsub.f32 %v2265, %v2356
          %v2387 = vsub.f32 %v2266, %v2356
          %v2388 = vsub.f32 %v2267, %v2357
          %v2389 = vsub.f32 %v2268, %v2357
          %v2390 = vsub.f32 %v2269, %v2358
          %v2391 = vsub.f32 %v2270, %v2358
          %v2392 = vsub.f32 %v2271, %v2359
          %v2393 = vsub.f32 %v2272, %v2359
          %v2394 = vsub.f32 %v2273, %v2360
          %v2395 = vsub.f32 %v2274, %v2360
          %v2396 = vsub.f32 %v2275, %v2361
          %v2397 = vsub.f32 %v2276, %v2361
          %v2398 = vsub.f32 %v2277, %v2362
          %v2399 = vsub.f32 %v2278, %v2362
          %v2400 = vsub.f32 %v2279, %v2363
          %v2401 = vsub.f32 %v2280, %v2363
          %v2402 = vsub.f32 %v2281, %v2364
          %v2403 = vsub.f32 %v2282, %v2364
          %v2404 = vsub.f32 %v2283, %v2365
          %v2405 = vsub.f32 %v2284, %v2365
          %v2406 = vmul.f32 %v2366, %v2366
          %v2407 = vmul.f32 %v2367, %v2367
          %v2408 = vmul.f32 %v2368, %v2368
          %v2409 = vmul.f32 %v2369, %v2369
          %v2410 = vmul.f32 %v2370, %v2370
          %v2411 = vmul.f32 %v2371, %v2371
          %v2412 = vmul.f32 %v2372, %v2372
          %v2413 = vmul.f32 %v2373, %v2373
          %v2414 = vmul.f32 %v2374, %v2374
          %v2415 = vmul.f32 %v2375, %v2375
          %v2416 = vmul.f32 %v2376, %v2376
          %v2417 = vmul.f32 %v2377, %v2377
          %v2418 = vmul.f32 %v2378, %v2378
          %v2419 = vmul.f32 %v2379, %v2379
          %v2420 = vmul.f32 %v2380, %v2380
          %v2421 = vmul.f32 %v2381, %v2381
          %v2422 = vmul.f32 %v2382, %v2382
          %v2423 = vmul.f32 %v2383, %v2383
          %v2424 = vmul.f32 %v2384, %v2384
          %v2425 = vmul.f32 %v2385, %v2385
          %v2426 = vmul.f32 %v2386, %v2386
          %v2427 = vmul.f32 %v2387, %v2387
          %v2428 = vmul.f32 %v2388, %v2388
          %v2429 = vmul.f32 %v2389, %v2389
          %v2430 = vmul.f32 %v2390, %v2390
          %v2431 = vmul.f32 %v2391, %v2391
          %v2432 = vmul.f32 %v2392, %v2392
          %v2433 = vmul.f32 %v2393, %v2393
          %v2434 = vmul.f32 %v2394, %v2394
          %v2435 = vmul.f32 %v2395, %v2395
          %v2436 = vmul.f32 %v2396, %v2396
          %v2437 = vmul.f32 %v2397, %v2397
          %v2438 = vmul.f32 %v2398, %v2398
          %v2439 = vmul.f32 %v2399, %v2399
          %v2440 = vmul.f32 %v2400, %v2400
          %v2441 = vmul.f32 %v2401, %v2401
          %v2442 = vmul.f32 %v2402, %v2402
          %v2443 = vmul.f32 %v2403, %v2403
          %v2444 = vmul.f32 %v2404, %v2404
          %v2445 = vmul.f32 %v2405, %v2405
          %v2446 = vadd.f32 %v2406, %v2407
          %2447 = vadd.xlane.f32.xlu0 %v2446
          %v2448 = vpop.xlane.xlu0 %2447
          %v2449 = vadd.f32 %v2408, %v2409
          %2450 = vadd.xlane.f32.xlu0 %v2449
          %v2451 = vpop.xlane.xlu0 %2450
          %v2452 = vadd.f32 %v2410, %v2411
          %2453 = vadd.xlane.f32.xlu0 %v2452
          %v2454 = vpop.xlane.xlu0 %2453
          %v2455 = vadd.f32 %v2412, %v2413
          %2456 = vadd.xlane.f32.xlu0 %v2455
          %v2457 = vpop.xlane.xlu0 %2456
          %v2458 = vadd.f32 %v2414, %v2415
          %2459 = vadd.xlane.f32.xlu0 %v2458
          %v2460 = vpop.xlane.xlu0 %2459
          %v2461 = vadd.f32 %v2416, %v2417
          %2462 = vadd.xlane.f32.xlu0 %v2461
          %v2463 = vpop.xlane.xlu0 %2462
          %v2464 = vadd.f32 %v2418, %v2419
          %2465 = vadd.xlane.f32.xlu0 %v2464
          %v2466 = vpop.xlane.xlu0 %2465
          %v2467 = vadd.f32 %v2420, %v2421
          %2468 = vadd.xlane.f32.xlu0 %v2467
          %v2469 = vpop.xlane.xlu0 %2468
          %v2470 = vadd.f32 %v2422, %v2423
          %2471 = vadd.xlane.f32.xlu0 %v2470
          %v2472 = vpop.xlane.xlu0 %2471
          %v2473 = vadd.f32 %v2424, %v2425
          %2474 = vadd.xlane.f32.xlu0 %v2473
          %v2475 = vpop.xlane.xlu0 %2474
          %v2476 = vadd.f32 %v2426, %v2427
          %2477 = vadd.xlane.f32.xlu0 %v2476
          %v2478 = vpop.xlane.xlu0 %2477
          %v2479 = vadd.f32 %v2428, %v2429
          %2480 = vadd.xlane.f32.xlu0 %v2479
          %v2481 = vpop.xlane.xlu0 %2480
          %v2482 = vadd.f32 %v2430, %v2431
          %2483 = vadd.xlane.f32.xlu0 %v2482
          %v2484 = vpop.xlane.xlu0 %2483
          %v2485 = vadd.f32 %v2432, %v2433
          %2486 = vadd.xlane.f32.xlu0 %v2485
          %v2487 = vpop.xlane.xlu0 %2486
          %v2488 = vadd.f32 %v2434, %v2435
          %2489 = vadd.xlane.f32.xlu0 %v2488
          %v2490 = vpop.xlane.xlu0 %2489
          %v2491 = vadd.f32 %v2436, %v2437
          %2492 = vadd.xlane.f32.xlu0 %v2491
          %v2493 = vpop.xlane.xlu0 %2492
          %v2494 = vadd.f32 %v2438, %v2439
          %2495 = vadd.xlane.f32.xlu0 %v2494
          %v2496 = vpop.xlane.xlu0 %2495
          %v2497 = vadd.f32 %v2440, %v2441
          %2498 = vadd.xlane.f32.xlu0 %v2497
          %v2499 = vpop.xlane.xlu0 %2498
          %v2500 = vadd.f32 %v2442, %v2443
          %2501 = vadd.xlane.f32.xlu0 %v2500
          %v2502 = vpop.xlane.xlu0 %2501
          %v2503 = vadd.f32 %v2444, %v2445
          %2504 = vadd.xlane.f32.xlu0 %v2503
          %v2505 = vpop.xlane.xlu0 %2504
          %v2506 = vmul.f32 %v2448, 0.003921569
          %v2507 = vmul.f32 %v2451, 0.003921569
          %v2508 = vmul.f32 %v2454, 0.003921569
          %v2509 = vmul.f32 %v2457, 0.003921569
          %v2510 = vmul.f32 %v2460, 0.003921569
          %v2511 = vmul.f32 %v2463, 0.003921569
          %v2512 = vmul.f32 %v2466, 0.003921569
          %v2513 = vmul.f32 %v2469, 0.003921569
          %v2514 = vmul.f32 %v2472, 0.003921569
          %v2515 = vmul.f32 %v2475, 0.003921569
          %v2516 = vmul.f32 %v2478, 0.003921569
          %v2517 = vmul.f32 %v2481, 0.003921569
          %v2518 = vmul.f32 %v2484, 0.003921569
          %v2519 = vmul.f32 %v2487, 0.003921569
          %v2520 = vmul.f32 %v2490, 0.003921569
          %v2521 = vmul.f32 %v2493, 0.003921569
          %v2522 = vmul.f32 %v2496, 0.003921569
          %v2523 = vmul.f32 %v2499, 0.003921569
          %v2524 = vmul.f32 %v2502, 0.003921569
          %v2525 = vmul.f32 %v2505, 0.003921569
          %v2526 = vrsqrt.pop %v2506
          %v2527 = vmul.f32 %v2506, %v2526
          %vm2528 = vcmp.eq.f32.partialorder %v2506, inf
          %v2529 = vsel %vm2528, %v2506, %v2527
          %vm2530 = vcmp.eq.f32.partialorder %v2506, 0.0
          %v2531 = vand.u32 %v2506, 2147483648
          %v2532 = vsel %vm2530, %v2531, %v2529
          %v2533 = vrsqrt.pop %v2507
          %v2534 = vmul.f32 %v2507, %v2533
          %vm2535 = vcmp.eq.f32.partialorder %v2507, inf
          %v2536 = vsel %vm2535, %v2507, %v2534
          %vm2537 = vcmp.eq.f32.partialorder %v2507, 0.0
          %v2538 = vand.u32 %v2507, 2147483648
          %v2539 = vsel %vm2537, %v2538, %v2536
          %v2540 = vrsqrt.pop %v2508
          %v2541 = vmul.f32 %v2508, %v2540
          %vm2542 = vcmp.eq.f32.partialorder %v2508, inf
          %v2543 = vsel %vm2542, %v2508, %v2541
          %vm2544 = vcmp.eq.f32.partialorder %v2508, 0.0
          %v2545 = vand.u32 %v2508, 2147483648
          %v2546 = vsel %vm2544, %v2545, %v2543
          %v2547 = vrsqrt.pop %v2509
          %v2548 = vmul.f32 %v2509, %v2547
          %vm2549 = vcmp.eq.f32.partialorder %v2509, inf
          %v2550 = vsel %vm2549, %v2509, %v2548
          %vm2551 = vcmp.eq.f32.partialorder %v2509, 0.0
          %v2552 = vand.u32 %v2509, 2147483648
          %v2553 = vsel %vm2551, %v2552, %v2550
          %v2554 = vrsqrt.pop %v2510
          %v2555 = vmul.f32 %v2510, %v2554
          %vm2556 = vcmp.eq.f32.partialorder %v2510, inf
          %v2557 = vsel %vm2556, %v2510, %v2555
          %vm2558 = vcmp.eq.f32.partialorder %v2510, 0.0
          %v2559 = vand.u32 %v2510, 2147483648
          %v2560 = vsel %vm2558, %v2559, %v2557
          %v2561 = vrsqrt.pop %v2511
          %v2562 = vmul.f32 %v2511, %v2561
          %vm2563 = vcmp.eq.f32.partialorder %v2511, inf
          %v2564 = vsel %vm2563, %v2511, %v2562
          %vm2565 = vcmp.eq.f32.partialorder %v2511, 0.0
          %v2566 = vand.u32 %v2511, 2147483648
          %v2567 = vsel %vm2565, %v2566, %v2564
          %v2568 = vrsqrt.pop %v2512
          %v2569 = vmul.f32 %v2512, %v2568
          %vm2570 = vcmp.eq.f32.partialorder %v2512, inf
          %v2571 = vsel %vm2570, %v2512, %v2569
          %vm2572 = vcmp.eq.f32.partialorder %v2512, 0.0
          %v2573 = vand.u32 %v2512, 2147483648
          %v2574 = vsel %vm2572, %v2573, %v2571
          %v2575 = vrsqrt.pop %v2513
          %v2576 = vmul.f32 %v2513, %v2575
          %vm2577 = vcmp.eq.f32.partialorder %v2513, inf
          %v2578 = vsel %vm2577, %v2513, %v2576
          %vm2579 = vcmp.eq.f32.partialorder %v2513, 0.0
          %v2580 = vand.u32 %v2513, 2147483648
          %v2581 = vsel %vm2579, %v2580, %v2578
          %v2582 = vrsqrt.pop %v2514
          %v2583 = vmul.f32 %v2514, %v2582
          %vm2584 = vcmp.eq.f32.partialorder %v2514, inf
          %v2585 = vsel %vm2584, %v2514, %v2583
          %vm2586 = vcmp.eq.f32.partialorder %v2514, 0.0
          %v2587 = vand.u32 %v2514, 2147483648
          %v2588 = vsel %vm2586, %v2587, %v2585
          %v2589 = vrsqrt.pop %v2515
          %v2590 = vmul.f32 %v2515, %v2589
          %vm2591 = vcmp.eq.f32.partialorder %v2515, inf
          %v2592 = vsel %vm2591, %v2515, %v2590
          %vm2593 = vcmp.eq.f32.partialorder %v2515, 0.0
          %v2594 = vand.u32 %v2515, 2147483648
          %v2595 = vsel %vm2593, %v2594, %v2592
          %v2596 = vrsqrt.pop %v2516
          %v2597 = vmul.f32 %v2516, %v2596
          %vm2598 = vcmp.eq.f32.partialorder %v2516, inf
          %v2599 = vsel %vm2598, %v2516, %v2597
          %vm2600 = vcmp.eq.f32.partialorder %v2516, 0.0
          %v2601 = vand.u32 %v2516, 2147483648
          %v2602 = vsel %vm2600, %v2601, %v2599
          %v2603 = vrsqrt.pop %v2517
          %v2604 = vmul.f32 %v2517, %v2603
          %vm2605 = vcmp.eq.f32.partialorder %v2517, inf
          %v2606 = vsel %vm2605, %v2517, %v2604
          %vm2607 = vcmp.eq.f32.partialorder %v2517, 0.0
          %v2608 = vand.u32 %v2517, 2147483648
          %v2609 = vsel %vm2607, %v2608, %v2606
          %v2610 = vrsqrt.pop %v2518
          %v2611 = vmul.f32 %v2518, %v2610
          %vm2612 = vcmp.eq.f32.partialorder %v2518, inf
          %v2613 = vsel %vm2612, %v2518, %v2611
          %vm2614 = vcmp.eq.f32.partialorder %v2518, 0.0
          %v2615 = vand.u32 %v2518, 2147483648
          %v2616 = vsel %vm2614, %v2615, %v2613
          %v2617 = vrsqrt.pop %v2519
          %v2618 = vmul.f32 %v2519, %v2617
          %vm2619 = vcmp.eq.f32.partialorder %v2519, inf
          %v2620 = vsel %vm2619, %v2519, %v2618
          %vm2621 = vcmp.eq.f32.partialorder %v2519, 0.0
          %v2622 = vand.u32 %v2519, 2147483648
          %v2623 = vsel %vm2621, %v2622, %v2620
          %v2624 = vrsqrt.pop %v2520
          %v2625 = vmul.f32 %v2520, %v2624
          %vm2626 = vcmp.eq.f32.partialorder %v2520, inf
          %v2627 = vsel %vm2626, %v2520, %v2625
          %vm2628 = vcmp.eq.f32.partialorder %v2520, 0.0
          %v2629 = vand.u32 %v2520, 2147483648
          %v2630 = vsel %vm2628, %v2629, %v2627
          %v2631 = vrsqrt.pop %v2521
          %v2632 = vmul.f32 %v2521, %v2631
          %vm2633 = vcmp.eq.f32.partialorder %v2521, inf
          %v2634 = vsel %vm2633, %v2521, %v2632
          %vm2635 = vcmp.eq.f32.partialorder %v2521, 0.0
          %v2636 = vand.u32 %v2521, 2147483648
          %v2637 = vsel %vm2635, %v2636, %v2634
          %v2638 = vrsqrt.pop %v2522
          %v2639 = vmul.f32 %v2522, %v2638
          %vm2640 = vcmp.eq.f32.partialorder %v2522, inf
          %v2641 = vsel %vm2640, %v2522, %v2639
          %vm2642 = vcmp.eq.f32.partialorder %v2522, 0.0
          %v2643 = vand.u32 %v2522, 2147483648
          %v2644 = vsel %vm2642, %v2643, %v2641
          %v2645 = vrsqrt.pop %v2523
          %v2646 = vmul.f32 %v2523, %v2645
          %vm2647 = vcmp.eq.f32.partialorder %v2523, inf
          %v2648 = vsel %vm2647, %v2523, %v2646
          %vm2649 = vcmp.eq.f32.partialorder %v2523, 0.0
          %v2650 = vand.u32 %v2523, 2147483648
          %v2651 = vsel %vm2649, %v2650, %v2648
          %v2652 = vrsqrt.pop %v2524
          %v2653 = vmul.f32 %v2524, %v2652
          %vm2654 = vcmp.eq.f32.partialorder %v2524, inf
          %v2655 = vsel %vm2654, %v2524, %v2653
          %vm2656 = vcmp.eq.f32.partialorder %v2524, 0.0
          %v2657 = vand.u32 %v2524, 2147483648
          %v2658 = vsel %vm2656, %v2657, %v2655
          %v2659 = vrsqrt.pop %v2525
          %v2660 = vmul.f32 %v2525, %v2659
          %vm2661 = vcmp.eq.f32.partialorder %v2525, inf
          %v2662 = vsel %vm2661, %v2525, %v2660
          %vm2663 = vcmp.eq.f32.partialorder %v2525, 0.0
          %v2664 = vand.u32 %v2525, 2147483648
          %v2665 = vsel %vm2663, %v2664, %v2662
          %v2666 = vadd.f32 %v2532, 1e-06
          %v2667 = vadd.f32 %v2539, 1e-06
          %v2668 = vadd.f32 %v2546, 1e-06
          %v2669 = vadd.f32 %v2553, 1e-06
          %v2670 = vadd.f32 %v2560, 1e-06
          %v2671 = vadd.f32 %v2567, 1e-06
          %v2672 = vadd.f32 %v2574, 1e-06
          %v2673 = vadd.f32 %v2581, 1e-06
          %v2674 = vadd.f32 %v2588, 1e-06
          %v2675 = vadd.f32 %v2595, 1e-06
          %v2676 = vadd.f32 %v2602, 1e-06
          %v2677 = vadd.f32 %v2609, 1e-06
          %v2678 = vadd.f32 %v2616, 1e-06
          %v2679 = vadd.f32 %v2623, 1e-06
          %v2680 = vadd.f32 %v2630, 1e-06
          %v2681 = vadd.f32 %v2637, 1e-06
          %v2682 = vadd.f32 %v2644, 1e-06
          %v2683 = vadd.f32 %v2651, 1e-06
          %v2684 = vadd.f32 %v2658, 1e-06
          %v2685 = vadd.f32 %v2665, 1e-06
          %v2686 = vrcp.pop %v2666
          %v2687 = vrcp.pop %v2667
          %v2688 = vrcp.pop %v2668
          %v2689 = vrcp.pop %v2669
          %v2690 = vrcp.pop %v2670
          %v2691 = vrcp.pop %v2671
          %v2692 = vrcp.pop %v2672
          %v2693 = vrcp.pop %v2673
          %v2694 = vrcp.pop %v2674
          %v2695 = vrcp.pop %v2675
          %v2696 = vrcp.pop %v2676
          %v2697 = vrcp.pop %v2677
          %v2698 = vrcp.pop %v2678
          %v2699 = vrcp.pop %v2679
          %v2700 = vrcp.pop %v2680
          %v2701 = vrcp.pop %v2681
          %v2702 = vrcp.pop %v2682
          %v2703 = vrcp.pop %v2683
          %v2704 = vrcp.pop %v2684
          %v2705 = vrcp.pop %v2685
          %v2706 = vld [vmem:[%s2] sm:$0x3]
          %v2708 = vlaneseq
          %v2709 = vshrl.u32 %v2708, 7
          %v2710 = vsub.s32 0, %v2709
          %v2711 = vrot.slane %v2706, %v2710
          %v2712 = vlaneseq
          %v2713 = vshrl.u32 %v2712, 7
          %v2714 = vsub.s32 1, %v2713
          %v2715 = vrot.slane %v2706, %v2714
          %v2718 = vmul.f32 %v2711, %v2366
          %v2719 = vmul.f32 %v2715, %v2367
          %v2720 = vmul.f32 %v2711, %v2368
          %v2721 = vmul.f32 %v2715, %v2369
          %v2722 = vmul.f32 %v2711, %v2370
          %v2723 = vmul.f32 %v2715, %v2371
          %v2724 = vmul.f32 %v2711, %v2372
          %v2725 = vmul.f32 %v2715, %v2373
          %v2726 = vmul.f32 %v2711, %v2374
          %v2727 = vmul.f32 %v2715, %v2375
          %v2728 = vmul.f32 %v2711, %v2376
          %v2729 = vmul.f32 %v2715, %v2377
          %v2730 = vmul.f32 %v2711, %v2378
          %v2731 = vmul.f32 %v2715, %v2379
          %v2732 = vmul.f32 %v2711, %v2380
          %v2733 = vmul.f32 %v2715, %v2381
          %v2734 = vmul.f32 %v2711, %v2382
          %v2735 = vmul.f32 %v2715, %v2383
          %v2736 = vmul.f32 %v2711, %v2384
          %v2737 = vmul.f32 %v2715, %v2385
          %v2738 = vmul.f32 %v2711, %v2386
          %v2739 = vmul.f32 %v2715, %v2387
          %v2740 = vmul.f32 %v2711, %v2388
          %v2741 = vmul.f32 %v2715, %v2389
          %v2742 = vmul.f32 %v2711, %v2390
          %v2743 = vmul.f32 %v2715, %v2391
          %v2744 = vmul.f32 %v2711, %v2392
          %v2745 = vmul.f32 %v2715, %v2393
          %v2746 = vmul.f32 %v2711, %v2394
          %v2747 = vmul.f32 %v2715, %v2395
          %v2748 = vmul.f32 %v2711, %v2396
          %v2749 = vmul.f32 %v2715, %v2397
          %v2750 = vmul.f32 %v2711, %v2398
          %v2751 = vmul.f32 %v2715, %v2399
          %v2752 = vmul.f32 %v2711, %v2400
          %v2753 = vmul.f32 %v2715, %v2401
          %v2754 = vmul.f32 %v2711, %v2402
          %v2755 = vmul.f32 %v2715, %v2403
          %v2756 = vmul.f32 %v2711, %v2404
          %v2757 = vmul.f32 %v2715, %v2405
          %v2758 = vmul.f32 %v2718, %v2686
          %v2759 = vmul.f32 %v2719, %v2686
          %v2760 = vmul.f32 %v2720, %v2687
          %v2761 = vmul.f32 %v2721, %v2687
          %v2762 = vmul.f32 %v2722, %v2688
          %v2763 = vmul.f32 %v2723, %v2688
          %v2764 = vmul.f32 %v2724, %v2689
          %v2765 = vmul.f32 %v2725, %v2689
          %v2766 = vmul.f32 %v2726, %v2690
          %v2767 = vmul.f32 %v2727, %v2690
          %v2768 = vmul.f32 %v2728, %v2691
          %v2769 = vmul.f32 %v2729, %v2691
          %v2770 = vmul.f32 %v2730, %v2692
          %v2771 = vmul.f32 %v2731, %v2692
          %v2772 = vmul.f32 %v2732, %v2693
          %v2773 = vmul.f32 %v2733, %v2693
          %v2774 = vmul.f32 %v2734, %v2694
          %v2775 = vmul.f32 %v2735, %v2694
          %v2776 = vmul.f32 %v2736, %v2695
          %v2777 = vmul.f32 %v2737, %v2695
          %v2778 = vmul.f32 %v2738, %v2696
          %v2779 = vmul.f32 %v2739, %v2696
          %v2780 = vmul.f32 %v2740, %v2697
          %v2781 = vmul.f32 %v2741, %v2697
          %v2782 = vmul.f32 %v2742, %v2698
          %v2783 = vmul.f32 %v2743, %v2698
          %v2784 = vmul.f32 %v2744, %v2699
          %v2785 = vmul.f32 %v2745, %v2699
          %v2786 = vmul.f32 %v2746, %v2700
          %v2787 = vmul.f32 %v2747, %v2700
          %v2788 = vmul.f32 %v2748, %v2701
          %v2789 = vmul.f32 %v2749, %v2701
          %v2790 = vmul.f32 %v2750, %v2702
          %v2791 = vmul.f32 %v2751, %v2702
          %v2792 = vmul.f32 %v2752, %v2703
          %v2793 = vmul.f32 %v2753, %v2703
          %v2794 = vmul.f32 %v2754, %v2704
          %v2795 = vmul.f32 %v2755, %v2704
          %v2796 = vmul.f32 %v2756, %v2705
          %v2797 = vmul.f32 %v2757, %v2705
          %v2798 = vld [vmem:[%s3] sm:$0x3]
          %v2800 = vlaneseq
          %v2801 = vshrl.u32 %v2800, 7
          %v2802 = vsub.s32 0, %v2801
          %v2803 = vrot.slane %v2798, %v2802
          %v2804 = vlaneseq
          %v2805 = vshrl.u32 %v2804, 7
          %v2806 = vsub.s32 1, %v2805
          %v2807 = vrot.slane %v2798, %v2806
          %v2810 = vadd.f32 %v2758, %v2803
          %v2811 = vadd.f32 %v2759, %v2807
          %v2812 = vadd.f32 %v2760, %v2803
          %v2813 = vadd.f32 %v2761, %v2807
          %v2814 = vadd.f32 %v2762, %v2803
          %v2815 = vadd.f32 %v2763, %v2807
          %v2816 = vadd.f32 %v2764, %v2803
          %v2817 = vadd.f32 %v2765, %v2807
          %v2818 = vadd.f32 %v2766, %v2803
          %v2819 = vadd.f32 %v2767, %v2807
          %v2820 = vadd.f32 %v2768, %v2803
          %v2821 = vadd.f32 %v2769, %v2807
          %v2822 = vadd.f32 %v2770, %v2803
          %v2823 = vadd.f32 %v2771, %v2807
          %v2824 = vadd.f32 %v2772, %v2803
          %v2825 = vadd.f32 %v2773, %v2807
          %v2826 = vadd.f32 %v2774, %v2803
          %v2827 = vadd.f32 %v2775, %v2807
          %v2828 = vadd.f32 %v2776, %v2803
          %v2829 = vadd.f32 %v2777, %v2807
          %v2830 = vadd.f32 %v2778, %v2803
          %v2831 = vadd.f32 %v2779, %v2807
          %v2832 = vadd.f32 %v2780, %v2803
          %v2833 = vadd.f32 %v2781, %v2807
          %v2834 = vadd.f32 %v2782, %v2803
          %v2835 = vadd.f32 %v2783, %v2807
          %v2836 = vadd.f32 %v2784, %v2803
          %v2837 = vadd.f32 %v2785, %v2807
          %v2838 = vadd.f32 %v2786, %v2803
          %v2839 = vadd.f32 %v2787, %v2807
          %v2840 = vadd.f32 %v2788, %v2803
          %v2841 = vadd.f32 %v2789, %v2807
          %v2842 = vadd.f32 %v2790, %v2803
          %v2843 = vadd.f32 %v2791, %v2807
          %v2844 = vadd.f32 %v2792, %v2803
          %v2845 = vadd.f32 %v2793, %v2807
          %v2846 = vadd.f32 %v2794, %v2803
          %v2847 = vadd.f32 %v2795, %v2807
          %v2848 = vadd.f32 %v2796, %v2803
          %v2849 = vadd.f32 %v2797, %v2807
          %vm2850 = vcmp.gt.f32.partialorder %v2810, 0.0
          %vm2851 = vcmp.gt.f32.partialorder %v2811, 0.0
          %vm2852 = vcmp.gt.f32.partialorder %v2812, 0.0
          %vm2853 = vcmp.gt.f32.partialorder %v2813, 0.0
          %vm2854 = vcmp.gt.f32.partialorder %v2814, 0.0
          %vm2855 = vcmp.gt.f32.partialorder %v2815, 0.0
          %vm2856 = vcmp.gt.f32.partialorder %v2816, 0.0
          %vm2857 = vcmp.gt.f32.partialorder %v2817, 0.0
          %vm2858 = vcmp.gt.f32.partialorder %v2818, 0.0
          %vm2859 = vcmp.gt.f32.partialorder %v2819, 0.0
          %vm2860 = vcmp.gt.f32.partialorder %v2820, 0.0
          %vm2861 = vcmp.gt.f32.partialorder %v2821, 0.0
          %vm2862 = vcmp.gt.f32.partialorder %v2822, 0.0
          %vm2863 = vcmp.gt.f32.partialorder %v2823, 0.0
          %vm2864 = vcmp.gt.f32.partialorder %v2824, 0.0
          %vm2865 = vcmp.gt.f32.partialorder %v2825, 0.0
          %vm2866 = vcmp.gt.f32.partialorder %v2826, 0.0
          %vm2867 = vcmp.gt.f32.partialorder %v2827, 0.0
          %vm2868 = vcmp.gt.f32.partialorder %v2828, 0.0
          %vm2869 = vcmp.gt.f32.partialorder %v2829, 0.0
          %vm2870 = vcmp.gt.f32.partialorder %v2830, 0.0
          %vm2871 = vcmp.gt.f32.partialorder %v2831, 0.0
          %vm2872 = vcmp.gt.f32.partialorder %v2832, 0.0
          %vm2873 = vcmp.gt.f32.partialorder %v2833, 0.0
          %vm2874 = vcmp.gt.f32.partialorder %v2834, 0.0
          %vm2875 = vcmp.gt.f32.partialorder %v2835, 0.0
          %vm2876 = vcmp.gt.f32.partialorder %v2836, 0.0
          %vm2877 = vcmp.gt.f32.partialorder %v2837, 0.0
          %vm2878 = vcmp.gt.f32.partialorder %v2838, 0.0
          %vm2879 = vcmp.gt.f32.partialorder %v2839, 0.0
          %vm2880 = vcmp.gt.f32.partialorder %v2840, 0.0
          %vm2881 = vcmp.gt.f32.partialorder %v2841, 0.0
          %vm2882 = vcmp.gt.f32.partialorder %v2842, 0.0
          %vm2883 = vcmp.gt.f32.partialorder %v2843, 0.0
          %vm2884 = vcmp.gt.f32.partialorder %v2844, 0.0
          %vm2885 = vcmp.gt.f32.partialorder %v2845, 0.0
          %vm2886 = vcmp.gt.f32.partialorder %v2846, 0.0
          %vm2887 = vcmp.gt.f32.partialorder %v2847, 0.0
          %vm2888 = vcmp.gt.f32.partialorder %v2848, 0.0
          %vm2889 = vcmp.gt.f32.partialorder %v2849, 0.0
          %v2890 = vmul.f32 %v2810, 0.2
          %v2891 = vmul.f32 %v2811, 0.2
          %v2892 = vmul.f32 %v2812, 0.2
          %v2893 = vmul.f32 %v2813, 0.2
          %v2894 = vmul.f32 %v2814, 0.2
          %v2895 = vmul.f32 %v2815, 0.2
          %v2896 = vmul.f32 %v2816, 0.2
          %v2897 = vmul.f32 %v2817, 0.2
          %v2898 = vmul.f32 %v2818, 0.2
          %v2899 = vmul.f32 %v2819, 0.2
          %v2900 = vmul.f32 %v2820, 0.2
          %v2901 = vmul.f32 %v2821, 0.2
          %v2902 = vmul.f32 %v2822, 0.2
          %v2903 = vmul.f32 %v2823, 0.2
          %v2904 = vmul.f32 %v2824, 0.2
          %v2905 = vmul.f32 %v2825, 0.2
          %v2906 = vmul.f32 %v2826, 0.2
          %v2907 = vmul.f32 %v2827, 0.2
          %v2908 = vmul.f32 %v2828, 0.2
          %v2909 = vmul.f32 %v2829, 0.2
          %v2910 = vmul.f32 %v2830, 0.2
          %v2911 = vmul.f32 %v2831, 0.2
          %v2912 = vmul.f32 %v2832, 0.2
          %v2913 = vmul.f32 %v2833, 0.2
          %v2914 = vmul.f32 %v2834, 0.2
          %v2915 = vmul.f32 %v2835, 0.2
          %v2916 = vmul.f32 %v2836, 0.2
          %v2917 = vmul.f32 %v2837, 0.2
          %v2918 = vmul.f32 %v2838, 0.2
          %v2919 = vmul.f32 %v2839, 0.2
          %v2920 = vmul.f32 %v2840, 0.2
          %v2921 = vmul.f32 %v2841, 0.2
          %v2922 = vmul.f32 %v2842, 0.2
          %v2923 = vmul.f32 %v2843, 0.2
          %v2924 = vmul.f32 %v2844, 0.2
          %v2925 = vmul.f32 %v2845, 0.2
          %v2926 = vmul.f32 %v2846, 0.2
          %v2927 = vmul.f32 %v2847, 0.2
          %v2928 = vmul.f32 %v2848, 0.2
          %v2929 = vmul.f32 %v2849, 0.2
          %v2930 = vsel %vm2850, %v2810, %v2890
          %v2931 = vsel %vm2851, %v2811, %v2891
          %v2932 = vsel %vm2852, %v2812, %v2892
          %v2933 = vsel %vm2853, %v2813, %v2893
          %v2934 = vsel %vm2854, %v2814, %v2894
          %v2935 = vsel %vm2855, %v2815, %v2895
          %v2936 = vsel %vm2856, %v2816, %v2896
          %v2937 = vsel %vm2857, %v2817, %v2897
          %v2938 = vsel %vm2858, %v2818, %v2898
          %v2939 = vsel %vm2859, %v2819, %v2899
          %v2940 = vsel %vm2860, %v2820, %v2900
          %v2941 = vsel %vm2861, %v2821, %v2901
          %v2942 = vsel %vm2862, %v2822, %v2902
          %v2943 = vsel %vm2863, %v2823, %v2903
          %v2944 = vsel %vm2864, %v2824, %v2904
          %v2945 = vsel %vm2865, %v2825, %v2905
          %v2946 = vsel %vm2866, %v2826, %v2906
          %v2947 = vsel %vm2867, %v2827, %v2907
          %v2948 = vsel %vm2868, %v2828, %v2908
          %v2949 = vsel %vm2869, %v2829, %v2909
          %v2950 = vsel %vm2870, %v2830, %v2910
          %v2951 = vsel %vm2871, %v2831, %v2911
          %v2952 = vsel %vm2872, %v2832, %v2912
          %v2953 = vsel %vm2873, %v2833, %v2913
          %v2954 = vsel %vm2874, %v2834, %v2914
          %v2955 = vsel %vm2875, %v2835, %v2915
          %v2956 = vsel %vm2876, %v2836, %v2916
          %v2957 = vsel %vm2877, %v2837, %v2917
          %v2958 = vsel %vm2878, %v2838, %v2918
          %v2959 = vsel %vm2879, %v2839, %v2919
          %v2960 = vsel %vm2880, %v2840, %v2920
          %v2961 = vsel %vm2881, %v2841, %v2921
          %v2962 = vsel %vm2882, %v2842, %v2922
          %v2963 = vsel %vm2883, %v2843, %v2923
          %v2964 = vsel %vm2884, %v2844, %v2924
          %v2965 = vsel %vm2885, %v2845, %v2925
          %v2966 = vsel %vm2886, %v2846, %v2926
          %v2967 = vsel %vm2887, %v2847, %v2927
          %v2968 = vsel %vm2888, %v2848, %v2928
          %v2969 = vsel %vm2889, %v2849, %v2929
          %2970 = vst [vmem:[%s430] sm:$0xff] %v2930
          %2971 = vst [vmem:[%s430 + $0x8] sm:$0xff] %v2931
          %2972 = vst [vmem:[%s430 + $0x10] sm:$0xff] %v2932
          %2973 = vst [vmem:[%s430 + $0x18] sm:$0xff] %v2933
          %2974 = vst [vmem:[%s430 + $0x20] sm:$0xff] %v2934
          %2975 = vst [vmem:[%s430 + $0x28] sm:$0xff] %v2935
          %2976 = vst [vmem:[%s430 + $0x30] sm:$0xff] %v2936
          %2977 = vst [vmem:[%s430 + $0x38] sm:$0xff] %v2937
          %2978 = vst [vmem:[%s430 + $0x40] sm:$0xff] %v2938
          %2979 = vst [vmem:[%s430 + $0x48] sm:$0xff] %v2939
          %2980 = vst [vmem:[%s430 + $0x50] sm:$0xff] %v2940
          %2981 = vst [vmem:[%s430 + $0x58] sm:$0xff] %v2941
          %2982 = vst [vmem:[%s430 + $0x60] sm:$0xff] %v2942
          %2983 = vst [vmem:[%s430 + $0x68] sm:$0xff] %v2943
          %2984 = vst [vmem:[%s430 + $0x70] sm:$0xff] %v2944
          %2985 = vst [vmem:[%s430 + $0x78] sm:$0xff] %v2945
          %2986 = vst [vmem:[%s430 + $0x80] sm:$0xff] %v2946
          %2987 = vst [vmem:[%s430 + $0x88] sm:$0xff] %v2947
          %2988 = vst [vmem:[%s430 + $0x90] sm:$0xff] %v2948
          %2989 = vst [vmem:[%s430 + $0x98] sm:$0xff] %v2949
          %2990 = vst [vmem:[%s430 + $0xa0] sm:$0xff] %v2950
          %2991 = vst [vmem:[%s430 + $0xa8] sm:$0xff] %v2951
          %2992 = vst [vmem:[%s430 + $0xb0] sm:$0xff] %v2952
          %2993 = vst [vmem:[%s430 + $0xb8] sm:$0xff] %v2953
          %2994 = vst [vmem:[%s430 + $0xc0] sm:$0xff] %v2954
          %2995 = vst [vmem:[%s430 + $0xc8] sm:$0xff] %v2955
          %2996 = vst [vmem:[%s430 + $0xd0] sm:$0xff] %v2956
          %2997 = vst [vmem:[%s430 + $0xd8] sm:$0xff] %v2957
          %2998 = vst [vmem:[%s430 + $0xe0] sm:$0xff] %v2958
          %2999 = vst [vmem:[%s430 + $0xe8] sm:$0xff] %v2959
          %3000 = vst [vmem:[%s430 + $0xf0] sm:$0xff] %v2960
          %3001 = vst [vmem:[%s430 + $0xf8] sm:$0xff] %v2961
          %3002 = vst [vmem:[%s430 + $0x100] sm:$0xff] %v2962
          %3003 = vst [vmem:[%s430 + $0x108] sm:$0xff] %v2963
          %3004 = vst [vmem:[%s430 + $0x110] sm:$0xff] %v2964
          %3005 = vst [vmem:[%s430 + $0x118] sm:$0xff] %v2965
          %3006 = vst [vmem:[%s430 + $0x120] sm:$0xff] %v2966
          %3007 = vst [vmem:[%s430 + $0x128] sm:$0xff] %v2967
          %3008 = vst [vmem:[%s430 + $0x130] sm:$0xff] %v2968
          %3009 = vst [vmem:[%s430 + $0x138] sm:$0xff] %v2969
        $region70: #{frequency_discriminator.9} parent=57 // pred_fallthru
          _
        %s3010 = smul.u32 20, %s19
        %p3011 = scmp.lt.s32.totalorder %s3010, 19
        %s3012 = scalar_select %p3011, %s3010, 19
        %s3013 = smul.addr %s3012, 2
        %s3014 = smul.addr %s3013, 8
        %s3015 = scalar_lea.vmem %s4, %s3014
        // Predicated region
        $region71: #{frequency_discriminator.9} parent=57 // pred_check
          %p3016 = pneg %p141
        $region72: #{frequency_discriminator.9} parent=57 // pred_check_branch
          %3018 = sbr.rel (%p3016) target = $region74
        $region73: #{frequency_discriminator.9} parent=57 // pred_region
          %s3019 = smul.u32 20, %s19
        $region74: #{frequency_discriminator.9} parent=57 // pred_fallthru
          _
        // Predicated region
        $region75: #{frequency_discriminator.9} parent=57 // pred_check
          %p3020 = pneg %p141
        $region76: #{frequency_discriminator.9} parent=57 // pred_check_branch
          %3022 = sbr.rel (%p3020) target = $region78
        $region77: #{frequency_discriminator.9} parent=57 // pred_region
          %s3023 = smul.u32 20, %s19
          %p3024 = scmp.lt.s32.totalorder %s3023, 19
          %s3025 = scalar_select %p3024, %s3023, 19
          %s3026 = smul.addr %s3025, 2
          %s3027 = smul.addr %s3026, 8
          %s3028 = scalar_lea.vmem %s4, %s3027
        $region78: #{frequency_discriminator.9} parent=57 // pred_fallthru
          _
      $region58: #{frequency_discriminator.9} parent=5 // pred_fallthru
        _
      %p3029 = scmp.le.s32.totalorder 2, %s10
      // Predicated region
      $region79: #{frequency_discriminator.9} parent=5 // pred_check
        %p3030 = pneg %p3029
      $region80: #{frequency_discriminator.9} parent=5 // pred_check_branch
        %3032 = sbr.rel (%p3030) target = $region82
      $region81: #{frequency_discriminator.9} parent=5 // pred_region
        %s3033 = ssub.s32 %s10, 2
      $region82: #{frequency_discriminator.9} parent=5 // pred_fallthru
        _
    $region6: #{frequency_discriminator.9} parent=1 // loop_footer
      %s14 = sadd.s32 1, %s10
    $region7: #{frequency_discriminator.9} parent=1 // loop_footer_branch
      %9 = sbr.rel target = $region3
    $region8: #{frequency_discriminator.9} parent=1 // loop_exit
      _

// kernel: frequency_discriminator.10
$region0: #{frequency_discriminator.10}
  #allocation0 [shape = 'u32[]', space=smem, size = 0x4, offset = 0x4, fixed_abs, tag = 'smem constant byte address 0x4 - core index']
  #allocation1 [shape = 'u32[144,128]{1,0:T(1,128)}', space=vmem, size = 0x12000, scoped, tag = 'internal scratch']
  #allocation2 [shape = 'f32[48,512]{1,0:T(8,128)}', space=vmem, size = 0x18000, scoped, tag = 'scratch operand']
  %s0 = inlined_call_operand.vmem [shape: bf16[48,12544], index: 0, kind: input, shape index: {}]
  %s1 = inlined_call_operand.vmem [shape: bf16[12544,512], index: 1, kind: input, shape index: {}]
  %s2 = inlined_call_operand.vmem [shape: f32[1,512], index: 2, kind: input, shape index: {}]
  %s3 = inlined_call_operand.vmem [shape: f32[1,512], index: 3, kind: input, shape index: {}]
  %s4 = inlined_call_operand.vmem [shape: f32[48,512], index: 4, kind: output, shape index: {}]
  %s5 = sld [smem:[#allocation0]]
  $region83: #{frequency_discriminator.10} parent=0
    _
  %s7 = ssub.s32 1, %s5
  %s8 = scalar_select 0, %s7, %s5
  $region1: #{frequency_discriminator.10} parent=0
    #allocation3 [shape = 'u8[172032]{0}', space=vmem, size = 0x2a000, scoped, tag = 'input window, operand 0']
    loop: start=0, step=1, limit=16
    $region2: #{frequency_discriminator.10} parent=1 // loop_pre_header
      _
    $region3: #{frequency_discriminator.10} parent=1 // loop_header
      %s10 = sphi 0, %s14
      %p11 = scmp.ge.s32.totalorder %s10, 16
      %s17 = sphi 0, %s29
      %s18 = sphi 0, %s25
      %s19 = sphi 0, %s17
      %s20 = sphi 0, %s18
      %s21 = sphi 0, %s19
      %s22 = sphi 0, %s20
      %s34 = sphi 0, %s36
      %s37 = sphi 0, %s34
      %s38 = sphi 0, %s37
      %s54 = sphi 0, %s38
      %s60 = sphi 0, %s62
      %s63 = sphi 0, %s60
      %s64 = sphi 0, %s63
      %s80 = sphi 0, %s64
      %s84 = sphi 0, %s84
      %s86 = sphi 0, %s84
      %s87 = sphi 0, %s86
      %s101 = sphi 0, %s87
      %s105 = sphi 0, %s105
      %s107 = sphi 0, %s105
      %s108 = sphi 0, %s107
      %s122 = sphi 0, %s108
      %s128 = sphi 0, %s130
      %s131 = sphi 0, %s128
      %s132 = sphi 0, %s131
      %s148 = sphi 0, %s132
    $region4: #{frequency_discriminator.10} parent=1 // loop_header_branch
      %13 = sbr.rel (%p11) target = $region8
    $region5: #{frequency_discriminator.10} parent=1 // loop_body
      %s15 = ssub.s32 %s10, 1
      %s16 = ssub.s32 %s10, 2
      %s23 = sadd.s32 1, %s18
      %p24 = scmp.ge.s32.totalorder %s23, 14
      %s25 = scalar_select %p24, 0, %s23
      %s26 = sadd.s32 1, %s17
      %s27 = scalar_select %p24, %s26, %s17
      %p28 = scmp.ge.s32.totalorder %s27, 1
      %s29 = scalar_select %p28, 0, %s27
      %s30 = ssub.s32 %s17, %s29
      %s31 = ssub.s32 %s18, %s25
      %s32 = sor.u32 %s30, %s31
      %p33 = scmp.eq.s32.totalorder %s32, 0
      %s35 = sadd.s32 %s34, 1
      %s36 = scalar_select %p33, %s34, %s35
      %p39 = pneg %p33
      %p40 = scmp.eq.s32.totalorder %s10, 13
      %p41 = por %p39, %p40
      %p42 = scmp.ne.s32.totalorder %s34, %s37
      %p43 = scmp.eq.s32.totalorder %s10, 0
      %p44 = por %p42, %p43
      %p45 = scmp.ne.s32.totalorder %s34, %s37
      %p46 = scmp.eq.s32.totalorder %s15, 13
      %p47 = por %p45, %p46
      %p48 = scmp.ne.s32.totalorder %s37, %s38
      %p49 = scmp.eq.s32.totalorder %s15, 0
      %p50 = por %p48, %p49
      %p51 = scmp.ne.s32.totalorder %s37, %s38
      %p52 = scmp.eq.s32.totalorder %s16, 13
      %p53 = por %p51, %p52
      %p55 = scmp.ne.s32.totalorder %s38, %s54
      %p56 = scmp.eq.s32.totalorder %s16, 0
      %p57 = por %p55, %p56
      %s58 = ssub.s32 %s18, %s25
      %p59 = scmp.eq.s32.totalorder %s58, 0
      %s61 = sadd.s32 %s60, 1
      %s62 = scalar_select %p59, %s60, %s61
      %p65 = pneg %p59
      %p66 = scmp.eq.s32.totalorder %s10, 13
      %p67 = por %p65, %p66
      %p68 = scmp.ne.s32.totalorder %s60, %s63
      %p69 = scmp.eq.s32.totalorder %s10, 0
      %p70 = por %p68, %p69
      %p71 = scmp.ne.s32.totalorder %s60, %s63
      %p72 = scmp.eq.s32.totalorder %s15, 13
      %p73 = por %p71, %p72
      %p74 = scmp.ne.s32.totalorder %s63, %s64
      %p75 = scmp.eq.s32.totalorder %s15, 0
      %p76 = por %p74, %p75
      %p77 = scmp.ne.s32.totalorder %s63, %s64
      %p78 = scmp.eq.s32.totalorder %s16, 13
      %p79 = por %p77, %p78
      %p81 = scmp.ne.s32.totalorder %s64, %s80
      %p82 = scmp.eq.s32.totalorder %s16, 0
      %p83 = por %p81, %p82
      %s85 = sadd.s32 %s84, 1
      %p88 = scmp.eq.s32.totalorder %s10, 13
      %p89 = scmp.ne.s32.totalorder %s84, %s86
      %p90 = scmp.eq.s32.totalorder %s10, 0
      %p91 = por %p89, %p90
      %p92 = scmp.ne.s32.totalorder %s84, %s86
      %p93 = scmp.eq.s32.totalorder %s15, 13
      %p94 = por %p92, %p93
      %p95 = scmp.ne.s32.totalorder %s86, %s87
      %p96 = scmp.eq.s32.totalorder %s15, 0
      %p97 = por %p95, %p96
      %p98 = scmp.ne.s32.totalorder %s86, %s87
      %p99 = scmp.eq.s32.totalorder %s16, 13
      %p100 = por %p98, %p99
      %p102 = scmp.ne.s32.totalorder %s87, %s101
      %p103 = scmp.eq.s32.totalorder %s16, 0
      %p104 = por %p102, %p103
      %s106 = sadd.s32 %s105, 1
      %p109 = scmp.eq.s32.totalorder %s10, 13
      %p110 = scmp.ne.s32.totalorder %s105, %s107
      %p111 = scmp.eq.s32.totalorder %s10, 0
      %p112 = por %p110, %p111
      %p113 = scmp.ne.s32.totalorder %s105, %s107
      %p114 = scmp.eq.s32.totalorder %s15, 13
      %p115 = por %p113, %p114
      %p116 = scmp.ne.s32.totalorder %s107, %s108
      %p117 = scmp.eq.s32.totalorder %s15, 0
      %p118 = por %p116, %p117
      %p119 = scmp.ne.s32.totalorder %s107, %s108
      %p120 = scmp.eq.s32.totalorder %s16, 13
      %p121 = por %p119, %p120
      %p123 = scmp.ne.s32.totalorder %s108, %s122
      %p124 = scmp.eq.s32.totalorder %s16, 0
      %p125 = por %p123, %p124
      %s126 = ssub.s32 %s17, %s29
      %p127 = scmp.eq.s32.totalorder %s126, 0
      %s129 = sadd.s32 %s128, 1
      %s130 = scalar_select %p127, %s128, %s129
      %p133 = pneg %p127
      %p134 = scmp.eq.s32.totalorder %s10, 13
      %p135 = por %p133, %p134
      %p136 = scmp.ne.s32.totalorder %s128, %s131
      %p137 = scmp.eq.s32.totalorder %s10, 0
      %p138 = por %p136, %p137
      %p139 = scmp.ne.s32.totalorder %s128, %s131
      %p140 = scmp.eq.s32.totalorder %s15, 13
      %p141 = por %p139, %p140
      %p142 = scmp.ne.s32.totalorder %s131, %s132
      %p143 = scmp.eq.s32.totalorder %s15, 0
      %p144 = por %p142, %p143
      %p145 = scmp.ne.s32.totalorder %s131, %s132
      %p146 = scmp.eq.s32.totalorder %s16, 13
      %p147 = por %p145, %p146
      %p149 = scmp.ne.s32.totalorder %s132, %s148
      %p150 = scmp.eq.s32.totalorder %s16, 0
      %p151 = por %p149, %p150
      %p152 = scmp.le.s32.totalorder 1, %s10
      %p153 = scmp.lt.s32.totalorder %s10, 15
      %p154 = pnand %p152, %p153
      %p155 = pneg %p154
      // Predicated region
      $region9: #{frequency_discriminator.10} parent=5 // pred_check
        _
      $region10: #{frequency_discriminator.10} parent=5 // pred_check_branch
        %157 = sbr.rel (%p154) target = $region12
      $region11: #{frequency_discriminator.10} parent=5 // pred_region
        %s158 = ssub.s32 %s10, 1
        // Predicated region
        $region13: #{frequency_discriminator.10} parent=11 // pred_check
          %p159 = pneg %p97
        $region14: #{frequency_discriminator.10} parent=11 // pred_check_branch
          %161 = sbr.rel (%p159) target = $region16
        $region15: #{frequency_discriminator.10} parent=11 // pred_region
          _
        $region16: #{frequency_discriminator.10} parent=11 // pred_fallthru
          _
        // Predicated region
        $region17: #{frequency_discriminator.10} parent=11 // pred_check
          %p162 = pneg %p118
        $region18: #{frequency_discriminator.10} parent=11 // pred_check_branch
          %164 = sbr.rel (%p162) target = $region20
        $region19: #{frequency_discriminator.10} parent=11 // pred_region
          _
        $region20: #{frequency_discriminator.10} parent=11 // pred_fallthru
          _
      $region12: #{frequency_discriminator.10} parent=5 // pred_fallthru
        _
      %p165 = scmp.lt.s32.totalorder %s10, 14
      // Predicated region
      $region21: #{frequency_discriminator.10} parent=5 // pred_check
        %p166 = pneg %p165
      $region22: #{frequency_discriminator.10} parent=5 // pred_check_branch
        %168 = sbr.rel (%p166) target = $region24
      $region23: #{frequency_discriminator.10} parent=5 // pred_region
        // Predicated region
        $region25: #{frequency_discriminator.10} parent=23 // pred_check
          %p169 = pneg %p44
        $region26: #{frequency_discriminator.10} parent=23 // pred_check_branch
          %171 = sbr.rel (%p169) target = $region28
        $region27: #{frequency_discriminator.10} parent=23 // pred_region
          %s172 = sand.u32 %s34, 1
          %s173 = sand.u32 %s34, 1
          %s174 = smul.addr %s173, 168
          %s175 = scalar_lea.vmem [#allocation3], %s174
          %s176 = smul.u32 6, %s17
          %s177 = smul.u32 7, %s18
          %s178 = smul.addr %s176, 98
          %s179 = sadd.s32 %s177, %s178
          %s180 = smul.addr %s179, 4
          %s181 = scalar_lea.vmem %s0, %s180
          // Predicated region
          $region29: #{frequency_discriminator.10} parent=27 // pred_check
            _
          $region30: #{frequency_discriminator.10} parent=27 // pred_check_branch
            %183 = sbr.rel (0) target = $region32
          $region31: #{frequency_discriminator.10} parent=27 // pred_region
            // Predicated region
            $region33: #{frequency_discriminator.10} parent=31 // pred_check
              _
            $region34: #{frequency_discriminator.10} parent=31 // pred_check_branch
              %185 = sbr.rel (0) target = $region36
            $region35: #{frequency_discriminator.10} parent=31 // pred_region
              %s186 = scalar_lea.vmem %s181, 24
              %s187 = scalar_lea.vmem %s175, 24 [#allocation3]
              loop: start=0, step=1, limit=1
              $region37: #{frequency_discriminator.10} parent=35 // loop_pre_header
                _
              $region38: #{frequency_discriminator.10} parent=35 // loop_header
                %s189 = sphi 0, %s193
                %p190 = scmp.ge.s32.totalorder %s189, 1
                %s194 = sphi %s181, %s181
                %s195 = sphi %s175, %s175
              $region39: #{frequency_discriminator.10} parent=35 // loop_header_branch
                %192 = sbr.rel (%p190) target = $region43
              $region40: #{frequency_discriminator.10} parent=35 // loop_body
                %v196 = vld [vmem:[%s194] sm:$0xff]
                %197 = vst [vmem:[%s195] sm:$0xff] %v196
                %v198 = vld [vmem:[%s194 + $0x8] sm:$0xff]
                %199 = vst [vmem:[%s195 + $0x8] sm:$0xff] %v198
                %v200 = vld [vmem:[%s194 + $0x10] sm:$0xff]
                %201 = vst [vmem:[%s195 + $0x10] sm:$0xff] %v200
                %v202 = vld [vmem:[%s194 + $0x188] sm:$0xff]
                %203 = vst [vmem:[%s195 + $0x1c] sm:$0xff] %v202
                %v204 = vld [vmem:[%s194 + $0x190] sm:$0xff]
                %205 = vst [vmem:[%s195 + $0x24] sm:$0xff] %v204
                %v206 = vld [vmem:[%s194 + $0x198] sm:$0xff]
                %207 = vst [vmem:[%s195 + $0x2c] sm:$0xff] %v206
                %v208 = vld [vmem:[%s194 + $0x310] sm:$0xff]
                %209 = vst [vmem:[%s195 + $0x38] sm:$0xff] %v208
                %v210 = vld [vmem:[%s194 + $0x318] sm:$0xff]
                %211 = vst [vmem:[%s195 + $0x40] sm:$0xff] %v210
                %v212 = vld [vmem:[%s194 + $0x320] sm:$0xff]
                %213 = vst [vmem:[%s195 + $0x48] sm:$0xff] %v212
                %v214 = vld [vmem:[%s194 + $0x498] sm:$0xff]
                %215 = vst [vmem:[%s195 + $0x54] sm:$0xff] %v214
                %v216 = vld [vmem:[%s194 + $0x4a0] sm:$0xff]
                %217 = vst [vmem:[%s195 + $0x5c] sm:$0xff] %v216
                %v218 = vld [vmem:[%s194 + $0x4a8] sm:$0xff]
                %219 = vst [vmem:[%s195 + $0x64] sm:$0xff] %v218
                %v220 = vld [vmem:[%s194 + $0x620] sm:$0xff]
                %221 = vst [vmem:[%s195 + $0x70] sm:$0xff] %v220
                %v222 = vld [vmem:[%s194 + $0x628] sm:$0xff]
                %223 = vst [vmem:[%s195 + $0x78] sm:$0xff] %v222
                %v224 = vld [vmem:[%s194 + $0x630] sm:$0xff]
                %225 = vst [vmem:[%s195 + $0x80] sm:$0xff] %v224
                %v226 = vld [vmem:[%s194 + $0x7a8] sm:$0xff]
                %227 = vst [vmem:[%s195 + $0x8c] sm:$0xff] %v226
                %v228 = vld [vmem:[%s194 + $0x7b0] sm:$0xff]
                %229 = vst [vmem:[%s195 + $0x94] sm:$0xff] %v228
                %v230 = vld [vmem:[%s194 + $0x7b8] sm:$0xff]
                %231 = vst [vmem:[%s195 + $0x9c] sm:$0xff] %v230
              $region41: #{frequency_discriminator.10} parent=35 // loop_footer
                %s193 = sadd.s32 1, %s189
              $region42: #{frequency_discriminator.10} parent=35 // loop_footer_branch
                %188 = sbr.rel target = $region38
              $region43: #{frequency_discriminator.10} parent=35 // loop_exit
                _
              loop: start=0, step=1, limit=1
              $region44: #{frequency_discriminator.10} parent=35 // loop_pre_header
                _
              $region45: #{frequency_discriminator.10} parent=35 // loop_header
                %s234 = sphi 0, %s238
                %p235 = scmp.ge.s32.totalorder %s234, 1
                %s239 = sphi %s186, %s186
                %s240 = sphi %s187, %s187
              $region46: #{frequency_discriminator.10} parent=35 // loop_header_branch
                %237 = sbr.rel (%p235) target = $region50
              $region47: #{frequency_discriminator.10} parent=35 // loop_body
                %v241 = vld [vmem:[%s239] sm:$0xf]
                %242 = vst [vmem:[%s240] sm:$0xf] %v241
                %v243 = vld [vmem:[%s239 + $0x188] sm:$0xf]
                %244 = vst [vmem:[%s240 + $0x1c] sm:$0xf] %v243
                %v245 = vld [vmem:[%s239 + $0x310] sm:$0xf]
                %246 = vst [vmem:[%s240 + $0x38] sm:$0xf] %v245
                %v247 = vld [vmem:[%s239 + $0x498] sm:$0xf]
                %248 = vst [vmem:[%s240 + $0x54] sm:$0xf] %v247
                %v249 = vld [vmem:[%s239 + $0x620] sm:$0xf]
                %250 = vst [vmem:[%s240 + $0x70] sm:$0xf] %v249
                %v251 = vld [vmem:[%s239 + $0x7a8] sm:$0xf]
                %252 = vst [vmem:[%s240 + $0x8c] sm:$0xf] %v251
              $region48: #{frequency_discriminator.10} parent=35 // loop_footer
                %s238 = sadd.s32 1, %s234
              $region49: #{frequency_discriminator.10} parent=35 // loop_footer_branch
                %233 = sbr.rel target = $region45
              $region50: #{frequency_discriminator.10} parent=35 // loop_exit
                _
            $region36: #{frequency_discriminator.10} parent=31 // pred_fallthru
              _
          $region32: #{frequency_discriminator.10} parent=27 // pred_fallthru
            _
          %253 = vnop
        $region28: #{frequency_discriminator.10} parent=23 // pred_fallthru
          _
        // Predicated region
        $region51: #{frequency_discriminator.10} parent=23 // pred_check
          %p254 = pneg %p70
        $region52: #{frequency_discriminator.10} parent=23 // pred_check_branch
          %256 = sbr.rel (%p254) target = $region54
        $region53: #{frequency_discriminator.10} parent=23 // pred_region
          %s257 = smul.u32 112, %s18
          %p258 = scmp.lt.s32.totalorder %s257, 1567
          %s259 = scalar_select %p258, %s257, 1567
          %s260 = smul.addr %s259, 4
          %s261 = smul.addr %s260, 4
          %s262 = scalar_lea.vmem %s1, %s261
          %s263 = smul.u32 112, %s18
        $region54: #{frequency_discriminator.10} parent=23 // pred_fallthru
          _
      $region24: #{frequency_discriminator.10} parent=5 // pred_fallthru
        _
      %p264 = scmp.le.s32.totalorder 1, %s10
      %p265 = scmp.lt.s32.totalorder %s10, 15
      %p266 = pnand %p264, %p265
      %p267 = pneg %p266
      // Predicated region
      $region55: #{frequency_discriminator.10} parent=5 // pred_check
        _
      $region56: #{frequency_discriminator.10} parent=5 // pred_check_branch
        %269 = sbr.rel (%p266) target = $region58
      $region57: #{frequency_discriminator.10} parent=5 // pred_region
        %s270 = ssub.s32 %s10, 1
        %s271 = sand.u32 %s37, 1
        %s272 = sand.u32 %s37, 1
        %s273 = smul.addr %s272, 168
        %s274 = scalar_lea.vmem [#allocation3], %s273
        // Predicated region
        $region59: #{frequency_discriminator.10} parent=57 // pred_check
          %p275 = pneg %p50
        $region60: #{frequency_discriminator.10} parent=57 // pred_check_branch
          %277 = sbr.rel (%p275) target = $region62
        $region61: #{frequency_discriminator.10} parent=57 // pred_region
          _
        $region62: #{frequency_discriminator.10} parent=57 // pred_fallthru
          _
        %s278 = sand.u32 %s37, 1
        %s279 = sand.u32 %s37, 1
        %s280 = smul.addr %s279, 168
        %s281 = scalar_lea.vmem [#allocation3], %s280
        %p282 = pneg %p50
        %p283 = pneg %p47
        %s284 = smul.u32 112, %s20
        %p285 = scmp.lt.s32.totalorder %s284, 1567
        %s286 = scalar_select %p285, %s284, 1567
        %s287 = smul.addr %s286, 4
        %s288 = smul.addr %s287, 4
        %s289 = scalar_lea.vmem %s1, %s288
        %p290 = pneg %p76
        %p291 = pneg %p73
        %p292 = pneg %p97
        %p293 = pneg %p94
        %p294 = pneg %p118
        %p295 = pneg %p115
        %p296 = pneg %p144
        %p297 = pneg %p141
        %s298 = smul.u32 6, %s19
        %p299 = scmp.lt.s32.totalorder %s298, 5
        %s300 = scalar_select %p299, %s298, 5
        %s301 = smul.addr %s300, 4
        %s302 = smul.addr %s301, 8
        %s303 = scalar_lea.vmem %s4, %s302
        %s304 = smul.u32 6, %s19
        %s305 = smul.u32 7, %s20
        %s306 = smul.u32 112, %s20
        %p307 = scmp.lt.s32.totalorder %s306, 1567
        %s308 = scalar_select %p307, %s306, 1567
        %s309 = smul.addr %s308, 4
        %s310 = smul.addr %s309, 4
        %s311 = scalar_lea.vmem %s1, %s310
        %s312 = smul.u32 112, %s20
        %s313 = smul.u32 6, %s19
        %p314 = scmp.lt.s32.totalorder %s313, 5
        %s315 = scalar_select %p314, %s313, 5
        %s316 = smul.addr %s315, 4
        %s317 = smul.addr %s316, 8
        %s318 = scalar_lea.vmem %s4, %s317
        %s319 = smul.u32 6, %s19
        %p321 = scmp.eq.s32.totalorder %s20, 0
        // Predicated region
        $region63: #{frequency_discriminator.10} parent=57 // pred_check
          %p322 = pneg %p321
        $region64: #{frequency_discriminator.10} parent=57 // pred_check_branch
          %324 = sbr.rel (%p322) target = $region66
        $region65: #{frequency_discriminator.10} parent=57 // pred_region
          %325 = vst [vmem:[#allocation2] sm:$0xff] 0.0
          %326 = vst [vmem:[#allocation2 + $0x8] sm:$0xff] 0.0
          %327 = vst [vmem:[#allocation2 + $0x10] sm:$0xff] 0.0
          %328 = vst [vmem:[#allocation2 + $0x18] sm:$0xff] 0.0
          %329 = vst [vmem:[#allocation2 + $0x20] sm:$0xff] 0.0
          %330 = vst [vmem:[#allocation2 + $0x28] sm:$0xff] 0.0
          %331 = vst [vmem:[#allocation2 + $0x30] sm:$0xff] 0.0
          %332 = vst [vmem:[#allocation2 + $0x38] sm:$0xff] 0.0
          %333 = vst [vmem:[#allocation2 + $0x40] sm:$0xff] 0.0
          %334 = vst [vmem:[#allocation2 + $0x48] sm:$0xff] 0.0
          %335 = vst [vmem:[#allocation2 + $0x50] sm:$0xff] 0.0
          %336 = vst [vmem:[#allocation2 + $0x58] sm:$0xff] 0.0
          %337 = vst [vmem:[#allocation2 + $0x60] sm:$0xff] 0.0
          %338 = vst [vmem:[#allocation2 + $0x68] sm:$0xff] 0.0
          %339 = vst [vmem:[#allocation2 + $0x70] sm:$0xff] 0.0
          %340 = vst [vmem:[#allocation2 + $0x78] sm:$0xff] 0.0
          %341 = vst [vmem:[#allocation2 + $0x80] sm:$0xff] 0.0
          %342 = vst [vmem:[#allocation2 + $0x88] sm:$0xff] 0.0
          %343 = vst [vmem:[#allocation2 + $0x90] sm:$0xff] 0.0
          %344 = vst [vmem:[#allocation2 + $0x98] sm:$0xff] 0.0
          %345 = vst [vmem:[#allocation2 + $0xa0] sm:$0xff] 0.0
          %346 = vst [vmem:[#allocation2 + $0xa8] sm:$0xff] 0.0
          %347 = vst [vmem:[#allocation2 + $0xb0] sm:$0xff] 0.0
          %348 = vst [vmem:[#allocation2 + $0xb8] sm:$0xff] 0.0
        $region66: #{frequency_discriminator.10} parent=57 // pred_fallthru
          _
        %v349 = vld [vmem:[#allocation2] sm:$0xff]
        %v350 = vld [vmem:[#allocation2 + $0x8] sm:$0xff]
        %v351 = vld [vmem:[#allocation2 + $0x10] sm:$0xff]
        %v352 = vld [vmem:[#allocation2 + $0x18] sm:$0xff]
        %v353 = vld [vmem:[#allocation2 + $0x20] sm:$0xff]
        %v354 = vld [vmem:[#allocation2 + $0x28] sm:$0xff]
        %v355 = vld [vmem:[#allocation2 + $0x30] sm:$0xff]
        %v356 = vld [vmem:[#allocation2 + $0x38] sm:$0xff]
        %v357 = vld [vmem:[#allocation2 + $0x40] sm:$0xff]
        %v358 = vld [vmem:[#allocation2 + $0x48] sm:$0xff]
        %v359 = vld [vmem:[#allocation2 + $0x50] sm:$0xff]
        %v360 = vld [vmem:[#allocation2 + $0x58] sm:$0xff]
        %v361 = vld [vmem:[#allocation2 + $0x60] sm:$0xff]
        %v362 = vld [vmem:[#allocation2 + $0x68] sm:$0xff]
        %v363 = vld [vmem:[#allocation2 + $0x70] sm:$0xff]
        %v364 = vld [vmem:[#allocation2 + $0x78] sm:$0xff]
        %v365 = vld [vmem:[#allocation2 + $0x80] sm:$0xff]
        %v366 = vld [vmem:[#allocation2 + $0x88] sm:$0xff]
        %v367 = vld [vmem:[#allocation2 + $0x90] sm:$0xff]
        %v368 = vld [vmem:[#allocation2 + $0x98] sm:$0xff]
        %v369 = vld [vmem:[#allocation2 + $0xa0] sm:$0xff]
        %v370 = vld [vmem:[#allocation2 + $0xa8] sm:$0xff]
        %v371 = vld [vmem:[#allocation2 + $0xb0] sm:$0xff]
        %v372 = vld [vmem:[#allocation2 + $0xb8] sm:$0xff]
        %v373 = vld [vmem:[%s274] sm:$0xff]
        %v374 = vld [vmem:[%s274 + $0x8] sm:$0xff]
        %v375 = vld [vmem:[%s274 + $0x10] sm:$0xff]
        %v376 = vld [vmem:[%s274 + $0x18] sm:$0xf]
        %v377 = vld [vmem:[%s274 + $0x1c] sm:$0xff]
        %v378 = vld [vmem:[%s274 + $0x24] sm:$0xff]
        %v379 = vld [vmem:[%s274 + $0x2c] sm:$0xff]
        %v380 = vld [vmem:[%s274 + $0x34] sm:$0xf]
        %v381 = vld [vmem:[%s274 + $0x38] sm:$0xff]
        %v382 = vld [vmem:[%s274 + $0x40] sm:$0xff]
        %v383 = vld [vmem:[%s274 + $0x48] sm:$0xff]
        %v384 = vld [vmem:[%s274 + $0x50] sm:$0xf]
        %v385 = vld [vmem:[%s274 + $0x54] sm:$0xff]
        %v386 = vld [vmem:[%s274 + $0x5c] sm:$0xff]
        %v387 = vld [vmem:[%s274 + $0x64] sm:$0xff]
        %v388 = vld [vmem:[%s274 + $0x6c] sm:$0xf]
        %v389 = vld [vmem:[%s274 + $0x70] sm:$0xff]
        %v390 = vld [vmem:[%s274 + $0x78] sm:$0xff]
        %v391 = vld [vmem:[%s274 + $0x80] sm:$0xff]
        %v392 = vld [vmem:[%s274 + $0x88] sm:$0xf]
        %v393 = vld [vmem:[%s274 + $0x8c] sm:$0xff]
        %v394 = vld [vmem:[%s274 + $0x94] sm:$0xff]
        %v395 = vld [vmem:[%s274 + $0x9c] sm:$0xff]
        %v396 = vld [vmem:[%s274 + $0xa4] sm:$0xf]
        %v397 = vld [vmem:[%s311] sm:$0xff]
        %v398 = vld [vmem:[%s311 + $0x8] sm:$0xff]
        %v399 = vld [vmem:[%s311 + $0x10] sm:$0xff]
        %v400 = vld [vmem:[%s311 + $0x18] sm:$0xff]
        %v401 = vld [vmem:[%s311 + $0x20] sm:$0xff]
        %v402 = vld [vmem:[%s311 + $0x28] sm:$0xff]
        %v403 = vld [vmem:[%s311 + $0x30] sm:$0xff]
        %v404 = vld [vmem:[%s311 + $0x38] sm:$0xff]
        %v405 = vld [vmem:[%s311 + $0x40] sm:$0xff]
        %v406 = vld [vmem:[%s311 + $0x48] sm:$0xff]
        %v407 = vld [vmem:[%s311 + $0x50] sm:$0xff]
        %v408 = vld [vmem:[%s311 + $0x58] sm:$0xff]
        %v409 = vld [vmem:[%s311 + $0x60] sm:$0xff]
        %v410 = vld [vmem:[%s311 + $0x68] sm:$0xff]
        %v411 = vld [vmem:[%s311 + $0x70] sm:$0xff]
        %v412 = vld [vmem:[%s311 + $0x78] sm:$0xff]
        %v413 = vld [vmem:[%s311 + $0x80] sm:$0xff]
        %v414 = vld [vmem:[%s311 + $0x88] sm:$0xff]
        %v415 = vld [vmem:[%s311 + $0x90] sm:$0xff]
        %v416 = vld [vmem:[%s311 + $0x98] sm:$0xff]
        %v417 = vld [vmem:[%s311 + $0xa0] sm:$0xff]
        %v418 = vld [vmem:[%s311 + $0xa8] sm:$0xff]
        %v419 = vld [vmem:[%s311 + $0xb0] sm:$0xff]
        %v420 = vld [vmem:[%s311 + $0xb8] sm:$0xff]
        %v421 = vld [vmem:[%s311 + $0xc0] sm:$0xff]
        %v422 = vld [vmem:[%s311 + $0xc8] sm:$0xff]
        %v423 = vld [vmem:[%s311 + $0xd0] sm:$0xff]
        %v424 = vld [vmem:[%s311 + $0xd8] sm:$0xff]
        %v425 = vld [vmem:[%s311 + $0xe0] sm:$0xff]
        %v426 = vld [vmem:[%s311 + $0xe8] sm:$0xff]
        %v427 = vld [vmem:[%s311 + $0xf0] sm:$0xff]
        %v428 = vld [vmem:[%s311 + $0xf8] sm:$0xff]
        %v429 = vld [vmem:[%s311 + $0x100] sm:$0xff]
        %v430 = vld [vmem:[%s311 + $0x108] sm:$0xff]
        %v431 = vld [vmem:[%s311 + $0x110] sm:$0xff]
        %v432 = vld [vmem:[%s311 + $0x118] sm:$0xff]
        %v433 = vld [vmem:[%s311 + $0x120] sm:$0xff]
        %v434 = vld [vmem:[%s311 + $0x128] sm:$0xff]
        %v435 = vld [vmem:[%s311 + $0x130] sm:$0xff]
        %v436 = vld [vmem:[%s311 + $0x138] sm:$0xff]
        %v437 = vld [vmem:[%s311 + $0x140] sm:$0xff]
        %v438 = vld [vmem:[%s311 + $0x148] sm:$0xff]
        %v439 = vld [vmem:[%s311 + $0x150] sm:$0xff]
        %v440 = vld [vmem:[%s311 + $0x158] sm:$0xff]
        %v441 = vld [vmem:[%s311 + $0x160] sm:$0xff]
        %v442 = vld [vmem:[%s311 + $0x168] sm:$0xff]
        %v443 = vld [vmem:[%s311 + $0x170] sm:$0xff]
        %v444 = vld [vmem:[%s311 + $0x178] sm:$0xff]
        %v445 = vld [vmem:[%s311 + $0x180] sm:$0xff]
        %v446 = vld [vmem:[%s311 + $0x188] sm:$0xff]
        %v447 = vld [vmem:[%s311 + $0x190] sm:$0xff]
        %v448 = vld [vmem:[%s311 + $0x198] sm:$0xff]
        %v449 = vld [vmem:[%s311 + $0x1a0] sm:$0xff]
        %v450 = vld [vmem:[%s311 + $0x1a8] sm:$0xff]
        %v451 = vld [vmem:[%s311 + $0x1b0] sm:$0xff]
        %v452 = vld [vmem:[%s311 + $0x1b8] sm:$0xff]
        %v453 = vld [vmem:[%s311 + $0x1c0] sm:$0xff]
        %v454 = vld [vmem:[%s311 + $0x1c8] sm:$0xff]
        %v455 = vld [vmem:[%s311 + $0x1d0] sm:$0xff]
        %v456 = vld [vmem:[%s311 + $0x1d8] sm:$0xff]
        %v457 = vld [vmem:[%s311 + $0x1e0] sm:$0xff]
        %v458 = vld [vmem:[%s311 + $0x1e8] sm:$0xff]
        %v459 = vld [vmem:[%s311 + $0x1f0] sm:$0xff]
        %v460 = vld [vmem:[%s311 + $0x1f8] sm:$0xff]
        %v461 = vld [vmem:[%s311 + $0x200] sm:$0xff]
        %v462 = vld [vmem:[%s311 + $0x208] sm:$0xff]
        %v463 = vld [vmem:[%s311 + $0x210] sm:$0xff]
        %v464 = vld [vmem:[%s311 + $0x218] sm:$0xff]
        %v465 = vld [vmem:[%s311 + $0x220] sm:$0xff]
        %v466 = vld [vmem:[%s311 + $0x228] sm:$0xff]
        %v467 = vld [vmem:[%s311 + $0x230] sm:$0xff]
        %v468 = vld [vmem:[%s311 + $0x238] sm:$0xff]
        %v469 = vld [vmem:[%s311 + $0x240] sm:$0xff]
        %v470 = vld [vmem:[%s311 + $0x248] sm:$0xff]
        %v471 = vld [vmem:[%s311 + $0x250] sm:$0xff]
        %v472 = vld [vmem:[%s311 + $0x258] sm:$0xff]
        %v473 = vld [vmem:[%s311 + $0x260] sm:$0xff]
        %v474 = vld [vmem:[%s311 + $0x268] sm:$0xff]
        %v475 = vld [vmem:[%s311 + $0x270] sm:$0xff]
        %v476 = vld [vmem:[%s311 + $0x278] sm:$0xff]
        %v477 = vld [vmem:[%s311 + $0x280] sm:$0xff]
        %v478 = vld [vmem:[%s311 + $0x288] sm:$0xff]
        %v479 = vld [vmem:[%s311 + $0x290] sm:$0xff]
        %v480 = vld [vmem:[%s311 + $0x298] sm:$0xff]
        %v481 = vld [vmem:[%s311 + $0x2a0] sm:$0xff]
        %v482 = vld [vmem:[%s311 + $0x2a8] sm:$0xff]
        %v483 = vld [vmem:[%s311 + $0x2b0] sm:$0xff]
        %v484 = vld [vmem:[%s311 + $0x2b8] sm:$0xff]
        %v485 = vld [vmem:[%s311 + $0x2c0] sm:$0xff]
        %v486 = vld [vmem:[%s311 + $0x2c8] sm:$0xff]
        %v487 = vld [vmem:[%s311 + $0x2d0] sm:$0xff]
        %v488 = vld [vmem:[%s311 + $0x2d8] sm:$0xff]
        %v489 = vld [vmem:[%s311 + $0x2e0] sm:$0xff]
        %v490 = vld [vmem:[%s311 + $0x2e8] sm:$0xff]
        %v491 = vld [vmem:[%s311 + $0x2f0] sm:$0xff]
        %v492 = vld [vmem:[%s311 + $0x2f8] sm:$0xff]
        %v493 = vld [vmem:[%s311 + $0x300] sm:$0xff]
        %v494 = vld [vmem:[%s311 + $0x308] sm:$0xff]
        %v495 = vld [vmem:[%s311 + $0x310] sm:$0xff]
        %v496 = vld [vmem:[%s311 + $0x318] sm:$0xff]
        %v497 = vld [vmem:[%s311 + $0x320] sm:$0xff]
        %v498 = vld [vmem:[%s311 + $0x328] sm:$0xff]
        %v499 = vld [vmem:[%s311 + $0x330] sm:$0xff]
        %v500 = vld [vmem:[%s311 + $0x338] sm:$0xff]
        %v501 = vld [vmem:[%s311 + $0x340] sm:$0xff]
        %v502 = vld [vmem:[%s311 + $0x348] sm:$0xff]
        %v503 = vld [vmem:[%s311 + $0x350] sm:$0xff]
        %v504 = vld [vmem:[%s311 + $0x358] sm:$0xff]
        %v505 = vld [vmem:[%s311 + $0x360] sm:$0xff]
        %v506 = vld [vmem:[%s311 + $0x368] sm:$0xff]
        %v507 = vld [vmem:[%s311 + $0x370] sm:$0xff]
        %v508 = vld [vmem:[%s311 + $0x378] sm:$0xff]
        %v509 = vld [vmem:[%s311 + $0x380] sm:$0xff]
        %v510 = vld [vmem:[%s311 + $0x388] sm:$0xff]
        %v511 = vld [vmem:[%s311 + $0x390] sm:$0xff]
        %v512 = vld [vmem:[%s311 + $0x398] sm:$0xff]
        %v513 = vld [vmem:[%s311 + $0x3a0] sm:$0xff]
        %v514 = vld [vmem:[%s311 + $0x3a8] sm:$0xff]
        %v515 = vld [vmem:[%s311 + $0x3b0] sm:$0xff]
        %v516 = vld [vmem:[%s311 + $0x3b8] sm:$0xff]
        %v517 = vld [vmem:[%s311 + $0x3c0] sm:$0xff]
        %v518 = vld [vmem:[%s311 + $0x3c8] sm:$0xff]
        %v519 = vld [vmem:[%s311 + $0x3d0] sm:$0xff]
        %v520 = vld [vmem:[%s311 + $0x3d8] sm:$0xff]
        %v521 = vld [vmem:[%s311 + $0x3e0] sm:$0xff]
        %v522 = vld [vmem:[%s311 + $0x3e8] sm:$0xff]
        %v523 = vld [vmem:[%s311 + $0x3f0] sm:$0xff]
        %v524 = vld [vmem:[%s311 + $0x3f8] sm:$0xff]
        %v525 = vld [vmem:[%s311 + $0x400] sm:$0xff]
        %v526 = vld [vmem:[%s311 + $0x408] sm:$0xff]
        %v527 = vld [vmem:[%s311 + $0x410] sm:$0xff]
        %v528 = vld [vmem:[%s311 + $0x418] sm:$0xff]
        %v529 = vld [vmem:[%s311 + $0x420] sm:$0xff]
        %v530 = vld [vmem:[%s311 + $0x428] sm:$0xff]
        %v531 = vld [vmem:[%s311 + $0x430] sm:$0xff]
        %v532 = vld [vmem:[%s311 + $0x438] sm:$0xff]
        %v533 = vld [vmem:[%s311 + $0x440] sm:$0xff]
        %v534 = vld [vmem:[%s311 + $0x448] sm:$0xff]
        %v535 = vld [vmem:[%s311 + $0x450] sm:$0xff]
        %v536 = vld [vmem:[%s311 + $0x458] sm:$0xff]
        %v537 = vld [vmem:[%s311 + $0x460] sm:$0xff]
        %v538 = vld [vmem:[%s311 + $0x468] sm:$0xff]
        %v539 = vld [vmem:[%s311 + $0x470] sm:$0xff]
        %v540 = vld [vmem:[%s311 + $0x478] sm:$0xff]
        %v541 = vld [vmem:[%s311 + $0x480] sm:$0xff]
        %v542 = vld [vmem:[%s311 + $0x488] sm:$0xff]
        %v543 = vld [vmem:[%s311 + $0x490] sm:$0xff]
        %v544 = vld [vmem:[%s311 + $0x498] sm:$0xff]
        %v545 = vld [vmem:[%s311 + $0x4a0] sm:$0xff]
        %v546 = vld [vmem:[%s311 + $0x4a8] sm:$0xff]
        %v547 = vld [vmem:[%s311 + $0x4b0] sm:$0xff]
        %v548 = vld [vmem:[%s311 + $0x4b8] sm:$0xff]
        %v549 = vld [vmem:[%s311 + $0x4c0] sm:$0xff]
        %v550 = vld [vmem:[%s311 + $0x4c8] sm:$0xff]
        %v551 = vld [vmem:[%s311 + $0x4d0] sm:$0xff]
        %v552 = vld [vmem:[%s311 + $0x4d8] sm:$0xff]
        %v553 = vld [vmem:[%s311 + $0x4e0] sm:$0xff]
        %v554 = vld [vmem:[%s311 + $0x4e8] sm:$0xff]
        %v555 = vld [vmem:[%s311 + $0x4f0] sm:$0xff]
        %v556 = vld [vmem:[%s311 + $0x4f8] sm:$0xff]
        %v557 = vld [vmem:[%s311 + $0x500] sm:$0xff]
        %v558 = vld [vmem:[%s311 + $0x508] sm:$0xff]
        %v559 = vld [vmem:[%s311 + $0x510] sm:$0xff]
        %v560 = vld [vmem:[%s311 + $0x518] sm:$0xff]
        %v561 = vld [vmem:[%s311 + $0x520] sm:$0xff]
        %v562 = vld [vmem:[%s311 + $0x528] sm:$0xff]
        %v563 = vld [vmem:[%s311 + $0x530] sm:$0xff]
        %v564 = vld [vmem:[%s311 + $0x538] sm:$0xff]
        %v565 = vld [vmem:[%s311 + $0x540] sm:$0xff]
        %v566 = vld [vmem:[%s311 + $0x548] sm:$0xff]
        %v567 = vld [vmem:[%s311 + $0x550] sm:$0xff]
        %v568 = vld [vmem:[%s311 + $0x558] sm:$0xff]
        %v569 = vld [vmem:[%s311 + $0x560] sm:$0xff]
        %v570 = vld [vmem:[%s311 + $0x568] sm:$0xff]
        %v571 = vld [vmem:[%s311 + $0x570] sm:$0xff]
        %v572 = vld [vmem:[%s311 + $0x578] sm:$0xff]
        %v573 = vld [vmem:[%s311 + $0x580] sm:$0xff]
        %v574 = vld [vmem:[%s311 + $0x588] sm:$0xff]
        %v575 = vld [vmem:[%s311 + $0x590] sm:$0xff]
        %v576 = vld [vmem:[%s311 + $0x598] sm:$0xff]
        %v577 = vld [vmem:[%s311 + $0x5a0] sm:$0xff]
        %v578 = vld [vmem:[%s311 + $0x5a8] sm:$0xff]
        %v579 = vld [vmem:[%s311 + $0x5b0] sm:$0xff]
        %v580 = vld [vmem:[%s311 + $0x5b8] sm:$0xff]
        %v581 = vld [vmem:[%s311 + $0x5c0] sm:$0xff]
        %v582 = vld [vmem:[%s311 + $0x5c8] sm:$0xff]
        %v583 = vld [vmem:[%s311 + $0x5d0] sm:$0xff]
        %v584 = vld [vmem:[%s311 + $0x5d8] sm:$0xff]
        %v585 = vld [vmem:[%s311 + $0x5e0] sm:$0xff]
        %v586 = vld [vmem:[%s311 + $0x5e8] sm:$0xff]
        %v587 = vld [vmem:[%s311 + $0x5f0] sm:$0xff]
        %v588 = vld [vmem:[%s311 + $0x5f8] sm:$0xff]
        %v589 = vld [vmem:[%s311 + $0x600] sm:$0xff]
        %v590 = vld [vmem:[%s311 + $0x608] sm:$0xff]
        %v591 = vld [vmem:[%s311 + $0x610] sm:$0xff]
        %v592 = vld [vmem:[%s311 + $0x618] sm:$0xff]
        %v593 = vld [vmem:[%s311 + $0x620] sm:$0xff]
        %v594 = vld [vmem:[%s311 + $0x628] sm:$0xff]
        %v595 = vld [vmem:[%s311 + $0x630] sm:$0xff]
        %v596 = vld [vmem:[%s311 + $0x638] sm:$0xff]
        %v597 = vld [vmem:[%s311 + $0x640] sm:$0xff]
        %v598 = vld [vmem:[%s311 + $0x648] sm:$0xff]
        %v599 = vld [vmem:[%s311 + $0x650] sm:$0xff]
        %v600 = vld [vmem:[%s311 + $0x658] sm:$0xff]
        %v601 = vld [vmem:[%s311 + $0x660] sm:$0xff]
        %v602 = vld [vmem:[%s311 + $0x668] sm:$0xff]
        %v603 = vld [vmem:[%s311 + $0x670] sm:$0xff]
        %v604 = vld [vmem:[%s311 + $0x678] sm:$0xff]
        %v605 = vld [vmem:[%s311 + $0x680] sm:$0xff]
        %v606 = vld [vmem:[%s311 + $0x688] sm:$0xff]
        %v607 = vld [vmem:[%s311 + $0x690] sm:$0xff]
        %v608 = vld [vmem:[%s311 + $0x698] sm:$0xff]
        %v609 = vld [vmem:[%s311 + $0x6a0] sm:$0xff]
        %v610 = vld [vmem:[%s311 + $0x6a8] sm:$0xff]
        %v611 = vld [vmem:[%s311 + $0x6b0] sm:$0xff]
        %v612 = vld [vmem:[%s311 + $0x6b8] sm:$0xff]
        %v613 = vld [vmem:[%s311 + $0x6c0] sm:$0xff]
        %v614 = vld [vmem:[%s311 + $0x6c8] sm:$0xff]
        %v615 = vld [vmem:[%s311 + $0x6d0] sm:$0xff]
        %v616 = vld [vmem:[%s311 + $0x6d8] sm:$0xff]
        %v617 = vld [vmem:[%s311 + $0x6e0] sm:$0xff]
        %v618 = vld [vmem:[%s311 + $0x6e8] sm:$0xff]
        %v619 = vld [vmem:[%s311 + $0x6f0] sm:$0xff]
        %v620 = vld [vmem:[%s311 + $0x6f8] sm:$0xff]
        %v645 = vunpack.c.l.b16 %v373
        %v646 = vunpack.c.h.b16 %v373
        %v647 = vunpack.c.l.b16 %v374
        %v648 = vunpack.c.h.b16 %v374
        %v649 = vunpack.c.l.b16 %v375
        %v650 = vunpack.c.h.b16 %v375
        %v651 = vunpack.c.l.b16 %v376
        %v652 = vunpack.c.l.b16 %v377
        %v653 = vunpack.c.h.b16 %v377
        %v654 = vunpack.c.l.b16 %v378
        %v655 = vunpack.c.h.b16 %v378
        %v656 = vunpack.c.l.b16 %v379
        %v657 = vunpack.c.h.b16 %v379
        %v658 = vunpack.c.l.b16 %v380
        %v659 = vunpack.c.l.b16 %v381
        %v660 = vunpack.c.h.b16 %v381
        %v661 = vunpack.c.l.b16 %v382
        %v662 = vunpack.c.h.b16 %v382
        %v663 = vunpack.c.l.b16 %v383
        %v664 = vunpack.c.h.b16 %v383
        %v665 = vunpack.c.l.b16 %v384
        %v666 = vunpack.c.l.b16 %v385
        %v667 = vunpack.c.h.b16 %v385
        %v668 = vunpack.c.l.b16 %v386
        %v669 = vunpack.c.h.b16 %v386
        %v670 = vunpack.c.l.b16 %v387
        %v671 = vunpack.c.h.b16 %v387
        %v672 = vunpack.c.l.b16 %v388
        %v673 = vunpack.c.l.b16 %v389
        %v674 = vunpack.c.h.b16 %v389
        %v675 = vunpack.c.l.b16 %v390
        %v676 = vunpack.c.h.b16 %v390
        %v677 = vunpack.c.l.b16 %v391
        %v678 = vunpack.c.h.b16 %v391
        %v679 = vunpack.c.l.b16 %v392
        %v680 = vunpack.c.l.b16 %v393
        %v681 = vunpack.c.h.b16 %v393
        %v682 = vunpack.c.l.b16 %v394
        %v683 = vunpack.c.h.b16 %v394
        %v684 = vunpack.c.l.b16 %v395
        %v685 = vunpack.c.h.b16 %v395
        %v686 = vunpack.c.l.b16 %v396
        %v687 = vpack.c.b16 %v652, %v645
        %v688 = vpack.c.b16 %v653, %v646
        %v689 = vpack.c.b16 %v654, %v647
        %v690 = vpack.c.b16 %v655, %v648
        %v691 = vpack.c.b16 %v656, %v649
        %v692 = vpack.c.b16 %v657, %v650
        %v693 = vpack.c.b16 %v658, %v651
        %v694 = vpack.c.b16 %v666, %v659
        %v695 = vpack.c.b16 %v667, %v660
        %v696 = vpack.c.b16 %v668, %v661
        %v697 = vpack.c.b16 %v669, %v662
        %v698 = vpack.c.b16 %v670, %v663
        %v699 = vpack.c.b16 %v671, %v664
        %v700 = vpack.c.b16 %v672, %v665
        %v701 = vpack.c.b16 %v680, %v673
        %v702 = vpack.c.b16 %v681, %v674
        %v703 = vpack.c.b16 %v682, %v675
        %v704 = vpack.c.b16 %v683, %v676
        %v705 = vpack.c.b16 %v684, %v677
        %v706 = vpack.c.b16 %v685, %v678
        %v707 = vpack.c.b16 %v686, %v679
        %v953 = vunpack.c.l.b16 %v397
        %v954 = vunpack.c.h.b16 %v397
        %v955 = vunpack.c.l.b16 %v398
        %v956 = vunpack.c.h.b16 %v398
        %v957 = vunpack.c.l.b16 %v399
        %v958 = vunpack.c.h.b16 %v399
        %v959 = vunpack.c.l.b16 %v400
        %v960 = vunpack.c.h.b16 %v400
        %v961 = vunpack.c.l.b16 %v401
        %v962 = vunpack.c.h.b16 %v401
        %v963 = vunpack.c.l.b16 %v402
        %v964 = vunpack.c.h.b16 %v402
        %v965 = vunpack.c.l.b16 %v403
        %v966 = vunpack.c.h.b16 %v403
        %v967 = vunpack.c.l.b16 %v404
        %v968 = vunpack.c.h.b16 %v404
        %v969 = vunpack.c.l.b16 %v405
        %v970 = vunpack.c.h.b16 %v405
        %v971 = vunpack.c.l.b16 %v406
        %v972 = vunpack.c.h.b16 %v406
        %v973 = vunpack.c.l.b16 %v407
        %v974 = vunpack.c.h.b16 %v407
        %v975 = vunpack.c.l.b16 %v408
        %v976 = vunpack.c.h.b16 %v408
        %v977 = vunpack.c.l.b16 %v409
        %v978 = vunpack.c.h.b16 %v409
        %v979 = vunpack.c.l.b16 %v410
        %v980 = vunpack.c.h.b16 %v410
        %v981 = vunpack.c.l.b16 %v411
        %v982 = vunpack.c.h.b16 %v411
        %v983 = vunpack.c.l.b16 %v412
        %v984 = vunpack.c.h.b16 %v412
        %v985 = vunpack.c.l.b16 %v413
        %v986 = vunpack.c.h.b16 %v413
        %v987 = vunpack.c.l.b16 %v414
        %v988 = vunpack.c.h.b16 %v414
        %v989 = vunpack.c.l.b16 %v415
        %v990 = vunpack.c.h.b16 %v415
        %v991 = vunpack.c.l.b16 %v416
        %v992 = vunpack.c.h.b16 %v416
        %v993 = vunpack.c.l.b16 %v417
        %v994 = vunpack.c.h.b16 %v417
        %v995 = vunpack.c.l.b16 %v418
        %v996 = vunpack.c.h.b16 %v418
        %v997 = vunpack.c.l.b16 %v419
        %v998 = vunpack.c.h.b16 %v419
        %v999 = vunpack.c.l.b16 %v420
        %v1000 = vunpack.c.h.b16 %v420
        %v1001 = vunpack.c.l.b16 %v421
        %v1002 = vunpack.c.h.b16 %v421
        %v1003 = vunpack.c.l.b16 %v422
        %v1004 = vunpack.c.h.b16 %v422
        %v1005 = vunpack.c.l.b16 %v423
        %v1006 = vunpack.c.h.b16 %v423
        %v1007 = vunpack.c.l.b16 %v424
        %v1008 = vunpack.c.h.b16 %v424
        %v1009 = vunpack.c.l.b16 %v425
        %v1010 = vunpack.c.h.b16 %v425
        %v1011 = vunpack.c.l.b16 %v426
        %v1012 = vunpack.c.h.b16 %v426
        %v1013 = vunpack.c.l.b16 %v427
        %v1014 = vunpack.c.h.b16 %v427
        %v1015 = vunpack.c.l.b16 %v428
        %v1016 = vunpack.c.h.b16 %v428
        %v1017 = vunpack.c.l.b16 %v429
        %v1018 = vunpack.c.h.b16 %v429
        %v1019 = vunpack.c.l.b16 %v430
        %v1020 = vunpack.c.h.b16 %v430
        %v1021 = vunpack.c.l.b16 %v431
        %v1022 = vunpack.c.h.b16 %v431
        %v1023 = vunpack.c.l.b16 %v432
        %v1024 = vunpack.c.h.b16 %v432
        %v1025 = vunpack.c.l.b16 %v433
        %v1026 = vunpack.c.h.b16 %v433
        %v1027 = vunpack.c.l.b16 %v434
        %v1028 = vunpack.c.h.b16 %v434
        %v1029 = vunpack.c.l.b16 %v435
        %v1030 = vunpack.c.h.b16 %v435
        %v1031 = vunpack.c.l.b16 %v436
        %v1032 = vunpack.c.h.b16 %v436
        %v1033 = vunpack.c.l.b16 %v437
        %v1034 = vunpack.c.h.b16 %v437
        %v1035 = vunpack.c.l.b16 %v438
        %v1036 = vunpack.c.h.b16 %v438
        %v1037 = vunpack.c.l.b16 %v439
        %v1038 = vunpack.c.h.b16 %v439
        %v1039 = vunpack.c.l.b16 %v440
        %v1040 = vunpack.c.h.b16 %v440
        %v1041 = vunpack.c.l.b16 %v441
        %v1042 = vunpack.c.h.b16 %v441
        %v1043 = vunpack.c.l.b16 %v442
        %v1044 = vunpack.c.h.b16 %v442
        %v1045 = vunpack.c.l.b16 %v443
        %v1046 = vunpack.c.h.b16 %v443
        %v1047 = vunpack.c.l.b16 %v444
        %v1048 = vunpack.c.h.b16 %v444
        %v1049 = vunpack.c.l.b16 %v445
        %v1050 = vunpack.c.h.b16 %v445
        %v1051 = vunpack.c.l.b16 %v446
        %v1052 = vunpack.c.h.b16 %v446
        %v1053 = vunpack.c.l.b16 %v447
        %v1054 = vunpack.c.h.b16 %v447
        %v1055 = vunpack.c.l.b16 %v448
        %v1056 = vunpack.c.h.b16 %v448
        %v1057 = vunpack.c.l.b16 %v449
        %v1058 = vunpack.c.h.b16 %v449
        %v1059 = vunpack.c.l.b16 %v450
        %v1060 = vunpack.c.h.b16 %v450
        %v1061 = vunpack.c.l.b16 %v451
        %v1062 = vunpack.c.h.b16 %v451
        %v1063 = vunpack.c.l.b16 %v452
        %v1064 = vunpack.c.h.b16 %v452
        %v1065 = vunpack.c.l.b16 %v453
        %v1066 = vunpack.c.h.b16 %v453
        %v1067 = vunpack.c.l.b16 %v454
        %v1068 = vunpack.c.h.b16 %v454
        %v1069 = vunpack.c.l.b16 %v455
        %v1070 = vunpack.c.h.b16 %v455
        %v1071 = vunpack.c.l.b16 %v456
        %v1072 = vunpack.c.h.b16 %v456
        %v1073 = vunpack.c.l.b16 %v457
        %v1074 = vunpack.c.h.b16 %v457
        %v1075 = vunpack.c.l.b16 %v458
        %v1076 = vunpack.c.h.b16 %v458
        %v1077 = vunpack.c.l.b16 %v459
        %v1078 = vunpack.c.h.b16 %v459
        %v1079 = vunpack.c.l.b16 %v460
        %v1080 = vunpack.c.h.b16 %v460
        %v1081 = vunpack.c.l.b16 %v461
        %v1082 = vunpack.c.h.b16 %v461
        %v1083 = vunpack.c.l.b16 %v462
        %v1084 = vunpack.c.h.b16 %v462
        %v1085 = vunpack.c.l.b16 %v463
        %v1086 = vunpack.c.h.b16 %v463
        %v1087 = vunpack.c.l.b16 %v464
        %v1088 = vunpack.c.h.b16 %v464
        %v1089 = vunpack.c.l.b16 %v465
        %v1090 = vunpack.c.h.b16 %v465
        %v1091 = vunpack.c.l.b16 %v466
        %v1092 = vunpack.c.h.b16 %v466
        %v1093 = vunpack.c.l.b16 %v467
        %v1094 = vunpack.c.h.b16 %v467
        %v1095 = vunpack.c.l.b16 %v468
        %v1096 = vunpack.c.h.b16 %v468
        %v1097 = vunpack.c.l.b16 %v469
        %v1098 = vunpack.c.h.b16 %v469
        %v1099 = vunpack.c.l.b16 %v470
        %v1100 = vunpack.c.h.b16 %v470
        %v1101 = vunpack.c.l.b16 %v471
        %v1102 = vunpack.c.h.b16 %v471
        %v1103 = vunpack.c.l.b16 %v472
        %v1104 = vunpack.c.h.b16 %v472
        %v1105 = vunpack.c.l.b16 %v473
        %v1106 = vunpack.c.h.b16 %v473
        %v1107 = vunpack.c.l.b16 %v474
        %v1108 = vunpack.c.h.b16 %v474
        %v1109 = vunpack.c.l.b16 %v475
        %v1110 = vunpack.c.h.b16 %v475
        %v1111 = vunpack.c.l.b16 %v476
        %v1112 = vunpack.c.h.b16 %v476
        %v1113 = vunpack.c.l.b16 %v477
        %v1114 = vunpack.c.h.b16 %v477
        %v1115 = vunpack.c.l.b16 %v478
        %v1116 = vunpack.c.h.b16 %v478
        %v1117 = vunpack.c.l.b16 %v479
        %v1118 = vunpack.c.h.b16 %v479
        %v1119 = vunpack.c.l.b16 %v480
        %v1120 = vunpack.c.h.b16 %v480
        %v1121 = vunpack.c.l.b16 %v481
        %v1122 = vunpack.c.h.b16 %v481
        %v1123 = vunpack.c.l.b16 %v482
        %v1124 = vunpack.c.h.b16 %v482
        %v1125 = vunpack.c.l.b16 %v483
        %v1126 = vunpack.c.h.b16 %v483
        %v1127 = vunpack.c.l.b16 %v484
        %v1128 = vunpack.c.h.b16 %v484
        %v1129 = vunpack.c.l.b16 %v485
        %v1130 = vunpack.c.h.b16 %v485
        %v1131 = vunpack.c.l.b16 %v486
        %v1132 = vunpack.c.h.b16 %v486
        %v1133 = vunpack.c.l.b16 %v487
        %v1134 = vunpack.c.h.b16 %v487
        %v1135 = vunpack.c.l.b16 %v488
        %v1136 = vunpack.c.h.b16 %v488
        %v1137 = vunpack.c.l.b16 %v489
        %v1138 = vunpack.c.h.b16 %v489
        %v1139 = vunpack.c.l.b16 %v490
        %v1140 = vunpack.c.h.b16 %v490
        %v1141 = vunpack.c.l.b16 %v491
        %v1142 = vunpack.c.h.b16 %v491
        %v1143 = vunpack.c.l.b16 %v492
        %v1144 = vunpack.c.h.b16 %v492
        %v1145 = vunpack.c.l.b16 %v493
        %v1146 = vunpack.c.h.b16 %v493
        %v1147 = vunpack.c.l.b16 %v494
        %v1148 = vunpack.c.h.b16 %v494
        %v1149 = vunpack.c.l.b16 %v495
        %v1150 = vunpack.c.h.b16 %v495
        %v1151 = vunpack.c.l.b16 %v496
        %v1152 = vunpack.c.h.b16 %v496
        %v1153 = vunpack.c.l.b16 %v497
        %v1154 = vunpack.c.h.b16 %v497
        %v1155 = vunpack.c.l.b16 %v498
        %v1156 = vunpack.c.h.b16 %v498
        %v1157 = vunpack.c.l.b16 %v499
        %v1158 = vunpack.c.h.b16 %v499
        %v1159 = vunpack.c.l.b16 %v500
        %v1160 = vunpack.c.h.b16 %v500
        %v1161 = vunpack.c.l.b16 %v501
        %v1162 = vunpack.c.h.b16 %v501
        %v1163 = vunpack.c.l.b16 %v502
        %v1164 = vunpack.c.h.b16 %v502
        %v1165 = vunpack.c.l.b16 %v503
        %v1166 = vunpack.c.h.b16 %v503
        %v1167 = vunpack.c.l.b16 %v504
        %v1168 = vunpack.c.h.b16 %v504
        %v1169 = vunpack.c.l.b16 %v505
        %v1170 = vunpack.c.h.b16 %v505
        %v1171 = vunpack.c.l.b16 %v506
        %v1172 = vunpack.c.h.b16 %v506
        %v1173 = vunpack.c.l.b16 %v507
        %v1174 = vunpack.c.h.b16 %v507
        %v1175 = vunpack.c.l.b16 %v508
        %v1176 = vunpack.c.h.b16 %v508
        %v1177 = vunpack.c.l.b16 %v509
        %v1178 = vunpack.c.h.b16 %v509
        %v1179 = vunpack.c.l.b16 %v510
        %v1180 = vunpack.c.h.b16 %v510
        %v1181 = vunpack.c.l.b16 %v511
        %v1182 = vunpack.c.h.b16 %v511
        %v1183 = vunpack.c.l.b16 %v512
        %v1184 = vunpack.c.h.b16 %v512
        %v1185 = vunpack.c.l.b16 %v513
        %v1186 = vunpack.c.h.b16 %v513
        %v1187 = vunpack.c.l.b16 %v514
        %v1188 = vunpack.c.h.b16 %v514
        %v1189 = vunpack.c.l.b16 %v515
        %v1190 = vunpack.c.h.b16 %v515
        %v1191 = vunpack.c.l.b16 %v516
        %v1192 = vunpack.c.h.b16 %v516
        %v1193 = vunpack.c.l.b16 %v517
        %v1194 = vunpack.c.h.b16 %v517
        %v1195 = vunpack.c.l.b16 %v518
        %v1196 = vunpack.c.h.b16 %v518
        %v1197 = vunpack.c.l.b16 %v519
        %v1198 = vunpack.c.h.b16 %v519
        %v1199 = vunpack.c.l.b16 %v520
        %v1200 = vunpack.c.h.b16 %v520
        %v1201 = vunpack.c.l.b16 %v521
        %v1202 = vunpack.c.h.b16 %v521
        %v1203 = vunpack.c.l.b16 %v522
        %v1204 = vunpack.c.h.b16 %v522
        %v1205 = vunpack.c.l.b16 %v523
        %v1206 = vunpack.c.h.b16 %v523
        %v1207 = vunpack.c.l.b16 %v524
        %v1208 = vunpack.c.h.b16 %v524
        %v1209 = vunpack.c.l.b16 %v525
        %v1210 = vunpack.c.h.b16 %v525
        %v1211 = vunpack.c.l.b16 %v526
        %v1212 = vunpack.c.h.b16 %v526
        %v1213 = vunpack.c.l.b16 %v527
        %v1214 = vunpack.c.h.b16 %v527
        %v1215 = vunpack.c.l.b16 %v528
        %v1216 = vunpack.c.h.b16 %v528
        %v1217 = vunpack.c.l.b16 %v529
        %v1218 = vunpack.c.h.b16 %v529
        %v1219 = vunpack.c.l.b16 %v530
        %v1220 = vunpack.c.h.b16 %v530
        %v1221 = vunpack.c.l.b16 %v531
        %v1222 = vunpack.c.h.b16 %v531
        %v1223 = vunpack.c.l.b16 %v532
        %v1224 = vunpack.c.h.b16 %v532
        %v1225 = vunpack.c.l.b16 %v533
        %v1226 = vunpack.c.h.b16 %v533
        %v1227 = vunpack.c.l.b16 %v534
        %v1228 = vunpack.c.h.b16 %v534
        %v1229 = vunpack.c.l.b16 %v535
        %v1230 = vunpack.c.h.b16 %v535
        %v1231 = vunpack.c.l.b16 %v536
        %v1232 = vunpack.c.h.b16 %v536
        %v1233 = vunpack.c.l.b16 %v537
        %v1234 = vunpack.c.h.b16 %v537
        %v1235 = vunpack.c.l.b16 %v538
        %v1236 = vunpack.c.h.b16 %v538
        %v1237 = vunpack.c.l.b16 %v539
        %v1238 = vunpack.c.h.b16 %v539
        %v1239 = vunpack.c.l.b16 %v540
        %v1240 = vunpack.c.h.b16 %v540
        %v1241 = vunpack.c.l.b16 %v541
        %v1242 = vunpack.c.h.b16 %v541
        %v1243 = vunpack.c.l.b16 %v542
        %v1244 = vunpack.c.h.b16 %v542
        %v1245 = vunpack.c.l.b16 %v543
        %v1246 = vunpack.c.h.b16 %v543
        %v1247 = vunpack.c.l.b16 %v544
        %v1248 = vunpack.c.h.b16 %v544
        %v1249 = vunpack.c.l.b16 %v545
        %v1250 = vunpack.c.h.b16 %v545
        %v1251 = vunpack.c.l.b16 %v546
        %v1252 = vunpack.c.h.b16 %v546
        %v1253 = vunpack.c.l.b16 %v547
        %v1254 = vunpack.c.h.b16 %v547
        %v1255 = vunpack.c.l.b16 %v548
        %v1256 = vunpack.c.h.b16 %v548
        %v1257 = vunpack.c.l.b16 %v549
        %v1258 = vunpack.c.h.b16 %v549
        %v1259 = vunpack.c.l.b16 %v550
        %v1260 = vunpack.c.h.b16 %v550
        %v1261 = vunpack.c.l.b16 %v551
        %v1262 = vunpack.c.h.b16 %v551
        %v1263 = vunpack.c.l.b16 %v552
        %v1264 = vunpack.c.h.b16 %v552
        %v1265 = vunpack.c.l.b16 %v553
        %v1266 = vunpack.c.h.b16 %v553
        %v1267 = vunpack.c.l.b16 %v554
        %v1268 = vunpack.c.h.b16 %v554
        %v1269 = vunpack.c.l.b16 %v555
        %v1270 = vunpack.c.h.b16 %v555
        %v1271 = vunpack.c.l.b16 %v556
        %v1272 = vunpack.c.h.b16 %v556
        %v1273 = vunpack.c.l.b16 %v557
        %v1274 = vunpack.c.h.b16 %v557
        %v1275 = vunpack.c.l.b16 %v558
        %v1276 = vunpack.c.h.b16 %v558
        %v1277 = vunpack.c.l.b16 %v559
        %v1278 = vunpack.c.h.b16 %v559
        %v1279 = vunpack.c.l.b16 %v560
        %v1280 = vunpack.c.h.b16 %v560
        %v1281 = vunpack.c.l.b16 %v561
        %v1282 = vunpack.c.h.b16 %v561
        %v1283 = vunpack.c.l.b16 %v562
        %v1284 = vunpack.c.h.b16 %v562
        %v1285 = vunpack.c.l.b16 %v563
        %v1286 = vunpack.c.h.b16 %v563
        %v1287 = vunpack.c.l.b16 %v564
        %v1288 = vunpack.c.h.b16 %v564
        %v1289 = vunpack.c.l.b16 %v565
        %v1290 = vunpack.c.h.b16 %v565
        %v1291 = vunpack.c.l.b16 %v566
        %v1292 = vunpack.c.h.b16 %v566
        %v1293 = vunpack.c.l.b16 %v567
        %v1294 = vunpack.c.h.b16 %v567
        %v1295 = vunpack.c.l.b16 %v568
        %v1296 = vunpack.c.h.b16 %v568
        %v1297 = vunpack.c.l.b16 %v569
        %v1298 = vunpack.c.h.b16 %v569
        %v1299 = vunpack.c.l.b16 %v570
        %v1300 = vunpack.c.h.b16 %v570
        %v1301 = vunpack.c.l.b16 %v571
        %v1302 = vunpack.c.h.b16 %v571
        %v1303 = vunpack.c.l.b16 %v572
        %v1304 = vunpack.c.h.b16 %v572
        %v1305 = vunpack.c.l.b16 %v573
        %v1306 = vunpack.c.h.b16 %v573
        %v1307 = vunpack.c.l.b16 %v574
        %v1308 = vunpack.c.h.b16 %v574
        %v1309 = vunpack.c.l.b16 %v575
        %v1310 = vunpack.c.h.b16 %v575
        %v1311 = vunpack.c.l.b16 %v576
        %v1312 = vunpack.c.h.b16 %v576
        %v1313 = vunpack.c.l.b16 %v577
        %v1314 = vunpack.c.h.b16 %v577
        %v1315 = vunpack.c.l.b16 %v578
        %v1316 = vunpack.c.h.b16 %v578
        %v1317 = vunpack.c.l.b16 %v579
        %v1318 = vunpack.c.h.b16 %v579
        %v1319 = vunpack.c.l.b16 %v580
        %v1320 = vunpack.c.h.b16 %v580
        %v1321 = vunpack.c.l.b16 %v581
        %v1322 = vunpack.c.h.b16 %v581
        %v1323 = vunpack.c.l.b16 %v582
        %v1324 = vunpack.c.h.b16 %v582
        %v1325 = vunpack.c.l.b16 %v583
        %v1326 = vunpack.c.h.b16 %v583
        %v1327 = vunpack.c.l.b16 %v584
        %v1328 = vunpack.c.h.b16 %v584
        %v1329 = vunpack.c.l.b16 %v585
        %v1330 = vunpack.c.h.b16 %v585
        %v1331 = vunpack.c.l.b16 %v586
        %v1332 = vunpack.c.h.b16 %v586
        %v1333 = vunpack.c.l.b16 %v587
        %v1334 = vunpack.c.h.b16 %v587
        %v1335 = vunpack.c.l.b16 %v588
        %v1336 = vunpack.c.h.b16 %v588
        %v1337 = vunpack.c.l.b16 %v589
        %v1338 = vunpack.c.h.b16 %v589
        %v1339 = vunpack.c.l.b16 %v590
        %v1340 = vunpack.c.h.b16 %v590
        %v1341 = vunpack.c.l.b16 %v591
        %v1342 = vunpack.c.h.b16 %v591
        %v1343 = vunpack.c.l.b16 %v592
        %v1344 = vunpack.c.h.b16 %v592
        %v1345 = vunpack.c.l.b16 %v593
        %v1346 = vunpack.c.h.b16 %v593
        %v1347 = vunpack.c.l.b16 %v594
        %v1348 = vunpack.c.h.b16 %v594
        %v1349 = vunpack.c.l.b16 %v595
        %v1350 = vunpack.c.h.b16 %v595
        %v1351 = vunpack.c.l.b16 %v596
        %v1352 = vunpack.c.h.b16 %v596
        %v1353 = vunpack.c.l.b16 %v597
        %v1354 = vunpack.c.h.b16 %v597
        %v1355 = vunpack.c.l.b16 %v598
        %v1356 = vunpack.c.h.b16 %v598
        %v1357 = vunpack.c.l.b16 %v599
        %v1358 = vunpack.c.h.b16 %v599
        %v1359 = vunpack.c.l.b16 %v600
        %v1360 = vunpack.c.h.b16 %v600
        %v1361 = vunpack.c.l.b16 %v601
        %v1362 = vunpack.c.h.b16 %v601
        %v1363 = vunpack.c.l.b16 %v602
        %v1364 = vunpack.c.h.b16 %v602
        %v1365 = vunpack.c.l.b16 %v603
        %v1366 = vunpack.c.h.b16 %v603
        %v1367 = vunpack.c.l.b16 %v604
        %v1368 = vunpack.c.h.b16 %v604
        %v1369 = vunpack.c.l.b16 %v605
        %v1370 = vunpack.c.h.b16 %v605
        %v1371 = vunpack.c.l.b16 %v606
        %v1372 = vunpack.c.h.b16 %v606
        %v1373 = vunpack.c.l.b16 %v607
        %v1374 = vunpack.c.h.b16 %v607
        %v1375 = vunpack.c.l.b16 %v608
        %v1376 = vunpack.c.h.b16 %v608
        %v1377 = vunpack.c.l.b16 %v609
        %v1378 = vunpack.c.h.b16 %v609
        %v1379 = vunpack.c.l.b16 %v610
        %v1380 = vunpack.c.h.b16 %v610
        %v1381 = vunpack.c.l.b16 %v611
        %v1382 = vunpack.c.h.b16 %v611
        %v1383 = vunpack.c.l.b16 %v612
        %v1384 = vunpack.c.h.b16 %v612
        %v1385 = vunpack.c.l.b16 %v613
        %v1386 = vunpack.c.h.b16 %v613
        %v1387 = vunpack.c.l.b16 %v614
        %v1388 = vunpack.c.h.b16 %v614
        %v1389 = vunpack.c.l.b16 %v615
        %v1390 = vunpack.c.h.b16 %v615
        %v1391 = vunpack.c.l.b16 %v616
        %v1392 = vunpack.c.h.b16 %v616
        %v1393 = vunpack.c.l.b16 %v617
        %v1394 = vunpack.c.h.b16 %v617
        %v1395 = vunpack.c.l.b16 %v618
        %v1396 = vunpack.c.h.b16 %v618
        %v1397 = vunpack.c.l.b16 %v619
        %v1398 = vunpack.c.h.b16 %v619
        %v1399 = vunpack.c.l.b16 %v620
        %v1400 = vunpack.c.h.b16 %v620
        %v1401 = vpack.c.b16 %v957, %v953
        %v1402 = vpack.c.b16 %v958, %v954
        %v1403 = vpack.c.b16 %v959, %v955
        %v1404 = vpack.c.b16 %v960, %v956
        %v1405 = vpack.c.b16 %v965, %v961
        %v1406 = vpack.c.b16 %v966, %v962
        %v1407 = vpack.c.b16 %v967, %v963
        %v1408 = vpack.c.b16 %v968, %v964
        %v1409 = vpack.c.b16 %v973, %v969
        %v1410 = vpack.c.b16 %v974, %v970
        %v1411 = vpack.c.b16 %v975, %v971
        %v1412 = vpack.c.b16 %v976, %v972
        %v1413 = vpack.c.b16 %v981, %v977
        %v1414 = vpack.c.b16 %v982, %v978
        %v1415 = vpack.c.b16 %v983, %v979
        %v1416 = vpack.c.b16 %v984, %v980
        %v1417 = vpack.c.b16 %v989, %v985
        %v1418 = vpack.c.b16 %v990, %v986
        %v1419 = vpack.c.b16 %v991, %v987
        %v1420 = vpack.c.b16 %v992, %v988
        %v1421 = vpack.c.b16 %v997, %v993
        %v1422 = vpack.c.b16 %v998, %v994
        %v1423 = vpack.c.b16 %v999, %v995
        %v1424 = vpack.c.b16 %v1000, %v996
        %v1425 = vpack.c.b16 %v1005, %v1001
        %v1426 = vpack.c.b16 %v1006, %v1002
        %v1427 = vpack.c.b16 %v1007, %v1003
        %v1428 = vpack.c.b16 %v1008, %v1004
        %v1429 = vpack.c.b16 %v1013, %v1009
        %v1430 = vpack.c.b16 %v1014, %v1010
        %v1431 = vpack.c.b16 %v1015, %v1011
        %v1432 = vpack.c.b16 %v1016, %v1012
        %v1433 = vpack.c.b16 %v1021, %v1017
        %v1434 = vpack.c.b16 %v1022, %v1018
        %v1435 = vpack.c.b16 %v1023, %v1019
        %v1436 = vpack.c.b16 %v1024, %v1020
        %v1437 = vpack.c.b16 %v1029, %v1025
        %v1438 = vpack.c.b16 %v1030, %v1026
        %v1439 = vpack.c.b16 %v1031, %v1027
        %v1440 = vpack.c.b16 %v1032, %v1028
        %v1441 = vpack.c.b16 %v1037, %v1033
        %v1442 = vpack.c.b16 %v1038, %v1034
        %v1443 = vpack.c.b16 %v1039, %v1035
        %v1444 = vpack.c.b16 %v1040, %v1036
        %v1445 = vpack.c.b16 %v1045, %v1041
        %v1446 = vpack.c.b16 %v1046, %v1042
        %v1447 = vpack.c.b16 %v1047, %v1043
        %v1448 = vpack.c.b16 %v1048, %v1044
        %v1449 = vpack.c.b16 %v1053, %v1049
        %v1450 = vpack.c.b16 %v1054, %v1050
        %v1451 = vpack.c.b16 %v1055, %v1051
        %v1452 = vpack.c.b16 %v1056, %v1052
        %v1453 = vpack.c.b16 %v1061, %v1057
        %v1454 = vpack.c.b16 %v1062, %v1058
        %v1455 = vpack.c.b16 %v1063, %v1059
        %v1456 = vpack.c.b16 %v1064, %v1060
        %v1457 = vpack.c.b16 %v1069, %v1065
        %v1458 = vpack.c.b16 %v1070, %v1066
        %v1459 = vpack.c.b16 %v1071, %v1067
        %v1460 = vpack.c.b16 %v1072, %v1068
        %v1461 = vpack.c.b16 %v1077, %v1073
        %v1462 = vpack.c.b16 %v1078, %v1074
        %v1463 = vpack.c.b16 %v1079, %v1075
        %v1464 = vpack.c.b16 %v1080, %v1076
        %v1465 = vpack.c.b16 %v1085, %v1081
        %v1466 = vpack.c.b16 %v1086, %v1082
        %v1467 = vpack.c.b16 %v1087, %v1083
        %v1468 = vpack.c.b16 %v1088, %v1084
        %v1469 = vpack.c.b16 %v1093, %v1089
        %v1470 = vpack.c.b16 %v1094, %v1090
        %v1471 = vpack.c.b16 %v1095, %v1091
        %v1472 = vpack.c.b16 %v1096, %v1092
        %v1473 = vpack.c.b16 %v1101, %v1097
        %v1474 = vpack.c.b16 %v1102, %v1098
        %v1475 = vpack.c.b16 %v1103, %v1099
        %v1476 = vpack.c.b16 %v1104, %v1100
        %v1477 = vpack.c.b16 %v1109, %v1105
        %v1478 = vpack.c.b16 %v1110, %v1106
        %v1479 = vpack.c.b16 %v1111, %v1107
        %v1480 = vpack.c.b16 %v1112, %v1108
        %v1481 = vpack.c.b16 %v1117, %v1113
        %v1482 = vpack.c.b16 %v1118, %v1114
        %v1483 = vpack.c.b16 %v1119, %v1115
        %v1484 = vpack.c.b16 %v1120, %v1116
        %v1485 = vpack.c.b16 %v1125, %v1121
        %v1486 = vpack.c.b16 %v1126, %v1122
        %v1487 = vpack.c.b16 %v1127, %v1123
        %v1488 = vpack.c.b16 %v1128, %v1124
        %v1489 = vpack.c.b16 %v1133, %v1129
        %v1490 = vpack.c.b16 %v1134, %v1130
        %v1491 = vpack.c.b16 %v1135, %v1131
        %v1492 = vpack.c.b16 %v1136, %v1132
        %v1493 = vpack.c.b16 %v1141, %v1137
        %v1494 = vpack.c.b16 %v1142, %v1138
        %v1495 = vpack.c.b16 %v1143, %v1139
        %v1496 = vpack.c.b16 %v1144, %v1140
        %v1497 = vpack.c.b16 %v1149, %v1145
        %v1498 = vpack.c.b16 %v1150, %v1146
        %v1499 = vpack.c.b16 %v1151, %v1147
        %v1500 = vpack.c.b16 %v1152, %v1148
        %v1501 = vpack.c.b16 %v1157, %v1153
        %v1502 = vpack.c.b16 %v1158, %v1154
        %v1503 = vpack.c.b16 %v1159, %v1155
        %v1504 = vpack.c.b16 %v1160, %v1156
        %v1505 = vpack.c.b16 %v1165, %v1161
        %v1506 = vpack.c.b16 %v1166, %v1162
        %v1507 = vpack.c.b16 %v1167, %v1163
        %v1508 = vpack.c.b16 %v1168, %v1164
        %v1509 = vpack.c.b16 %v1173, %v1169
        %v1510 = vpack.c.b16 %v1174, %v1170
        %v1511 = vpack.c.b16 %v1175, %v1171
        %v1512 = vpack.c.b16 %v1176, %v1172
        %v1513 = vpack.c.b16 %v1181, %v1177
        %v1514 = vpack.c.b16 %v1182, %v1178
        %v1515 = vpack.c.b16 %v1183, %v1179
        %v1516 = vpack.c.b16 %v1184, %v1180
        %v1517 = vpack.c.b16 %v1189, %v1185
        %v1518 = vpack.c.b16 %v1190, %v1186
        %v1519 = vpack.c.b16 %v1191, %v1187
        %v1520 = vpack.c.b16 %v1192, %v1188
        %v1521 = vpack.c.b16 %v1197, %v1193
        %v1522 = vpack.c.b16 %v1198, %v1194
        %v1523 = vpack.c.b16 %v1199, %v1195
        %v1524 = vpack.c.b16 %v1200, %v1196
        %v1525 = vpack.c.b16 %v1205, %v1201
        %v1526 = vpack.c.b16 %v1206, %v1202
        %v1527 = vpack.c.b16 %v1207, %v1203
        %v1528 = vpack.c.b16 %v1208, %v1204
        %v1529 = vpack.c.b16 %v1213, %v1209
        %v1530 = vpack.c.b16 %v1214, %v1210
        %v1531 = vpack.c.b16 %v1215, %v1211
        %v1532 = vpack.c.b16 %v1216, %v1212
        %v1533 = vpack.c.b16 %v1221, %v1217
        %v1534 = vpack.c.b16 %v1222, %v1218
        %v1535 = vpack.c.b16 %v1223, %v1219
        %v1536 = vpack.c.b16 %v1224, %v1220
        %v1537 = vpack.c.b16 %v1229, %v1225
        %v1538 = vpack.c.b16 %v1230, %v1226
        %v1539 = vpack.c.b16 %v1231, %v1227
        %v1540 = vpack.c.b16 %v1232, %v1228
        %v1541 = vpack.c.b16 %v1237, %v1233
        %v1542 = vpack.c.b16 %v1238, %v1234
        %v1543 = vpack.c.b16 %v1239, %v1235
        %v1544 = vpack.c.b16 %v1240, %v1236
        %v1545 = vpack.c.b16 %v1245, %v1241
        %v1546 = vpack.c.b16 %v1246, %v1242
        %v1547 = vpack.c.b16 %v1247, %v1243
        %v1548 = vpack.c.b16 %v1248, %v1244
        %v1549 = vpack.c.b16 %v1253, %v1249
        %v1550 = vpack.c.b16 %v1254, %v1250
        %v1551 = vpack.c.b16 %v1255, %v1251
        %v1552 = vpack.c.b16 %v1256, %v1252
        %v1553 = vpack.c.b16 %v1261, %v1257
        %v1554 = vpack.c.b16 %v1262, %v1258
        %v1555 = vpack.c.b16 %v1263, %v1259
        %v1556 = vpack.c.b16 %v1264, %v1260
        %v1557 = vpack.c.b16 %v1269, %v1265
        %v1558 = vpack.c.b16 %v1270, %v1266
        %v1559 = vpack.c.b16 %v1271, %v1267
        %v1560 = vpack.c.b16 %v1272, %v1268
        %v1561 = vpack.c.b16 %v1277, %v1273
        %v1562 = vpack.c.b16 %v1278, %v1274
        %v1563 = vpack.c.b16 %v1279, %v1275
        %v1564 = vpack.c.b16 %v1280, %v1276
        %v1565 = vpack.c.b16 %v1285, %v1281
        %v1566 = vpack.c.b16 %v1286, %v1282
        %v1567 = vpack.c.b16 %v1287, %v1283
        %v1568 = vpack.c.b16 %v1288, %v1284
        %v1569 = vpack.c.b16 %v1293, %v1289
        %v1570 = vpack.c.b16 %v1294, %v1290
        %v1571 = vpack.c.b16 %v1295, %v1291
        %v1572 = vpack.c.b16 %v1296, %v1292
        %v1573 = vpack.c.b16 %v1301, %v1297
        %v1574 = vpack.c.b16 %v1302, %v1298
        %v1575 = vpack.c.b16 %v1303, %v1299
        %v1576 = vpack.c.b16 %v1304, %v1300
        %v1577 = vpack.c.b16 %v1309, %v1305
        %v1578 = vpack.c.b16 %v1310, %v1306
        %v1579 = vpack.c.b16 %v1311, %v1307
        %v1580 = vpack.c.b16 %v1312, %v1308
        %v1581 = vpack.c.b16 %v1317, %v1313
        %v1582 = vpack.c.b16 %v1318, %v1314
        %v1583 = vpack.c.b16 %v1319, %v1315
        %v1584 = vpack.c.b16 %v1320, %v1316
        %v1585 = vpack.c.b16 %v1325, %v1321
        %v1586 = vpack.c.b16 %v1326, %v1322
        %v1587 = vpack.c.b16 %v1327, %v1323
        %v1588 = vpack.c.b16 %v1328, %v1324
        %v1589 = vpack.c.b16 %v1333, %v1329
        %v1590 = vpack.c.b16 %v1334, %v1330
        %v1591 = vpack.c.b16 %v1335, %v1331
        %v1592 = vpack.c.b16 %v1336, %v1332
        %v1593 = vpack.c.b16 %v1341, %v1337
        %v1594 = vpack.c.b16 %v1342, %v1338
        %v1595 = vpack.c.b16 %v1343, %v1339
        %v1596 = vpack.c.b16 %v1344, %v1340
        %v1597 = vpack.c.b16 %v1349, %v1345
        %v1598 = vpack.c.b16 %v1350, %v1346
        %v1599 = vpack.c.b16 %v1351, %v1347
        %v1600 = vpack.c.b16 %v1352, %v1348
        %v1601 = vpack.c.b16 %v1357, %v1353
        %v1602 = vpack.c.b16 %v1358, %v1354
        %v1603 = vpack.c.b16 %v1359, %v1355
        %v1604 = vpack.c.b16 %v1360, %v1356
        %v1605 = vpack.c.b16 %v1365, %v1361
        %v1606 = vpack.c.b16 %v1366, %v1362
        %v1607 = vpack.c.b16 %v1367, %v1363
        %v1608 = vpack.c.b16 %v1368, %v1364
        %v1609 = vpack.c.b16 %v1373, %v1369
        %v1610 = vpack.c.b16 %v1374, %v1370
        %v1611 = vpack.c.b16 %v1375, %v1371
        %v1612 = vpack.c.b16 %v1376, %v1372
        %v1613 = vpack.c.b16 %v1381, %v1377
        %v1614 = vpack.c.b16 %v1382, %v1378
        %v1615 = vpack.c.b16 %v1383, %v1379
        %v1616 = vpack.c.b16 %v1384, %v1380
        %v1617 = vpack.c.b16 %v1389, %v1385
        %v1618 = vpack.c.b16 %v1390, %v1386
        %v1619 = vpack.c.b16 %v1391, %v1387
        %v1620 = vpack.c.b16 %v1392, %v1388
        %v1621 = vpack.c.b16 %v1397, %v1393
        %v1622 = vpack.c.b16 %v1398, %v1394
        %v1623 = vpack.c.b16 %v1399, %v1395
        %v1624 = vpack.c.b16 %v1400, %v1396
        %1849 = vmatprep.subr.bf16.mxu0 %v1402
        %1850 = vmatpush1.bf16.msra.mxu0 %v1401
        %1851 = vmatprep.subr.bf16.mxu0 %v1406
        %1852 = vmatpush1.bf16.msra.mxu0 %v1405
        %1853 = vmatprep.subr.bf16.mxu0 %v1410
        %1854 = vmatpush1.bf16.msra.mxu0 %v1409
        %1855 = vmatprep.subr.bf16.mxu0 %v1414
        %1856 = vmatpush1.bf16.msra.mxu0 %v1413
        %1857 = vmatprep.subr.bf16.mxu0 %v1418
        %1858 = vmatpush1.bf16.msra.mxu0 %v1417
        %1859 = vmatprep.subr.bf16.mxu0 %v1422
        %1860 = vmatpush1.bf16.msra.mxu0 %v1421
        %1861 = vmatprep.subr.bf16.mxu0 %v1426
        %1862 = vmatpush1.bf16.msra.mxu0 %v1425
        %1863 = vmatprep.subr.bf16.mxu0 %v1430
        %1864 = vmatpush1.bf16.msra.mxu0 %v1429
        %1865 = vmatprep.subr.bf16.mxu0 %v1434
        %1866 = vmatpush1.bf16.msra.mxu0 %v1433
        %1867 = vmatprep.subr.bf16.mxu0 %v1438
        %1868 = vmatpush1.bf16.msra.mxu0 %v1437
        %1869 = vmatprep.subr.bf16.mxu0 %v1442
        %1870 = vmatpush1.bf16.msra.mxu0 %v1441
        %1871 = vmatprep.subr.bf16.mxu0 %v1446
        %1872 = vmatpush1.bf16.msra.mxu0 %v1445
        %1873 = vmatprep.subr.bf16.mxu0 %v1450
        %1874 = vmatpush1.bf16.msra.mxu0 %v1449
        %1875 = vmatprep.subr.bf16.mxu0 %v1454
        %1876 = vmatpush1.bf16.msra.mxu0 %v1453
        %1877 = vmatprep.subr.bf16.mxu0 %v1458
        %1878 = vmatpush1.bf16.msra.mxu0 %v1457
        %1879 = vmatprep.subr.bf16.mxu0 %v1462
        %1880 = vmatpush1.bf16.msra.mxu0 %v1461
        %1881 = vmatprep.mubr.bf16.mxu0 %v688
        %1882 = vmatmul.mubr.bf16.gmra.mrb[0].mxu0 %v687
        %v1883 = vpop.f32.mrb[0].mxu0
        %v1884 = vadd.f32 0.0, %v1883
        %v1885 = vpop.f32.mrb[0].mxu0
        %v1886 = vadd.f32 0.0, %v1885
        %v1887 = vpop.f32.mrb[0].mxu0
        %v1888 = vadd.f32 0.0, %v1887
        %v1889 = vpop.f32.mrb[0].mxu0
        %v1890 = vadd.f32 0.0, %v1889
        %1891 = vmatprep.mubr.bf16.mxu0 %v695
        %1892 = vmatmul.mubr.bf16.gmra.mrb[0].mxu0 %v694
        %v1893 = vpop.f32.mrb[0].mxu0
        %v1894 = vadd.f32 0.0, %v1893
        %v1895 = vpop.f32.mrb[0].mxu0
        %v1896 = vadd.f32 0.0, %v1895
        %v1897 = vpop.f32.mrb[0].mxu0
        %v1898 = vadd.f32 0.0, %v1897
        %v1899 = vpop.f32.mrb[0].mxu0
        %v1900 = vadd.f32 0.0, %v1899
        %1901 = vmatprep.mubr.bf16.mxu0 %v702
        %1902 = vmatmul.mubr.bf16.gmra.mrb[0].mxu0 %v701
        %v1903 = vpop.f32.mrb[0].mxu0
        %v1904 = vadd.f32 0.0, %v1903
        %v1905 = vpop.f32.mrb[0].mxu0
        %v1906 = vadd.f32 0.0, %v1905
        %v1907 = vpop.f32.mrb[0].mxu0
        %v1908 = vadd.f32 0.0, %v1907
        %v1909 = vpop.f32.mrb[0].mxu0
        %v1910 = vadd.f32 0.0, %v1909
        %1911 = vdwg.mxu0
        %1912 = vmatprep.subr.bf16.mxu0 %v1466
        %1913 = vmatpush1.bf16.msra.mxu0 %v1465
        %1914 = vmatprep.subr.bf16.mxu0 %v1470
        %1915 = vmatpush1.bf16.msra.mxu0 %v1469
        %1916 = vmatprep.subr.bf16.mxu0 %v1474
        %1917 = vmatpush1.bf16.msra.mxu0 %v1473
        %1918 = vmatprep.subr.bf16.mxu0 %v1478
        %1919 = vmatpush1.bf16.msra.mxu0 %v1477
        %1920 = vmatprep.subr.bf16.mxu0 %v1482
        %1921 = vmatpush1.bf16.msra.mxu0 %v1481
        %1922 = vmatprep.subr.bf16.mxu0 %v1486
        %1923 = vmatpush1.bf16.msra.mxu0 %v1485
        %1924 = vmatprep.subr.bf16.mxu0 %v1490
        %1925 = vmatpush1.bf16.msra.mxu0 %v1489
        %1926 = vmatprep.subr.bf16.mxu0 %v1494
        %1927 = vmatpush1.bf16.msra.mxu0 %v1493
        %1928 = vmatprep.subr.bf16.mxu0 %v1498
        %1929 = vmatpush1.bf16.msra.mxu0 %v1497
        %1930 = vmatprep.subr.bf16.mxu0 %v1502
        %1931 = vmatpush1.bf16.msra.mxu0 %v1501
        %1932 = vmatprep.subr.bf16.mxu0 %v1506
        %1933 = vmatpush1.bf16.msra.mxu0 %v1505
        %1934 = vmatprep.subr.bf16.mxu0 %v1510
        %1935 = vmatpush1.bf16.msra.mxu0 %v1509
        %1936 = vmatprep.subr.bf16.mxu0 %v1514
        %1937 = vmatpush1.bf16.msra.mxu0 %v1513
        %1938 = vmatprep.subr.bf16.mxu0 %v1518
        %1939 = vmatpush1.bf16.msra.mxu0 %v1517
        %1940 = vmatprep.subr.bf16.mxu0 %v1522
        %1941 = vmatpush1.bf16.msra.mxu0 %v1521
        %1942 = vmatprep.subr.bf16.mxu0 %v1526
        %1943 = vmatpush1.bf16.msra.mxu0 %v1525
        %1944 = vmatprep.mubr.bf16.mxu0 %v690
        %1945 = vmatmul.mubr.bf16.gmra.mrb[0].mxu0 %v689
        %v1946 = vpop.f32.mrb[0].mxu0
        %v1947 = vadd.f32 %v1884, %v1946
        %v1948 = vpop.f32.mrb[0].mxu0
        %v1949 = vadd.f32 %v1886, %v1948
        %v1950 = vpop.f32.mrb[0].mxu0
        %v1951 = vadd.f32 %v1888, %v1950
        %v1952 = vpop.f32.mrb[0].mxu0
        %v1953 = vadd.f32 %v1890, %v1952
        %1954 = vmatprep.mubr.bf16.mxu0 %v697
        %1955 = vmatmul.mubr.bf16.gmra.mrb[0].mxu0 %v696
        %v1956 = vpop.f32.mrb[0].mxu0
        %v1957 = vadd.f32 %v1894, %v1956
        %v1958 = vpop.f32.mrb[0].mxu0
        %v1959 = vadd.f32 %v1896, %v1958
        %v1960 = vpop.f32.mrb[0].mxu0
        %v1961 = vadd.f32 %v1898, %v1960
        %v1962 = vpop.f32.mrb[0].mxu0
        %v1963 = vadd.f32 %v1900, %v1962
        %1964 = vmatprep.mubr.bf16.mxu0 %v704
        %1965 = vmatmul.mubr.bf16.gmra.mrb[0].mxu0 %v703
        %v1966 = vpop.f32.mrb[0].mxu0
        %v1967 = vadd.f32 %v1904, %v1966
        %v1968 = vpop.f32.mrb[0].mxu0
        %v1969 = vadd.f32 %v1906, %v1968
        %v1970 = vpop.f32.mrb[0].mxu0
        %v1971 = vadd.f32 %v1908, %v1970
        %v1972 = vpop.f32.mrb[0].mxu0
        %v1973 = vadd.f32 %v1910, %v1972
        %1974 = vdwg.mxu0
        %1975 = vmatprep.subr.bf16.mxu0 %v1530
        %1976 = vmatpush1.bf16.msra.mxu0 %v1529
        %1977 = vmatprep.subr.bf16.mxu0 %v1534
        %1978 = vmatpush1.bf16.msra.mxu0 %v1533
        %1979 = vmatprep.subr.bf16.mxu0 %v1538
        %1980 = vmatpush1.bf16.msra.mxu0 %v1537
        %1981 = vmatprep.subr.bf16.mxu0 %v1542
        %1982 = vmatpush1.bf16.msra.mxu0 %v1541
        %1983 = vmatprep.subr.bf16.mxu0 %v1546
        %1984 = vmatpush1.bf16.msra.mxu0 %v1545
        %1985 = vmatprep.subr.bf16.mxu0 %v1550
        %1986 = vmatpush1.bf16.msra.mxu0 %v1549
        %1987 = vmatprep.subr.bf16.mxu0 %v1554
        %1988 = vmatpush1.bf16.msra.mxu0 %v1553
        %1989 = vmatprep.subr.bf16.mxu0 %v1558
        %1990 = vmatpush1.bf16.msra.mxu0 %v1557
        %1991 = vmatprep.subr.bf16.mxu0 %v1562
        %1992 = vmatpush1.bf16.msra.mxu0 %v1561
        %1993 = vmatprep.subr.bf16.mxu0 %v1566
        %1994 = vmatpush1.bf16.msra.mxu0 %v1565
        %1995 = vmatprep.subr.bf16.mxu0 %v1570
        %1996 = vmatpush1.bf16.msra.mxu0 %v1569
        %1997 = vmatprep.subr.bf16.mxu0 %v1574
        %1998 = vmatpush1.bf16.msra.mxu0 %v1573
        %1999 = vmatprep.subr.bf16.mxu0 %v1578
        %2000 = vmatpush1.bf16.msra.mxu0 %v1577
        %2001 = vmatprep.subr.bf16.mxu0 %v1582
        %2002 = vmatpush1.bf16.msra.mxu0 %v1581
        %2003 = vmatprep.subr.bf16.mxu0 %v1586
        %2004 = vmatpush1.bf16.msra.mxu0 %v1585
        %2005 = vmatprep.subr.bf16.mxu0 %v1590
        %2006 = vmatpush1.bf16.msra.mxu0 %v1589
        %2007 = vmatprep.mubr.bf16.mxu0 %v692
        %2008 = vmatmul.mubr.bf16.gmra.mrb[0].mxu0 %v691
        %v2009 = vpop.f32.mrb[0].mxu0
        %v2010 = vadd.f32 %v1947, %v2009
        %v2011 = vpop.f32.mrb[0].mxu0
        %v2012 = vadd.f32 %v1949, %v2011
        %v2013 = vpop.f32.mrb[0].mxu0
        %v2014 = vadd.f32 %v1951, %v2013
        %v2015 = vpop.f32.mrb[0].mxu0
        %v2016 = vadd.f32 %v1953, %v2015
        %2017 = vmatprep.mubr.bf16.mxu0 %v699
        %2018 = vmatmul.mubr.bf16.gmra.mrb[0].mxu0 %v698
        %v2019 = vpop.f32.mrb[0].mxu0
        %v2020 = vadd.f32 %v1957, %v2019
        %v2021 = vpop.f32.mrb[0].mxu0
        %v2022 = vadd.f32 %v1959, %v2021
        %v2023 = vpop.f32.mrb[0].mxu0
        %v2024 = vadd.f32 %v1961, %v2023
        %v2025 = vpop.f32.mrb[0].mxu0
        %v2026 = vadd.f32 %v1963, %v2025
        %2027 = vmatprep.mubr.bf16.mxu0 %v706
        %2028 = vmatmul.mubr.bf16.gmra.mrb[0].mxu0 %v705
        %v2029 = vpop.f32.mrb[0].mxu0
        %v2030 = vadd.f32 %v1967, %v2029
        %v2031 = vpop.f32.mrb[0].mxu0
        %v2032 = vadd.f32 %v1969, %v2031
        %v2033 = vpop.f32.mrb[0].mxu0
        %v2034 = vadd.f32 %v1971, %v2033
        %v2035 = vpop.f32.mrb[0].mxu0
        %v2036 = vadd.f32 %v1973, %v2035
        %2037 = vdwg.mxu0
        %2038 = vmatprep.subr.bf16.mxu0 %v1594
        %2039 = vmatpush1.bf16.msra.mxu0 %v1593
        %2040 = vmatprep.subr.bf16.mxu0 %v1598
        %2041 = vmatpush1.bf16.msra.mxu0 %v1597
        %2042 = vmatprep.subr.bf16.mxu0 %v1602
        %2043 = vmatpush1.bf16.msra.mxu0 %v1601
        %2044 = vmatprep.subr.bf16.mxu0 %v1606
        %2045 = vmatpush1.bf16.msra.mxu0 %v1605
        %2046 = vmatprep.subr.bf16.mxu0 %v1610
        %2047 = vmatpush1.bf16.msra.mxu0 %v1609
        %2048 = vmatprep.subr.bf16.mxu0 %v1614
        %2049 = vmatpush1.bf16.msra.mxu0 %v1613
        %2050 = vmatprep.subr.bf16.mxu0 %v1618
        %2051 = vmatpush1.bf16.msra.mxu0 %v1617
        %2052 = vmatprep.subr.bf16.mxu0 %v1622
        %2053 = vmatpush1.bf16.msra.mxu0 %v1621
        %2054 = vmatprep.subr.bf16.mxu0 0
        %2055 = vmatpush1.bf16.msra.mxu0 0
        %2056 = vmatprep.subr.bf16.mxu0 0
        %2057 = vmatpush1.bf16.msra.mxu0 0
        %2058 = vmatprep.subr.bf16.mxu0 0
        %2059 = vmatpush1.bf16.msra.mxu0 0
        %2060 = vmatprep.subr.bf16.mxu0 0
        %2061 = vmatpush1.bf16.msra.mxu0 0
        %2062 = vmatprep.subr.bf16.mxu0 0
        %2063 = vmatpush1.bf16.msra.mxu0 0
        %2064 = vmatprep.subr.bf16.mxu0 0
        %2065 = vmatpush1.bf16.msra.mxu0 0
        %2066 = vmatprep.subr.bf16.mxu0 0
        %2067 = vmatpush1.bf16.msra.mxu0 0
        %2068 = vmatprep.subr.bf16.mxu0 0
        %2069 = vmatpush1.bf16.msra.mxu0 0
        %2070 = vmatprep.mubr.bf16.mxu0 0
        %2071 = vmatmul.mubr.bf16.gmra.mrb[0].mxu0 %v693
        %v2072 = vpop.f32.mrb[0].mxu0
        %v2073 = vadd.f32 %v2010, %v2072
        %v2074 = vpop.f32.mrb[0].mxu0
        %v2075 = vadd.f32 %v2012, %v2074
        %v2076 = vpop.f32.mrb[0].mxu0
        %v2077 = vadd.f32 %v2014, %v2076
        %v2078 = vpop.f32.mrb[0].mxu0
        %v2079 = vadd.f32 %v2016, %v2078
        %2080 = vmatprep.mubr.bf16.mxu0 0
        %2081 = vmatmul.mubr.bf16.gmra.mrb[0].mxu0 %v700
        %v2082 = vpop.f32.mrb[0].mxu0
        %v2083 = vadd.f32 %v2020, %v2082
        %v2084 = vpop.f32.mrb[0].mxu0
        %v2085 = vadd.f32 %v2022, %v2084
        %v2086 = vpop.f32.mrb[0].mxu0
        %v2087 = vadd.f32 %v2024, %v2086
        %v2088 = vpop.f32.mrb[0].mxu0
        %v2089 = vadd.f32 %v2026, %v2088
        %2090 = vmatprep.mubr.bf16.mxu0 0
        %2091 = vmatmul.mubr.bf16.gmra.mrb[0].mxu0 %v707
        %v2092 = vpop.f32.mrb[0].mxu0
        %v2093 = vadd.f32 %v2030, %v2092
        %v2094 = vpop.f32.mrb[0].mxu0
        %v2095 = vadd.f32 %v2032, %v2094
        %v2096 = vpop.f32.mrb[0].mxu0
        %v2097 = vadd.f32 %v2034, %v2096
        %v2098 = vpop.f32.mrb[0].mxu0
        %v2099 = vadd.f32 %v2036, %v2098
        %2100 = vdwg.mxu0
        %2101 = vmatprep.subr.bf16.mxu0 %v1404
        %2102 = vmatpush1.bf16.msra.mxu0 %v1403
        %2103 = vmatprep.subr.bf16.mxu0 %v1408
        %2104 = vmatpush1.bf16.msra.mxu0 %v1407
        %2105 = vmatprep.subr.bf16.mxu0 %v1412
        %2106 = vmatpush1.bf16.msra.mxu0 %v1411
        %2107 = vmatprep.subr.bf16.mxu0 %v1416
        %2108 = vmatpush1.bf16.msra.mxu0 %v1415
        %2109 = vmatprep.subr.bf16.mxu0 %v1420
        %2110 = vmatpush1.bf16.msra.mxu0 %v1419
        %2111 = vmatprep.subr.bf16.mxu0 %v1424
        %2112 = vmatpush1.bf16.msra.mxu0 %v1423
        %2113 = vmatprep.subr.bf16.mxu0 %v1428
        %2114 = vmatpush1.bf16.msra.mxu0 %v1427
        %2115 = vmatprep.subr.bf16.mxu0 %v1432
        %2116 = vmatpush1.bf16.msra.mxu0 %v1431
        %2117 = vmatprep.subr.bf16.mxu0 %v1436
        %2118 = vmatpush1.bf16.msra.mxu0 %v1435
        %2119 = vmatprep.subr.bf16.mxu0 %v1440
        %2120 = vmatpush1.bf16.msra.mxu0 %v1439
        %2121 = vmatprep.subr.bf16.mxu0 %v1444
        %2122 = vmatpush1.bf16.msra.mxu0 %v1443
        %2123 = vmatprep.subr.bf16.mxu0 %v1448
        %2124 = vmatpush1.bf16.msra.mxu0 %v1447
        %2125 = vmatprep.subr.bf16.mxu0 %v1452
        %2126 = vmatpush1.bf16.msra.mxu0 %v1451
        %2127 = vmatprep.subr.bf16.mxu0 %v1456
        %2128 = vmatpush1.bf16.msra.mxu0 %v1455
        %2129 = vmatprep.subr.bf16.mxu0 %v1460
        %2130 = vmatpush1.bf16.msra.mxu0 %v1459
        %2131 = vmatprep.subr.bf16.mxu0 %v1464
        %2132 = vmatpush1.bf16.msra.mxu0 %v1463
        %2133 = vmatprep.mubr.bf16.mxu0 %v688
        %2134 = vmatmul.mubr.bf16.gmra.mrb[0].mxu0 %v687
        %v2135 = vpop.f32.mrb[0].mxu0
        %v2136 = vadd.f32 0.0, %v2135
        %v2137 = vpop.f32.mrb[0].mxu0
        %v2138 = vadd.f32 0.0, %v2137
        %v2139 = vpop.f32.mrb[0].mxu0
        %v2140 = vadd.f32 0.0, %v2139
        %v2141 = vpop.f32.mrb[0].mxu0
        %v2142 = vadd.f32 0.0, %v2141
        %2143 = vmatprep.mubr.bf16.mxu0 %v695
        %2144 = vmatmul.mubr.bf16.gmra.mrb[0].mxu0 %v694
        %v2145 = vpop.f32.mrb[0].mxu0
        %v2146 = vadd.f32 0.0, %v2145
        %v2147 = vpop.f32.mrb[0].mxu0
        %v2148 = vadd.f32 0.0, %v2147
        %v2149 = vpop.f32.mrb[0].mxu0
        %v2150 = vadd.f32 0.0, %v2149
        %v2151 = vpop.f32.mrb[0].mxu0
        %v2152 = vadd.f32 0.0, %v2151
        %2153 = vmatprep.mubr.bf16.mxu0 %v702
        %2154 = vmatmul.mubr.bf16.gmra.mrb[0].mxu0 %v701
        %v2155 = vpop.f32.mrb[0].mxu0
        %v2156 = vadd.f32 0.0, %v2155
        %v2157 = vpop.f32.mrb[0].mxu0
        %v2158 = vadd.f32 0.0, %v2157
        %v2159 = vpop.f32.mrb[0].mxu0
        %v2160 = vadd.f32 0.0, %v2159
        %v2161 = vpop.f32.mrb[0].mxu0
        %v2162 = vadd.f32 0.0, %v2161
        %2163 = vdwg.mxu0
        %2164 = vmatprep.subr.bf16.mxu0 %v1468
        %2165 = vmatpush1.bf16.msra.mxu0 %v1467
        %2166 = vmatprep.subr.bf16.mxu0 %v1472
        %2167 = vmatpush1.bf16.msra.mxu0 %v1471
        %2168 = vmatprep.subr.bf16.mxu0 %v1476
        %2169 = vmatpush1.bf16.msra.mxu0 %v1475
        %2170 = vmatprep.subr.bf16.mxu0 %v1480
        %2171 = vmatpush1.bf16.msra.mxu0 %v1479
        %2172 = vmatprep.subr.bf16.mxu0 %v1484
        %2173 = vmatpush1.bf16.msra.mxu0 %v1483
        %2174 = vmatprep.subr.bf16.mxu0 %v1488
        %2175 = vmatpush1.bf16.msra.mxu0 %v1487
        %2176 = vmatprep.subr.bf16.mxu0 %v1492
        %2177 = vmatpush1.bf16.msra.mxu0 %v1491
        %2178 = vmatprep.subr.bf16.mxu0 %v1496
        %2179 = vmatpush1.bf16.msra.mxu0 %v1495
        %2180 = vmatprep.subr.bf16.mxu0 %v1500
        %2181 = vmatpush1.bf16.msra.mxu0 %v1499
        %2182 = vmatprep.subr.bf16.mxu0 %v1504
        %2183 = vmatpush1.bf16.msra.mxu0 %v1503
        %2184 = vmatprep.subr.bf16.mxu0 %v1508
        %2185 = vmatpush1.bf16.msra.mxu0 %v1507
        %2186 = vmatprep.subr.bf16.mxu0 %v1512
        %2187 = vmatpush1.bf16.msra.mxu0 %v1511
        %2188 = vmatprep.subr.bf16.mxu0 %v1516
        %2189 = vmatpush1.bf16.msra.mxu0 %v1515
        %2190 = vmatprep.subr.bf16.mxu0 %v1520
        %2191 = vmatpush1.bf16.msra.mxu0 %v1519
        %2192 = vmatprep.subr.bf16.mxu0 %v1524
        %2193 = vmatpush1.bf16.msra.mxu0 %v1523
        %2194 = vmatprep.subr.bf16.mxu0 %v1528
        %2195 = vmatpush1.bf16.msra.mxu0 %v1527
        %2196 = vmatprep.mubr.bf16.mxu0 %v690
        %2197 = vmatmul.mubr.bf16.gmra.mrb[0].mxu0 %v689
        %v2198 = vpop.f32.mrb[0].mxu0
        %v2199 = vadd.f32 %v2136, %v2198
        %v2200 = vpop.f32.mrb[0].mxu0
        %v2201 = vadd.f32 %v2138, %v2200
        %v2202 = vpop.f32.mrb[0].mxu0
        %v2203 = vadd.f32 %v2140, %v2202
        %v2204 = vpop.f32.mrb[0].mxu0
        %v2205 = vadd.f32 %v2142, %v2204
        %2206 = vmatprep.mubr.bf16.mxu0 %v697
        %2207 = vmatmul.mubr.bf16.gmra.mrb[0].mxu0 %v696
        %v2208 = vpop.f32.mrb[0].mxu0
        %v2209 = vadd.f32 %v2146, %v2208
        %v2210 = vpop.f32.mrb[0].mxu0
        %v2211 = vadd.f32 %v2148, %v2210
        %v2212 = vpop.f32.mrb[0].mxu0
        %v2213 = vadd.f32 %v2150, %v2212
        %v2214 = vpop.f32.mrb[0].mxu0
        %v2215 = vadd.f32 %v2152, %v2214
        %2216 = vmatprep.mubr.bf16.mxu0 %v704
        %2217 = vmatmul.mubr.bf16.gmra.mrb[0].mxu0 %v703
        %v2218 = vpop.f32.mrb[0].mxu0
        %v2219 = vadd.f32 %v2156, %v2218
        %v2220 = vpop.f32.mrb[0].mxu0
        %v2221 = vadd.f32 %v2158, %v2220
        %v2222 = vpop.f32.mrb[0].mxu0
        %v2223 = vadd.f32 %v2160, %v2222
        %v2224 = vpop.f32.mrb[0].mxu0
        %v2225 = vadd.f32 %v2162, %v2224
        %2226 = vdwg.mxu0
        %2227 = vmatprep.subr.bf16.mxu0 %v1532
        %2228 = vmatpush1.bf16.msra.mxu0 %v1531
        %2229 = vmatprep.subr.bf16.mxu0 %v1536
        %2230 = vmatpush1.bf16.msra.mxu0 %v1535
        %2231 = vmatprep.subr.bf16.mxu0 %v1540
        %2232 = vmatpush1.bf16.msra.mxu0 %v1539
        %2233 = vmatprep.subr.bf16.mxu0 %v1544
        %2234 = vmatpush1.bf16.msra.mxu0 %v1543
        %2235 = vmatprep.subr.bf16.mxu0 %v1548
        %2236 = vmatpush1.bf16.msra.mxu0 %v1547
        %2237 = vmatprep.subr.bf16.mxu0 %v1552
        %2238 = vmatpush1.bf16.msra.mxu0 %v1551
        %2239 = vmatprep.subr.bf16.mxu0 %v1556
        %2240 = vmatpush1.bf16.msra.mxu0 %v1555
        %2241 = vmatprep.subr.bf16.mxu0 %v1560
        %2242 = vmatpush1.bf16.msra.mxu0 %v1559
        %2243 = vmatprep.subr.bf16.mxu0 %v1564
        %2244 = vmatpush1.bf16.msra.mxu0 %v1563
        %2245 = vmatprep.subr.bf16.mxu0 %v1568
        %2246 = vmatpush1.bf16.msra.mxu0 %v1567
        %2247 = vmatprep.subr.bf16.mxu0 %v1572
        %2248 = vmatpush1.bf16.msra.mxu0 %v1571
        %2249 = vmatprep.subr.bf16.mxu0 %v1576
        %2250 = vmatpush1.bf16.msra.mxu0 %v1575
        %2251 = vmatprep.subr.bf16.mxu0 %v1580
        %2252 = vmatpush1.bf16.msra.mxu0 %v1579
        %2253 = vmatprep.subr.bf16.mxu0 %v1584
        %2254 = vmatpush1.bf16.msra.mxu0 %v1583
        %2255 = vmatprep.subr.bf16.mxu0 %v1588
        %2256 = vmatpush1.bf16.msra.mxu0 %v1587
        %2257 = vmatprep.subr.bf16.mxu0 %v1592
        %2258 = vmatpush1.bf16.msra.mxu0 %v1591
        %2259 = vmatprep.mubr.bf16.mxu0 %v692
        %2260 = vmatmul.mubr.bf16.gmra.mrb[0].mxu0 %v691
        %v2261 = vpop.f32.mrb[0].mxu0
        %v2262 = vadd.f32 %v2199, %v2261
        %v2263 = vpop.f32.mrb[0].mxu0
        %v2264 = vadd.f32 %v2201, %v2263
        %v2265 = vpop.f32.mrb[0].mxu0
        %v2266 = vadd.f32 %v2203, %v2265
        %v2267 = vpop.f32.mrb[0].mxu0
        %v2268 = vadd.f32 %v2205, %v2267
        %2269 = vmatprep.mubr.bf16.mxu0 %v699
        %2270 = vmatmul.mubr.bf16.gmra.mrb[0].mxu0 %v698
        %v2271 = vpop.f32.mrb[0].mxu0
        %v2272 = vadd.f32 %v2209, %v2271
        %v2273 = vpop.f32.mrb[0].mxu0
        %v2274 = vadd.f32 %v2211, %v2273
        %v2275 = vpop.f32.mrb[0].mxu0
        %v2276 = vadd.f32 %v2213, %v2275
        %v2277 = vpop.f32.mrb[0].mxu0
        %v2278 = vadd.f32 %v2215, %v2277
        %2279 = vmatprep.mubr.bf16.mxu0 %v706
        %2280 = vmatmul.mubr.bf16.gmra.mrb[0].mxu0 %v705
        %v2281 = vpop.f32.mrb[0].mxu0
        %v2282 = vadd.f32 %v2219, %v2281
        %v2283 = vpop.f32.mrb[0].mxu0
        %v2284 = vadd.f32 %v2221, %v2283
        %v2285 = vpop.f32.mrb[0].mxu0
        %v2286 = vadd.f32 %v2223, %v2285
        %v2287 = vpop.f32.mrb[0].mxu0
        %v2288 = vadd.f32 %v2225, %v2287
        %2289 = vdwg.mxu0
        %2290 = vmatprep.subr.bf16.mxu0 %v1596
        %2291 = vmatpush1.bf16.msra.mxu0 %v1595
        %2292 = vmatprep.subr.bf16.mxu0 %v1600
        %2293 = vmatpush1.bf16.msra.mxu0 %v1599
        %2294 = vmatprep.subr.bf16.mxu0 %v1604
        %2295 = vmatpush1.bf16.msra.mxu0 %v1603
        %2296 = vmatprep.subr.bf16.mxu0 %v1608
        %2297 = vmatpush1.bf16.msra.mxu0 %v1607
        %2298 = vmatprep.subr.bf16.mxu0 %v1612
        %2299 = vmatpush1.bf16.msra.mxu0 %v1611
        %2300 = vmatprep.subr.bf16.mxu0 %v1616
        %2301 = vmatpush1.bf16.msra.mxu0 %v1615
        %2302 = vmatprep.subr.bf16.mxu0 %v1620
        %2303 = vmatpush1.bf16.msra.mxu0 %v1619
        %2304 = vmatprep.subr.bf16.mxu0 %v1624
        %2305 = vmatpush1.bf16.msra.mxu0 %v1623
        %2306 = vmatprep.subr.bf16.mxu0 0
        %2307 = vmatpush1.bf16.msra.mxu0 0
        %2308 = vmatprep.subr.bf16.mxu0 0
        %2309 = vmatpush1.bf16.msra.mxu0 0
        %2310 = vmatprep.subr.bf16.mxu0 0
        %2311 = vmatpush1.bf16.msra.mxu0 0
        %2312 = vmatprep.subr.bf16.mxu0 0
        %2313 = vmatpush1.bf16.msra.mxu0 0
        %2314 = vmatprep.subr.bf16.mxu0 0
        %2315 = vmatpush1.bf16.msra.mxu0 0
        %2316 = vmatprep.subr.bf16.mxu0 0
        %2317 = vmatpush1.bf16.msra.mxu0 0
        %2318 = vmatprep.subr.bf16.mxu0 0
        %2319 = vmatpush1.bf16.msra.mxu0 0
        %2320 = vmatprep.subr.bf16.mxu0 0
        %2321 = vmatpush1.bf16.msra.mxu0 0
        %2322 = vmatprep.mubr.bf16.mxu0 0
        %2323 = vmatmul.mubr.bf16.gmra.mrb[0].mxu0 %v693
        %v2324 = vpop.f32.mrb[0].mxu0
        %v2325 = vadd.f32 %v2262, %v2324
        %v2326 = vpop.f32.mrb[0].mxu0
        %v2327 = vadd.f32 %v2264, %v2326
        %v2328 = vpop.f32.mrb[0].mxu0
        %v2329 = vadd.f32 %v2266, %v2328
        %v2330 = vpop.f32.mrb[0].mxu0
        %v2331 = vadd.f32 %v2268, %v2330
        %2332 = vmatprep.mubr.bf16.mxu0 0
        %2333 = vmatmul.mubr.bf16.gmra.mrb[0].mxu0 %v700
        %v2334 = vpop.f32.mrb[0].mxu0
        %v2335 = vadd.f32 %v2272, %v2334
        %v2336 = vpop.f32.mrb[0].mxu0
        %v2337 = vadd.f32 %v2274, %v2336
        %v2338 = vpop.f32.mrb[0].mxu0
        %v2339 = vadd.f32 %v2276, %v2338
        %v2340 = vpop.f32.mrb[0].mxu0
        %v2341 = vadd.f32 %v2278, %v2340
        %2342 = vmatprep.mubr.bf16.mxu0 0
        %2343 = vmatmul.mubr.bf16.gmra.mrb[0].mxu0 %v707
        %v2344 = vpop.f32.mrb[0].mxu0
        %v2345 = vadd.f32 %v2282, %v2344
        %v2346 = vpop.f32.mrb[0].mxu0
        %v2347 = vadd.f32 %v2284, %v2346
        %v2348 = vpop.f32.mrb[0].mxu0
        %v2349 = vadd.f32 %v2286, %v2348
        %v2350 = vpop.f32.mrb[0].mxu0
        %v2351 = vadd.f32 %v2288, %v2350
        %2352 = vdwg.mxu0
        %v2353 = vadd.f32 %v349, %v2073
        %v2354 = vadd.f32 %v350, %v2075
        %v2355 = vadd.f32 %v351, %v2325
        %v2356 = vadd.f32 %v352, %v2327
        %v2357 = vadd.f32 %v353, %v2077
        %v2358 = vadd.f32 %v354, %v2079
        %v2359 = vadd.f32 %v355, %v2329
        %v2360 = vadd.f32 %v356, %v2331
        %v2361 = vadd.f32 %v357, %v2083
        %v2362 = vadd.f32 %v358, %v2085
        %v2363 = vadd.f32 %v359, %v2335
        %v2364 = vadd.f32 %v360, %v2337
        %v2365 = vadd.f32 %v361, %v2087
        %v2366 = vadd.f32 %v362, %v2089
        %v2367 = vadd.f32 %v363, %v2339
        %v2368 = vadd.f32 %v364, %v2341
        %v2369 = vadd.f32 %v365, %v2093
        %v2370 = vadd.f32 %v366, %v2095
        %v2371 = vadd.f32 %v367, %v2345
        %v2372 = vadd.f32 %v368, %v2347
        %v2373 = vadd.f32 %v369, %v2097
        %v2374 = vadd.f32 %v370, %v2099
        %v2375 = vadd.f32 %v371, %v2349
        %v2376 = vadd.f32 %v372, %v2351
        %2377 = vst [vmem:[#allocation2] sm:$0xff] %v2353
        %2378 = vst [vmem:[#allocation2 + $0x8] sm:$0xff] %v2354
        %2379 = vst [vmem:[#allocation2 + $0x10] sm:$0xff] %v2355
        %2380 = vst [vmem:[#allocation2 + $0x18] sm:$0xff] %v2356
        %2381 = vst [vmem:[#allocation2 + $0x20] sm:$0xff] %v2357
        %2382 = vst [vmem:[#allocation2 + $0x28] sm:$0xff] %v2358
        %2383 = vst [vmem:[#allocation2 + $0x30] sm:$0xff] %v2359
        %2384 = vst [vmem:[#allocation2 + $0x38] sm:$0xff] %v2360
        %2385 = vst [vmem:[#allocation2 + $0x40] sm:$0xff] %v2361
        %2386 = vst [vmem:[#allocation2 + $0x48] sm:$0xff] %v2362
        %2387 = vst [vmem:[#allocation2 + $0x50] sm:$0xff] %v2363
        %2388 = vst [vmem:[#allocation2 + $0x58] sm:$0xff] %v2364
        %2389 = vst [vmem:[#allocation2 + $0x60] sm:$0xff] %v2365
        %2390 = vst [vmem:[#allocation2 + $0x68] sm:$0xff] %v2366
        %2391 = vst [vmem:[#allocation2 + $0x70] sm:$0xff] %v2367
        %2392 = vst [vmem:[#allocation2 + $0x78] sm:$0xff] %v2368
        %2393 = vst [vmem:[#allocation2 + $0x80] sm:$0xff] %v2369
        %2394 = vst [vmem:[#allocation2 + $0x88] sm:$0xff] %v2370
        %2395 = vst [vmem:[#allocation2 + $0x90] sm:$0xff] %v2371
        %2396 = vst [vmem:[#allocation2 + $0x98] sm:$0xff] %v2372
        %2397 = vst [vmem:[#allocation2 + $0xa0] sm:$0xff] %v2373
        %2398 = vst [vmem:[#allocation2 + $0xa8] sm:$0xff] %v2374
        %2399 = vst [vmem:[#allocation2 + $0xb0] sm:$0xff] %v2375
        %2400 = vst [vmem:[#allocation2 + $0xb8] sm:$0xff] %v2376
        %p2401 = scmp.eq.s32.totalorder %s20, 13
        // Predicated region
        $region67: #{frequency_discriminator.10} parent=57 // pred_check
          %p2402 = pneg %p2401
        $region68: #{frequency_discriminator.10} parent=57 // pred_check_branch
          %2404 = sbr.rel (%p2402) target = $region70
        $region69: #{frequency_discriminator.10} parent=57 // pred_region
          %v2405 = vld [vmem:[#allocation2] sm:$0xff]
          %v2406 = vld [vmem:[#allocation2 + $0x8] sm:$0xff]
          %v2407 = vld [vmem:[#allocation2 + $0x10] sm:$0xff]
          %v2408 = vld [vmem:[#allocation2 + $0x18] sm:$0xff]
          %v2409 = vld [vmem:[#allocation2 + $0x20] sm:$0xff]
          %v2410 = vld [vmem:[#allocation2 + $0x28] sm:$0xff]
          %v2411 = vld [vmem:[#allocation2 + $0x30] sm:$0xff]
          %v2412 = vld [vmem:[#allocation2 + $0x38] sm:$0xff]
          %v2413 = vld [vmem:[#allocation2 + $0x40] sm:$0xff]
          %v2414 = vld [vmem:[#allocation2 + $0x48] sm:$0xff]
          %v2415 = vld [vmem:[#allocation2 + $0x50] sm:$0xff]
          %v2416 = vld [vmem:[#allocation2 + $0x58] sm:$0xff]
          %v2417 = vld [vmem:[#allocation2 + $0x60] sm:$0xff]
          %v2418 = vld [vmem:[#allocation2 + $0x68] sm:$0xff]
          %v2419 = vld [vmem:[#allocation2 + $0x70] sm:$0xff]
          %v2420 = vld [vmem:[#allocation2 + $0x78] sm:$0xff]
          %v2421 = vld [vmem:[#allocation2 + $0x80] sm:$0xff]
          %v2422 = vld [vmem:[#allocation2 + $0x88] sm:$0xff]
          %v2423 = vld [vmem:[#allocation2 + $0x90] sm:$0xff]
          %v2424 = vld [vmem:[#allocation2 + $0x98] sm:$0xff]
          %v2425 = vld [vmem:[#allocation2 + $0xa0] sm:$0xff]
          %v2426 = vld [vmem:[#allocation2 + $0xa8] sm:$0xff]
          %v2427 = vld [vmem:[#allocation2 + $0xb0] sm:$0xff]
          %v2428 = vld [vmem:[#allocation2 + $0xb8] sm:$0xff]
          %v2429 = vadd.f32 %v2405, %v2406
          %v2430 = vadd.f32 %v2429, %v2407
          %v2431 = vadd.f32 %v2430, %v2408
          %2432 = vadd.xlane.f32.xlu0 %v2431
          %v2433 = vpop.xlane.xlu0 %2432
          %v2434 = vadd.f32 %v2409, %v2410
          %v2435 = vadd.f32 %v2434, %v2411
          %v2436 = vadd.f32 %v2435, %v2412
          %2437 = vadd.xlane.f32.xlu0 %v2436
          %v2438 = vpop.xlane.xlu0 %2437
          %v2439 = vadd.f32 %v2413, %v2414
          %v2440 = vadd.f32 %v2439, %v2415
          %v2441 = vadd.f32 %v2440, %v2416
          %2442 = vadd.xlane.f32.xlu0 %v2441
          %v2443 = vpop.xlane.xlu0 %2442
          %v2444 = vadd.f32 %v2417, %v2418
          %v2445 = vadd.f32 %v2444, %v2419
          %v2446 = vadd.f32 %v2445, %v2420
          %2447 = vadd.xlane.f32.xlu0 %v2446
          %v2448 = vpop.xlane.xlu0 %2447
          %v2449 = vadd.f32 %v2421, %v2422
          %v2450 = vadd.f32 %v2449, %v2423
          %v2451 = vadd.f32 %v2450, %v2424
          %2452 = vadd.xlane.f32.xlu0 %v2451
          %v2453 = vpop.xlane.xlu0 %2452
          %v2454 = vadd.f32 %v2425, %v2426
          %v2455 = vadd.f32 %v2454, %v2427
          %v2456 = vadd.f32 %v2455, %v2428
          %2457 = vadd.xlane.f32.xlu0 %v2456
          %v2458 = vpop.xlane.xlu0 %2457
          %v2459 = vrcp.pop 512.0
          %v2460 = vmul.f32 %v2433, %v2459
          %v2461 = vmul.f32 %v2438, %v2459
          %v2462 = vmul.f32 %v2443, %v2459
          %v2463 = vmul.f32 %v2448, %v2459
          %v2464 = vmul.f32 %v2453, %v2459
          %v2465 = vmul.f32 %v2458, %v2459
          %v2466 = vsub.f32 %v2405, %v2460
          %v2467 = vsub.f32 %v2406, %v2460
          %v2468 = vsub.f32 %v2407, %v2460
          %v2469 = vsub.f32 %v2408, %v2460
          %v2470 = vsub.f32 %v2409, %v2461
          %v2471 = vsub.f32 %v2410, %v2461
          %v2472 = vsub.f32 %v2411, %v2461
          %v2473 = vsub.f32 %v2412, %v2461
          %v2474 = vsub.f32 %v2413, %v2462
          %v2475 = vsub.f32 %v2414, %v2462
          %v2476 = vsub.f32 %v2415, %v2462
          %v2477 = vsub.f32 %v2416, %v2462
          %v2478 = vsub.f32 %v2417, %v2463
          %v2479 = vsub.f32 %v2418, %v2463
          %v2480 = vsub.f32 %v2419, %v2463
          %v2481 = vsub.f32 %v2420, %v2463
          %v2482 = vsub.f32 %v2421, %v2464
          %v2483 = vsub.f32 %v2422, %v2464
          %v2484 = vsub.f32 %v2423, %v2464
          %v2485 = vsub.f32 %v2424, %v2464
          %v2486 = vsub.f32 %v2425, %v2465
          %v2487 = vsub.f32 %v2426, %v2465
          %v2488 = vsub.f32 %v2427, %v2465
          %v2489 = vsub.f32 %v2428, %v2465
          %v2490 = vmul.f32 %v2466, %v2466
          %v2491 = vmul.f32 %v2467, %v2467
          %v2492 = vmul.f32 %v2468, %v2468
          %v2493 = vmul.f32 %v2469, %v2469
          %v2494 = vmul.f32 %v2470, %v2470
          %v2495 = vmul.f32 %v2471, %v2471
          %v2496 = vmul.f32 %v2472, %v2472
          %v2497 = vmul.f32 %v2473, %v2473
          %v2498 = vmul.f32 %v2474, %v2474
          %v2499 = vmul.f32 %v2475, %v2475
          %v2500 = vmul.f32 %v2476, %v2476
          %v2501 = vmul.f32 %v2477, %v2477
          %v2502 = vmul.f32 %v2478, %v2478
          %v2503 = vmul.f32 %v2479, %v2479
          %v2504 = vmul.f32 %v2480, %v2480
          %v2505 = vmul.f32 %v2481, %v2481
          %v2506 = vmul.f32 %v2482, %v2482
          %v2507 = vmul.f32 %v2483, %v2483
          %v2508 = vmul.f32 %v2484, %v2484
          %v2509 = vmul.f32 %v2485, %v2485
          %v2510 = vmul.f32 %v2486, %v2486
          %v2511 = vmul.f32 %v2487, %v2487
          %v2512 = vmul.f32 %v2488, %v2488
          %v2513 = vmul.f32 %v2489, %v2489
          %v2514 = vadd.f32 %v2490, %v2491
          %v2515 = vadd.f32 %v2514, %v2492
          %v2516 = vadd.f32 %v2515, %v2493
          %2517 = vadd.xlane.f32.xlu0 %v2516
          %v2518 = vpop.xlane.xlu0 %2517
          %v2519 = vadd.f32 %v2494, %v2495
          %v2520 = vadd.f32 %v2519, %v2496
          %v2521 = vadd.f32 %v2520, %v2497
          %2522 = vadd.xlane.f32.xlu0 %v2521
          %v2523 = vpop.xlane.xlu0 %2522
          %v2524 = vadd.f32 %v2498, %v2499
          %v2525 = vadd.f32 %v2524, %v2500
          %v2526 = vadd.f32 %v2525, %v2501
          %2527 = vadd.xlane.f32.xlu0 %v2526
          %v2528 = vpop.xlane.xlu0 %2527
          %v2529 = vadd.f32 %v2502, %v2503
          %v2530 = vadd.f32 %v2529, %v2504
          %v2531 = vadd.f32 %v2530, %v2505
          %2532 = vadd.xlane.f32.xlu0 %v2531
          %v2533 = vpop.xlane.xlu0 %2532
          %v2534 = vadd.f32 %v2506, %v2507
          %v2535 = vadd.f32 %v2534, %v2508
          %v2536 = vadd.f32 %v2535, %v2509
          %2537 = vadd.xlane.f32.xlu0 %v2536
          %v2538 = vpop.xlane.xlu0 %2537
          %v2539 = vadd.f32 %v2510, %v2511
          %v2540 = vadd.f32 %v2539, %v2512
          %v2541 = vadd.f32 %v2540, %v2513
          %2542 = vadd.xlane.f32.xlu0 %v2541
          %v2543 = vpop.xlane.xlu0 %2542
          %v2544 = vmul.f32 %v2518, 0.0019569471
          %v2545 = vmul.f32 %v2523, 0.0019569471
          %v2546 = vmul.f32 %v2528, 0.0019569471
          %v2547 = vmul.f32 %v2533, 0.0019569471
          %v2548 = vmul.f32 %v2538, 0.0019569471
          %v2549 = vmul.f32 %v2543, 0.0019569471
          %v2550 = vrsqrt.pop %v2544
          %v2551 = vmul.f32 %v2544, %v2550
          %vm2552 = vcmp.eq.f32.partialorder %v2544, inf
          %v2553 = vsel %vm2552, %v2544, %v2551
          %vm2554 = vcmp.eq.f32.partialorder %v2544, 0.0
          %v2555 = vand.u32 %v2544, 2147483648
          %v2556 = vsel %vm2554, %v2555, %v2553
          %v2557 = vrsqrt.pop %v2545
          %v2558 = vmul.f32 %v2545, %v2557
          %vm2559 = vcmp.eq.f32.partialorder %v2545, inf
          %v2560 = vsel %vm2559, %v2545, %v2558
          %vm2561 = vcmp.eq.f32.partialorder %v2545, 0.0
          %v2562 = vand.u32 %v2545, 2147483648
          %v2563 = vsel %vm2561, %v2562, %v2560
          %v2564 = vrsqrt.pop %v2546
          %v2565 = vmul.f32 %v2546, %v2564
          %vm2566 = vcmp.eq.f32.partialorder %v2546, inf
          %v2567 = vsel %vm2566, %v2546, %v2565
          %vm2568 = vcmp.eq.f32.partialorder %v2546, 0.0
          %v2569 = vand.u32 %v2546, 2147483648
          %v2570 = vsel %vm2568, %v2569, %v2567
          %v2571 = vrsqrt.pop %v2547
          %v2572 = vmul.f32 %v2547, %v2571
          %vm2573 = vcmp.eq.f32.partialorder %v2547, inf
          %v2574 = vsel %vm2573, %v2547, %v2572
          %vm2575 = vcmp.eq.f32.partialorder %v2547, 0.0
          %v2576 = vand.u32 %v2547, 2147483648
          %v2577 = vsel %vm2575, %v2576, %v2574
          %v2578 = vrsqrt.pop %v2548
          %v2579 = vmul.f32 %v2548, %v2578
          %vm2580 = vcmp.eq.f32.partialorder %v2548, inf
          %v2581 = vsel %vm2580, %v2548, %v2579
          %vm2582 = vcmp.eq.f32.partialorder %v2548, 0.0
          %v2583 = vand.u32 %v2548, 2147483648
          %v2584 = vsel %vm2582, %v2583, %v2581
          %v2585 = vrsqrt.pop %v2549
          %v2586 = vmul.f32 %v2549, %v2585
          %vm2587 = vcmp.eq.f32.partialorder %v2549, inf
          %v2588 = vsel %vm2587, %v2549, %v2586
          %vm2589 = vcmp.eq.f32.partialorder %v2549, 0.0
          %v2590 = vand.u32 %v2549, 2147483648
          %v2591 = vsel %vm2589, %v2590, %v2588
          %v2592 = vadd.f32 %v2556, 1e-06
          %v2593 = vadd.f32 %v2563, 1e-06
          %v2594 = vadd.f32 %v2570, 1e-06
          %v2595 = vadd.f32 %v2577, 1e-06
          %v2596 = vadd.f32 %v2584, 1e-06
          %v2597 = vadd.f32 %v2591, 1e-06
          %v2598 = vrcp.pop %v2592
          %v2599 = vrcp.pop %v2593
          %v2600 = vrcp.pop %v2594
          %v2601 = vrcp.pop %v2595
          %v2602 = vrcp.pop %v2596
          %v2603 = vrcp.pop %v2597
          %v2604 = vld [vmem:[%s2] sm:$0xf]
          %v2606 = vlaneseq
          %v2607 = vshrl.u32 %v2606, 7
          %v2608 = vsub.s32 0, %v2607
          %v2609 = vrot.slane %v2604, %v2608
          %v2610 = vlaneseq
          %v2611 = vshrl.u32 %v2610, 7
          %v2612 = vsub.s32 1, %v2611
          %v2613 = vrot.slane %v2604, %v2612
          %v2614 = vlaneseq
          %v2615 = vshrl.u32 %v2614, 7
          %v2616 = vsub.s32 2, %v2615
          %v2617 = vrot.slane %v2604, %v2616
          %v2618 = vlaneseq
          %v2619 = vshrl.u32 %v2618, 7
          %v2620 = vsub.s32 3, %v2619
          %v2621 = vrot.slane %v2604, %v2620
          %v2626 = vmul.f32 %v2609, %v2466
          %v2627 = vmul.f32 %v2613, %v2467
          %v2628 = vmul.f32 %v2617, %v2468
          %v2629 = vmul.f32 %v2621, %v2469
          %v2630 = vmul.f32 %v2609, %v2470
          %v2631 = vmul.f32 %v2613, %v2471
          %v2632 = vmul.f32 %v2617, %v2472
          %v2633 = vmul.f32 %v2621, %v2473
          %v2634 = vmul.f32 %v2609, %v2474
          %v2635 = vmul.f32 %v2613, %v2475
          %v2636 = vmul.f32 %v2617, %v2476
          %v2637 = vmul.f32 %v2621, %v2477
          %v2638 = vmul.f32 %v2609, %v2478
          %v2639 = vmul.f32 %v2613, %v2479
          %v2640 = vmul.f32 %v2617, %v2480
          %v2641 = vmul.f32 %v2621, %v2481
          %v2642 = vmul.f32 %v2609, %v2482
          %v2643 = vmul.f32 %v2613, %v2483
          %v2644 = vmul.f32 %v2617, %v2484
          %v2645 = vmul.f32 %v2621, %v2485
          %v2646 = vmul.f32 %v2609, %v2486
          %v2647 = vmul.f32 %v2613, %v2487
          %v2648 = vmul.f32 %v2617, %v2488
          %v2649 = vmul.f32 %v2621, %v2489
          %v2650 = vmul.f32 %v2626, %v2598
          %v2651 = vmul.f32 %v2627, %v2598
          %v2652 = vmul.f32 %v2628, %v2598
          %v2653 = vmul.f32 %v2629, %v2598
          %v2654 = vmul.f32 %v2630, %v2599
          %v2655 = vmul.f32 %v2631, %v2599
          %v2656 = vmul.f32 %v2632, %v2599
          %v2657 = vmul.f32 %v2633, %v2599
          %v2658 = vmul.f32 %v2634, %v2600
          %v2659 = vmul.f32 %v2635, %v2600
          %v2660 = vmul.f32 %v2636, %v2600
          %v2661 = vmul.f32 %v2637, %v2600
          %v2662 = vmul.f32 %v2638, %v2601
          %v2663 = vmul.f32 %v2639, %v2601
          %v2664 = vmul.f32 %v2640, %v2601
          %v2665 = vmul.f32 %v2641, %v2601
          %v2666 = vmul.f32 %v2642, %v2602
          %v2667 = vmul.f32 %v2643, %v2602
          %v2668 = vmul.f32 %v2644, %v2602
          %v2669 = vmul.f32 %v2645, %v2602
          %v2670 = vmul.f32 %v2646, %v2603
          %v2671 = vmul.f32 %v2647, %v2603
          %v2672 = vmul.f32 %v2648, %v2603
          %v2673 = vmul.f32 %v2649, %v2603
          %v2674 = vld [vmem:[%s3] sm:$0xf]
          %v2676 = vlaneseq
          %v2677 = vshrl.u32 %v2676, 7
          %v2678 = vsub.s32 0, %v2677
          %v2679 = vrot.slane %v2674, %v2678
          %v2680 = vlaneseq
          %v2681 = vshrl.u32 %v2680, 7
          %v2682 = vsub.s32 1, %v2681
          %v2683 = vrot.slane %v2674, %v2682
          %v2684 = vlaneseq
          %v2685 = vshrl.u32 %v2684, 7
          %v2686 = vsub.s32 2, %v2685
          %v2687 = vrot.slane %v2674, %v2686
          %v2688 = vlaneseq
          %v2689 = vshrl.u32 %v2688, 7
          %v2690 = vsub.s32 3, %v2689
          %v2691 = vrot.slane %v2674, %v2690
          %v2696 = vadd.f32 %v2650, %v2679
          %v2697 = vadd.f32 %v2651, %v2683
          %v2698 = vadd.f32 %v2652, %v2687
          %v2699 = vadd.f32 %v2653, %v2691
          %v2700 = vadd.f32 %v2654, %v2679
          %v2701 = vadd.f32 %v2655, %v2683
          %v2702 = vadd.f32 %v2656, %v2687
          %v2703 = vadd.f32 %v2657, %v2691
          %v2704 = vadd.f32 %v2658, %v2679
          %v2705 = vadd.f32 %v2659, %v2683
          %v2706 = vadd.f32 %v2660, %v2687
          %v2707 = vadd.f32 %v2661, %v2691
          %v2708 = vadd.f32 %v2662, %v2679
          %v2709 = vadd.f32 %v2663, %v2683
          %v2710 = vadd.f32 %v2664, %v2687
          %v2711 = vadd.f32 %v2665, %v2691
          %v2712 = vadd.f32 %v2666, %v2679
          %v2713 = vadd.f32 %v2667, %v2683
          %v2714 = vadd.f32 %v2668, %v2687
          %v2715 = vadd.f32 %v2669, %v2691
          %v2716 = vadd.f32 %v2670, %v2679
          %v2717 = vadd.f32 %v2671, %v2683
          %v2718 = vadd.f32 %v2672, %v2687
          %v2719 = vadd.f32 %v2673, %v2691
          %vm2720 = vcmp.gt.f32.partialorder %v2696, 0.0
          %vm2721 = vcmp.gt.f32.partialorder %v2697, 0.0
          %vm2722 = vcmp.gt.f32.partialorder %v2698, 0.0
          %vm2723 = vcmp.gt.f32.partialorder %v2699, 0.0
          %vm2724 = vcmp.gt.f32.partialorder %v2700, 0.0
          %vm2725 = vcmp.gt.f32.partialorder %v2701, 0.0
          %vm2726 = vcmp.gt.f32.partialorder %v2702, 0.0
          %vm2727 = vcmp.gt.f32.partialorder %v2703, 0.0
          %vm2728 = vcmp.gt.f32.partialorder %v2704, 0.0
          %vm2729 = vcmp.gt.f32.partialorder %v2705, 0.0
          %vm2730 = vcmp.gt.f32.partialorder %v2706, 0.0
          %vm2731 = vcmp.gt.f32.partialorder %v2707, 0.0
          %vm2732 = vcmp.gt.f32.partialorder %v2708, 0.0
          %vm2733 = vcmp.gt.f32.partialorder %v2709, 0.0
          %vm2734 = vcmp.gt.f32.partialorder %v2710, 0.0
          %vm2735 = vcmp.gt.f32.partialorder %v2711, 0.0
          %vm2736 = vcmp.gt.f32.partialorder %v2712, 0.0
          %vm2737 = vcmp.gt.f32.partialorder %v2713, 0.0
          %vm2738 = vcmp.gt.f32.partialorder %v2714, 0.0
          %vm2739 = vcmp.gt.f32.partialorder %v2715, 0.0
          %vm2740 = vcmp.gt.f32.partialorder %v2716, 0.0
          %vm2741 = vcmp.gt.f32.partialorder %v2717, 0.0
          %vm2742 = vcmp.gt.f32.partialorder %v2718, 0.0
          %vm2743 = vcmp.gt.f32.partialorder %v2719, 0.0
          %v2744 = vmul.f32 %v2696, 0.2
          %v2745 = vmul.f32 %v2697, 0.2
          %v2746 = vmul.f32 %v2698, 0.2
          %v2747 = vmul.f32 %v2699, 0.2
          %v2748 = vmul.f32 %v2700, 0.2
          %v2749 = vmul.f32 %v2701, 0.2
          %v2750 = vmul.f32 %v2702, 0.2
          %v2751 = vmul.f32 %v2703, 0.2
          %v2752 = vmul.f32 %v2704, 0.2
          %v2753 = vmul.f32 %v2705, 0.2
          %v2754 = vmul.f32 %v2706, 0.2
          %v2755 = vmul.f32 %v2707, 0.2
          %v2756 = vmul.f32 %v2708, 0.2
          %v2757 = vmul.f32 %v2709, 0.2
          %v2758 = vmul.f32 %v2710, 0.2
          %v2759 = vmul.f32 %v2711, 0.2
          %v2760 = vmul.f32 %v2712, 0.2
          %v2761 = vmul.f32 %v2713, 0.2
          %v2762 = vmul.f32 %v2714, 0.2
          %v2763 = vmul.f32 %v2715, 0.2
          %v2764 = vmul.f32 %v2716, 0.2
          %v2765 = vmul.f32 %v2717, 0.2
          %v2766 = vmul.f32 %v2718, 0.2
          %v2767 = vmul.f32 %v2719, 0.2
          %v2768 = vsel %vm2720, %v2696, %v2744
          %v2769 = vsel %vm2721, %v2697, %v2745
          %v2770 = vsel %vm2722, %v2698, %v2746
          %v2771 = vsel %vm2723, %v2699, %v2747
          %v2772 = vsel %vm2724, %v2700, %v2748
          %v2773 = vsel %vm2725, %v2701, %v2749
          %v2774 = vsel %vm2726, %v2702, %v2750
          %v2775 = vsel %vm2727, %v2703, %v2751
          %v2776 = vsel %vm2728, %v2704, %v2752
          %v2777 = vsel %vm2729, %v2705, %v2753
          %v2778 = vsel %vm2730, %v2706, %v2754
          %v2779 = vsel %vm2731, %v2707, %v2755
          %v2780 = vsel %vm2732, %v2708, %v2756
          %v2781 = vsel %vm2733, %v2709, %v2757
          %v2782 = vsel %vm2734, %v2710, %v2758
          %v2783 = vsel %vm2735, %v2711, %v2759
          %v2784 = vsel %vm2736, %v2712, %v2760
          %v2785 = vsel %vm2737, %v2713, %v2761
          %v2786 = vsel %vm2738, %v2714, %v2762
          %v2787 = vsel %vm2739, %v2715, %v2763
          %v2788 = vsel %vm2740, %v2716, %v2764
          %v2789 = vsel %vm2741, %v2717, %v2765
          %v2790 = vsel %vm2742, %v2718, %v2766
          %v2791 = vsel %vm2743, %v2719, %v2767
          %2792 = vst [vmem:[%s318] sm:$0xff] %v2768
          %2793 = vst [vmem:[%s318 + $0x8] sm:$0xff] %v2769
          %2794 = vst [vmem:[%s318 + $0x10] sm:$0xff] %v2770
          %2795 = vst [vmem:[%s318 + $0x18] sm:$0xff] %v2771
          %2796 = vst [vmem:[%s318 + $0x20] sm:$0xff] %v2772
          %2797 = vst [vmem:[%s318 + $0x28] sm:$0xff] %v2773
          %2798 = vst [vmem:[%s318 + $0x30] sm:$0xff] %v2774
          %2799 = vst [vmem:[%s318 + $0x38] sm:$0xff] %v2775
          %2800 = vst [vmem:[%s318 + $0x40] sm:$0xff] %v2776
          %2801 = vst [vmem:[%s318 + $0x48] sm:$0xff] %v2777
          %2802 = vst [vmem:[%s318 + $0x50] sm:$0xff] %v2778
          %2803 = vst [vmem:[%s318 + $0x58] sm:$0xff] %v2779
          %2804 = vst [vmem:[%s318 + $0x60] sm:$0xff] %v2780
          %2805 = vst [vmem:[%s318 + $0x68] sm:$0xff] %v2781
          %2806 = vst [vmem:[%s318 + $0x70] sm:$0xff] %v2782
          %2807 = vst [vmem:[%s318 + $0x78] sm:$0xff] %v2783
          %2808 = vst [vmem:[%s318 + $0x80] sm:$0xff] %v2784
          %2809 = vst [vmem:[%s318 + $0x88] sm:$0xff] %v2785
          %2810 = vst [vmem:[%s318 + $0x90] sm:$0xff] %v2786
          %2811 = vst [vmem:[%s318 + $0x98] sm:$0xff] %v2787
          %2812 = vst [vmem:[%s318 + $0xa0] sm:$0xff] %v2788
          %2813 = vst [vmem:[%s318 + $0xa8] sm:$0xff] %v2789
          %2814 = vst [vmem:[%s318 + $0xb0] sm:$0xff] %v2790
          %2815 = vst [vmem:[%s318 + $0xb8] sm:$0xff] %v2791
        $region70: #{frequency_discriminator.10} parent=57 // pred_fallthru
          _
        %s2816 = smul.u32 6, %s19
        %p2817 = scmp.lt.s32.totalorder %s2816, 5
        %s2818 = scalar_select %p2817, %s2816, 5
        %s2819 = smul.addr %s2818, 4
        %s2820 = smul.addr %s2819, 8
        %s2821 = scalar_lea.vmem %s4, %s2820
        // Predicated region
        $region71: #{frequency_discriminator.10} parent=57 // pred_check
          %p2822 = pneg %p141
        $region72: #{frequency_discriminator.10} parent=57 // pred_check_branch
          %2824 = sbr.rel (%p2822) target = $region74
        $region73: #{frequency_discriminator.10} parent=57 // pred_region
          %s2825 = smul.u32 6, %s19
        $region74: #{frequency_discriminator.10} parent=57 // pred_fallthru
          _
        // Predicated region
        $region75: #{frequency_discriminator.10} parent=57 // pred_check
          %p2826 = pneg %p141
        $region76: #{frequency_discriminator.10} parent=57 // pred_check_branch
          %2828 = sbr.rel (%p2826) target = $region78
        $region77: #{frequency_discriminator.10} parent=57 // pred_region
          %s2829 = smul.u32 6, %s19
          %p2830 = scmp.lt.s32.totalorder %s2829, 5
          %s2831 = scalar_select %p2830, %s2829, 5
          %s2832 = smul.addr %s2831, 4
          %s2833 = smul.addr %s2832, 8
          %s2834 = scalar_lea.vmem %s4, %s2833
        $region78: #{frequency_discriminator.10} parent=57 // pred_fallthru
          _
      $region58: #{frequency_discriminator.10} parent=5 // pred_fallthru
        _
      %p2835 = scmp.le.s32.totalorder 2, %s10
      // Predicated region
      $region79: #{frequency_discriminator.10} parent=5 // pred_check
        %p2836 = pneg %p2835
      $region80: #{frequency_discriminator.10} parent=5 // pred_check_branch
        %2838 = sbr.rel (%p2836) target = $region82
      $region81: #{frequency_discriminator.10} parent=5 // pred_region
        %s2839 = ssub.s32 %s10, 2
      $region82: #{frequency_discriminator.10} parent=5 // pred_fallthru
        _
    $region6: #{frequency_discriminator.10} parent=1 // loop_footer
      %s14 = sadd.s32 1, %s10
    $region7: #{frequency_discriminator.10} parent=1 // loop_footer_branch
      %9 = sbr.rel target = $region3
    $region8: #{frequency_discriminator.10} parent=1 // loop_exit
      _

// kernel: frequency_discriminator.11
$region0: #{frequency_discriminator.11}
  #allocation0 [shape = 'u32[]', space=smem, size = 0x4, offset = 0x4, fixed_abs, tag = 'smem constant byte address 0x4 - core index']
  #allocation1 [shape = 'u32[144,128]{1,0:T(1,128)}', space=vmem, size = 0x12000, scoped, tag = 'internal scratch']
  #allocation2 [shape = 'f32[16,128]{1,0:T(8,128)}', space=vmem, size = 0x2000, scoped, tag = 'scratch operand']
  %s0 = inlined_call_operand.vmem [shape: bf16[16,25088], index: 0, kind: input, shape index: {}]
  %s1 = inlined_call_operand.vmem [shape: bf16[25088,128], index: 1, kind: input, shape index: {}]
  %s2 = inlined_call_operand.vmem [shape: f32[16,128], index: 2, kind: output, shape index: {}]
  %s3 = sld [smem:[#allocation0]]
  $region75: #{frequency_discriminator.11} parent=0
    _
  %s5 = ssub.s32 1, %s3
  %s6 = scalar_select 0, %s5, %s3
  $region1: #{frequency_discriminator.11} parent=0
    #allocation3 [shape = 'u8[57344]{0}', space=vmem, size = 0xe000, scoped, tag = 'input window, operand 0']
    loop: start=0, step=1, limit=30
    $region2: #{frequency_discriminator.11} parent=1 // loop_pre_header
      _
    $region3: #{frequency_discriminator.11} parent=1 // loop_header
      %s8 = sphi 0, %s12
      %p9 = scmp.ge.s32.totalorder %s8, 30
      %s15 = sphi 0, %s27
      %s16 = sphi 0, %s23
      %s17 = sphi 0, %s15
      %s18 = sphi 0, %s16
      %s19 = sphi 0, %s17
      %s20 = sphi 0, %s18
      %s32 = sphi 0, %s34
      %s35 = sphi 0, %s32
      %s36 = sphi 0, %s35
      %s52 = sphi 0, %s36
      %s58 = sphi 0, %s60
      %s61 = sphi 0, %s58
      %s62 = sphi 0, %s61
      %s78 = sphi 0, %s62
      %s84 = sphi 0, %s86
      %s87 = sphi 0, %s84
      %s88 = sphi 0, %s87
      %s104 = sphi 0, %s88
    $region4: #{frequency_discriminator.11} parent=1 // loop_header_branch
      %11 = sbr.rel (%p9) target = $region8
    $region5: #{frequency_discriminator.11} parent=1 // loop_body
      %s13 = ssub.s32 %s8, 1
      %s14 = ssub.s32 %s8, 2
      %s21 = sadd.s32 1, %s16
      %p22 = scmp.ge.s32.totalorder %s21, 28
      %s23 = scalar_select %p22, 0, %s21
      %s24 = sadd.s32 1, %s15
      %s25 = scalar_select %p22, %s24, %s15
      %p26 = scmp.ge.s32.totalorder %s25, 1
      %s27 = scalar_select %p26, 0, %s25
      %s28 = ssub.s32 %s15, %s27
      %s29 = ssub.s32 %s16, %s23
      %s30 = sor.u32 %s28, %s29
      %p31 = scmp.eq.s32.totalorder %s30, 0
      %s33 = sadd.s32 %s32, 1
      %s34 = scalar_select %p31, %s32, %s33
      %p37 = pneg %p31
      %p38 = scmp.eq.s32.totalorder %s8, 27
      %p39 = por %p37, %p38
      %p40 = scmp.ne.s32.totalorder %s32, %s35
      %p41 = scmp.eq.s32.totalorder %s8, 0
      %p42 = por %p40, %p41
      %p43 = scmp.ne.s32.totalorder %s32, %s35
      %p44 = scmp.eq.s32.totalorder %s13, 27
      %p45 = por %p43, %p44
      %p46 = scmp.ne.s32.totalorder %s35, %s36
      %p47 = scmp.eq.s32.totalorder %s13, 0
      %p48 = por %p46, %p47
      %p49 = scmp.ne.s32.totalorder %s35, %s36
      %p50 = scmp.eq.s32.totalorder %s14, 27
      %p51 = por %p49, %p50
      %p53 = scmp.ne.s32.totalorder %s36, %s52
      %p54 = scmp.eq.s32.totalorder %s14, 0
      %p55 = por %p53, %p54
      %s56 = ssub.s32 %s16, %s23
      %p57 = scmp.eq.s32.totalorder %s56, 0
      %s59 = sadd.s32 %s58, 1
      %s60 = scalar_select %p57, %s58, %s59
      %p63 = pneg %p57
      %p64 = scmp.eq.s32.totalorder %s8, 27
      %p65 = por %p63, %p64
      %p66 = scmp.ne.s32.totalorder %s58, %s61
      %p67 = scmp.eq.s32.totalorder %s8, 0
      %p68 = por %p66, %p67
      %p69 = scmp.ne.s32.totalorder %s58, %s61
      %p70 = scmp.eq.s32.totalorder %s13, 27
      %p71 = por %p69, %p70
      %p72 = scmp.ne.s32.totalorder %s61, %s62
      %p73 = scmp.eq.s32.totalorder %s13, 0
      %p74 = por %p72, %p73
      %p75 = scmp.ne.s32.totalorder %s61, %s62
      %p76 = scmp.eq.s32.totalorder %s14, 27
      %p77 = por %p75, %p76
      %p79 = scmp.ne.s32.totalorder %s62, %s78
      %p80 = scmp.eq.s32.totalorder %s14, 0
      %p81 = por %p79, %p80
      %s82 = ssub.s32 %s15, %s27
      %p83 = scmp.eq.s32.totalorder %s82, 0
      %s85 = sadd.s32 %s84, 1
      %s86 = scalar_select %p83, %s84, %s85
      %p89 = pneg %p83
      %p90 = scmp.eq.s32.totalorder %s8, 27
      %p91 = por %p89, %p90
      %p92 = scmp.ne.s32.totalorder %s84, %s87
      %p93 = scmp.eq.s32.totalorder %s8, 0
      %p94 = por %p92, %p93
      %p95 = scmp.ne.s32.totalorder %s84, %s87
      %p96 = scmp.eq.s32.totalorder %s13, 27
      %p97 = por %p95, %p96
      %p98 = scmp.ne.s32.totalorder %s87, %s88
      %p99 = scmp.eq.s32.totalorder %s13, 0
      %p100 = por %p98, %p99
      %p101 = scmp.ne.s32.totalorder %s87, %s88
      %p102 = scmp.eq.s32.totalorder %s14, 27
      %p103 = por %p101, %p102
      %p105 = scmp.ne.s32.totalorder %s88, %s104
      %p106 = scmp.eq.s32.totalorder %s14, 0
      %p107 = por %p105, %p106
      %p108 = scmp.le.s32.totalorder 1, %s8
      %p109 = scmp.lt.s32.totalorder %s8, 29
      %p110 = pnand %p108, %p109
      %p111 = pneg %p110
      // Predicated region
      $region9: #{frequency_discriminator.11} parent=5 // pred_check
        _
      $region10: #{frequency_discriminator.11} parent=5 // pred_check_branch
        %113 = sbr.rel (%p110) target = $region12
      $region11: #{frequency_discriminator.11} parent=5 // pred_region
        %s114 = ssub.s32 %s8, 1
      $region12: #{frequency_discriminator.11} parent=5 // pred_fallthru
        _
      %p115 = scmp.lt.s32.totalorder %s8, 28
      // Predicated region
      $region13: #{frequency_discriminator.11} parent=5 // pred_check
        %p116 = pneg %p115
      $region14: #{frequency_discriminator.11} parent=5 // pred_check_branch
        %118 = sbr.rel (%p116) target = $region16
      $region15: #{frequency_discriminator.11} parent=5 // pred_region
        // Predicated region
        $region17: #{frequency_discriminator.11} parent=15 // pred_check
          %p119 = pneg %p42
        $region18: #{frequency_discriminator.11} parent=15 // pred_check_branch
          %121 = sbr.rel (%p119) target = $region20
        $region19: #{frequency_discriminator.11} parent=15 // pred_region
          %s122 = sand.u32 %s32, 1
          %s123 = sand.u32 %s32, 1
          %s124 = smul.addr %s123, 56
          %s125 = scalar_lea.vmem [#allocation3], %s124
          %s126 = smul.u32 2, %s15
          %s127 = smul.u32 7, %s16
          %s128 = smul.addr %s126, 196
          %s129 = sadd.s32 %s127, %s128
          %s130 = smul.addr %s129, 4
          %s131 = scalar_lea.vmem %s0, %s130
          // Predicated region
          $region21: #{frequency_discriminator.11} parent=19 // pred_check
            _
          $region22: #{frequency_discriminator.11} parent=19 // pred_check_branch
            %133 = sbr.rel (0) target = $region24
          $region23: #{frequency_discriminator.11} parent=19 // pred_region
            // Predicated region
            $region25: #{frequency_discriminator.11} parent=23 // pred_check
              _
            $region26: #{frequency_discriminator.11} parent=23 // pred_check_branch
              %135 = sbr.rel (0) target = $region28
            $region27: #{frequency_discriminator.11} parent=23 // pred_region
              %s136 = scalar_lea.vmem %s131, 24
              %s137 = scalar_lea.vmem %s125, 24 [#allocation3]
              loop: start=0, step=1, limit=1
              $region29: #{frequency_discriminator.11} parent=27 // loop_pre_header
                _
              $region30: #{frequency_discriminator.11} parent=27 // loop_header
                %s139 = sphi 0, %s143
                %p140 = scmp.ge.s32.totalorder %s139, 1
                %s144 = sphi %s131, %s131
                %s145 = sphi %s125, %s125
              $region31: #{frequency_discriminator.11} parent=27 // loop_header_branch
                %142 = sbr.rel (%p140) target = $region35
              $region32: #{frequency_discriminator.11} parent=27 // loop_body
                %v146 = vld [vmem:[%s144] sm:$0xff]
                %147 = vst [vmem:[%s145] sm:$0xff] %v146
                %v148 = vld [vmem:[%s144 + $0x8] sm:$0xff]
                %149 = vst [vmem:[%s145 + $0x8] sm:$0xff] %v148
                %v150 = vld [vmem:[%s144 + $0x10] sm:$0xff]
                %151 = vst [vmem:[%s145 + $0x10] sm:$0xff] %v150
                %v152 = vld [vmem:[%s144 + $0x310] sm:$0xff]
                %153 = vst [vmem:[%s145 + $0x1c] sm:$0xff] %v152
                %v154 = vld [vmem:[%s144 + $0x318] sm:$0xff]
                %155 = vst [vmem:[%s145 + $0x24] sm:$0xff] %v154
                %v156 = vld [vmem:[%s144 + $0x320] sm:$0xff]
                %157 = vst [vmem:[%s145 + $0x2c] sm:$0xff] %v156
              $region33: #{frequency_discriminator.11} parent=27 // loop_footer
                %s143 = sadd.s32 1, %s139
              $region34: #{frequency_discriminator.11} parent=27 // loop_footer_branch
                %138 = sbr.rel target = $region30
              $region35: #{frequency_discriminator.11} parent=27 // loop_exit
                _
              loop: start=0, step=1, limit=1
              $region36: #{frequency_discriminator.11} parent=27 // loop_pre_header
                _
              $region37: #{frequency_discriminator.11} parent=27 // loop_header
                %s160 = sphi 0, %s164
                %p161 = scmp.ge.s32.totalorder %s160, 1
                %s165 = sphi %s136, %s136
                %s166 = sphi %s137, %s137
              $region38: #{frequency_discriminator.11} parent=27 // loop_header_branch
                %163 = sbr.rel (%p161) target = $region42
              $region39: #{frequency_discriminator.11} parent=27 // loop_body
                %v167 = vld [vmem:[%s165] sm:$0xf]
                %168 = vst [vmem:[%s166] sm:$0xf] %v167
                %v169 = vld [vmem:[%s165 + $0x310] sm:$0xf]
                %170 = vst [vmem:[%s166 + $0x1c] sm:$0xf] %v169
              $region40: #{frequency_discriminator.11} parent=27 // loop_footer
                %s164 = sadd.s32 1, %s160
              $region41: #{frequency_discriminator.11} parent=27 // loop_footer_branch
                %159 = sbr.rel target = $region37
              $region42: #{frequency_discriminator.11} parent=27 // loop_exit
                _
            $region28: #{frequency_discriminator.11} parent=23 // pred_fallthru
              _
          $region24: #{frequency_discriminator.11} parent=19 // pred_fallthru
            _
          %171 = vnop
        $region20: #{frequency_discriminator.11} parent=15 // pred_fallthru
          _
        // Predicated region
        $region43: #{frequency_discriminator.11} parent=15 // pred_check
          %p172 = pneg %p68
        $region44: #{frequency_discriminator.11} parent=15 // pred_check_branch
          %174 = sbr.rel (%p172) target = $region46
        $region45: #{frequency_discriminator.11} parent=15 // pred_region
          %s175 = smul.u32 112, %s16
          %p176 = scmp.lt.s32.totalorder %s175, 3135
          %s177 = scalar_select %p176, %s175, 3135
          %s178 = smul.addr %s177, 4
          %s179 = scalar_lea.vmem %s1, %s178
          %s180 = smul.u32 112, %s16
        $region46: #{frequency_discriminator.11} parent=15 // pred_fallthru
          _
      $region16: #{frequency_discriminator.11} parent=5 // pred_fallthru
        _
      %p181 = scmp.le.s32.totalorder 1, %s8
      %p182 = scmp.lt.s32.totalorder %s8, 29
      %p183 = pnand %p181, %p182
      %p184 = pneg %p183
      // Predicated region
      $region47: #{frequency_discriminator.11} parent=5 // pred_check
        _
      $region48: #{frequency_discriminator.11} parent=5 // pred_check_branch
        %186 = sbr.rel (%p183) target = $region50
      $region49: #{frequency_discriminator.11} parent=5 // pred_region
        %s187 = ssub.s32 %s8, 1
        %s188 = sand.u32 %s35, 1
        %s189 = sand.u32 %s35, 1
        %s190 = smul.addr %s189, 56
        %s191 = scalar_lea.vmem [#allocation3], %s190
        // Predicated region
        $region51: #{frequency_discriminator.11} parent=49 // pred_check
          %p192 = pneg %p48
        $region52: #{frequency_discriminator.11} parent=49 // pred_check_branch
          %194 = sbr.rel (%p192) target = $region54
        $region53: #{frequency_discriminator.11} parent=49 // pred_region
          _
        $region54: #{frequency_discriminator.11} parent=49 // pred_fallthru
          _
        %s195 = sand.u32 %s35, 1
        %s196 = sand.u32 %s35, 1
        %s197 = smul.addr %s196, 56
        %s198 = scalar_lea.vmem [#allocation3], %s197
        %p199 = pneg %p48
        %p200 = pneg %p45
        %s201 = smul.u32 112, %s18
        %p202 = scmp.lt.s32.totalorder %s201, 3135
        %s203 = scalar_select %p202, %s201, 3135
        %s204 = smul.addr %s203, 4
        %s205 = scalar_lea.vmem %s1, %s204
        %p206 = pneg %p74
        %p207 = pneg %p71
        %p208 = pneg %p100
        %p209 = pneg %p97
        %s210 = smul.u32 2, %s17
        %p211 = scmp.lt.s32.totalorder %s210, 1
        %s212 = scalar_select %p211, %s210, 1
        %s213 = smul.addr %s212, 8
        %s214 = scalar_lea.vmem %s2, %s213
        %s215 = smul.u32 2, %s17
        %s216 = smul.u32 7, %s18
        %s217 = smul.u32 112, %s18
        %p218 = scmp.lt.s32.totalorder %s217, 3135
        %s219 = scalar_select %p218, %s217, 3135
        %s220 = smul.addr %s219, 4
        %s221 = scalar_lea.vmem %s1, %s220
        %s222 = smul.u32 112, %s18
        %s223 = smul.u32 2, %s17
        %p224 = scmp.lt.s32.totalorder %s223, 1
        %s225 = scalar_select %p224, %s223, 1
        %s226 = smul.addr %s225, 8
        %s227 = scalar_lea.vmem %s2, %s226
        %s228 = smul.u32 2, %s17
        %p230 = scmp.eq.s32.totalorder %s18, 0
        // Predicated region
        $region55: #{frequency_discriminator.11} parent=49 // pred_check
          %p231 = pneg %p230
        $region56: #{frequency_discriminator.11} parent=49 // pred_check_branch
          %233 = sbr.rel (%p231) target = $region58
        $region57: #{frequency_discriminator.11} parent=49 // pred_region
          %234 = vst [vmem:[#allocation2] sm:$0xff] 0.0
          %235 = vst [vmem:[#allocation2 + $0x8] sm:$0xff] 0.0
        $region58: #{frequency_discriminator.11} parent=49 // pred_fallthru
          _
        %v236 = vld [vmem:[#allocation2] sm:$0xff]
        %v237 = vld [vmem:[#allocation2 + $0x8] sm:$0xff]
        %v238 = vld [vmem:[%s191] sm:$0xff]
        %v239 = vld [vmem:[%s191 + $0x8] sm:$0xff]
        %v240 = vld [vmem:[%s191 + $0x10] sm:$0xff]
        %v241 = vld [vmem:[%s191 + $0x18] sm:$0xf]
        %v242 = vld [vmem:[%s191 + $0x1c] sm:$0xff]
        %v243 = vld [vmem:[%s191 + $0x24] sm:$0xff]
        %v244 = vld [vmem:[%s191 + $0x2c] sm:$0xff]
        %v245 = vld [vmem:[%s191 + $0x34] sm:$0xf]
        %v246 = vld [vmem:[%s221] sm:$0xf]
        %v247 = vld [vmem:[%s221 + $0x4] sm:$0xf]
        %v248 = vld [vmem:[%s221 + $0x8] sm:$0xf]
        %v249 = vld [vmem:[%s221 + $0xc] sm:$0xf]
        %v250 = vld [vmem:[%s221 + $0x10] sm:$0xf]
        %v251 = vld [vmem:[%s221 + $0x14] sm:$0xf]
        %v252 = vld [vmem:[%s221 + $0x18] sm:$0xf]
        %v253 = vld [vmem:[%s221 + $0x1c] sm:$0xf]
        %v254 = vld [vmem:[%s221 + $0x20] sm:$0xf]
        %v255 = vld [vmem:[%s221 + $0x24] sm:$0xf]
        %v256 = vld [vmem:[%s221 + $0x28] sm:$0xf]
        %v257 = vld [vmem:[%s221 + $0x2c] sm:$0xf]
        %v258 = vld [vmem:[%s221 + $0x30] sm:$0xf]
        %v259 = vld [vmem:[%s221 + $0x34] sm:$0xf]
        %v260 = vld [vmem:[%s221 + $0x38] sm:$0xf]
        %v261 = vld [vmem:[%s221 + $0x3c] sm:$0xf]
        %v262 = vld [vmem:[%s221 + $0x40] sm:$0xf]
        %v263 = vld [vmem:[%s221 + $0x44] sm:$0xf]
        %v264 = vld [vmem:[%s221 + $0x48] sm:$0xf]
        %v265 = vld [vmem:[%s221 + $0x4c] sm:$0xf]
        %v266 = vld [vmem:[%s221 + $0x50] sm:$0xf]
        %v267 = vld [vmem:[%s221 + $0x54] sm:$0xf]
        %v268 = vld [vmem:[%s221 + $0x58] sm:$0xf]
        %v269 = vld [vmem:[%s221 + $0x5c] sm:$0xf]
        %v270 = vld [vmem:[%s221 + $0x60] sm:$0xf]
        %v271 = vld [vmem:[%s221 + $0x64] sm:$0xf]
        %v272 = vld [vmem:[%s221 + $0x68] sm:$0xf]
        %v273 = vld [vmem:[%s221 + $0x6c] sm:$0xf]
        %v274 = vld [vmem:[%s221 + $0x70] sm:$0xf]
        %v275 = vld [vmem:[%s221 + $0x74] sm:$0xf]
        %v276 = vld [vmem:[%s221 + $0x78] sm:$0xf]
        %v277 = vld [vmem:[%s221 + $0x7c] sm:$0xf]
        %v278 = vld [vmem:[%s221 + $0x80] sm:$0xf]
        %v279 = vld [vmem:[%s221 + $0x84] sm:$0xf]
        %v280 = vld [vmem:[%s221 + $0x88] sm:$0xf]
        %v281 = vld [vmem:[%s221 + $0x8c] sm:$0xf]
        %v282 = vld [vmem:[%s221 + $0x90] sm:$0xf]
        %v283 = vld [vmem:[%s221 + $0x94] sm:$0xf]
        %v284 = vld [vmem:[%s221 + $0x98] sm:$0xf]
        %v285 = vld [vmem:[%s221 + $0x9c] sm:$0xf]
        %v286 = vld [vmem:[%s221 + $0xa0] sm:$0xf]
        %v287 = vld [vmem:[%s221 + $0xa4] sm:$0xf]
        %v288 = vld [vmem:[%s221 + $0xa8] sm:$0xf]
        %v289 = vld [vmem:[%s221 + $0xac] sm:$0xf]
        %v290 = vld [vmem:[%s221 + $0xb0] sm:$0xf]
        %v291 = vld [vmem:[%s221 + $0xb4] sm:$0xf]
        %v292 = vld [vmem:[%s221 + $0xb8] sm:$0xf]
        %v293 = vld [vmem:[%s221 + $0xbc] sm:$0xf]
        %v294 = vld [vmem:[%s221 + $0xc0] sm:$0xf]
        %v295 = vld [vmem:[%s221 + $0xc4] sm:$0xf]
        %v296 = vld [vmem:[%s221 + $0xc8] sm:$0xf]
        %v297 = vld [vmem:[%s221 + $0xcc] sm:$0xf]
        %v298 = vld [vmem:[%s221 + $0xd0] sm:$0xf]
        %v299 = vld [vmem:[%s221 + $0xd4] sm:$0xf]
        %v300 = vld [vmem:[%s221 + $0xd8] sm:$0xf]
        %v301 = vld [vmem:[%s221 + $0xdc] sm:$0xf]
        %v302 = vld [vmem:[%s221 + $0xe0] sm:$0xf]
        %v303 = vld [vmem:[%s221 + $0xe4] sm:$0xf]
        %v304 = vld [vmem:[%s221 + $0xe8] sm:$0xf]
        %v305 = vld [vmem:[%s221 + $0xec] sm:$0xf]
        %v306 = vld [vmem:[%s221 + $0xf0] sm:$0xf]
        %v307 = vld [vmem:[%s221 + $0xf4] sm:$0xf]
        %v308 = vld [vmem:[%s221 + $0xf8] sm:$0xf]
        %v309 = vld [vmem:[%s221 + $0xfc] sm:$0xf]
        %v310 = vld [vmem:[%s221 + $0x100] sm:$0xf]
        %v311 = vld [vmem:[%s221 + $0x104] sm:$0xf]
        %v312 = vld [vmem:[%s221 + $0x108] sm:$0xf]
        %v313 = vld [vmem:[%s221 + $0x10c] sm:$0xf]
        %v314 = vld [vmem:[%s221 + $0x110] sm:$0xf]
        %v315 = vld [vmem:[%s221 + $0x114] sm:$0xf]
        %v316 = vld [vmem:[%s221 + $0x118] sm:$0xf]
        %v317 = vld [vmem:[%s221 + $0x11c] sm:$0xf]
        %v318 = vld [vmem:[%s221 + $0x120] sm:$0xf]
        %v319 = vld [vmem:[%s221 + $0x124] sm:$0xf]
        %v320 = vld [vmem:[%s221 + $0x128] sm:$0xf]
        %v321 = vld [vmem:[%s221 + $0x12c] sm:$0xf]
        %v322 = vld [vmem:[%s221 + $0x130] sm:$0xf]
        %v323 = vld [vmem:[%s221 + $0x134] sm:$0xf]
        %v324 = vld [vmem:[%s221 + $0x138] sm:$0xf]
        %v325 = vld [vmem:[%s221 + $0x13c] sm:$0xf]
        %v326 = vld [vmem:[%s221 + $0x140] sm:$0xf]
        %v327 = vld [vmem:[%s221 + $0x144] sm:$0xf]
        %v328 = vld [vmem:[%s221 + $0x148] sm:$0xf]
        %v329 = vld [vmem:[%s221 + $0x14c] sm:$0xf]
        %v330 = vld [vmem:[%s221 + $0x150] sm:$0xf]
        %v331 = vld [vmem:[%s221 + $0x154] sm:$0xf]
        %v332 = vld [vmem:[%s221 + $0x158] sm:$0xf]
        %v333 = vld [vmem:[%s221 + $0x15c] sm:$0xf]
        %v334 = vld [vmem:[%s221 + $0x160] sm:$0xf]
        %v335 = vld [vmem:[%s221 + $0x164] sm:$0xf]
        %v336 = vld [vmem:[%s221 + $0x168] sm:$0xf]
        %v337 = vld [vmem:[%s221 + $0x16c] sm:$0xf]
        %v338 = vld [vmem:[%s221 + $0x170] sm:$0xf]
        %v339 = vld [vmem:[%s221 + $0x174] sm:$0xf]
        %v340 = vld [vmem:[%s221 + $0x178] sm:$0xf]
        %v341 = vld [vmem:[%s221 + $0x17c] sm:$0xf]
        %v342 = vld [vmem:[%s221 + $0x180] sm:$0xf]
        %v343 = vld [vmem:[%s221 + $0x184] sm:$0xf]
        %v344 = vld [vmem:[%s221 + $0x188] sm:$0xf]
        %v345 = vld [vmem:[%s221 + $0x18c] sm:$0xf]
        %v346 = vld [vmem:[%s221 + $0x190] sm:$0xf]
        %v347 = vld [vmem:[%s221 + $0x194] sm:$0xf]
        %v348 = vld [vmem:[%s221 + $0x198] sm:$0xf]
        %v349 = vld [vmem:[%s221 + $0x19c] sm:$0xf]
        %v350 = vld [vmem:[%s221 + $0x1a0] sm:$0xf]
        %v351 = vld [vmem:[%s221 + $0x1a4] sm:$0xf]
        %v352 = vld [vmem:[%s221 + $0x1a8] sm:$0xf]
        %v353 = vld [vmem:[%s221 + $0x1ac] sm:$0xf]
        %v354 = vld [vmem:[%s221 + $0x1b0] sm:$0xf]
        %v355 = vld [vmem:[%s221 + $0x1b4] sm:$0xf]
        %v356 = vld [vmem:[%s221 + $0x1b8] sm:$0xf]
        %v357 = vld [vmem:[%s221 + $0x1bc] sm:$0xf]
        %v366 = vunpack.c.l.b16 %v238
        %v367 = vunpack.c.h.b16 %v238
        %v368 = vunpack.c.l.b16 %v239
        %v369 = vunpack.c.h.b16 %v239
        %v370 = vunpack.c.l.b16 %v240
        %v371 = vunpack.c.h.b16 %v240
        %v372 = vunpack.c.l.b16 %v241
        %v373 = vunpack.c.l.b16 %v242
        %v374 = vunpack.c.h.b16 %v242
        %v375 = vunpack.c.l.b16 %v243
        %v376 = vunpack.c.h.b16 %v243
        %v377 = vunpack.c.l.b16 %v244
        %v378 = vunpack.c.h.b16 %v244
        %v379 = vunpack.c.l.b16 %v245
        %v380 = vpack.c.b16 %v373, %v366
        %v381 = vpack.c.b16 %v374, %v367
        %v382 = vpack.c.b16 %v375, %v368
        %v383 = vpack.c.b16 %v376, %v369
        %v384 = vpack.c.b16 %v377, %v370
        %v385 = vpack.c.b16 %v378, %v371
        %v386 = vpack.c.b16 %v379, %v372
        %v506 = vunpack.c.l.b16 %v246
        %v507 = vunpack.c.l.b16 %v247
        %v508 = vunpack.c.l.b16 %v248
        %v509 = vunpack.c.l.b16 %v249
        %v510 = vunpack.c.l.b16 %v250
        %v511 = vunpack.c.l.b16 %v251
        %v512 = vunpack.c.l.b16 %v252
        %v513 = vunpack.c.l.b16 %v253
        %v514 = vunpack.c.l.b16 %v254
        %v515 = vunpack.c.l.b16 %v255
        %v516 = vunpack.c.l.b16 %v256
        %v517 = vunpack.c.l.b16 %v257
        %v518 = vunpack.c.l.b16 %v258
        %v519 = vunpack.c.l.b16 %v259
        %v520 = vunpack.c.l.b16 %v260
        %v521 = vunpack.c.l.b16 %v261
        %v522 = vunpack.c.l.b16 %v262
        %v523 = vunpack.c.l.b16 %v263
        %v524 = vunpack.c.l.b16 %v264
        %v525 = vunpack.c.l.b16 %v265
        %v526 = vunpack.c.l.b16 %v266
        %v527 = vunpack.c.l.b16 %v267
        %v528 = vunpack.c.l.b16 %v268
        %v529 = vunpack.c.l.b16 %v269
        %v530 = vunpack.c.l.b16 %v270
        %v531 = vunpack.c.l.b16 %v271
        %v532 = vunpack.c.l.b16 %v272
        %v533 = vunpack.c.l.b16 %v273
        %v534 = vunpack.c.l.b16 %v274
        %v535 = vunpack.c.l.b16 %v275
        %v536 = vunpack.c.l.b16 %v276
        %v537 = vunpack.c.l.b16 %v277
        %v538 = vunpack.c.l.b16 %v278
        %v539 = vunpack.c.l.b16 %v279
        %v540 = vunpack.c.l.b16 %v280
        %v541 = vunpack.c.l.b16 %v281
        %v542 = vunpack.c.l.b16 %v282
        %v543 = vunpack.c.l.b16 %v283
        %v544 = vunpack.c.l.b16 %v284
        %v545 = vunpack.c.l.b16 %v285
        %v546 = vunpack.c.l.b16 %v286
        %v547 = vunpack.c.l.b16 %v287
        %v548 = vunpack.c.l.b16 %v288
        %v549 = vunpack.c.l.b16 %v289
        %v550 = vunpack.c.l.b16 %v290
        %v551 = vunpack.c.l.b16 %v291
        %v552 = vunpack.c.l.b16 %v292
        %v553 = vunpack.c.l.b16 %v293
        %v554 = vunpack.c.l.b16 %v294
        %v555 = vunpack.c.l.b16 %v295
        %v556 = vunpack.c.l.b16 %v296
        %v557 = vunpack.c.l.b16 %v297
        %v558 = vunpack.c.l.b16 %v298
        %v559 = vunpack.c.l.b16 %v299
        %v560 = vunpack.c.l.b16 %v300
        %v561 = vunpack.c.l.b16 %v301
        %v562 = vunpack.c.l.b16 %v302
        %v563 = vunpack.c.l.b16 %v303
        %v564 = vunpack.c.l.b16 %v304
        %v565 = vunpack.c.l.b16 %v305
        %v566 = vunpack.c.l.b16 %v306
        %v567 = vunpack.c.l.b16 %v307
        %v568 = vunpack.c.l.b16 %v308
        %v569 = vunpack.c.l.b16 %v309
        %v570 = vunpack.c.l.b16 %v310
        %v571 = vunpack.c.l.b16 %v311
        %v572 = vunpack.c.l.b16 %v312
        %v573 = vunpack.c.l.b16 %v313
        %v574 = vunpack.c.l.b16 %v314
        %v575 = vunpack.c.l.b16 %v315
        %v576 = vunpack.c.l.b16 %v316
        %v577 = vunpack.c.l.b16 %v317
        %v578 = vunpack.c.l.b16 %v318
        %v579 = vunpack.c.l.b16 %v319
        %v580 = vunpack.c.l.b16 %v320
        %v581 = vunpack.c.l.b16 %v321
        %v582 = vunpack.c.l.b16 %v322
        %v583 = vunpack.c.l.b16 %v323
        %v584 = vunpack.c.l.b16 %v324
        %v585 = vunpack.c.l.b16 %v325
        %v586 = vunpack.c.l.b16 %v326
        %v587 = vunpack.c.l.b16 %v327
        %v588 = vunpack.c.l.b16 %v328
        %v589 = vunpack.c.l.b16 %v329
        %v590 = vunpack.c.l.b16 %v330
        %v591 = vunpack.c.l.b16 %v331
        %v592 = vunpack.c.l.b16 %v332
        %v593 = vunpack.c.l.b16 %v333
        %v594 = vunpack.c.l.b16 %v334
        %v595 = vunpack.c.l.b16 %v335
        %v596 = vunpack.c.l.b16 %v336
        %v597 = vunpack.c.l.b16 %v337
        %v598 = vunpack.c.l.b16 %v338
        %v599 = vunpack.c.l.b16 %v339
        %v600 = vunpack.c.l.b16 %v340
        %v601 = vunpack.c.l.b16 %v341
        %v602 = vunpack.c.l.b16 %v342
        %v603 = vunpack.c.l.b16 %v343
        %v604 = vunpack.c.l.b16 %v344
        %v605 = vunpack.c.l.b16 %v345
        %v606 = vunpack.c.l.b16 %v346
        %v607 = vunpack.c.l.b16 %v347
        %v608 = vunpack.c.l.b16 %v348
        %v609 = vunpack.c.l.b16 %v349
        %v610 = vunpack.c.l.b16 %v350
        %v611 = vunpack.c.l.b16 %v351
        %v612 = vunpack.c.l.b16 %v352
        %v613 = vunpack.c.l.b16 %v353
        %v614 = vunpack.c.l.b16 %v354
        %v615 = vunpack.c.l.b16 %v355
        %v616 = vunpack.c.l.b16 %v356
        %v617 = vunpack.c.l.b16 %v357
        %v618 = vpack.c.b16 %v507, %v506
        %v619 = vpack.c.b16 %v509, %v508
        %v620 = vpack.c.b16 %v511, %v510
        %v621 = vpack.c.b16 %v513, %v512
        %v622 = vpack.c.b16 %v515, %v514
        %v623 = vpack.c.b16 %v517, %v516
        %v624 = vpack.c.b16 %v519, %v518
        %v625 = vpack.c.b16 %v521, %v520
        %v626 = vpack.c.b16 %v523, %v522
        %v627 = vpack.c.b16 %v525, %v524
        %v628 = vpack.c.b16 %v527, %v526
        %v629 = vpack.c.b16 %v529, %v528
        %v630 = vpack.c.b16 %v531, %v530
        %v631 = vpack.c.b16 %v533, %v532
        %v632 = vpack.c.b16 %v535, %v534
        %v633 = vpack.c.b16 %v537, %v536
        %v634 = vpack.c.b16 %v539, %v538
        %v635 = vpack.c.b16 %v541, %v540
        %v636 = vpack.c.b16 %v543, %v542
        %v637 = vpack.c.b16 %v545, %v544
        %v638 = vpack.c.b16 %v547, %v546
        %v639 = vpack.c.b16 %v549, %v548
        %v640 = vpack.c.b16 %v551, %v550
        %v641 = vpack.c.b16 %v553, %v552
        %v642 = vpack.c.b16 %v555, %v554
        %v643 = vpack.c.b16 %v557, %v556
        %v644 = vpack.c.b16 %v559, %v558
        %v645 = vpack.c.b16 %v561, %v560
        %v646 = vpack.c.b16 %v563, %v562
        %v647 = vpack.c.b16 %v565, %v564
        %v648 = vpack.c.b16 %v567, %v566
        %v649 = vpack.c.b16 %v569, %v568
        %v650 = vpack.c.b16 %v571, %v570
        %v651 = vpack.c.b16 %v573, %v572
        %v652 = vpack.c.b16 %v575, %v574
        %v653 = vpack.c.b16 %v577, %v576
        %v654 = vpack.c.b16 %v579, %v578
        %v655 = vpack.c.b16 %v581, %v580
        %v656 = vpack.c.b16 %v583, %v582
        %v657 = vpack.c.b16 %v585, %v584
        %v658 = vpack.c.b16 %v587, %v586
        %v659 = vpack.c.b16 %v589, %v588
        %v660 = vpack.c.b16 %v591, %v590
        %v661 = vpack.c.b16 %v593, %v592
        %v662 = vpack.c.b16 %v595, %v594
        %v663 = vpack.c.b16 %v597, %v596
        %v664 = vpack.c.b16 %v599, %v598
        %v665 = vpack.c.b16 %v601, %v600
        %v666 = vpack.c.b16 %v603, %v602
        %v667 = vpack.c.b16 %v605, %v604
        %v668 = vpack.c.b16 %v607, %v606
        %v669 = vpack.c.b16 %v609, %v608
        %v670 = vpack.c.b16 %v611, %v610
        %v671 = vpack.c.b16 %v613, %v612
        %v672 = vpack.c.b16 %v615, %v614
        %v673 = vpack.c.b16 %v617, %v616
        %730 = vmatprep.subr.bf16.mxu0 0
        %731 = vmatpush1.bf16.msra.mxu0 %v618
        %732 = vmatprep.subr.bf16.mxu0 0
        %733 = vmatpush1.bf16.msra.mxu0 %v619
        %734 = vmatprep.subr.bf16.mxu0 0
        %735 = vmatpush1.bf16.msra.mxu0 %v620
        %736 = vmatprep.subr.bf16.mxu0 0
        %737 = vmatpush1.bf16.msra.mxu0 %v621
        %738 = vmatprep.subr.bf16.mxu0 0
        %739 = vmatpush1.bf16.msra.mxu0 %v622
        %740 = vmatprep.subr.bf16.mxu0 0
        %741 = vmatpush1.bf16.msra.mxu0 %v623
        %742 = vmatprep.subr.bf16.mxu0 0
        %743 = vmatpush1.bf16.msra.mxu0 %v624
        %744 = vmatprep.subr.bf16.mxu0 0
        %745 = vmatpush1.bf16.msra.mxu0 %v625
        %746 = vmatprep.subr.bf16.mxu0 0
        %747 = vmatpush1.bf16.msra.mxu0 %v626
        %748 = vmatprep.subr.bf16.mxu0 0
        %749 = vmatpush1.bf16.msra.mxu0 %v627
        %750 = vmatprep.subr.bf16.mxu0 0
        %751 = vmatpush1.bf16.msra.mxu0 %v628
        %752 = vmatprep.subr.bf16.mxu0 0
        %753 = vmatpush1.bf16.msra.mxu0 %v629
        %754 = vmatprep.subr.bf16.mxu0 0
        %755 = vmatpush1.bf16.msra.mxu0 %v630
        %756 = vmatprep.subr.bf16.mxu0 0
        %757 = vmatpush1.bf16.msra.mxu0 %v631
        %758 = vmatprep.subr.bf16.mxu0 0
        %759 = vmatpush1.bf16.msra.mxu0 %v632
        %760 = vmatprep.subr.bf16.mxu0 0
        %761 = vmatpush1.bf16.msra.mxu0 %v633
        %762 = vmatprep.mubr.bf16.mxu0 %v381
        %763 = vmatmul.mubr.bf16.gmra.mrb[0].mxu0 %v380
        %v764 = vpop.f32.mrb[0].mxu0
        %v765 = vadd.f32 0.0, %v764
        %v766 = vpop.f32.mrb[0].mxu0
        %v767 = vpop.f32.mrb[0].mxu0
        %v768 = vadd.f32 0.0, %v767
        %v769 = vpop.f32.mrb[0].mxu0
        %770 = vdwg.mxu0
        %771 = vmatprep.subr.bf16.mxu0 0
        %772 = vmatpush1.bf16.msra.mxu0 %v634
        %773 = vmatprep.subr.bf16.mxu0 0
        %774 = vmatpush1.bf16.msra.mxu0 %v635
        %775 = vmatprep.subr.bf16.mxu0 0
        %776 = vmatpush1.bf16.msra.mxu0 %v636
        %777 = vmatprep.subr.bf16.mxu0 0
        %778 = vmatpush1.bf16.msra.mxu0 %v637
        %779 = vmatprep.subr.bf16.mxu0 0
        %780 = vmatpush1.bf16.msra.mxu0 %v638
        %781 = vmatprep.subr.bf16.mxu0 0
        %782 = vmatpush1.bf16.msra.mxu0 %v639
        %783 = vmatprep.subr.bf16.mxu0 0
        %784 = vmatpush1.bf16.msra.mxu0 %v640
        %785 = vmatprep.subr.bf16.mxu0 0
        %786 = vmatpush1.bf16.msra.mxu0 %v641
        %787 = vmatprep.subr.bf16.mxu0 0
        %788 = vmatpush1.bf16.msra.mxu0 %v642
        %789 = vmatprep.subr.bf16.mxu0 0
        %790 = vmatpush1.bf16.msra.mxu0 %v643
        %791 = vmatprep.subr.bf16.mxu0 0
        %792 = vmatpush1.bf16.msra.mxu0 %v644
        %793 = vmatprep.subr.bf16.mxu0 0
        %794 = vmatpush1.bf16.msra.mxu0 %v645
        %795 = vmatprep.subr.bf16.mxu0 0
        %796 = vmatpush1.bf16.msra.mxu0 %v646
        %797 = vmatprep.subr.bf16.mxu0 0
        %798 = vmatpush1.bf16.msra.mxu0 %v647
        %799 = vmatprep.subr.bf16.mxu0 0
        %800 = vmatpush1.bf16.msra.mxu0 %v648
        %801 = vmatprep.subr.bf16.mxu0 0
        %802 = vmatpush1.bf16.msra.mxu0 %v649
        %803 = vmatprep.mubr.bf16.mxu0 %v383
        %804 = vmatmul.mubr.bf16.gmra.mrb[0].mxu0 %v382
        %v805 = vpop.f32.mrb[0].mxu0
        %v806 = vadd.f32 %v765, %v805
        %v807 = vpop.f32.mrb[0].mxu0
        %v808 = vpop.f32.mrb[0].mxu0
        %v809 = vadd.f32 %v768, %v808
        %v810 = vpop.f32.mrb[0].mxu0
        %811 = vdwg.mxu0
        %812 = vmatprep.subr.bf16.mxu0 0
        %813 = vmatpush1.bf16.msra.mxu0 %v650
        %814 = vmatprep.subr.bf16.mxu0 0
        %815 = vmatpush1.bf16.msra.mxu0 %v651
        %816 = vmatprep.subr.bf16.mxu0 0
        %817 = vmatpush1.bf16.msra.mxu0 %v652
        %818 = vmatprep.subr.bf16.mxu0 0
        %819 = vmatpush1.bf16.msra.mxu0 %v653
        %820 = vmatprep.subr.bf16.mxu0 0
        %821 = vmatpush1.bf16.msra.mxu0 %v654
        %822 = vmatprep.subr.bf16.mxu0 0
        %823 = vmatpush1.bf16.msra.mxu0 %v655
        %824 = vmatprep.subr.bf16.mxu0 0
        %825 = vmatpush1.bf16.msra.mxu0 %v656
        %826 = vmatprep.subr.bf16.mxu0 0
        %827 = vmatpush1.bf16.msra.mxu0 %v657
        %828 = vmatprep.subr.bf16.mxu0 0
        %829 = vmatpush1.bf16.msra.mxu0 %v658
        %830 = vmatprep.subr.bf16.mxu0 0
        %831 = vmatpush1.bf16.msra.mxu0 %v659
        %832 = vmatprep.subr.bf16.mxu0 0
        %833 = vmatpush1.bf16.msra.mxu0 %v660
        %834 = vmatprep.subr.bf16.mxu0 0
        %835 = vmatpush1.bf16.msra.mxu0 %v661
        %836 = vmatprep.subr.bf16.mxu0 0
        %837 = vmatpush1.bf16.msra.mxu0 %v662
        %838 = vmatprep.subr.bf16.mxu0 0
        %839 = vmatpush1.bf16.msra.mxu0 %v663
        %840 = vmatprep.subr.bf16.mxu0 0
        %841 = vmatpush1.bf16.msra.mxu0 %v664
        %842 = vmatprep.subr.bf16.mxu0 0
        %843 = vmatpush1.bf16.msra.mxu0 %v665
        %844 = vmatprep.mubr.bf16.mxu0 %v385
        %845 = vmatmul.mubr.bf16.gmra.mrb[0].mxu0 %v384
        %v846 = vpop.f32.mrb[0].mxu0
        %v847 = vadd.f32 %v806, %v846
        %v848 = vpop.f32.mrb[0].mxu0
        %v849 = vpop.f32.mrb[0].mxu0
        %v850 = vadd.f32 %v809, %v849
        %v851 = vpop.f32.mrb[0].mxu0
        %852 = vdwg.mxu0
        %853 = vmatprep.subr.bf16.mxu0 0
        %854 = vmatpush1.bf16.msra.mxu0 %v666
        %855 = vmatprep.subr.bf16.mxu0 0
        %856 = vmatpush1.bf16.msra.mxu0 %v667
        %857 = vmatprep.subr.bf16.mxu0 0
        %858 = vmatpush1.bf16.msra.mxu0 %v668
        %859 = vmatprep.subr.bf16.mxu0 0
        %860 = vmatpush1.bf16.msra.mxu0 %v669
        %861 = vmatprep.subr.bf16.mxu0 0
        %862 = vmatpush1.bf16.msra.mxu0 %v670
        %863 = vmatprep.subr.bf16.mxu0 0
        %864 = vmatpush1.bf16.msra.mxu0 %v671
        %865 = vmatprep.subr.bf16.mxu0 0
        %866 = vmatpush1.bf16.msra.mxu0 %v672
        %867 = vmatprep.subr.bf16.mxu0 0
        %868 = vmatpush1.bf16.msra.mxu0 %v673
        %869 = vmatprep.subr.bf16.mxu0 0
        %870 = vmatpush1.bf16.msra.mxu0 0
        %871 = vmatprep.subr.bf16.mxu0 0
        %872 = vmatpush1.bf16.msra.mxu0 0
        %873 = vmatprep.subr.bf16.mxu0 0
        %874 = vmatpush1.bf16.msra.mxu0 0
        %875 = vmatprep.subr.bf16.mxu0 0
        %876 = vmatpush1.bf16.msra.mxu0 0
        %877 = vmatprep.subr.bf16.mxu0 0
        %878 = vmatpush1.bf16.msra.mxu0 0
        %879 = vmatprep.subr.bf16.mxu0 0
        %880 = vmatpush1.bf16.msra.mxu0 0
        %881 = vmatprep.subr.bf16.mxu0 0
        %882 = vmatpush1.bf16.msra.mxu0 0
        %883 = vmatprep.subr.bf16.mxu0 0
        %884 = vmatpush1.bf16.msra.mxu0 0
        %885 = vmatprep.mubr.bf16.mxu0 0
        %886 = vmatmul.mubr.bf16.gmra.mrb[0].mxu0 %v386
        %v887 = vpop.f32.mrb[0].mxu0
        %v888 = vadd.f32 %v847, %v887
        %v889 = vpop.f32.mrb[0].mxu0
        %v890 = vpop.f32.mrb[0].mxu0
        %v891 = vadd.f32 %v850, %v890
        %v892 = vpop.f32.mrb[0].mxu0
        %893 = vdwg.mxu0
        %v894 = vadd.f32 %v236, %v888
        %v895 = vadd.f32 %v237, %v891
        %896 = vst [vmem:[#allocation2] sm:$0xff] %v894
        %897 = vst [vmem:[#allocation2 + $0x8] sm:$0xff] %v895
        %p898 = scmp.eq.s32.totalorder %s18, 27
        // Predicated region
        $region59: #{frequency_discriminator.11} parent=49 // pred_check
          %p899 = pneg %p898
        $region60: #{frequency_discriminator.11} parent=49 // pred_check_branch
          %901 = sbr.rel (%p899) target = $region62
        $region61: #{frequency_discriminator.11} parent=49 // pred_region
          %v902 = vld [vmem:[#allocation2] sm:$0xff]
          %v903 = vld [vmem:[#allocation2 + $0x8] sm:$0xff]
          %904 = vst [vmem:[%s227] sm:$0xff] %v902
          %905 = vst [vmem:[%s227 + $0x8] sm:$0xff] %v903
        $region62: #{frequency_discriminator.11} parent=49 // pred_fallthru
          _
        %s906 = smul.u32 2, %s17
        %p907 = scmp.lt.s32.totalorder %s906, 1
        %s908 = scalar_select %p907, %s906, 1
        %s909 = smul.addr %s908, 8
        %s910 = scalar_lea.vmem %s2, %s909
        // Predicated region
        $region63: #{frequency_discriminator.11} parent=49 // pred_check
          %p911 = pneg %p97
        $region64: #{frequency_discriminator.11} parent=49 // pred_check_branch
          %913 = sbr.rel (%p911) target = $region66
        $region65: #{frequency_discriminator.11} parent=49 // pred_region
          %s914 = smul.u32 2, %s17
        $region66: #{frequency_discriminator.11} parent=49 // pred_fallthru
          _
        // Predicated region
        $region67: #{frequency_discriminator.11} parent=49 // pred_check
          %p915 = pneg %p97
        $region68: #{frequency_discriminator.11} parent=49 // pred_check_branch
          %917 = sbr.rel (%p915) target = $region70
        $region69: #{frequency_discriminator.11} parent=49 // pred_region
          %s918 = smul.u32 2, %s17
          %p919 = scmp.lt.s32.totalorder %s918, 1
          %s920 = scalar_select %p919, %s918, 1
          %s921 = smul.addr %s920, 8
          %s922 = scalar_lea.vmem %s2, %s921
        $region70: #{frequency_discriminator.11} parent=49 // pred_fallthru
          _
      $region50: #{frequency_discriminator.11} parent=5 // pred_fallthru
        _
      %p923 = scmp.le.s32.totalorder 2, %s8
      // Predicated region
      $region71: #{frequency_discriminator.11} parent=5 // pred_check
        %p924 = pneg %p923
      $region72: #{frequency_discriminator.11} parent=5 // pred_check_branch
        %926 = sbr.rel (%p924) target = $region74
      $region73: #{frequency_discriminator.11} parent=5 // pred_region
        %s927 = ssub.s32 %s8, 2
      $region74: #{frequency_discriminator.11} parent=5 // pred_fallthru
        _
    $region6: #{frequency_discriminator.11} parent=1 // loop_footer
      %s12 = sadd.s32 1, %s8
    $region7: #{frequency_discriminator.11} parent=1 // loop_footer_branch
      %7 = sbr.rel target = $region3
    $region8: #{frequency_discriminator.11} parent=1 // loop_exit
      _

</llo_original>
